<compile_context>
chip_gen: v7x
topology: tpu7x:2x2x1
jax: 0.10.0
libtpu: 0.0.40
codegen_flags: <defaults>
</compile_context>

<pallas_src>
import functools

import jax
import jax.numpy as jnp
from jax.experimental import pallas as pl
from jax.experimental.pallas import tpu as pltpu

_BN_EPS = 1e-5
_LANE = 128      # channel (lane) padding
_TM = 512        # output rows per grid step
_TB = 128        # halo input block rows (divides _TM)


def _round_up(x, m):
    return (x + m - 1) // m * m


# ----------------------------------------------------------------------------
# Slab geometry helpers (all glue here is tiny / ~1x copies, no 9x blow-up)
# ----------------------------------------------------------------------------
def _geom(N, H, W):
    Hp, Wp = H + 2, W + 2
    R = N * Hp * Wp
    R_pad = _round_up(R, _TM)
    return {"N": N, "H": H, "W": W, "Hp": Hp, "Wp": Wp,
            "R": R, "R_pad": R_pad, "T": R_pad // _TM}


def _slab_from_nhwc(x):
    N, H, W, C = x.shape
    assert C <= _LANE  # TODO(synk): channel tiling for C > 128
    g = _geom(N, H, W)
    xp = jnp.pad(x, ((0, 0), (1, 1), (1, 1), (0, _LANE - C)))
    flat = xp.reshape(g["R"], _LANE)
    flat = jnp.pad(flat, ((0, g["R_pad"] - g["R"]), (0, 0)))
    out = dict(g)
    out["data"] = flat.astype(jnp.bfloat16)
    return out


def _interior_mask(g):
    """(R_pad, 1) f32: 1.0 for real (non-border, non-tail) pixel rows."""
    r = jnp.arange(g["R_pad"], dtype=jnp.int32)
    hw = g["Hp"] * g["Wp"]
    rem = r % hw
    h = rem // g["Wp"]
    w = rem % g["Wp"]
    m = (r < g["R"]) & (h >= 1) & (h <= g["H"]) & (w >= 1) & (w <= g["W"])
    return m.astype(jnp.float32).reshape(-1, 1)


def _phase_slabs(in_slab, out_g):
    """Space-to-depth: 4 phase slabs in the OUTPUT slab geometry (for stride 2)."""
    N = in_slab["N"]
    x = in_slab["data"][: in_slab["R"]].reshape(
        N, in_slab["Hp"], in_slab["Wp"], _LANE)
    Hq, Wq = out_g["Hp"], out_g["Wp"]
    phases = {}
    for a in (0, 1):
        for b in (0, 1):
            ph = x[:, a::2, b::2, :]
            ph = jnp.pad(ph, ((0, 0), (0, Hq - ph.shape[1]),
                              (0, Wq - ph.shape[2]), (0, 0)))
            ph = ph.reshape(N * Hq * Wq, _LANE)
            ph = jnp.pad(ph, ((0, out_g["R_pad"] - ph.shape[0]), (0, 0)))
            phases[(a, b)] = ph
    return phases


# tap = (source slab array, constant row offset, weight tap index)
def _taps_3x3_s1(slab):
    Wp = slab["Wp"]
    return [(slab["data"], (kh - 1) * Wp + (kw - 1), kh * 3 + kw)
            for kh in range(3) for kw in range(3)]


def _taps_3x3_s2(phases, out_g):
    Wq = out_g["Wp"]
    taps = []
    for kh in range(3):
        for kw in range(3):
            taps.append((phases[(kh & 1, kw & 1)],
                         (kh // 2 - 1) * Wq + (kw // 2 - 1),
                         kh * 3 + kw))
    return taps


def _taps_1x1_s2(phases, out_g):
    return [(phases[(1, 1)], -out_g["Wp"] - 1, 0)]


def _conv_w_taps(w):
    """(Cout, Cin, KH, KW) torch layout -> (KH*KW, 128, 128) bf16 tap weights."""
    Cout, Cin, KH, KW = w.shape
    assert Cin <= _LANE and Cout <= _LANE  # TODO(synk): channel tiling > 128
    wt = jnp.transpose(w, (2, 3, 1, 0)).reshape(KH * KW, Cin, Cout)
    out = jnp.zeros((KH * KW, _LANE, _LANE), jnp.float32)
    out = out.at[:, :Cin, :Cout].set(wt)
    return out.astype(jnp.bfloat16)


# ----------------------------------------------------------------------------
# Pallas kernels
# ----------------------------------------------------------------------------
def _conv_kernel(*refs, n_srcs, B, n_side, taps):
    n_in = n_srcs * B
    x_refs = refs[:n_in]
    w_ref = refs[n_in]
    mask_ref = refs[n_in + 1]
    out_ref = refs[n_in + 2]
    psum_ref = refs[n_in + 3]
    psq_ref = refs[n_in + 4]
    win_refs = refs[n_in + 5: n_in + 5 + n_srcs]
    acc_ref = refs[n_in + 5 + n_srcs]

    # Stage halo blocks into one contiguous VMEM window per source slab.
    for s in range(n_srcs):
        for i in range(B):
            win_refs[s][i * _TB:(i + 1) * _TB, :] = x_refs[s * B + i][...]

    base = n_side * _TB
    for idx, (sidx, off, k) in enumerate(taps):
        xw = win_refs[sidx][base + off: base + off + _TM, :]
        contrib = jnp.dot(xw, w_ref[k], preferred_element_type=jnp.float32)
        if idx == 0:
            acc_ref[...] = contrib
        else:
            acc_ref[...] += contrib

    a = acc_ref[...] * mask_ref[...]          # zero the border / tail rows
    out_ref[...] = a.astype(out_ref.dtype)
    s_ = jnp.sum(a, axis=0, keepdims=True)    # fused BN partial stats
    q_ = jnp.sum(a * a, axis=0, keepdims=True)
    psum_ref[...] = jnp.broadcast_to(s_, psum_ref.shape)
    psq_ref[...] = jnp.broadcast_to(q_, psq_ref.shape)


def _maxpool_kernel(*refs, n_srcs, B, n_side, taps):
    n_in = n_srcs * B
    x_refs = refs[:n_in]
    mask_ref = refs[n_in]
    out_ref = refs[n_in + 1]
    win_refs = refs[n_in + 2: n_in + 2 + n_srcs]
    acc_ref = refs[n_in + 2 + n_srcs]

    for s in range(n_srcs):
        for i in range(B):
            win_refs[s][i * _TB:(i + 1) * _TB, :] = x_refs[s * B + i][...]

    base = n_side * _TB
    for idx, (sidx, off, _k) in enumerate(taps):
        xw = win_refs[sidx][base + off: base + off + _TM, :].astype(jnp.float32)
        if idx == 0:
            acc_ref[...] = xw
        else:
            acc_ref[...] = jnp.maximum(acc_ref[...], xw)
    out_ref[...] = (acc_ref[...] * mask_ref[...]).astype(out_ref.dtype)


def _affine_kernel(x_ref, s_ref, b_ref, m_ref, o_ref, *, relu):
    y = x_ref[...].astype(jnp.float32) * s_ref[...] + b_ref[...]
    if relu:
        y = jnp.maximum(y, 0.0)
    o_ref[...] = (y * m_ref[...]).astype(o_ref.dtype)


def _affine_res_kernel(x_ref, s_ref, b_ref, m_ref, r_ref, o_ref, *, relu):
    y = (x_ref[...].astype(jnp.float32) * s_ref[...] + b_ref[...]
         + r_ref[...].astype(jnp.float32))
    if relu:
        y = jnp.maximum(y, 0.0)
    o_ref[...] = (y * m_ref[...]).astype(o_ref.dtype)


def _head_kernel(p_ref, x_ref, w_ref, b_ref, o_ref, acc_ref):
    @pl.when(pl.program_id(0) == 0)
    def _():
        acc_ref[...] = jnp.zeros_like(acc_ref)
    acc_ref[...] += jnp.dot(p_ref[...], x_ref[...].astype(jnp.float32),
                            preferred_element_type=jnp.float32)

    @pl.when(pl.program_id(0) == pl.num_programs(0) - 1)
    def _():
        o_ref[...] = jnp.dot(acc_ref[...], w_ref[...],
                             preferred_element_type=jnp.float32) + b_ref[...]


# ----------------------------------------------------------------------------
# pallas_call wrappers
# ----------------------------------------------------------------------------
def _make_halo_map(step, delta, nmax):
    def _map(t):
        return (jnp.clip(t * step + delta, 0, nmax), 0)
    return _map


def _tap_inputs(taps, R_pad):
    """Dedup source slabs, build halo-block in_specs / args, remap taps."""
    srcs, src_ids = [], []
    for arr, _off, _k in taps:
        idx = None
        for i, a in enumerate(srcs):
            if a is arr:
                idx = i
                break
        if idx is None:
            srcs.append(arr)
            idx = len(srcs) - 1
        src_ids.append(idx)
    tap_spec = tuple((src_ids[i], int(taps[i][1]), int(taps[i][2]))
                     for i in range(len(taps)))
    max_off = max(abs(int(o)) for _, o, _ in taps)
    n_side = -(-max_off // _TB)               # ceil
    B = _TM // _TB + 2 * n_side
    step = _TM // _TB
    n_blocks = R_pad // _TB
    in_specs, args = [], []
    for arr in srcs:
        assert arr.shape[0] == R_pad
        for j in range(B):
            in_specs.append(pl.BlockSpec(
                (_TB, _LANE), _make_halo_map(step, j - n_side, n_blocks - 1)))
            args.append(arr)
    return args, in_specs, tap_spec, len(srcs), B, n_side


def _pallas_conv(taps, w_taps, out_g, mask):
    R_pad, T = out_g["R_pad"], out_g["T"]
    args, in_specs, tap_spec, n_srcs, B, n_side = _tap_inputs(taps, R_pad)
    KK = w_taps.shape[0]
    in_specs = in_specs + [
        pl.BlockSpec((KK, _LANE, _LANE), lambda t: (0, 0, 0)),
        pl.BlockSpec((_TM, 1), lambda t: (t, 0)),
    ]
    args = args + [w_taps, mask]
    kernel = functools.partial(_conv_kernel, n_srcs=n_srcs, B=B,
                               n_side=n_side, taps=tap_spec)
    out_shape = (jax.ShapeDtypeStruct((R_pad, _LANE), jnp.bfloat16),
                 jax.ShapeDtypeStruct((T * 8, _LANE), jnp.float32),
                 jax.ShapeDtypeStruct((T * 8, _LANE), jnp.float32))
    out_specs = (pl.BlockSpec((_TM, _LANE), lambda t: (t, 0)),
                 pl.BlockSpec((8, _LANE), lambda t: (t, 0)),
                 pl.BlockSpec((8, _LANE), lambda t: (t, 0)))
    scratch = ([pltpu.VMEM((B * _TB, _LANE), jnp.bfloat16) for _ in range(n_srcs)]
               + [pltpu.VMEM((_TM, _LANE), jnp.float32)])
    return pl.pallas_call(
        kernel, out_shape=out_shape, grid=(T,),
        in_specs=in_specs, out_specs=out_specs, scratch_shapes=scratch,
        compiler_params=pltpu.CompilerParams(dimension_semantics=("parallel",)),
    )(*args)


def _pallas_affine(x, scale, shift, mask, res, relu):
    R_pad = x.shape[0]
    T = R_pad // _TM
    in_specs = [pl.BlockSpec((_TM, _LANE), lambda t: (t, 0)),
                pl.BlockSpec((1, _LANE), lambda t: (0, 0)),
                pl.BlockSpec((1, _LANE), lambda t: (0, 0)),
                pl.BlockSpec((_TM, 1), lambda t: (t, 0))]
    args = [x, scale, shift, mask]
    if res is not None:
        in_specs.append(pl.BlockSpec((_TM, _LANE), lambda t: (t, 0)))
        args.append(res)
        kernel = functools.partial(_affine_res_kernel, relu=relu)
    else:
        kernel = functools.partial(_affine_kernel, relu=relu)
    return pl.pallas_call(
        kernel,
        out_shape=jax.ShapeDtypeStruct((R_pad, _LANE), jnp.bfloat16),
        grid=(T,),
        in_specs=in_specs,
        out_specs=pl.BlockSpec((_TM, _LANE), lambda t: (t, 0)),
        compiler_params=pltpu.CompilerParams(dimension_semantics=("parallel",)),
    )(*args)


def _pallas_maxpool(taps, out_g):
    mask = _interior_mask(out_g)
    R_pad, T = out_g["R_pad"], out_g["T"]
    args, in_specs, tap_spec, n_srcs, B, n_side = _tap_inputs(taps, R_pad)
    in_specs = in_specs + [pl.BlockSpec((_TM, 1), lambda t: (t, 0))]
    args = args + [mask]
    kernel = functools.partial(_maxpool_kernel, n_srcs=n_srcs, B=B,
                               n_side=n_side, taps=tap_spec)
    out = pl.pallas_call(
        kernel,
        out_shape=jax.ShapeDtypeStruct((R_pad, _LANE), jnp.bfloat16),
        grid=(T,),
        in_specs=in_specs,
        out_specs=pl.BlockSpec((_TM, _LANE), lambda t: (t, 0)),
        scratch_shapes=([pltpu.VMEM((B * _TB, _LANE), jnp.bfloat16)
                         for _ in range(n_srcs)]
                        + [pltpu.VMEM((_TM, _LANE), jnp.float32)]),
        compiler_params=pltpu.CompilerParams(dimension_semantics=("parallel",)),
    )(*args)
    slab = dict(out_g)
    slab["data"] = out
    return slab


def _conv_bn(taps, w_taps, out_g, gamma, beta, relu, res=None):
    """Conv (tap-accumulated matmuls, fused stats) + BatchNorm apply (+res,+relu)."""
    mask = _interior_mask(out_g)
    conv_out, ps, pq = _pallas_conv(taps, w_taps, out_g, mask)
    T = out_g["T"]
    s = ps.reshape(T, 8, _LANE)[:, 0, :].sum(axis=0)
    q = pq.reshape(T, 8, _LANE)[:, 0, :].sum(axis=0)
    m = float(out_g["N"] * out_g["H"] * out_g["W"])
    mean = s / m
    # TODO(synk): E[x^2]-mean^2 loses precision for very large N*H*W; a two-pass
    # or compensated variance would track PyTorch more closely at ImageNet scale.
    var = jnp.maximum(q / m - mean * mean, 0.0)
    gp = jnp.zeros((_LANE,), jnp.float32).at[: gamma.shape[0]].set(gamma)
    bp = jnp.zeros((_LANE,), jnp.float32).at[: beta.shape[0]].set(beta)
    inv = gp / jnp.sqrt(var + _BN_EPS)
    scale = inv.reshape(1, _LANE)
    shift = (bp - mean * inv).reshape(1, _LANE)
    y = _pallas_affine(conv_out, scale, shift, mask, res, relu)
    out = dict(out_g)
    out["data"] = y
    return out


def _pallas_head(slab, fc_w, fc_b):
    """Global average pool (as a masked matmul) + FC, tiled over slab rows."""
    num_classes = fc_w.shape[1]
    N = slab["N"]
    assert N <= 8 and num_classes <= _LANE
    R_pad, R, T = slab["R_pad"], slab["R"], slab["T"]
    NP, CLP = 8, _LANE
    r = jnp.arange(R_pad, dtype=jnp.int32)
    img = r // (slab["Hp"] * slab["Wp"])
    valid = (r < R).astype(jnp.float32)
    P = (img[None, :] == jnp.arange(NP, dtype=jnp.int32)[:, None]).astype(jnp.float32)
    P = P * valid[None, :] / float(slab["H"] * slab["W"])
    wp = jnp.zeros((_LANE, CLP), jnp.float32).at[: fc_w.shape[0], :num_classes].set(fc_w)
    bp = jnp.zeros((1, CLP), jnp.float32).at[0, :num_classes].set(fc_b)
    out = pl.pallas_call(
        _head_kernel,
        out_shape=jax.ShapeDtypeStruct((NP, CLP), jnp.float32),
        grid=(T,),
        in_specs=[pl.BlockSpec((NP, _TM), lambda t: (0, t)),
                  pl.BlockSpec((_TM, _LANE), lambda t: (t, 0)),
                  pl.BlockSpec((_LANE, CLP), lambda t: (0, 0)),
                  pl.BlockSpec((1, CLP), lambda t: (0, 0))],
        out_specs=pl.BlockSpec((NP, CLP), lambda t: (0, 0)),
        scratch_shapes=[pltpu.VMEM((NP, _LANE), jnp.float32)],
        compiler_params=pltpu.CompilerParams(dimension_semantics=("arbitrary",)),
    )(P, slab["data"], wp, bp)
    return out[:N, :num_classes]


# ----------------------------------------------------------------------------
# Parameter init (deterministic; mirrors ResNet._weights_init)
# ----------------------------------------------------------------------------
def _kaiming_conv(key, cout, cin, kh, kw):
    std = (2.0 / (cout * kh * kw)) ** 0.5     # fan_out, relu
    return std * jax.random.normal(key, (cout, cin, kh, kw), jnp.float32)


def _init_block(key, cin, cout, stride):
    k1, k2, k3 = jax.random.split(key, 3)
    p = {
        "stride": stride,
        "w1": _kaiming_conv(k1, cout, cin, 3, 3),
        "g1": jnp.ones((cout,), jnp.float32), "b1": jnp.zeros((cout,), jnp.float32),
        "w2": _kaiming_conv(k2, cout, cout, 3, 3),
        "g2": jnp.zeros((cout,), jnp.float32),   # bn2.weight zero-init
        "b2": jnp.zeros((cout,), jnp.float32),
    }
    if stride != 1 or cin != cout:               # projection shortcut
        p["ws"] = _kaiming_conv(k3, cout, cin, 1, 1)
        p["gs"] = jnp.ones((cout,), jnp.float32)
        p["bs"] = jnp.zeros((cout,), jnp.float32)
    return p


def init_resnet(key, input_channels, ocl, depths, num_classes, c1_kernel):
    n_blocks = sum(depths)
    keys = jax.random.split(key, 2 + n_blocks)
    params = {
        "conv1": _kaiming_conv(keys[0], ocl[0], input_channels, c1_kernel, c1_kernel),
        "bn_g": jnp.ones((ocl[0],), jnp.float32),
        "bn_b": jnp.zeros((ocl[0],), jnp.float32),
        "blocks": [],
    }
    channels = ocl[0]
    ki = 1
    for stage, (cout, depth) in enumerate(zip(ocl, depths)):
        first_stride = 1 if stage == 0 else 2
        strides = [first_stride] + [1] * (depth - 1)
        for s in strides:
            params["blocks"].append(_init_block(keys[ki], channels, cout, s))
            channels = cout
            ki += 1
    params["fc_w"] = (1.0 / (ocl[3] ** 0.5)) * jax.random.normal(
        keys[-1], (ocl[3], num_classes), jnp.float32)
    params["fc_b"] = jnp.zeros((num_classes,), jnp.float32)
    return params


# ----------------------------------------------------------------------------
# Forward
# ----------------------------------------------------------------------------
def basic_block(x_slab, p):
    stride = p["stride"]
    N, H, W = x_slab["N"], x_slab["H"], x_slab["W"]
    phases = None
    if stride == 1:
        out_g = _geom(N, H, W)
        taps1 = _taps_3x3_s1(x_slab)
    else:
        assert H % 2 == 0 and W % 2 == 0  # TODO(synk): odd spatial dims at stride 2
        out_g = _geom(N, H // 2, W // 2)
        phases = _phase_slabs(x_slab, out_g)
        taps1 = _taps_3x3_s2(phases, out_g)

    h1 = _conv_bn(taps1, _conv_w_taps(p["w1"]), out_g, p["g1"], p["b1"], relu=True)

    if "ws" in p:
        taps_s = ([(x_slab["data"], 0, 0)] if stride == 1
                  else _taps_1x1_s2(phases, out_g))
        sc = _conv_bn(taps_s, _conv_w_taps(p["ws"]), out_g, p["gs"], p["bs"],
                      relu=False)
        res = sc["data"]
    else:
        res = x_slab["data"]

    taps2 = _taps_3x3_s1(h1)
    return _conv_bn(taps2, _conv_w_taps(p["w2"]), out_g, p["g2"], p["b2"],
                    relu=True, res=res)


def resnet_forward(params, x_nchw, c1_stride, c1_pad, use_maxpool):
    assert params["conv1"].shape[2] == 3 and c1_pad == 1  # TODO(synk): 7x7 stem
    x = jnp.transpose(x_nchw, (0, 2, 3, 1)).astype(jnp.float32)   # NCHW -> NHWC
    slab = _slab_from_nhwc(x)
    N, H, W = slab["N"], slab["H"], slab["W"]

    if c1_stride == 1:
        g0 = _geom(N, H, W)
        taps = _taps_3x3_s1(slab)
    else:
        assert H % 2 == 0 and W % 2 == 0
        g0 = _geom(N, H // 2, W // 2)
        taps = _taps_3x3_s2(_phase_slabs(slab, g0), g0)
    cur = _conv_bn(taps, _conv_w_taps(params["conv1"]), g0,
                   params["bn_g"], params["bn_b"], relu=True)

    if use_maxpool:
        assert cur["H"] % 2 == 0 and cur["W"] % 2 == 0
        gp = _geom(N, cur["H"] // 2, cur["W"] // 2)
        phases = _phase_slabs(cur, gp)
        cur = _pallas_maxpool(_taps_3x3_s2(phases, gp), gp)

    for p in params["blocks"]:
        cur = basic_block(cur, p)

    return _pallas_head(cur, params["fc_w"], params["fc_b"])


if __name__ == "__main__":
    key = jax.random.PRNGKey(0)
    kp, kx = jax.random.split(key)

    input_channels = 3
    output_channels_list = [16, 32, 64, 128]
    layer_depths = [1, 1, 1, 1]
    num_classes = 10
    c1_kernel, c1_stride, c1_pad = 3, 1, 1
    use_maxpool = True

    params = init_resnet(kp, input_channels, output_channels_list,
                         layer_depths, num_classes, c1_kernel)
    x = jax.random.normal(kx, (2, input_channels, 32, 32), jnp.float32)

    logits = resnet_forward(params, x, c1_stride, c1_pad, use_maxpool)
    jax.block_until_ready(logits)
    assert logits.shape == (2, num_classes), logits.shape
    assert bool(jnp.all(jnp.isfinite(logits)))
    print("KERNEL_OK")
</pallas_src>

<mosaic_0001>
module attributes {stable_mosaic.version = 11 : i64} {
  func.func @_conv_kernel(%arg0: i32, %arg1: memref<128x128xbf16, #tpu.memory_space<vmem>>, %arg2: memref<128x128xbf16, #tpu.memory_space<vmem>>, %arg3: memref<128x128xbf16, #tpu.memory_space<vmem>>, %arg4: memref<128x128xbf16, #tpu.memory_space<vmem>>, %arg5: memref<128x128xbf16, #tpu.memory_space<vmem>>, %arg6: memref<128x128xbf16, #tpu.memory_space<vmem>>, %arg7: memref<9x128x128xbf16, #tpu.memory_space<vmem>>, %arg8: memref<512x1xf32, #tpu.memory_space<vmem>>, %arg9: memref<512x128xbf16, #tpu.memory_space<vmem>>, %arg10: memref<8x128xf32, #tpu.memory_space<vmem>>, %arg11: memref<8x128xf32, #tpu.memory_space<vmem>>, %arg12: memref<768x128xbf16, #tpu.memory_space<vmem>>, %arg13: memref<512x128xf32, #tpu.memory_space<vmem>>) attributes {dimension_semantics = [#tpu.dimension_semantics<parallel>], iteration_bounds = array<i64: 5>, scalar_prefetch = 0 : i64, scratch_operands = 2 : i64, tpu.core_type = #tpu.core_type<tc>, window_params = [{transform_indices = @transform_0, window_bounds = array<i64: 128, 128>}, {transform_indices = @transform_1, window_bounds = array<i64: 128, 128>}, {transform_indices = @transform_2, window_bounds = array<i64: 128, 128>}, {transform_indices = @transform_3, window_bounds = array<i64: 128, 128>}, {transform_indices = @transform_4, window_bounds = array<i64: 128, 128>}, {transform_indices = @transform_5, window_bounds = array<i64: 128, 128>}, {pipeline_mode = #tpu.pipeline_mode<synchronous>, transform_indices = @transform_6, window_bounds = array<i64: 9, 128, 128>}, {transform_indices = @transform_7, window_bounds = array<i64: 512, 1>}, {transform_indices = @transform_8, window_bounds = array<i64: 512, 128>}, {transform_indices = @transform_9, window_bounds = array<i64: 8, 128>}, {transform_indices = @transform_10, window_bounds = array<i64: 8, 128>}]} {
    %c0 = arith.constant 0 : index
    %c0_0 = arith.constant 0 : index
    %0 = vector.load %arg1[%c0, %c0_0] : memref<128x128xbf16, #tpu.memory_space<vmem>>, vector<128x128xbf16>
    %c0_1 = arith.constant 0 : index
    %c0_2 = arith.constant 0 : index
    %1 = vector.load %arg12[%c0_1, %c0_2] : memref<768x128xbf16, #tpu.memory_space<vmem>>, vector<128x128xbf16>
    tpu.vector_store %arg12[%c0_1, %c0_2], %0 {strides = array<i32>} : memref<768x128xbf16, #tpu.memory_space<vmem>>, vector<128x128xbf16>,
    %c0_3 = arith.constant 0 : index
    %c0_4 = arith.constant 0 : index
    %2 = vector.load %arg2[%c0_3, %c0_4] : memref<128x128xbf16, #tpu.memory_space<vmem>>, vector<128x128xbf16>
    %c128 = arith.constant 128 : index
    %c0_5 = arith.constant 0 : index
    %3 = vector.load %arg12[%c128, %c0_5] : memref<768x128xbf16, #tpu.memory_space<vmem>>, vector<128x128xbf16>
    tpu.vector_store %arg12[%c128, %c0_5], %2 {strides = array<i32>} : memref<768x128xbf16, #tpu.memory_space<vmem>>, vector<128x128xbf16>,
    %c0_6 = arith.constant 0 : index
    %c0_7 = arith.constant 0 : index
    %4 = vector.load %arg3[%c0_6, %c0_7] : memref<128x128xbf16, #tpu.memory_space<vmem>>, vector<128x128xbf16>
    %c256 = arith.constant 256 : index
    %c0_8 = arith.constant 0 : index
    %5 = vector.load %arg12[%c256, %c0_8] : memref<768x128xbf16, #tpu.memory_space<vmem>>, vector<128x128xbf16>
    tpu.vector_store %arg12[%c256, %c0_8], %4 {strides = array<i32>} : memref<768x128xbf16, #tpu.memory_space<vmem>>, vector<128x128xbf16>,
    %c0_9 = arith.constant 0 : index
    %c0_10 = arith.constant 0 : index
    %6 = vector.load %arg4[%c0_9, %c0_10] : memref<128x128xbf16, #tpu.memory_space<vmem>>, vector<128x128xbf16>
    %c384 = arith.constant 384 : index
    %c0_11 = arith.constant 0 : index
    %7 = vector.load %arg12[%c384, %c0_11] : memref<768x128xbf16, #tpu.memory_space<vmem>>, vector<128x128xbf16>
    tpu.vector_store %arg12[%c384, %c0_11], %6 {strides = array<i32>} : memref<768x128xbf16, #tpu.memory_space<vmem>>, vector<128x128xbf16>,
    %c0_12 = arith.constant 0 : index
    %c0_13 = arith.constant 0 : index
    %8 = vector.load %arg5[%c0_12, %c0_13] : memref<128x128xbf16, #tpu.memory_space<vmem>>, vector<128x128xbf16>
    %c512 = arith.constant 512 : index
    %c0_14 = arith.constant 0 : index
    %9 = vector.load %arg12[%c512, %c0_14] : memref<768x128xbf16, #tpu.memory_space<vmem>>, vector<128x128xbf16>
    tpu.vector_store %arg12[%c512, %c0_14], %8 {strides = array<i32>} : memref<768x128xbf16, #tpu.memory_space<vmem>>, vector<128x128xbf16>,
    %c0_15 = arith.constant 0 : index
    %c0_16 = arith.constant 0 : index
    %10 = vector.load %arg6[%c0_15, %c0_16] : memref<128x128xbf16, #tpu.memory_space<vmem>>, vector<128x128xbf16>
    %c640 = arith.constant 640 : index
    %c0_17 = arith.constant 0 : index
    %11 = vector.load %arg12[%c640, %c0_17] : memref<768x128xbf16, #tpu.memory_space<vmem>>, vector<128x128xbf16>
    tpu.vector_store %arg12[%c640, %c0_17], %10 {strides = array<i32>} : memref<768x128xbf16, #tpu.memory_space<vmem>>, vector<128x128xbf16>,
    %c93 = arith.constant 93 : index
    %c0_18 = arith.constant 0 : index
    %12 = vector.load %arg12[%c93, %c0_18] : memref<768x128xbf16, #tpu.memory_space<vmem>>, vector<512x128xbf16>
    %c0_19 = arith.constant 0 : index
    %c0_20 = arith.constant 0 : index
    %c0_21 = arith.constant 0 : index
    %13 = vector.load %arg7[%c0_19, %c0_20, %c0_21] : memref<9x128x128xbf16, #tpu.memory_space<vmem>>, vector<1x128x128xbf16>
    %14 = vector.shape_cast %13 : vector<1x128x128xbf16> to vector<128x128xbf16>
    %cst = arith.constant dense<0.000000e+00> : vector<512x128xf32>
    %15 = tpu.matmul %12, %14, %cst {dimension_numbers = #tpu.dot_dimension_numbers<[1], [0], [0], [1], [0, 0, 1, 1], [], []>} : vector<512x128xbf16>, vector<128x128xbf16>, vector<512x128xf32> -> vector<512x128xf32>
    %c0_22 = arith.constant 0 : index
    %c0_23 = arith.constant 0 : index
    %16 = vector.load %arg13[%c0_22, %c0_23] : memref<512x128xf32, #tpu.memory_space<vmem>>, vector<512x128xf32>
    tpu.vector_store %arg13[%c0_22, %c0_23], %15 {strides = array<i32>} : memref<512x128xf32, #tpu.memory_space<vmem>>, vector<512x128xf32>,
    %c94 = arith.constant 94 : index
    %c0_24 = arith.constant 0 : index
    %17 = vector.load %arg12[%c94, %c0_24] : memref<768x128xbf16, #tpu.memory_space<vmem>>, vector<512x128xbf16>
    %c1 = arith.constant 1 : index
    %c0_25 = arith.constant 0 : index
    %c0_26 = arith.constant 0 : index
    %18 = vector.load %arg7[%c1, %c0_25, %c0_26] : memref<9x128x128xbf16, #tpu.memory_space<vmem>>, vector<1x128x128xbf16>
    %19 = vector.shape_cast %18 : vector<1x128x128xbf16> to vector<128x128xbf16>
    %cst_27 = arith.constant dense<0.000000e+00> : vector<512x128xf32>
    %20 = tpu.matmul %17, %19, %cst_27 {dimension_numbers = #tpu.dot_dimension_numbers<[1], [0], [0], [1], [0, 0, 1, 1], [], []>} : vector<512x128xbf16>, vector<128x128xbf16>, vector<512x128xf32> -> vector<512x128xf32>
    %c0_28 = arith.constant 0 : index
    %c0_29 = arith.constant 0 : index
    %21 = vector.load %arg13[%c0_28, %c0_29] : memref<512x128xf32, #tpu.memory_space<vmem>>, vector<512x128xf32>
    %22 = arith.addf %21, %20 : vector<512x128xf32>
    %c0_30 = arith.constant 0 : index
    %c0_31 = arith.constant 0 : index
    %23 = vector.load %arg13[%c0_30, %c0_31] : memref<512x128xf32, #tpu.memory_space<vmem>>, vector<512x128xf32>
    tpu.vector_store %arg13[%c0_30, %c0_31], %22 {strides = array<i32>} : memref<512x128xf32, #tpu.memory_space<vmem>>, vector<512x128xf32>,
    %c95 = arith.constant 95 : index
    %c0_32 = arith.constant 0 : index
    %24 = vector.load %arg12[%c95, %c0_32] : memref<768x128xbf16, #tpu.memory_space<vmem>>, vector<512x128xbf16>
    %c2 = arith.constant 2 : index
    %c0_33 = arith.constant 0 : index
    %c0_34 = arith.constant 0 : index
    %25 = vector.load %arg7[%c2, %c0_33, %c0_34] : memref<9x128x128xbf16, #tpu.memory_space<vmem>>, vector<1x128x128xbf16>
    %26 = vector.shape_cast %25 : vector<1x128x128xbf16> to vector<128x128xbf16>
    %cst_35 = arith.constant dense<0.000000e+00> : vector<512x128xf32>
    %27 = tpu.matmul %24, %26, %cst_35 {dimension_numbers = #tpu.dot_dimension_numbers<[1], [0], [0], [1], [0, 0, 1, 1], [], []>} : vector<512x128xbf16>, vector<128x128xbf16>, vector<512x128xf32> -> vector<512x128xf32>
    %c0_36 = arith.constant 0 : index
    %c0_37 = arith.constant 0 : index
    %28 = vector.load %arg13[%c0_36, %c0_37] : memref<512x128xf32, #tpu.memory_space<vmem>>, vector<512x128xf32>
    %29 = arith.addf %28, %27 : vector<512x128xf32>
    %c0_38 = arith.constant 0 : index
    %c0_39 = arith.constant 0 : index
    %30 = vector.load %arg13[%c0_38, %c0_39] : memref<512x128xf32, #tpu.memory_space<vmem>>, vector<512x128xf32>
    tpu.vector_store %arg13[%c0_38, %c0_39], %29 {strides = array<i32>} : memref<512x128xf32, #tpu.memory_space<vmem>>, vector<512x128xf32>,
    %c127 = arith.constant 127 : index
    %c0_40 = arith.constant 0 : index
    %31 = vector.load %arg12[%c127, %c0_40] : memref<768x128xbf16, #tpu.memory_space<vmem>>, vector<512x128xbf16>
    %c3 = arith.constant 3 : index
    %c0_41 = arith.constant 0 : index
    %c0_42 = arith.constant 0 : index
    %32 = vector.load %arg7[%c3, %c0_41, %c0_42] : memref<9x128x128xbf16, #tpu.memory_space<vmem>>, vector<1x128x128xbf16>
    %33 = vector.shape_cast %32 : vector<1x128x128xbf16> to vector<128x128xbf16>
    %cst_43 = arith.constant dense<0.000000e+00> : vector<512x128xf32>
    %34 = tpu.matmul %31, %33, %cst_43 {dimension_numbers = #tpu.dot_dimension_numbers<[1], [0], [0], [1], [0, 0, 1, 1], [], []>} : vector<512x128xbf16>, vector<128x128xbf16>, vector<512x128xf32> -> vector<512x128xf32>
    %c0_44 = arith.constant 0 : index
    %c0_45 = arith.constant 0 : index
    %35 = vector.load %arg13[%c0_44, %c0_45] : memref<512x128xf32, #tpu.memory_space<vmem>>, vector<512x128xf32>
    %36 = arith.addf %35, %34 : vector<512x128xf32>
    %c0_46 = arith.constant 0 : index
    %c0_47 = arith.constant 0 : index
    %37 = vector.load %arg13[%c0_46, %c0_47] : memref<512x128xf32, #tpu.memory_space<vmem>>, vector<512x128xf32>
    tpu.vector_store %arg13[%c0_46, %c0_47], %36 {strides = array<i32>} : memref<512x128xf32, #tpu.memory_space<vmem>>, vector<512x128xf32>,
    %c128_48 = arith.constant 128 : index
    %c0_49 = arith.constant 0 : index
    %38 = vector.load %arg12[%c128_48, %c0_49] : memref<768x128xbf16, #tpu.memory_space<vmem>>, vector<512x128xbf16>
    %c4 = arith.constant 4 : index
    %c0_50 = arith.constant 0 : index
    %c0_51 = arith.constant 0 : index
    %39 = vector.load %arg7[%c4, %c0_50, %c0_51] : memref<9x128x128xbf16, #tpu.memory_space<vmem>>, vector<1x128x128xbf16>
    %40 = vector.shape_cast %39 : vector<1x128x128xbf16> to vector<128x128xbf16>
    %cst_52 = arith.constant dense<0.000000e+00> : vector<512x128xf32>
    %41 = tpu.matmul %38, %40, %cst_52 {dimension_numbers = #tpu.dot_dimension_numbers<[1], [0], [0], [1], [0, 0, 1, 1], [], []>} : vector<512x128xbf16>, vector<128x128xbf16>, vector<512x128xf32> -> vector<512x128xf32>
    %c0_53 = arith.constant 0 : index
    %c0_54 = arith.constant 0 : index
    %42 = vector.load %arg13[%c0_53, %c0_54] : memref<512x128xf32, #tpu.memory_space<vmem>>, vector<512x128xf32>
    %43 = arith.addf %42, %41 : vector<512x128xf32>
    %c0_55 = arith.constant 0 : index
    %c0_56 = arith.constant 0 : index
    %44 = vector.load %arg13[%c0_55, %c0_56] : memref<512x128xf32, #tpu.memory_space<vmem>>, vector<512x128xf32>
    tpu.vector_store %arg13[%c0_55, %c0_56], %43 {strides = array<i32>} : memref<512x128xf32, #tpu.memory_space<vmem>>, vector<512x128xf32>,
    %c129 = arith.constant 129 : index
    %c0_57 = arith.constant 0 : index
    %45 = vector.load %arg12[%c129, %c0_57] : memref<768x128xbf16, #tpu.memory_space<vmem>>, vector<512x128xbf16>
    %c5 = arith.constant 5 : index
    %c0_58 = arith.constant 0 : index
    %c0_59 = arith.constant 0 : index
    %46 = vector.load %arg7[%c5, %c0_58, %c0_59] : memref<9x128x128xbf16, #tpu.memory_space<vmem>>, vector<1x128x128xbf16>
    %47 = vector.shape_cast %46 : vector<1x128x128xbf16> to vector<128x128xbf16>
    %cst_60 = arith.constant dense<0.000000e+00> : vector<512x128xf32>
    %48 = tpu.matmul %45, %47, %cst_60 {dimension_numbers = #tpu.dot_dimension_numbers<[1], [0], [0], [1], [0, 0, 1, 1], [], []>} : vector<512x128xbf16>, vector<128x128xbf16>, vector<512x128xf32> -> vector<512x128xf32>
    %c0_61 = arith.constant 0 : index
    %c0_62 = arith.constant 0 : index
    %49 = vector.load %arg13[%c0_61, %c0_62] : memref<512x128xf32, #tpu.memory_space<vmem>>, vector<512x128xf32>
    %50 = arith.addf %49, %48 : vector<512x128xf32>
    %c0_63 = arith.constant 0 : index
    %c0_64 = arith.constant 0 : index
    %51 = vector.load %arg13[%c0_63, %c0_64] : memref<512x128xf32, #tpu.memory_space<vmem>>, vector<512x128xf32>
    tpu.vector_store %arg13[%c0_63, %c0_64], %50 {strides = array<i32>} : memref<512x128xf32, #tpu.memory_space<vmem>>, vector<512x128xf32>,
    %c161 = arith.constant 161 : index
    %c0_65 = arith.constant 0 : index
    %52 = vector.load %arg12[%c161, %c0_65] : memref<768x128xbf16, #tpu.memory_space<vmem>>, vector<512x128xbf16>
    %c6 = arith.constant 6 : index
    %c0_66 = arith.constant 0 : index
    %c0_67 = arith.constant 0 : index
    %53 = vector.load %arg7[%c6, %c0_66, %c0_67] : memref<9x128x128xbf16, #tpu.memory_space<vmem>>, vector<1x128x128xbf16>
    %54 = vector.shape_cast %53 : vector<1x128x128xbf16> to vector<128x128xbf16>
    %cst_68 = arith.constant dense<0.000000e+00> : vector<512x128xf32>
    %55 = tpu.matmul %52, %54, %cst_68 {dimension_numbers = #tpu.dot_dimension_numbers<[1], [0], [0], [1], [0, 0, 1, 1], [], []>} : vector<512x128xbf16>, vector<128x128xbf16>, vector<512x128xf32> -> vector<512x128xf32>
    %c0_69 = arith.constant 0 : index
    %c0_70 = arith.constant 0 : index
    %56 = vector.load %arg13[%c0_69, %c0_70] : memref<512x128xf32, #tpu.memory_space<vmem>>, vector<512x128xf32>
    %57 = arith.addf %56, %55 : vector<512x128xf32>
    %c0_71 = arith.constant 0 : index
    %c0_72 = arith.constant 0 : index
    %58 = vector.load %arg13[%c0_71, %c0_72] : memref<512x128xf32, #tpu.memory_space<vmem>>, vector<512x128xf32>
    tpu.vector_store %arg13[%c0_71, %c0_72], %57 {strides = array<i32>} : memref<512x128xf32, #tpu.memory_space<vmem>>, vector<512x128xf32>,
    %c162 = arith.constant 162 : index
    %c0_73 = arith.constant 0 : index
    %59 = vector.load %arg12[%c162, %c0_73] : memref<768x128xbf16, #tpu.memory_space<vmem>>, vector<512x128xbf16>
    %c7 = arith.constant 7 : index
    %c0_74 = arith.constant 0 : index
    %c0_75 = arith.constant 0 : index
    %60 = vector.load %arg7[%c7, %c0_74, %c0_75] : memref<9x128x128xbf16, #tpu.memory_space<vmem>>, vector<1x128x128xbf16>
    %61 = vector.shape_cast %60 : vector<1x128x128xbf16> to vector<128x128xbf16>
    %cst_76 = arith.constant dense<0.000000e+00> : vector<512x128xf32>
    %62 = tpu.matmul %59, %61, %cst_76 {dimension_numbers = #tpu.dot_dimension_numbers<[1], [0], [0], [1], [0, 0, 1, 1], [], []>} : vector<512x128xbf16>, vector<128x128xbf16>, vector<512x128xf32> -> vector<512x128xf32>
    %c0_77 = arith.constant 0 : index
    %c0_78 = arith.constant 0 : index
    %63 = vector.load %arg13[%c0_77, %c0_78] : memref<512x128xf32, #tpu.memory_space<vmem>>, vector<512x128xf32>
    %64 = arith.addf %63, %62 : vector<512x128xf32>
    %c0_79 = arith.constant 0 : index
    %c0_80 = arith.constant 0 : index
    %65 = vector.load %arg13[%c0_79, %c0_80] : memref<512x128xf32, #tpu.memory_space<vmem>>, vector<512x128xf32>
    tpu.vector_store %arg13[%c0_79, %c0_80], %64 {strides = array<i32>} : memref<512x128xf32, #tpu.memory_space<vmem>>, vector<512x128xf32>,
    %c163 = arith.constant 163 : index
    %c0_81 = arith.constant 0 : index
    %66 = vector.load %arg12[%c163, %c0_81] : memref<768x128xbf16, #tpu.memory_space<vmem>>, vector<512x128xbf16>
    %c8 = arith.constant 8 : index
    %c0_82 = arith.constant 0 : index
    %c0_83 = arith.constant 0 : index
    %67 = vector.load %arg7[%c8, %c0_82, %c0_83] : memref<9x128x128xbf16, #tpu.memory_space<vmem>>, vector<1x128x128xbf16>
    %68 = vector.shape_cast %67 : vector<1x128x128xbf16> to vector<128x128xbf16>
    %cst_84 = arith.constant dense<0.000000e+00> : vector<512x128xf32>
    %69 = tpu.matmul %66, %68, %cst_84 {dimension_numbers = #tpu.dot_dimension_numbers<[1], [0], [0], [1], [0, 0, 1, 1], [], []>} : vector<512x128xbf16>, vector<128x128xbf16>, vector<512x128xf32> -> vector<512x128xf32>
    %c0_85 = arith.constant 0 : index
    %c0_86 = arith.constant 0 : index
    %70 = vector.load %arg13[%c0_85, %c0_86] : memref<512x128xf32, #tpu.memory_space<vmem>>, vector<512x128xf32>
    %71 = arith.addf %70, %69 : vector<512x128xf32>
    %c0_87 = arith.constant 0 : index
    %c0_88 = arith.constant 0 : index
    %72 = vector.load %arg13[%c0_87, %c0_88] : memref<512x128xf32, #tpu.memory_space<vmem>>, vector<512x128xf32>
    tpu.vector_store %arg13[%c0_87, %c0_88], %71 {strides = array<i32>} : memref<512x128xf32, #tpu.memory_space<vmem>>, vector<512x128xf32>,
    %c0_89 = arith.constant 0 : index
    %c0_90 = arith.constant 0 : index
    %73 = vector.load %arg13[%c0_89, %c0_90] : memref<512x128xf32, #tpu.memory_space<vmem>>, vector<512x128xf32>
    %c0_91 = arith.constant 0 : index
    %c0_92 = arith.constant 0 : index
    %74 = vector.load %arg8[%c0_91, %c0_92] : memref<512x1xf32, #tpu.memory_space<vmem>>, vector<512x1xf32>
    %75 = vector.broadcast %74 : vector<512x1xf32> to vector<512x128xf32>
    %76 = arith.mulf %73, %75 : vector<512x128xf32>
    %77 = arith.truncf %76 : vector<512x128xf32> to vector<512x128xbf16>
    %c0_93 = arith.constant 0 : index
    %c0_94 = arith.constant 0 : index
    %78 = vector.load %arg9[%c0_93, %c0_94] : memref<512x128xbf16, #tpu.memory_space<vmem>>, vector<512x128xbf16>
    tpu.vector_store %arg9[%c0_93, %c0_94], %77 {strides = array<i32>} : memref<512x128xbf16, #tpu.memory_space<vmem>>, vector<512x128xbf16>,
    %cst_95 = arith.constant dense<0.000000e+00> : vector<128xf32>
    %79 = vector.multi_reduction <add>, %76, %cst_95 [0] : vector<512x128xf32> to vector<128xf32>
    %80 = vector.shape_cast %79 : vector<128xf32> to vector<1x128xf32>
    %81 = arith.mulf %76, %76 : vector<512x128xf32>
    %cst_96 = arith.constant dense<0.000000e+00> : vector<128xf32>
    %82 = vector.multi_reduction <add>, %81, %cst_96 [0] : vector<512x128xf32> to vector<128xf32>
    %83 = vector.shape_cast %82 : vector<128xf32> to vector<1x128xf32>
    %84 = vector.shape_cast %80 : vector<1x128xf32> to vector<1x128xf32>
    %85 = vector.broadcast %84 : vector<1x128xf32> to vector<8x128xf32>
    %c0_97 = arith.constant 0 : index
    %c0_98 = arith.constant 0 : index
    %86 = vector.load %arg10[%c0_97, %c0_98] : memref<8x128xf32, #tpu.memory_space<vmem>>, vector<8x128xf32>
    tpu.vector_store %arg10[%c0_97, %c0_98], %85 {strides = array<i32>} : memref<8x128xf32, #tpu.memory_space<vmem>>, vector<8x128xf32>,
    %87 = vector.shape_cast %83 : vector<1x128xf32> to vector<1x128xf32>
    %88 = vector.broadcast %87 : vector<1x128xf32> to vector<8x128xf32>
    %c0_99 = arith.constant 0 : index
    %c0_100 = arith.constant 0 : index
    %89 = vector.load %arg11[%c0_99, %c0_100] : memref<8x128xf32, #tpu.memory_space<vmem>>, vector<8x128xf32>
    tpu.vector_store %arg11[%c0_99, %c0_100], %88 {strides = array<i32>} : memref<8x128xf32, #tpu.memory_space<vmem>>, vector<8x128xf32>,
    return
  }
  func.func @transform_0(%arg0: i32) -> (i32, i32) {
    %c4_i32 = arith.constant 4 : i32
    %0 = arith.muli %arg0, %c4_i32 : i32
    %c-1_i32 = arith.constant -1 : i32
    %1 = arith.addi %0, %c-1_i32 : i32
    %c0_i32 = arith.constant 0 : i32
    %c19_i32 = arith.constant 19 : i32
    %2 = arith.maxsi %c0_i32, %1 : i32
    %3 = arith.minsi %c19_i32, %2 : i32
    %c0_i32_0 = arith.constant 0 : i32
    %c0_i32_1 = arith.constant 0 : i32
    return %3, %c0_i32_0 : i32, i32
  }
  func.func @transform_1(%arg0: i32) -> (i32, i32) {
    %c4_i32 = arith.constant 4 : i32
    %0 = arith.muli %arg0, %c4_i32 : i32
    %c0_i32 = arith.constant 0 : i32
    %1 = arith.addi %0, %c0_i32 : i32
    %c0_i32_0 = arith.constant 0 : i32
    %c19_i32 = arith.constant 19 : i32
    %2 = arith.maxsi %c0_i32_0, %1 : i32
    %3 = arith.minsi %c19_i32, %2 : i32
    %c0_i32_1 = arith.constant 0 : i32
    %c0_i32_2 = arith.constant 0 : i32
    return %3, %c0_i32_1 : i32, i32
  }
  func.func @transform_2(%arg0: i32) -> (i32, i32) {
    %c4_i32 = arith.constant 4 : i32
    %0 = arith.muli %arg0, %c4_i32 : i32
    %c1_i32 = arith.constant 1 : i32
    %1 = arith.addi %0, %c1_i32 : i32
    %c0_i32 = arith.constant 0 : i32
    %c19_i32 = arith.constant 19 : i32
    %2 = arith.maxsi %c0_i32, %1 : i32
    %3 = arith.minsi %c19_i32, %2 : i32
    %c0_i32_0 = arith.constant 0 : i32
    %c0_i32_1 = arith.constant 0 : i32
    return %3, %c0_i32_0 : i32, i32
  }
  func.func @transform_3(%arg0: i32) -> (i32, i32) {
    %c4_i32 = arith.constant 4 : i32
    %0 = arith.muli %arg0, %c4_i32 : i32
    %c2_i32 = arith.constant 2 : i32
    %1 = arith.addi %0, %c2_i32 : i32
    %c0_i32 = arith.constant 0 : i32
    %c19_i32 = arith.constant 19 : i32
    %2 = arith.maxsi %c0_i32, %1 : i32
    %3 = arith.minsi %c19_i32, %2 : i32
    %c0_i32_0 = arith.constant 0 : i32
    %c0_i32_1 = arith.constant 0 : i32
    return %3, %c0_i32_0 : i32, i32
  }
  func.func @transform_4(%arg0: i32) -> (i32, i32) {
    %c4_i32 = arith.constant 4 : i32
    %0 = arith.muli %arg0, %c4_i32 : i32
    %c3_i32 = arith.constant 3 : i32
    %1 = arith.addi %0, %c3_i32 : i32
    %c0_i32 = arith.constant 0 : i32
    %c19_i32 = arith.constant 19 : i32
    %2 = arith.maxsi %c0_i32, %1 : i32
    %3 = arith.minsi %c19_i32, %2 : i32
    %c0_i32_0 = arith.constant 0 : i32
    %c0_i32_1 = arith.constant 0 : i32
    return %3, %c0_i32_0 : i32, i32
  }
  func.func @transform_5(%arg0: i32) -> (i32, i32) {
    %c4_i32 = arith.constant 4 : i32
    %0 = arith.muli %arg0, %c4_i32 : i32
    %c4_i32_0 = arith.constant 4 : i32
    %1 = arith.addi %0, %c4_i32_0 : i32
    %c0_i32 = arith.constant 0 : i32
    %c19_i32 = arith.constant 19 : i32
    %2 = arith.maxsi %c0_i32, %1 : i32
    %3 = arith.minsi %c19_i32, %2 : i32
    %c0_i32_1 = arith.constant 0 : i32
    %c0_i32_2 = arith.constant 0 : i32
    return %3, %c0_i32_1 : i32, i32
  }
  func.func @transform_6(%arg0: i32) -> (i32, i32, i32) {
    %c0_i32 = arith.constant 0 : i32
    %c0_i32_0 = arith.constant 0 : i32
    %c0_i32_1 = arith.constant 0 : i32
    %c0_i32_2 = arith.constant 0 : i32
    return %c0_i32, %c0_i32_0, %c0_i32_1 : i32, i32, i32
  }
  func.func @transform_7(%arg0: i32) -> (i32, i32) {
    %c0_i32 = arith.constant 0 : i32
    %c0_i32_0 = arith.constant 0 : i32
    return %arg0, %c0_i32 : i32, i32
  }
  func.func @transform_8(%arg0: i32) -> (i32, i32) {
    %c0_i32 = arith.constant 0 : i32
    %c0_i32_0 = arith.constant 0 : i32
    return %arg0, %c0_i32 : i32, i32
  }
  func.func @transform_9(%arg0: i32) -> (i32, i32) {
    %c0_i32 = arith.constant 0 : i32
    %c0_i32_0 = arith.constant 0 : i32
    return %arg0, %c0_i32 : i32, i32
  }
  func.func @transform_10(%arg0: i32) -> (i32, i32) {
    %c0_i32 = arith.constant 0 : i32
    %c0_i32_0 = arith.constant 0 : i32
    return %arg0, %c0_i32 : i32, i32
  }
}

</mosaic_0001>

<llo_original>
// kernel: tpu_custom_call.1
$region0: #{tpu_custom_call.1}
  #allocation0 [shape = 'u32[]', space=smem, size = 0x4, offset = 0x4, fixed_abs, tag = 'smem constant byte address 0x4 - core index']
  #allocation1 [shape = 'u32[144,128]{1,0:T(1,128)}', space=vmem, size = 0x12000, scoped, tag = 'internal scratch']
  #allocation2 [shape = 'bf16[768,128]{1,0:T(16,128)(2,1)}', space=vmem, size = 0x30000, scoped, tag = 'scratch operand']
  #allocation3 [shape = 'f32[512,128]{1,0:T(8,128)}', space=vmem, size = 0x40000, scoped, tag = 'scratch operand']
  %s0 = inlined_call_operand.vmem [shape: bf16[2560,128], index: 0, kind: input, shape index: {}]
  %s1 = inlined_call_operand.vmem [shape: bf16[2560,128], index: 1, kind: input, shape index: {}]
  %s2 = inlined_call_operand.hbm [shape: bf16[2560,128], index: 2, kind: input, shape index: {}]
  %s3 = inlined_call_operand.hbm [shape: bf16[2560,128], index: 3, kind: input, shape index: {}]
  %s4 = inlined_call_operand.hbm [shape: bf16[2560,128], index: 4, kind: input, shape index: {}]
  %s5 = inlined_call_operand.hbm [shape: bf16[2560,128], index: 5, kind: input, shape index: {}]
  %s6 = inlined_call_operand.hbm [shape: bf16[9,128,128], index: 6, kind: input, shape index: {}]
  %s7 = inlined_call_operand.vmem [shape: f32[2560,1], index: 7, kind: input, shape index: {}]
  %s8 = inlined_call_operand.hbm [shape: bf16[2560,128], index: 8, kind: output, shape index: {0}]
  %s9 = inlined_call_operand.hbm [shape: f32[40,128], index: 9, kind: output, shape index: {1}]
  %s10 = inlined_call_operand.hbm [shape: f32[40,128], index: 10, kind: output, shape index: {2}]
  %11 = xla_tuple %s8, %s9, %s10
  %s12 = sld [smem:[#allocation0]]
  $region101: #{tpu_custom_call.1} parent=0
    _
  %s14 = ssub.s32 1, %s12
  %s15 = scalar_select 0, %s14, %s12
  $region1: #{tpu_custom_call.1} parent=0
    #allocation4 [shape = 'u8[65536]{0}', space=vmem, size = 0x10000, scoped, tag = 'input window, operand 2']
    #allocation5 [shape = 's32[2]{0}', space=sflag, size = 0x8, scoped, tag = 'scoped memory for tpu_custom_call.1']
    #allocation6 [shape = 's32[2]{0}', space=sflag, size = 0x8, scoped, tag = 'scoped memory for tpu_custom_call.1']
    #allocation7 [shape = 'u8[65536]{0}', space=vmem, size = 0x10000, scoped, tag = 'input window, operand 3']
    #allocation8 [shape = 's32[2]{0}', space=sflag, size = 0x8, scoped, tag = 'scoped memory for tpu_custom_call.1']
    #allocation9 [shape = 'u8[65536]{0}', space=vmem, size = 0x10000, scoped, tag = 'input window, operand 4']
    #allocation10 [shape = 'u8[65536]{0}', space=vmem, size = 0x10000, scoped, tag = 'input window, operand 5']
    #allocation11 [shape = 's32[2]{0}', space=sflag, size = 0x8, scoped, tag = 'scoped memory for tpu_custom_call.1']
    #allocation12 [shape = 'u8[294912]{0}', space=vmem, size = 0x48000, scoped, tag = 'input window, operand 6, single buffered']
    #allocation13 [shape = 'u8[262144]{0}', space=vmem, size = 0x40000, scoped, tag = 'output window, operand 0']
    #allocation14 [shape = 'u8[8192]{0}', space=vmem, size = 0x2000, scoped, tag = 'output window, operand 1']
    #allocation15 [shape = 's32[2]{0}', space=sflag, size = 0x8, scoped, tag = 'scoped memory for tpu_custom_call.1']
    #allocation16 [shape = 'u8[8192]{0}', space=vmem, size = 0x2000, scoped, tag = 'output window, operand 2']
    %16 = vsyncpa [#allocation5], 0
    %s17 = scalar_lea.sflag [#allocation5], 1
    %18 = vsyncpa %s17, 0
    %19 = vsyncpa [#allocation8], 0
    %s20 = scalar_lea.sflag [#allocation8], 1
    %21 = vsyncpa %s20, 0
    %22 = vsyncpa [#allocation11], 0
    %s23 = scalar_lea.sflag [#allocation11], 1
    %24 = vsyncpa %s23, 0
    %25 = vsyncpa [#allocation6], 0
    %s26 = scalar_lea.sflag [#allocation6], 1
    %27 = vsyncpa %s26, 0
    %28 = vsyncpa [#allocation15], 0
    %s29 = scalar_lea.sflag [#allocation15], 1
    %30 = vsyncpa %s29, 0
    loop: start=0, step=1, limit=7
    $region2: #{tpu_custom_call.1} parent=1 // loop_pre_header
      _
    $region3: #{tpu_custom_call.1} parent=1 // loop_header
      %s32 = sphi 0, %s36
      %p33 = scmp.ge.s32.totalorder %s32, 7
      %s54 = sphi 0, %s56
      %s57 = sphi 0, %s54
      %s58 = sphi 0, %s57
      %s74 = sphi 0, %s58
      %s90 = sphi 0, %s92
      %s93 = sphi 0, %s90
      %s94 = sphi 0, %s93
      %s110 = sphi 0, %s94
      %s128 = sphi 0, %s130
      %s131 = sphi 0, %s128
      %s132 = sphi 0, %s131
      %s148 = sphi 0, %s132
      %s166 = sphi 0, %s168
      %s169 = sphi 0, %s166
      %s170 = sphi 0, %s169
      %s186 = sphi 0, %s170
      %s204 = sphi 0, %s206
      %s207 = sphi 0, %s204
      %s208 = sphi 0, %s207
      %s224 = sphi 0, %s208
      %s242 = sphi 0, %s244
      %s245 = sphi 0, %s242
      %s246 = sphi 0, %s245
      %s262 = sphi 0, %s246
      %s266 = sphi 0, %s266
      %s268 = sphi 0, %s266
      %s269 = sphi 0, %s268
      %s283 = sphi 0, %s269
      %s289 = sphi 0, %s291
      %s292 = sphi 0, %s289
      %s293 = sphi 0, %s292
      %s309 = sphi 0, %s293
      %s315 = sphi 0, %s317
      %s318 = sphi 0, %s315
      %s319 = sphi 0, %s318
      %s335 = sphi 0, %s319
      %s341 = sphi 0, %s343
      %s344 = sphi 0, %s341
      %s345 = sphi 0, %s344
      %s361 = sphi 0, %s345
      %s367 = sphi 0, %s369
      %s370 = sphi 0, %s367
      %s371 = sphi 0, %s370
      %s387 = sphi 0, %s371
    $region4: #{tpu_custom_call.1} parent=1 // loop_header_branch
      %35 = sbr.rel (%p33) target = $region8
    $region5: #{tpu_custom_call.1} parent=1 // loop_body
      %s37 = ssub.s32 %s32, 1
      %s38 = ssub.s32 %s32, 2
      %s39 = sadd.s32 %s32, 1
      %s40 = smul.u32 %s32, 4
      %s41 = sadd.s32 %s40, 4294967295
      %p42 = scmp.gt.s32.totalorder %s41, 0
      %s43 = scalar_select %p42, %s41, 0
      %p44 = scmp.lt.s32.totalorder %s43, 19
      %s45 = scalar_select %p44, %s43, 19
      %s46 = smul.u32 %s39, 4
      %s47 = sadd.s32 %s46, 4294967295
      %p48 = scmp.gt.s32.totalorder %s47, 0
      %s49 = scalar_select %p48, %s47, 0
      %p50 = scmp.lt.s32.totalorder %s49, 19
      %s51 = scalar_select %p50, %s49, 19
      %s52 = ssub.s32 %s45, %s51
      %p53 = scmp.eq.s32.totalorder %s52, 0
      %s55 = sadd.s32 %s54, 1
      %s56 = scalar_select %p53, %s54, %s55
      %p59 = pneg %p53
      %p60 = scmp.eq.s32.totalorder %s32, 4
      %p61 = por %p59, %p60
      %p62 = scmp.ne.s32.totalorder %s54, %s57
      %p63 = scmp.eq.s32.totalorder %s32, 0
      %p64 = por %p62, %p63
      %p65 = scmp.ne.s32.totalorder %s54, %s57
      %p66 = scmp.eq.s32.totalorder %s37, 4
      %p67 = por %p65, %p66
      %p68 = scmp.ne.s32.totalorder %s57, %s58
      %p69 = scmp.eq.s32.totalorder %s37, 0
      %p70 = por %p68, %p69
      %p71 = scmp.ne.s32.totalorder %s57, %s58
      %p72 = scmp.eq.s32.totalorder %s38, 4
      %p73 = por %p71, %p72
      %p75 = scmp.ne.s32.totalorder %s58, %s74
      %p76 = scmp.eq.s32.totalorder %s38, 0
      %p77 = por %p75, %p76
      %s78 = smul.u32 %s32, 4
      %p79 = scmp.gt.s32.totalorder %s78, 0
      %s80 = scalar_select %p79, %s78, 0
      %p81 = scmp.lt.s32.totalorder %s80, 19
      %s82 = scalar_select %p81, %s80, 19
      %s83 = smul.u32 %s39, 4
      %p84 = scmp.gt.s32.totalorder %s83, 0
      %s85 = scalar_select %p84, %s83, 0
      %p86 = scmp.lt.s32.totalorder %s85, 19
      %s87 = scalar_select %p86, %s85, 19
      %s88 = ssub.s32 %s82, %s87
      %p89 = scmp.eq.s32.totalorder %s88, 0
      %s91 = sadd.s32 %s90, 1
      %s92 = scalar_select %p89, %s90, %s91
      %p95 = pneg %p89
      %p96 = scmp.eq.s32.totalorder %s32, 4
      %p97 = por %p95, %p96
      %p98 = scmp.ne.s32.totalorder %s90, %s93
      %p99 = scmp.eq.s32.totalorder %s32, 0
      %p100 = por %p98, %p99
      %p101 = scmp.ne.s32.totalorder %s90, %s93
      %p102 = scmp.eq.s32.totalorder %s37, 4
      %p103 = por %p101, %p102
      %p104 = scmp.ne.s32.totalorder %s93, %s94
      %p105 = scmp.eq.s32.totalorder %s37, 0
      %p106 = por %p104, %p105
      %p107 = scmp.ne.s32.totalorder %s93, %s94
      %p108 = scmp.eq.s32.totalorder %s38, 4
      %p109 = por %p107, %p108
      %p111 = scmp.ne.s32.totalorder %s94, %s110
      %p112 = scmp.eq.s32.totalorder %s38, 0
      %p113 = por %p111, %p112
      %s114 = smul.u32 %s32, 4
      %s115 = sadd.s32 %s114, 1
      %p116 = scmp.gt.s32.totalorder %s115, 0
      %s117 = scalar_select %p116, %s115, 0
      %p118 = scmp.lt.s32.totalorder %s117, 19
      %s119 = scalar_select %p118, %s117, 19
      %s120 = smul.u32 %s39, 4
      %s121 = sadd.s32 %s120, 1
      %p122 = scmp.gt.s32.totalorder %s121, 0
      %s123 = scalar_select %p122, %s121, 0
      %p124 = scmp.lt.s32.totalorder %s123, 19
      %s125 = scalar_select %p124, %s123, 19
      %s126 = ssub.s32 %s119, %s125
      %p127 = scmp.eq.s32.totalorder %s126, 0
      %s129 = sadd.s32 %s128, 1
      %s130 = scalar_select %p127, %s128, %s129
      %p133 = pneg %p127
      %p134 = scmp.eq.s32.totalorder %s32, 4
      %p135 = por %p133, %p134
      %p136 = scmp.ne.s32.totalorder %s128, %s131
      %p137 = scmp.eq.s32.totalorder %s32, 0
      %p138 = por %p136, %p137
      %p139 = scmp.ne.s32.totalorder %s128, %s131
      %p140 = scmp.eq.s32.totalorder %s37, 4
      %p141 = por %p139, %p140
      %p142 = scmp.ne.s32.totalorder %s131, %s132
      %p143 = scmp.eq.s32.totalorder %s37, 0
      %p144 = por %p142, %p143
      %p145 = scmp.ne.s32.totalorder %s131, %s132
      %p146 = scmp.eq.s32.totalorder %s38, 4
      %p147 = por %p145, %p146
      %p149 = scmp.ne.s32.totalorder %s132, %s148
      %p150 = scmp.eq.s32.totalorder %s38, 0
      %p151 = por %p149, %p150
      %s152 = smul.u32 %s32, 4
      %s153 = sadd.s32 %s152, 2
      %p154 = scmp.gt.s32.totalorder %s153, 0
      %s155 = scalar_select %p154, %s153, 0
      %p156 = scmp.lt.s32.totalorder %s155, 19
      %s157 = scalar_select %p156, %s155, 19
      %s158 = smul.u32 %s39, 4
      %s159 = sadd.s32 %s158, 2
      %p160 = scmp.gt.s32.totalorder %s159, 0
      %s161 = scalar_select %p160, %s159, 0
      %p162 = scmp.lt.s32.totalorder %s161, 19
      %s163 = scalar_select %p162, %s161, 19
      %s164 = ssub.s32 %s157, %s163
      %p165 = scmp.eq.s32.totalorder %s164, 0
      %s167 = sadd.s32 %s166, 1
      %s168 = scalar_select %p165, %s166, %s167
      %p171 = pneg %p165
      %p172 = scmp.eq.s32.totalorder %s32, 4
      %p173 = por %p171, %p172
      %p174 = scmp.ne.s32.totalorder %s166, %s169
      %p175 = scmp.eq.s32.totalorder %s32, 0
      %p176 = por %p174, %p175
      %p177 = scmp.ne.s32.totalorder %s166, %s169
      %p178 = scmp.eq.s32.totalorder %s37, 4
      %p179 = por %p177, %p178
      %p180 = scmp.ne.s32.totalorder %s169, %s170
      %p181 = scmp.eq.s32.totalorder %s37, 0
      %p182 = por %p180, %p181
      %p183 = scmp.ne.s32.totalorder %s169, %s170
      %p184 = scmp.eq.s32.totalorder %s38, 4
      %p185 = por %p183, %p184
      %p187 = scmp.ne.s32.totalorder %s170, %s186
      %p188 = scmp.eq.s32.totalorder %s38, 0
      %p189 = por %p187, %p188
      %s190 = smul.u32 %s32, 4
      %s191 = sadd.s32 %s190, 3
      %p192 = scmp.gt.s32.totalorder %s191, 0
      %s193 = scalar_select %p192, %s191, 0
      %p194 = scmp.lt.s32.totalorder %s193, 19
      %s195 = scalar_select %p194, %s193, 19
      %s196 = smul.u32 %s39, 4
      %s197 = sadd.s32 %s196, 3
      %p198 = scmp.gt.s32.totalorder %s197, 0
      %s199 = scalar_select %p198, %s197, 0
      %p200 = scmp.lt.s32.totalorder %s199, 19
      %s201 = scalar_select %p200, %s199, 19
      %s202 = ssub.s32 %s195, %s201
      %p203 = scmp.eq.s32.totalorder %s202, 0
      %s205 = sadd.s32 %s204, 1
      %s206 = scalar_select %p203, %s204, %s205
      %p209 = pneg %p203
      %p210 = scmp.eq.s32.totalorder %s32, 4
      %p211 = por %p209, %p210
      %p212 = scmp.ne.s32.totalorder %s204, %s207
      %p213 = scmp.eq.s32.totalorder %s32, 0
      %p214 = por %p212, %p213
      %p215 = scmp.ne.s32.totalorder %s204, %s207
      %p216 = scmp.eq.s32.totalorder %s37, 4
      %p217 = por %p215, %p216
      %p218 = scmp.ne.s32.totalorder %s207, %s208
      %p219 = scmp.eq.s32.totalorder %s37, 0
      %p220 = por %p218, %p219
      %p221 = scmp.ne.s32.totalorder %s207, %s208
      %p222 = scmp.eq.s32.totalorder %s38, 4
      %p223 = por %p221, %p222
      %p225 = scmp.ne.s32.totalorder %s208, %s224
      %p226 = scmp.eq.s32.totalorder %s38, 0
      %p227 = por %p225, %p226
      %s228 = smul.u32 %s32, 4
      %s229 = sadd.s32 %s228, 4
      %p230 = scmp.gt.s32.totalorder %s229, 0
      %s231 = scalar_select %p230, %s229, 0
      %p232 = scmp.lt.s32.totalorder %s231, 19
      %s233 = scalar_select %p232, %s231, 19
      %s234 = smul.u32 %s39, 4
      %s235 = sadd.s32 %s234, 4
      %p236 = scmp.gt.s32.totalorder %s235, 0
      %s237 = scalar_select %p236, %s235, 0
      %p238 = scmp.lt.s32.totalorder %s237, 19
      %s239 = scalar_select %p238, %s237, 19
      %s240 = ssub.s32 %s233, %s239
      %p241 = scmp.eq.s32.totalorder %s240, 0
      %s243 = sadd.s32 %s242, 1
      %s244 = scalar_select %p241, %s242, %s243
      %p247 = pneg %p241
      %p248 = scmp.eq.s32.totalorder %s32, 4
      %p249 = por %p247, %p248
      %p250 = scmp.ne.s32.totalorder %s242, %s245
      %p251 = scmp.eq.s32.totalorder %s32, 0
      %p252 = por %p250, %p251
      %p253 = scmp.ne.s32.totalorder %s242, %s245
      %p254 = scmp.eq.s32.totalorder %s37, 4
      %p255 = por %p253, %p254
      %p256 = scmp.ne.s32.totalorder %s245, %s246
      %p257 = scmp.eq.s32.totalorder %s37, 0
      %p258 = por %p256, %p257
      %p259 = scmp.ne.s32.totalorder %s245, %s246
      %p260 = scmp.eq.s32.totalorder %s38, 4
      %p261 = por %p259, %p260
      %p263 = scmp.ne.s32.totalorder %s246, %s262
      %p264 = scmp.eq.s32.totalorder %s38, 0
      %p265 = por %p263, %p264
      %s267 = sadd.s32 %s266, 1
      %p270 = scmp.eq.s32.totalorder %s32, 4
      %p271 = scmp.ne.s32.totalorder %s266, %s268
      %p272 = scmp.eq.s32.totalorder %s32, 0
      %p273 = por %p271, %p272
      %p274 = scmp.ne.s32.totalorder %s266, %s268
      %p275 = scmp.eq.s32.totalorder %s37, 4
      %p276 = por %p274, %p275
      %p277 = scmp.ne.s32.totalorder %s268, %s269
      %p278 = scmp.eq.s32.totalorder %s37, 0
      %p279 = por %p277, %p278
      %p280 = scmp.ne.s32.totalorder %s268, %s269
      %p281 = scmp.eq.s32.totalorder %s38, 4
      %p282 = por %p280, %p281
      %p284 = scmp.ne.s32.totalorder %s269, %s283
      %p285 = scmp.eq.s32.totalorder %s38, 0
      %p286 = por %p284, %p285
      %s287 = ssub.s32 %s32, %s39
      %p288 = scmp.eq.s32.totalorder %s287, 0
      %s290 = sadd.s32 %s289, 1
      %s291 = scalar_select %p288, %s289, %s290
      %p294 = pneg %p288
      %p295 = scmp.eq.s32.totalorder %s32, 4
      %p296 = por %p294, %p295
      %p297 = scmp.ne.s32.totalorder %s289, %s292
      %p298 = scmp.eq.s32.totalorder %s32, 0
      %p299 = por %p297, %p298
      %p300 = scmp.ne.s32.totalorder %s289, %s292
      %p301 = scmp.eq.s32.totalorder %s37, 4
      %p302 = por %p300, %p301
      %p303 = scmp.ne.s32.totalorder %s292, %s293
      %p304 = scmp.eq.s32.totalorder %s37, 0
      %p305 = por %p303, %p304
      %p306 = scmp.ne.s32.totalorder %s292, %s293
      %p307 = scmp.eq.s32.totalorder %s38, 4
      %p308 = por %p306, %p307
      %p310 = scmp.ne.s32.totalorder %s293, %s309
      %p311 = scmp.eq.s32.totalorder %s38, 0
      %p312 = por %p310, %p311
      %s313 = ssub.s32 %s32, %s39
      %p314 = scmp.eq.s32.totalorder %s313, 0
      %s316 = sadd.s32 %s315, 1
      %s317 = scalar_select %p314, %s315, %s316
      %p320 = pneg %p314
      %p321 = scmp.eq.s32.totalorder %s32, 4
      %p322 = por %p320, %p321
      %p323 = scmp.ne.s32.totalorder %s315, %s318
      %p324 = scmp.eq.s32.totalorder %s32, 0
      %p325 = por %p323, %p324
      %p326 = scmp.ne.s32.totalorder %s315, %s318
      %p327 = scmp.eq.s32.totalorder %s37, 4
      %p328 = por %p326, %p327
      %p329 = scmp.ne.s32.totalorder %s318, %s319
      %p330 = scmp.eq.s32.totalorder %s37, 0
      %p331 = por %p329, %p330
      %p332 = scmp.ne.s32.totalorder %s318, %s319
      %p333 = scmp.eq.s32.totalorder %s38, 4
      %p334 = por %p332, %p333
      %p336 = scmp.ne.s32.totalorder %s319, %s335
      %p337 = scmp.eq.s32.totalorder %s38, 0
      %p338 = por %p336, %p337
      %s339 = ssub.s32 %s32, %s39
      %p340 = scmp.eq.s32.totalorder %s339, 0
      %s342 = sadd.s32 %s341, 1
      %s343 = scalar_select %p340, %s341, %s342
      %p346 = pneg %p340
      %p347 = scmp.eq.s32.totalorder %s32, 4
      %p348 = por %p346, %p347
      %p349 = scmp.ne.s32.totalorder %s341, %s344
      %p350 = scmp.eq.s32.totalorder %s32, 0
      %p351 = por %p349, %p350
      %p352 = scmp.ne.s32.totalorder %s341, %s344
      %p353 = scmp.eq.s32.totalorder %s37, 4
      %p354 = por %p352, %p353
      %p355 = scmp.ne.s32.totalorder %s344, %s345
      %p356 = scmp.eq.s32.totalorder %s37, 0
      %p357 = por %p355, %p356
      %p358 = scmp.ne.s32.totalorder %s344, %s345
      %p359 = scmp.eq.s32.totalorder %s38, 4
      %p360 = por %p358, %p359
      %p362 = scmp.ne.s32.totalorder %s345, %s361
      %p363 = scmp.eq.s32.totalorder %s38, 0
      %p364 = por %p362, %p363
      %s365 = ssub.s32 %s32, %s39
      %p366 = scmp.eq.s32.totalorder %s365, 0
      %s368 = sadd.s32 %s367, 1
      %s369 = scalar_select %p366, %s367, %s368
      %p372 = pneg %p366
      %p373 = scmp.eq.s32.totalorder %s32, 4
      %p374 = por %p372, %p373
      %p375 = scmp.ne.s32.totalorder %s367, %s370
      %p376 = scmp.eq.s32.totalorder %s32, 0
      %p377 = por %p375, %p376
      %p378 = scmp.ne.s32.totalorder %s367, %s370
      %p379 = scmp.eq.s32.totalorder %s37, 4
      %p380 = por %p378, %p379
      %p381 = scmp.ne.s32.totalorder %s370, %s371
      %p382 = scmp.eq.s32.totalorder %s37, 0
      %p383 = por %p381, %p382
      %p384 = scmp.ne.s32.totalorder %s370, %s371
      %p385 = scmp.eq.s32.totalorder %s38, 4
      %p386 = por %p384, %p385
      %p388 = scmp.ne.s32.totalorder %s371, %s387
      %p389 = scmp.eq.s32.totalorder %s38, 0
      %p390 = por %p388, %p389
      %p391 = scmp.le.s32.totalorder 1, %s32
      %p392 = scmp.lt.s32.totalorder %s32, 6
      %p393 = pnand %p391, %p392
      %p394 = pneg %p393
      // Predicated region
      $region9: #{tpu_custom_call.1} parent=5 // pred_check
        _
      $region10: #{tpu_custom_call.1} parent=5 // pred_check_branch
        %396 = sbr.rel (%p393) target = $region12
      $region11: #{tpu_custom_call.1} parent=5 // pred_region
        %s397 = ssub.s32 %s32, 1
        // Predicated region
        $region13: #{tpu_custom_call.1} parent=11 // pred_check
          %p398 = pneg %p279
        $region14: #{tpu_custom_call.1} parent=11 // pred_check_branch
          %400 = sbr.rel (%p398) target = $region16
        $region15: #{tpu_custom_call.1} parent=11 // pred_region
          %s402 = ssub.s32 9216, 9216
          %403 = vsyncadd [#allocation11], %s402
          %s404 = sshll.u32 [#allocation12], 4
          %s405 = int_to_ptr.vmem [resolvable:$true] %s404
          %410 = dma.hbm_to_vmem [thread:$0]  %s6, 9216, %s405, [#allocation11], 64, 64, 4
        $region16: #{tpu_custom_call.1} parent=11 // pred_fallthru
          _
      $region12: #{tpu_custom_call.1} parent=5 // pred_fallthru
        _
      %p411 = scmp.lt.s32.totalorder %s32, 5
      // Predicated region
      $region17: #{tpu_custom_call.1} parent=5 // pred_check
        %p412 = pneg %p411
      $region18: #{tpu_custom_call.1} parent=5 // pred_check_branch
        %414 = sbr.rel (%p412) target = $region20
      $region19: #{tpu_custom_call.1} parent=5 // pred_region
        // Predicated region
        $region21: #{tpu_custom_call.1} parent=19 // pred_check
          %p415 = pneg %p64
        $region22: #{tpu_custom_call.1} parent=19 // pred_check_branch
          %417 = sbr.rel (%p415) target = $region24
        $region23: #{tpu_custom_call.1} parent=19 // pred_region
          %s418 = smul.u32 %s32, 4
          %s419 = sadd.s32 %s418, 4294967295
          %p420 = scmp.gt.s32.totalorder %s419, 0
          %s421 = scalar_select %p420, %s419, 0
          %p422 = scmp.lt.s32.totalorder %s421, 19
          %s423 = scalar_select %p422, %s421, 19
          %s424 = smul.u32 16, %s423
          %p425 = scmp.lt.s32.totalorder %s424, 319
          %s426 = scalar_select %p425, %s424, 319
          %s427 = smul.addr %s426, 4
          %s428 = scalar_lea.vmem %s0, %s427
          %s429 = smul.u32 %s32, 4
          %s430 = sadd.s32 %s429, 4294967295
          %p431 = scmp.gt.s32.totalorder %s430, 0
          %s432 = scalar_select %p431, %s430, 0
          %p433 = scmp.lt.s32.totalorder %s432, 19
          %s434 = scalar_select %p433, %s432, 19
          %s435 = smul.u32 16, %s434
        $region24: #{tpu_custom_call.1} parent=19 // pred_fallthru
          _
        // Predicated region
        $region25: #{tpu_custom_call.1} parent=19 // pred_check
          %p436 = pneg %p100
        $region26: #{tpu_custom_call.1} parent=19 // pred_check_branch
          %438 = sbr.rel (%p436) target = $region28
        $region27: #{tpu_custom_call.1} parent=19 // pred_region
          %s439 = smul.u32 %s32, 4
          %p440 = scmp.gt.s32.totalorder %s439, 0
          %s441 = scalar_select %p440, %s439, 0
          %p442 = scmp.lt.s32.totalorder %s441, 19
          %s443 = scalar_select %p442, %s441, 19
          %s444 = smul.u32 16, %s443
          %p445 = scmp.lt.s32.totalorder %s444, 319
          %s446 = scalar_select %p445, %s444, 319
          %s447 = smul.addr %s446, 4
          %s448 = scalar_lea.vmem %s1, %s447
          %s449 = smul.u32 %s32, 4
          %p450 = scmp.gt.s32.totalorder %s449, 0
          %s451 = scalar_select %p450, %s449, 0
          %p452 = scmp.lt.s32.totalorder %s451, 19
          %s453 = scalar_select %p452, %s451, 19
          %s454 = smul.u32 16, %s453
        $region28: #{tpu_custom_call.1} parent=19 // pred_fallthru
          _
        // Predicated region
        $region29: #{tpu_custom_call.1} parent=19 // pred_check
          %p455 = pneg %p138
        $region30: #{tpu_custom_call.1} parent=19 // pred_check_branch
          %457 = sbr.rel (%p455) target = $region32
        $region31: #{tpu_custom_call.1} parent=19 // pred_region
          %s458 = sand.u32 %s128, 1
          %s459 = scalar_lea.sflag [#allocation5], %s458
          %s460 = sand.u32 %s128, 1
          %s461 = smul.addr %s460, 64
          %s462 = scalar_lea.vmem [#allocation4], %s461
          %s463 = smul.u32 %s32, 4
          %s464 = sadd.s32 %s463, 1
          %p465 = scmp.gt.s32.totalorder %s464, 0
          %s466 = scalar_select %p465, %s464, 0
          %p467 = scmp.lt.s32.totalorder %s466, 19
          %s468 = scalar_select %p467, %s466, 19
          %s469 = smul.u32 16, %s468
          %s471 = ssub.s32 1024, 1024
          %472 = vsyncadd %s459, %s471
          %s473 = smul.addr %s469, 64
          %s474 = scalar_lea.hbm %s2, %s473
          %s475 = sshll.u32 %s462, 4
          %s476 = int_to_ptr.vmem [resolvable:$true] %s475
          %481 = dma.hbm_to_vmem [thread:$0]  %s474, 1024, %s476, %s459, 64, 64, 4
        $region32: #{tpu_custom_call.1} parent=19 // pred_fallthru
          _
        // Predicated region
        $region33: #{tpu_custom_call.1} parent=19 // pred_check
          %p482 = pneg %p176
        $region34: #{tpu_custom_call.1} parent=19 // pred_check_branch
          %484 = sbr.rel (%p482) target = $region36
        $region35: #{tpu_custom_call.1} parent=19 // pred_region
          %s485 = sand.u32 %s32, 1
          %s486 = scalar_lea.sflag [#allocation8], %s485
          %s487 = sand.u32 %s166, 1
          %s488 = smul.addr %s487, 64
          %s489 = scalar_lea.vmem [#allocation7], %s488
          %s490 = smul.u32 %s32, 4
          %s491 = sadd.s32 %s490, 2
          %p492 = scmp.gt.s32.totalorder %s491, 0
          %s493 = scalar_select %p492, %s491, 0
          %p494 = scmp.lt.s32.totalorder %s493, 19
          %s495 = scalar_select %p494, %s493, 19
          %s496 = smul.u32 16, %s495
          %s498 = ssub.s32 1024, 1024
          %499 = vsyncadd %s486, %s498
          %s500 = smul.addr %s496, 64
          %s501 = scalar_lea.hbm %s3, %s500
          %s502 = sshll.u32 %s489, 4
          %s503 = int_to_ptr.vmem [resolvable:$true] %s502
          %508 = dma.hbm_to_vmem [thread:$0]  %s501, 1024, %s503, %s486, 64, 64, 4
        $region36: #{tpu_custom_call.1} parent=19 // pred_fallthru
          _
        // Predicated region
        $region37: #{tpu_custom_call.1} parent=19 // pred_check
          %p509 = pneg %p214
        $region38: #{tpu_custom_call.1} parent=19 // pred_check_branch
          %511 = sbr.rel (%p509) target = $region40
        $region39: #{tpu_custom_call.1} parent=19 // pred_region
          %s512 = sand.u32 %s32, 1
          %s513 = scalar_lea.sflag [#allocation8], %s512
          %s514 = sand.u32 %s204, 1
          %s515 = smul.addr %s514, 64
          %s516 = scalar_lea.vmem [#allocation9], %s515
          %s517 = smul.u32 %s32, 4
          %s518 = sadd.s32 %s517, 3
          %p519 = scmp.gt.s32.totalorder %s518, 0
          %s520 = scalar_select %p519, %s518, 0
          %p521 = scmp.lt.s32.totalorder %s520, 19
          %s522 = scalar_select %p521, %s520, 19
          %s523 = smul.u32 16, %s522
          %s525 = ssub.s32 1024, 1024
          %526 = vsyncadd %s513, %s525
          %s527 = smul.addr %s523, 64
          %s528 = scalar_lea.hbm %s4, %s527
          %s529 = sshll.u32 %s516, 4
          %s530 = int_to_ptr.vmem [resolvable:$true] %s529
          %535 = dma.hbm_to_vmem [thread:$0]  %s528, 1024, %s530, %s513, 64, 64, 4
        $region40: #{tpu_custom_call.1} parent=19 // pred_fallthru
          _
        // Predicated region
        $region41: #{tpu_custom_call.1} parent=19 // pred_check
          %p536 = pneg %p252
        $region42: #{tpu_custom_call.1} parent=19 // pred_check_branch
          %538 = sbr.rel (%p536) target = $region44
        $region43: #{tpu_custom_call.1} parent=19 // pred_region
          %s539 = sand.u32 %s32, 1
          %s540 = scalar_lea.sflag [#allocation11], %s539
          %s541 = sand.u32 %s242, 1
          %s542 = smul.addr %s541, 64
          %s543 = scalar_lea.vmem [#allocation10], %s542
          %s544 = smul.u32 %s32, 4
          %s545 = sadd.s32 %s544, 4
          %p546 = scmp.gt.s32.totalorder %s545, 0
          %s547 = scalar_select %p546, %s545, 0
          %p548 = scmp.lt.s32.totalorder %s547, 19
          %s549 = scalar_select %p548, %s547, 19
          %s550 = smul.u32 16, %s549
          %s552 = ssub.s32 1024, 1024
          %553 = vsyncadd %s540, %s552
          %s554 = smul.addr %s550, 64
          %s555 = scalar_lea.hbm %s5, %s554
          %s556 = sshll.u32 %s543, 4
          %s557 = int_to_ptr.vmem [resolvable:$true] %s556
          %562 = dma.hbm_to_vmem [thread:$0]  %s555, 1024, %s557, %s540, 64, 64, 4
        $region44: #{tpu_custom_call.1} parent=19 // pred_fallthru
          _
        // Predicated region
        $region45: #{tpu_custom_call.1} parent=19 // pred_check
          %p563 = pneg %p299
        $region46: #{tpu_custom_call.1} parent=19 // pred_check_branch
          %565 = sbr.rel (%p563) target = $region48
        $region47: #{tpu_custom_call.1} parent=19 // pred_region
          %s566 = smul.u32 64, %s32
          %p567 = scmp.lt.s32.totalorder %s566, 319
          %s568 = scalar_select %p567, %s566, 319
          %s569 = smul.addr %s568, 8
          %s570 = scalar_lea.vmem %s7, %s569
          %s571 = smul.u32 64, %s32
        $region48: #{tpu_custom_call.1} parent=19 // pred_fallthru
          _
      $region20: #{tpu_custom_call.1} parent=5 // pred_fallthru
        _
      %p572 = scmp.le.s32.totalorder 1, %s32
      %p573 = scmp.lt.s32.totalorder %s32, 6
      %p574 = pnand %p572, %p573
      %p575 = pneg %p574
      // Predicated region
      $region49: #{tpu_custom_call.1} parent=5 // pred_check
        _
      $region50: #{tpu_custom_call.1} parent=5 // pred_check_branch
        %577 = sbr.rel (%p574) target = $region52
      $region51: #{tpu_custom_call.1} parent=5 // pred_region
        %s578 = ssub.s32 %s32, 1
        %s579 = sand.u32 %s131, 1
        %s580 = scalar_lea.sflag [#allocation5], %s579
        %s581 = sand.u32 %s131, 1
        %s582 = smul.addr %s581, 64
        %s583 = scalar_lea.vmem [#allocation4], %s582
        // Predicated region
        $region53: #{tpu_custom_call.1} parent=51 // pred_check
          %p584 = pneg %p144
        $region54: #{tpu_custom_call.1} parent=51 // pred_check_branch
          %586 = sbr.rel (%p584) target = $region56
        $region55: #{tpu_custom_call.1} parent=51 // pred_region
          %587 = dma.done %s580, 1024
        $region56: #{tpu_custom_call.1} parent=51 // pred_fallthru
          _
        %s588 = sand.u32 %s37, 1
        %s589 = scalar_lea.sflag [#allocation8], %s588
        %s590 = sand.u32 %s169, 1
        %s591 = smul.addr %s590, 64
        %s592 = scalar_lea.vmem [#allocation7], %s591
        // Predicated region
        $region57: #{tpu_custom_call.1} parent=51 // pred_check
          %p593 = pneg %p182
        $region58: #{tpu_custom_call.1} parent=51 // pred_check_branch
          %595 = sbr.rel (%p593) target = $region60
        $region59: #{tpu_custom_call.1} parent=51 // pred_region
          %596 = dma.done %s589, 1024
        $region60: #{tpu_custom_call.1} parent=51 // pred_fallthru
          _
        %s597 = sand.u32 %s37, 1
        %s598 = scalar_lea.sflag [#allocation8], %s597
        %s599 = sand.u32 %s207, 1
        %s600 = smul.addr %s599, 64
        %s601 = scalar_lea.vmem [#allocation9], %s600
        // Predicated region
        $region61: #{tpu_custom_call.1} parent=51 // pred_check
          %p602 = pneg %p220
        $region62: #{tpu_custom_call.1} parent=51 // pred_check_branch
          %604 = sbr.rel (%p602) target = $region64
        $region63: #{tpu_custom_call.1} parent=51 // pred_region
          %605 = dma.done %s598, 1024
        $region64: #{tpu_custom_call.1} parent=51 // pred_fallthru
          _
        %s606 = sand.u32 %s37, 1
        %s607 = scalar_lea.sflag [#allocation11], %s606
        %s608 = sand.u32 %s245, 1
        %s609 = smul.addr %s608, 64
        %s610 = scalar_lea.vmem [#allocation10], %s609
        // Predicated region
        $region65: #{tpu_custom_call.1} parent=51 // pred_check
          %p611 = pneg %p258
        $region66: #{tpu_custom_call.1} parent=51 // pred_check_branch
          %613 = sbr.rel (%p611) target = $region68
        $region67: #{tpu_custom_call.1} parent=51 // pred_region
          %614 = dma.done %s607, 1024
        $region68: #{tpu_custom_call.1} parent=51 // pred_fallthru
          _
        // Predicated region
        $region69: #{tpu_custom_call.1} parent=51 // pred_check
          %p615 = pneg %p279
        $region70: #{tpu_custom_call.1} parent=51 // pred_check_branch
          %617 = sbr.rel (%p615) target = $region72
        $region71: #{tpu_custom_call.1} parent=51 // pred_region
          %618 = dma.done [#allocation11], 9216
        $region72: #{tpu_custom_call.1} parent=51 // pred_fallthru
          _
        %s619 = smul.u32 %s37, 4
        %s620 = sadd.s32 %s619, 4294967295
        %p621 = scmp.gt.s32.totalorder %s620, 0
        %s622 = scalar_select %p621, %s620, 0
        %p623 = scmp.lt.s32.totalorder %s622, 19
        %s624 = scalar_select %p623, %s622, 19
        %s625 = smul.u32 16, %s624
        %p626 = scmp.lt.s32.totalorder %s625, 319
        %s627 = scalar_select %p626, %s625, 319
        %s628 = smul.addr %s627, 4
        %s629 = scalar_lea.vmem %s0, %s628
        %p630 = pneg %p70
        %p631 = pneg %p67
        %s632 = smul.u32 %s37, 4
        %p633 = scmp.gt.s32.totalorder %s632, 0
        %s634 = scalar_select %p633, %s632, 0
        %p635 = scmp.lt.s32.totalorder %s634, 19
        %s636 = scalar_select %p635, %s634, 19
        %s637 = smul.u32 16, %s636
        %p638 = scmp.lt.s32.totalorder %s637, 319
        %s639 = scalar_select %p638, %s637, 319
        %s640 = smul.addr %s639, 4
        %s641 = scalar_lea.vmem %s1, %s640
        %p642 = pneg %p106
        %p643 = pneg %p103
        %s644 = sand.u32 %s131, 1
        %s645 = scalar_lea.sflag [#allocation5], %s644
        %s646 = sand.u32 %s131, 1
        %s647 = smul.addr %s646, 64
        %s648 = scalar_lea.vmem [#allocation4], %s647
        %p649 = pneg %p144
        %p650 = pneg %p141
        %s651 = sand.u32 %s37, 1
        %s652 = scalar_lea.sflag [#allocation8], %s651
        %s653 = sand.u32 %s169, 1
        %s654 = smul.addr %s653, 64
        %s655 = scalar_lea.vmem [#allocation7], %s654
        %p656 = pneg %p182
        %p657 = pneg %p179
        %s658 = sand.u32 %s37, 1
        %s659 = scalar_lea.sflag [#allocation8], %s658
        %s660 = sand.u32 %s207, 1
        %s661 = smul.addr %s660, 64
        %s662 = scalar_lea.vmem [#allocation9], %s661
        %p663 = pneg %p220
        %p664 = pneg %p217
        %s665 = sand.u32 %s37, 1
        %s666 = scalar_lea.sflag [#allocation11], %s665
        %s667 = sand.u32 %s245, 1
        %s668 = smul.addr %s667, 64
        %s669 = scalar_lea.vmem [#allocation10], %s668
        %p670 = pneg %p258
        %p671 = pneg %p255
        %p672 = pneg %p279
        %p673 = pneg %p276
        %s674 = smul.u32 64, %s37
        %p675 = scmp.lt.s32.totalorder %s674, 319
        %s676 = scalar_select %p675, %s674, 319
        %s677 = smul.addr %s676, 8
        %s678 = scalar_lea.vmem %s7, %s677
        %p679 = pneg %p305
        %p680 = pneg %p302
        %p681 = pneg %p331
        %p682 = pneg %p328
        %s683 = sand.u32 %s318, 1
        %s684 = scalar_lea.sflag [#allocation6], %s683
        %s685 = sand.u32 %s318, 1
        %s686 = smul.addr %s685, 256
        %s687 = scalar_lea.vmem [#allocation13], %s686
        %p688 = pneg %p357
        %p689 = pneg %p354
        %s690 = sand.u32 %s37, 1
        %s691 = scalar_lea.sflag [#allocation15], %s690
        %s692 = sand.u32 %s344, 1
        %s693 = smul.addr %s692, 8
        %s694 = scalar_lea.vmem [#allocation14], %s693
        %p695 = pneg %p383
        %p696 = pneg %p380
        %s697 = sand.u32 %s37, 1
        %s698 = scalar_lea.sflag [#allocation15], %s697
        %s699 = sand.u32 %s370, 1
        %s700 = smul.addr %s699, 8
        %s701 = scalar_lea.vmem [#allocation16], %s700
        %s702 = smul.u32 %s37, 4
        %s703 = sadd.s32 %s702, 4294967295
        %p704 = scmp.gt.s32.totalorder %s703, 0
        %s705 = scalar_select %p704, %s703, 0
        %p706 = scmp.lt.s32.totalorder %s705, 19
        %s707 = scalar_select %p706, %s705, 19
        %s708 = smul.u32 16, %s707
        %p709 = scmp.lt.s32.totalorder %s708, 319
        %s710 = scalar_select %p709, %s708, 319
        %s711 = smul.addr %s710, 4
        %s712 = scalar_lea.vmem %s0, %s711
        %s713 = smul.u32 %s37, 4
        %s714 = sadd.s32 %s713, 4294967295
        %p715 = scmp.gt.s32.totalorder %s714, 0
        %s716 = scalar_select %p715, %s714, 0
        %p717 = scmp.lt.s32.totalorder %s716, 19
        %s718 = scalar_select %p717, %s716, 19
        %s719 = smul.u32 16, %s718
        %s720 = smul.u32 %s37, 4
        %p721 = scmp.gt.s32.totalorder %s720, 0
        %s722 = scalar_select %p721, %s720, 0
        %p723 = scmp.lt.s32.totalorder %s722, 19
        %s724 = scalar_select %p723, %s722, 19
        %s725 = smul.u32 16, %s724
        %p726 = scmp.lt.s32.totalorder %s725, 319
        %s727 = scalar_select %p726, %s725, 319
        %s728 = smul.addr %s727, 4
        %s729 = scalar_lea.vmem %s1, %s728
        %s730 = smul.u32 %s37, 4
        %p731 = scmp.gt.s32.totalorder %s730, 0
        %s732 = scalar_select %p731, %s730, 0
        %p733 = scmp.lt.s32.totalorder %s732, 19
        %s734 = scalar_select %p733, %s732, 19
        %s735 = smul.u32 16, %s734
        %s736 = smul.u32 %s37, 4
        %s737 = sadd.s32 %s736, 1
        %p738 = scmp.gt.s32.totalorder %s737, 0
        %s739 = scalar_select %p738, %s737, 0
        %p740 = scmp.lt.s32.totalorder %s739, 19
        %s741 = scalar_select %p740, %s739, 19
        %s742 = smul.u32 16, %s741
        %s743 = smul.u32 %s37, 4
        %s744 = sadd.s32 %s743, 2
        %p745 = scmp.gt.s32.totalorder %s744, 0
        %s746 = scalar_select %p745, %s744, 0
        %p747 = scmp.lt.s32.totalorder %s746, 19
        %s748 = scalar_select %p747, %s746, 19
        %s749 = smul.u32 16, %s748
        %s750 = smul.u32 %s37, 4
        %s751 = sadd.s32 %s750, 3
        %p752 = scmp.gt.s32.totalorder %s751, 0
        %s753 = scalar_select %p752, %s751, 0
        %p754 = scmp.lt.s32.totalorder %s753, 19
        %s755 = scalar_select %p754, %s753, 19
        %s756 = smul.u32 16, %s755
        %s757 = smul.u32 %s37, 4
        %s758 = sadd.s32 %s757, 4
        %p759 = scmp.gt.s32.totalorder %s758, 0
        %s760 = scalar_select %p759, %s758, 0
        %p761 = scmp.lt.s32.totalorder %s760, 19
        %s762 = scalar_select %p761, %s760, 19
        %s763 = smul.u32 16, %s762
        %s764 = smul.u32 64, %s37
        %p765 = scmp.lt.s32.totalorder %s764, 319
        %s766 = scalar_select %p765, %s764, 319
        %s767 = smul.addr %s766, 8
        %s768 = scalar_lea.vmem %s7, %s767
        %s769 = smul.u32 64, %s37
        %s770 = smul.u32 64, %s37
        %v772 = vld [vmem:[%s712] sm:$0xf]
        %v773 = vld [vmem:[%s712 + $0x4] sm:$0xf]
        %v774 = vld [vmem:[%s712 + $0x8] sm:$0xf]
        %v775 = vld [vmem:[%s712 + $0xc] sm:$0xf]
        %v776 = vld [vmem:[%s712 + $0x10] sm:$0xf]
        %v777 = vld [vmem:[%s712 + $0x14] sm:$0xf]
        %v778 = vld [vmem:[%s712 + $0x18] sm:$0xf]
        %v779 = vld [vmem:[%s712 + $0x1c] sm:$0xf]
        %v780 = vld [vmem:[%s712 + $0x20] sm:$0xf]
        %v781 = vld [vmem:[%s712 + $0x24] sm:$0xf]
        %v782 = vld [vmem:[%s712 + $0x28] sm:$0xf]
        %v783 = vld [vmem:[%s712 + $0x2c] sm:$0xf]
        %v784 = vld [vmem:[%s712 + $0x30] sm:$0xf]
        %v785 = vld [vmem:[%s712 + $0x34] sm:$0xf]
        %v786 = vld [vmem:[%s712 + $0x38] sm:$0xf]
        %v787 = vld [vmem:[%s712 + $0x3c] sm:$0xf]
        %v804 = vunpack.c.l.b16 %v772
        %v805 = vunpack.c.l.b16 %v773
        %v806 = vunpack.c.l.b16 %v774
        %v807 = vunpack.c.l.b16 %v775
        %v808 = vunpack.c.l.b16 %v776
        %v809 = vunpack.c.l.b16 %v777
        %v810 = vunpack.c.l.b16 %v778
        %v811 = vunpack.c.l.b16 %v779
        %v812 = vunpack.c.l.b16 %v780
        %v813 = vunpack.c.l.b16 %v781
        %v814 = vunpack.c.l.b16 %v782
        %v815 = vunpack.c.l.b16 %v783
        %v816 = vunpack.c.l.b16 %v784
        %v817 = vunpack.c.l.b16 %v785
        %v818 = vunpack.c.l.b16 %v786
        %v819 = vunpack.c.l.b16 %v787
        %v820 = vpack.c.b16 %v805, %v804
        %v821 = vpack.c.b16 %v807, %v806
        %v822 = vpack.c.b16 %v809, %v808
        %v823 = vpack.c.b16 %v811, %v810
        %v824 = vpack.c.b16 %v813, %v812
        %v825 = vpack.c.b16 %v815, %v814
        %v826 = vpack.c.b16 %v817, %v816
        %v827 = vpack.c.b16 %v819, %v818
        %836 = vst [vmem:[#allocation2] sm:$0xff] %v820
        %837 = vst [vmem:[#allocation2 + $0x8] sm:$0xff] %v821
        %838 = vst [vmem:[#allocation2 + $0x10] sm:$0xff] %v822
        %839 = vst [vmem:[#allocation2 + $0x18] sm:$0xff] %v823
        %840 = vst [vmem:[#allocation2 + $0x20] sm:$0xff] %v824
        %841 = vst [vmem:[#allocation2 + $0x28] sm:$0xff] %v825
        %842 = vst [vmem:[#allocation2 + $0x30] sm:$0xff] %v826
        %843 = vst [vmem:[#allocation2 + $0x38] sm:$0xff] %v827
        %v844 = vld [vmem:[%s729] sm:$0xf]
        %v845 = vld [vmem:[%s729 + $0x4] sm:$0xf]
        %v846 = vld [vmem:[%s729 + $0x8] sm:$0xf]
        %v847 = vld [vmem:[%s729 + $0xc] sm:$0xf]
        %v848 = vld [vmem:[%s729 + $0x10] sm:$0xf]
        %v849 = vld [vmem:[%s729 + $0x14] sm:$0xf]
        %v850 = vld [vmem:[%s729 + $0x18] sm:$0xf]
        %v851 = vld [vmem:[%s729 + $0x1c] sm:$0xf]
        %v852 = vld [vmem:[%s729 + $0x20] sm:$0xf]
        %v853 = vld [vmem:[%s729 + $0x24] sm:$0xf]
        %v854 = vld [vmem:[%s729 + $0x28] sm:$0xf]
        %v855 = vld [vmem:[%s729 + $0x2c] sm:$0xf]
        %v856 = vld [vmem:[%s729 + $0x30] sm:$0xf]
        %v857 = vld [vmem:[%s729 + $0x34] sm:$0xf]
        %v858 = vld [vmem:[%s729 + $0x38] sm:$0xf]
        %v859 = vld [vmem:[%s729 + $0x3c] sm:$0xf]
        %v876 = vunpack.c.l.b16 %v844
        %v877 = vunpack.c.l.b16 %v845
        %v878 = vunpack.c.l.b16 %v846
        %v879 = vunpack.c.l.b16 %v847
        %v880 = vunpack.c.l.b16 %v848
        %v881 = vunpack.c.l.b16 %v849
        %v882 = vunpack.c.l.b16 %v850
        %v883 = vunpack.c.l.b16 %v851
        %v884 = vunpack.c.l.b16 %v852
        %v885 = vunpack.c.l.b16 %v853
        %v886 = vunpack.c.l.b16 %v854
        %v887 = vunpack.c.l.b16 %v855
        %v888 = vunpack.c.l.b16 %v856
        %v889 = vunpack.c.l.b16 %v857
        %v890 = vunpack.c.l.b16 %v858
        %v891 = vunpack.c.l.b16 %v859
        %v892 = vpack.c.b16 %v877, %v876
        %v893 = vpack.c.b16 %v879, %v878
        %v894 = vpack.c.b16 %v881, %v880
        %v895 = vpack.c.b16 %v883, %v882
        %v896 = vpack.c.b16 %v885, %v884
        %v897 = vpack.c.b16 %v887, %v886
        %v898 = vpack.c.b16 %v889, %v888
        %v899 = vpack.c.b16 %v891, %v890
        %908 = vst [vmem:[#allocation2 + $0x40] sm:$0xff] %v892
        %909 = vst [vmem:[#allocation2 + $0x48] sm:$0xff] %v893
        %910 = vst [vmem:[#allocation2 + $0x50] sm:$0xff] %v894
        %911 = vst [vmem:[#allocation2 + $0x58] sm:$0xff] %v895
        %912 = vst [vmem:[#allocation2 + $0x60] sm:$0xff] %v896
        %913 = vst [vmem:[#allocation2 + $0x68] sm:$0xff] %v897
        %914 = vst [vmem:[#allocation2 + $0x70] sm:$0xff] %v898
        %915 = vst [vmem:[#allocation2 + $0x78] sm:$0xff] %v899
        %v916 = vld [vmem:[%s583] sm:$0xf]
        %v917 = vld [vmem:[%s583 + $0x4] sm:$0xf]
        %v918 = vld [vmem:[%s583 + $0x8] sm:$0xf]
        %v919 = vld [vmem:[%s583 + $0xc] sm:$0xf]
        %v920 = vld [vmem:[%s583 + $0x10] sm:$0xf]
        %v921 = vld [vmem:[%s583 + $0x14] sm:$0xf]
        %v922 = vld [vmem:[%s583 + $0x18] sm:$0xf]
        %v923 = vld [vmem:[%s583 + $0x1c] sm:$0xf]
        %v924 = vld [vmem:[%s583 + $0x20] sm:$0xf]
        %v925 = vld [vmem:[%s583 + $0x24] sm:$0xf]
        %v926 = vld [vmem:[%s583 + $0x28] sm:$0xf]
        %v927 = vld [vmem:[%s583 + $0x2c] sm:$0xf]
        %v928 = vld [vmem:[%s583 + $0x30] sm:$0xf]
        %v929 = vld [vmem:[%s583 + $0x34] sm:$0xf]
        %v930 = vld [vmem:[%s583 + $0x38] sm:$0xf]
        %v931 = vld [vmem:[%s583 + $0x3c] sm:$0xf]
        %v948 = vunpack.c.l.b16 %v916
        %v949 = vunpack.c.l.b16 %v917
        %v950 = vunpack.c.l.b16 %v918
        %v951 = vunpack.c.l.b16 %v919
        %v952 = vunpack.c.l.b16 %v920
        %v953 = vunpack.c.l.b16 %v921
        %v954 = vunpack.c.l.b16 %v922
        %v955 = vunpack.c.l.b16 %v923
        %v956 = vunpack.c.l.b16 %v924
        %v957 = vunpack.c.l.b16 %v925
        %v958 = vunpack.c.l.b16 %v926
        %v959 = vunpack.c.l.b16 %v927
        %v960 = vunpack.c.l.b16 %v928
        %v961 = vunpack.c.l.b16 %v929
        %v962 = vunpack.c.l.b16 %v930
        %v963 = vunpack.c.l.b16 %v931
        %v964 = vpack.c.b16 %v949, %v948
        %v965 = vpack.c.b16 %v951, %v950
        %v966 = vpack.c.b16 %v953, %v952
        %v967 = vpack.c.b16 %v955, %v954
        %v968 = vpack.c.b16 %v957, %v956
        %v969 = vpack.c.b16 %v959, %v958
        %v970 = vpack.c.b16 %v961, %v960
        %v971 = vpack.c.b16 %v963, %v962
        %980 = vst [vmem:[#allocation2 + $0x80] sm:$0xff] %v964
        %981 = vst [vmem:[#allocation2 + $0x88] sm:$0xff] %v965
        %982 = vst [vmem:[#allocation2 + $0x90] sm:$0xff] %v966
        %983 = vst [vmem:[#allocation2 + $0x98] sm:$0xff] %v967
        %984 = vst [vmem:[#allocation2 + $0xa0] sm:$0xff] %v968
        %985 = vst [vmem:[#allocation2 + $0xa8] sm:$0xff] %v969
        %986 = vst [vmem:[#allocation2 + $0xb0] sm:$0xff] %v970
        %987 = vst [vmem:[#allocation2 + $0xb8] sm:$0xff] %v971
        %v988 = vld [vmem:[%s592] sm:$0xf]
        %v989 = vld [vmem:[%s592 + $0x4] sm:$0xf]
        %v990 = vld [vmem:[%s592 + $0x8] sm:$0xf]
        %v991 = vld [vmem:[%s592 + $0xc] sm:$0xf]
        %v992 = vld [vmem:[%s592 + $0x10] sm:$0xf]
        %v993 = vld [vmem:[%s592 + $0x14] sm:$0xf]
        %v994 = vld [vmem:[%s592 + $0x18] sm:$0xf]
        %v995 = vld [vmem:[%s592 + $0x1c] sm:$0xf]
        %v996 = vld [vmem:[%s592 + $0x20] sm:$0xf]
        %v997 = vld [vmem:[%s592 + $0x24] sm:$0xf]
        %v998 = vld [vmem:[%s592 + $0x28] sm:$0xf]
        %v999 = vld [vmem:[%s592 + $0x2c] sm:$0xf]
        %v1000 = vld [vmem:[%s592 + $0x30] sm:$0xf]
        %v1001 = vld [vmem:[%s592 + $0x34] sm:$0xf]
        %v1002 = vld [vmem:[%s592 + $0x38] sm:$0xf]
        %v1003 = vld [vmem:[%s592 + $0x3c] sm:$0xf]
        %v1020 = vunpack.c.l.b16 %v988
        %v1021 = vunpack.c.l.b16 %v989
        %v1022 = vunpack.c.l.b16 %v990
        %v1023 = vunpack.c.l.b16 %v991
        %v1024 = vunpack.c.l.b16 %v992
        %v1025 = vunpack.c.l.b16 %v993
        %v1026 = vunpack.c.l.b16 %v994
        %v1027 = vunpack.c.l.b16 %v995
        %v1028 = vunpack.c.l.b16 %v996
        %v1029 = vunpack.c.l.b16 %v997
        %v1030 = vunpack.c.l.b16 %v998
        %v1031 = vunpack.c.l.b16 %v999
        %v1032 = vunpack.c.l.b16 %v1000
        %v1033 = vunpack.c.l.b16 %v1001
        %v1034 = vunpack.c.l.b16 %v1002
        %v1035 = vunpack.c.l.b16 %v1003
        %v1036 = vpack.c.b16 %v1021, %v1020
        %v1037 = vpack.c.b16 %v1023, %v1022
        %v1038 = vpack.c.b16 %v1025, %v1024
        %v1039 = vpack.c.b16 %v1027, %v1026
        %v1040 = vpack.c.b16 %v1029, %v1028
        %v1041 = vpack.c.b16 %v1031, %v1030
        %v1042 = vpack.c.b16 %v1033, %v1032
        %v1043 = vpack.c.b16 %v1035, %v1034
        %1052 = vst [vmem:[#allocation2 + $0xc0] sm:$0xff] %v1036
        %1053 = vst [vmem:[#allocation2 + $0xc8] sm:$0xff] %v1037
        %1054 = vst [vmem:[#allocation2 + $0xd0] sm:$0xff] %v1038
        %1055 = vst [vmem:[#allocation2 + $0xd8] sm:$0xff] %v1039
        %1056 = vst [vmem:[#allocation2 + $0xe0] sm:$0xff] %v1040
        %1057 = vst [vmem:[#allocation2 + $0xe8] sm:$0xff] %v1041
        %1058 = vst [vmem:[#allocation2 + $0xf0] sm:$0xff] %v1042
        %1059 = vst [vmem:[#allocation2 + $0xf8] sm:$0xff] %v1043
        %v1060 = vld [vmem:[%s601] sm:$0xf]
        %v1061 = vld [vmem:[%s601 + $0x4] sm:$0xf]
        %v1062 = vld [vmem:[%s601 + $0x8] sm:$0xf]
        %v1063 = vld [vmem:[%s601 + $0xc] sm:$0xf]
        %v1064 = vld [vmem:[%s601 + $0x10] sm:$0xf]
        %v1065 = vld [vmem:[%s601 + $0x14] sm:$0xf]
        %v1066 = vld [vmem:[%s601 + $0x18] sm:$0xf]
        %v1067 = vld [vmem:[%s601 + $0x1c] sm:$0xf]
        %v1068 = vld [vmem:[%s601 + $0x20] sm:$0xf]
        %v1069 = vld [vmem:[%s601 + $0x24] sm:$0xf]
        %v1070 = vld [vmem:[%s601 + $0x28] sm:$0xf]
        %v1071 = vld [vmem:[%s601 + $0x2c] sm:$0xf]
        %v1072 = vld [vmem:[%s601 + $0x30] sm:$0xf]
        %v1073 = vld [vmem:[%s601 + $0x34] sm:$0xf]
        %v1074 = vld [vmem:[%s601 + $0x38] sm:$0xf]
        %v1075 = vld [vmem:[%s601 + $0x3c] sm:$0xf]
        %v1092 = vunpack.c.l.b16 %v1060
        %v1093 = vunpack.c.l.b16 %v1061
        %v1094 = vunpack.c.l.b16 %v1062
        %v1095 = vunpack.c.l.b16 %v1063
        %v1096 = vunpack.c.l.b16 %v1064
        %v1097 = vunpack.c.l.b16 %v1065
        %v1098 = vunpack.c.l.b16 %v1066
        %v1099 = vunpack.c.l.b16 %v1067
        %v1100 = vunpack.c.l.b16 %v1068
        %v1101 = vunpack.c.l.b16 %v1069
        %v1102 = vunpack.c.l.b16 %v1070
        %v1103 = vunpack.c.l.b16 %v1071
        %v1104 = vunpack.c.l.b16 %v1072
        %v1105 = vunpack.c.l.b16 %v1073
        %v1106 = vunpack.c.l.b16 %v1074
        %v1107 = vunpack.c.l.b16 %v1075
        %v1108 = vpack.c.b16 %v1093, %v1092
        %v1109 = vpack.c.b16 %v1095, %v1094
        %v1110 = vpack.c.b16 %v1097, %v1096
        %v1111 = vpack.c.b16 %v1099, %v1098
        %v1112 = vpack.c.b16 %v1101, %v1100
        %v1113 = vpack.c.b16 %v1103, %v1102
        %v1114 = vpack.c.b16 %v1105, %v1104
        %v1115 = vpack.c.b16 %v1107, %v1106
        %1124 = vst [vmem:[#allocation2 + $0x100] sm:$0xff] %v1108
        %1125 = vst [vmem:[#allocation2 + $0x108] sm:$0xff] %v1109
        %1126 = vst [vmem:[#allocation2 + $0x110] sm:$0xff] %v1110
        %1127 = vst [vmem:[#allocation2 + $0x118] sm:$0xff] %v1111
        %1128 = vst [vmem:[#allocation2 + $0x120] sm:$0xff] %v1112
        %1129 = vst [vmem:[#allocation2 + $0x128] sm:$0xff] %v1113
        %1130 = vst [vmem:[#allocation2 + $0x130] sm:$0xff] %v1114
        %1131 = vst [vmem:[#allocation2 + $0x138] sm:$0xff] %v1115
        %v1132 = vld [vmem:[%s610] sm:$0xf]
        %v1133 = vld [vmem:[%s610 + $0x4] sm:$0xf]
        %v1134 = vld [vmem:[%s610 + $0x8] sm:$0xf]
        %v1135 = vld [vmem:[%s610 + $0xc] sm:$0xf]
        %v1136 = vld [vmem:[%s610 + $0x10] sm:$0xf]
        %v1137 = vld [vmem:[%s610 + $0x14] sm:$0xf]
        %v1138 = vld [vmem:[%s610 + $0x18] sm:$0xf]
        %v1139 = vld [vmem:[%s610 + $0x1c] sm:$0xf]
        %v1140 = vld [vmem:[%s610 + $0x20] sm:$0xf]
        %v1141 = vld [vmem:[%s610 + $0x24] sm:$0xf]
        %v1142 = vld [vmem:[%s610 + $0x28] sm:$0xf]
        %v1143 = vld [vmem:[%s610 + $0x2c] sm:$0xf]
        %v1144 = vld [vmem:[%s610 + $0x30] sm:$0xf]
        %v1145 = vld [vmem:[%s610 + $0x34] sm:$0xf]
        %v1146 = vld [vmem:[%s610 + $0x38] sm:$0xf]
        %v1147 = vld [vmem:[%s610 + $0x3c] sm:$0xf]
        %v1164 = vunpack.c.l.b16 %v1132
        %v1165 = vunpack.c.l.b16 %v1133
        %v1166 = vunpack.c.l.b16 %v1134
        %v1167 = vunpack.c.l.b16 %v1135
        %v1168 = vunpack.c.l.b16 %v1136
        %v1169 = vunpack.c.l.b16 %v1137
        %v1170 = vunpack.c.l.b16 %v1138
        %v1171 = vunpack.c.l.b16 %v1139
        %v1172 = vunpack.c.l.b16 %v1140
        %v1173 = vunpack.c.l.b16 %v1141
        %v1174 = vunpack.c.l.b16 %v1142
        %v1175 = vunpack.c.l.b16 %v1143
        %v1176 = vunpack.c.l.b16 %v1144
        %v1177 = vunpack.c.l.b16 %v1145
        %v1178 = vunpack.c.l.b16 %v1146
        %v1179 = vunpack.c.l.b16 %v1147
        %v1180 = vpack.c.b16 %v1165, %v1164
        %v1181 = vpack.c.b16 %v1167, %v1166
        %v1182 = vpack.c.b16 %v1169, %v1168
        %v1183 = vpack.c.b16 %v1171, %v1170
        %v1184 = vpack.c.b16 %v1173, %v1172
        %v1185 = vpack.c.b16 %v1175, %v1174
        %v1186 = vpack.c.b16 %v1177, %v1176
        %v1187 = vpack.c.b16 %v1179, %v1178
        %1196 = vst [vmem:[#allocation2 + $0x140] sm:$0xff] %v1180
        %1197 = vst [vmem:[#allocation2 + $0x148] sm:$0xff] %v1181
        %1198 = vst [vmem:[#allocation2 + $0x150] sm:$0xff] %v1182
        %1199 = vst [vmem:[#allocation2 + $0x158] sm:$0xff] %v1183
        %1200 = vst [vmem:[#allocation2 + $0x160] sm:$0xff] %v1184
        %1201 = vst [vmem:[#allocation2 + $0x168] sm:$0xff] %v1185
        %1202 = vst [vmem:[#allocation2 + $0x170] sm:$0xff] %v1186
        %1203 = vst [vmem:[#allocation2 + $0x178] sm:$0xff] %v1187
        %v1204 = vld [vmem:[#allocation2 + $0x28] sm:$0xc0]
        %v1205 = vld [vmem:[#allocation2 + $0x30] sm:$0xff]
        %v1206 = vld [vmem:[#allocation2 + $0x38] sm:$0xff]
        %v1207 = vld [vmem:[#allocation2 + $0x40] sm:$0xff]
        %v1208 = vld [vmem:[#allocation2 + $0x48] sm:$0xff]
        %v1209 = vld [vmem:[#allocation2 + $0x50] sm:$0xff]
        %v1210 = vld [vmem:[#allocation2 + $0x58] sm:$0xff]
        %v1211 = vld [vmem:[#allocation2 + $0x60] sm:$0xff]
        %v1212 = vld [vmem:[#allocation2 + $0x68] sm:$0xff]
        %v1213 = vld [vmem:[#allocation2 + $0x70] sm:$0xff]
        %v1214 = vld [vmem:[#allocation2 + $0x78] sm:$0xff]
        %v1215 = vld [vmem:[#allocation2 + $0x80] sm:$0xff]
        %v1216 = vld [vmem:[#allocation2 + $0x88] sm:$0xff]
        %v1217 = vld [vmem:[#allocation2 + $0x90] sm:$0xff]
        %v1218 = vld [vmem:[#allocation2 + $0x98] sm:$0xff]
        %v1219 = vld [vmem:[#allocation2 + $0xa0] sm:$0xff]
        %v1220 = vld [vmem:[#allocation2 + $0xa8] sm:$0xff]
        %v1221 = vld [vmem:[#allocation2 + $0xb0] sm:$0xff]
        %v1222 = vld [vmem:[#allocation2 + $0xb8] sm:$0xff]
        %v1223 = vld [vmem:[#allocation2 + $0xc0] sm:$0xff]
        %v1224 = vld [vmem:[#allocation2 + $0xc8] sm:$0xff]
        %v1225 = vld [vmem:[#allocation2 + $0xd0] sm:$0xff]
        %v1226 = vld [vmem:[#allocation2 + $0xd8] sm:$0xff]
        %v1227 = vld [vmem:[#allocation2 + $0xe0] sm:$0xff]
        %v1228 = vld [vmem:[#allocation2 + $0xe8] sm:$0xff]
        %v1229 = vld [vmem:[#allocation2 + $0xf0] sm:$0xff]
        %v1230 = vld [vmem:[#allocation2 + $0xf8] sm:$0xff]
        %v1231 = vld [vmem:[#allocation2 + $0x100] sm:$0xff]
        %v1232 = vld [vmem:[#allocation2 + $0x108] sm:$0xff]
        %v1233 = vld [vmem:[#allocation2 + $0x110] sm:$0xff]
        %v1234 = vld [vmem:[#allocation2 + $0x118] sm:$0xff]
        %v1235 = vld [vmem:[#allocation2 + $0x120] sm:$0xff]
        %v1236 = vld [vmem:[#allocation2 + $0x128] sm:$0x7f]
        %v1237 = vld [vmem:[#allocation12] sm:$0xf]
        %v1238 = vld [vmem:[#allocation12 + $0x4] sm:$0xf]
        %v1239 = vld [vmem:[#allocation12 + $0x8] sm:$0xf]
        %v1240 = vld [vmem:[#allocation12 + $0xc] sm:$0xf]
        %v1241 = vld [vmem:[#allocation12 + $0x10] sm:$0xf]
        %v1242 = vld [vmem:[#allocation12 + $0x14] sm:$0xf]
        %v1243 = vld [vmem:[#allocation12 + $0x18] sm:$0xf]
        %v1244 = vld [vmem:[#allocation12 + $0x1c] sm:$0xf]
        %v1245 = vld [vmem:[#allocation12 + $0x20] sm:$0xf]
        %v1246 = vld [vmem:[#allocation12 + $0x24] sm:$0xf]
        %v1247 = vld [vmem:[#allocation12 + $0x28] sm:$0xf]
        %v1248 = vld [vmem:[#allocation12 + $0x2c] sm:$0xf]
        %v1249 = vld [vmem:[#allocation12 + $0x30] sm:$0xf]
        %v1250 = vld [vmem:[#allocation12 + $0x34] sm:$0xf]
        %v1251 = vld [vmem:[#allocation12 + $0x38] sm:$0xf]
        %v1252 = vld [vmem:[#allocation12 + $0x3c] sm:$0xf]
        %vm1253 = vsmask.f32 1280
        %v1255 = vshrl.u32 %v1204, 16
        %v1257 = vrot.slane %v1255, 6
        %v1258 = vshll.u32 %v1204, 16
        %v1260 = vrot.slane %v1258, 7
        %v1261 = vor.u32 %v1257, %v1260
        %v1263 = vshrl.u32 %v1205, 16
        %v1265 = vrot.slane %v1263, 6
        %v1266 = vshll.u32 %v1205, 16
        %v1268 = vrot.slane %v1266, 7
        %v1269 = vor.u32 %v1265, %v1268
        %v1270 = vsel %vm1253, %v1261, %v1269
        %v1272 = vshrl.u32 %v1206, 16
        %v1274 = vrot.slane %v1272, 6
        %v1275 = vshll.u32 %v1206, 16
        %v1277 = vrot.slane %v1275, 7
        %v1278 = vor.u32 %v1274, %v1277
        %v1279 = vsel %vm1253, %v1269, %v1278
        %v1281 = vshrl.u32 %v1207, 16
        %v1283 = vrot.slane %v1281, 6
        %v1284 = vshll.u32 %v1207, 16
        %v1286 = vrot.slane %v1284, 7
        %v1287 = vor.u32 %v1283, %v1286
        %v1288 = vsel %vm1253, %v1278, %v1287
        %v1290 = vshrl.u32 %v1208, 16
        %v1292 = vrot.slane %v1290, 6
        %v1293 = vshll.u32 %v1208, 16
        %v1295 = vrot.slane %v1293, 7
        %v1296 = vor.u32 %v1292, %v1295
        %v1297 = vsel %vm1253, %v1287, %v1296
        %v1299 = vshrl.u32 %v1209, 16
        %v1301 = vrot.slane %v1299, 6
        %v1302 = vshll.u32 %v1209, 16
        %v1304 = vrot.slane %v1302, 7
        %v1305 = vor.u32 %v1301, %v1304
        %v1306 = vsel %vm1253, %v1296, %v1305
        %v1308 = vshrl.u32 %v1210, 16
        %v1310 = vrot.slane %v1308, 6
        %v1311 = vshll.u32 %v1210, 16
        %v1313 = vrot.slane %v1311, 7
        %v1314 = vor.u32 %v1310, %v1313
        %v1315 = vsel %vm1253, %v1305, %v1314
        %v1317 = vshrl.u32 %v1211, 16
        %v1319 = vrot.slane %v1317, 6
        %v1320 = vshll.u32 %v1211, 16
        %v1322 = vrot.slane %v1320, 7
        %v1323 = vor.u32 %v1319, %v1322
        %v1324 = vsel %vm1253, %v1314, %v1323
        %v1326 = vshrl.u32 %v1212, 16
        %v1328 = vrot.slane %v1326, 6
        %v1329 = vshll.u32 %v1212, 16
        %v1331 = vrot.slane %v1329, 7
        %v1332 = vor.u32 %v1328, %v1331
        %v1333 = vsel %vm1253, %v1323, %v1332
        %v1335 = vshrl.u32 %v1213, 16
        %v1337 = vrot.slane %v1335, 6
        %v1338 = vshll.u32 %v1213, 16
        %v1340 = vrot.slane %v1338, 7
        %v1341 = vor.u32 %v1337, %v1340
        %v1342 = vsel %vm1253, %v1332, %v1341
        %v1344 = vshrl.u32 %v1214, 16
        %v1346 = vrot.slane %v1344, 6
        %v1347 = vshll.u32 %v1214, 16
        %v1349 = vrot.slane %v1347, 7
        %v1350 = vor.u32 %v1346, %v1349
        %v1351 = vsel %vm1253, %v1341, %v1350
        %v1353 = vshrl.u32 %v1215, 16
        %v1355 = vrot.slane %v1353, 6
        %v1356 = vshll.u32 %v1215, 16
        %v1358 = vrot.slane %v1356, 7
        %v1359 = vor.u32 %v1355, %v1358
        %v1360 = vsel %vm1253, %v1350, %v1359
        %v1362 = vshrl.u32 %v1216, 16
        %v1364 = vrot.slane %v1362, 6
        %v1365 = vshll.u32 %v1216, 16
        %v1367 = vrot.slane %v1365, 7
        %v1368 = vor.u32 %v1364, %v1367
        %v1369 = vsel %vm1253, %v1359, %v1368
        %v1371 = vshrl.u32 %v1217, 16
        %v1373 = vrot.slane %v1371, 6
        %v1374 = vshll.u32 %v1217, 16
        %v1376 = vrot.slane %v1374, 7
        %v1377 = vor.u32 %v1373, %v1376
        %v1378 = vsel %vm1253, %v1368, %v1377
        %v1380 = vshrl.u32 %v1218, 16
        %v1382 = vrot.slane %v1380, 6
        %v1383 = vshll.u32 %v1218, 16
        %v1385 = vrot.slane %v1383, 7
        %v1386 = vor.u32 %v1382, %v1385
        %v1387 = vsel %vm1253, %v1377, %v1386
        %v1389 = vshrl.u32 %v1219, 16
        %v1391 = vrot.slane %v1389, 6
        %v1392 = vshll.u32 %v1219, 16
        %v1394 = vrot.slane %v1392, 7
        %v1395 = vor.u32 %v1391, %v1394
        %v1396 = vsel %vm1253, %v1386, %v1395
        %v1398 = vshrl.u32 %v1220, 16
        %v1400 = vrot.slane %v1398, 6
        %v1401 = vshll.u32 %v1220, 16
        %v1403 = vrot.slane %v1401, 7
        %v1404 = vor.u32 %v1400, %v1403
        %v1405 = vsel %vm1253, %v1395, %v1404
        %v1407 = vshrl.u32 %v1221, 16
        %v1409 = vrot.slane %v1407, 6
        %v1410 = vshll.u32 %v1221, 16
        %v1412 = vrot.slane %v1410, 7
        %v1413 = vor.u32 %v1409, %v1412
        %v1414 = vsel %vm1253, %v1404, %v1413
        %v1416 = vshrl.u32 %v1222, 16
        %v1418 = vrot.slane %v1416, 6
        %v1419 = vshll.u32 %v1222, 16
        %v1421 = vrot.slane %v1419, 7
        %v1422 = vor.u32 %v1418, %v1421
        %v1423 = vsel %vm1253, %v1413, %v1422
        %v1425 = vshrl.u32 %v1223, 16
        %v1427 = vrot.slane %v1425, 6
        %v1428 = vshll.u32 %v1223, 16
        %v1430 = vrot.slane %v1428, 7
        %v1431 = vor.u32 %v1427, %v1430
        %v1432 = vsel %vm1253, %v1422, %v1431
        %v1434 = vshrl.u32 %v1224, 16
        %v1436 = vrot.slane %v1434, 6
        %v1437 = vshll.u32 %v1224, 16
        %v1439 = vrot.slane %v1437, 7
        %v1440 = vor.u32 %v1436, %v1439
        %v1441 = vsel %vm1253, %v1431, %v1440
        %v1443 = vshrl.u32 %v1225, 16
        %v1445 = vrot.slane %v1443, 6
        %v1446 = vshll.u32 %v1225, 16
        %v1448 = vrot.slane %v1446, 7
        %v1449 = vor.u32 %v1445, %v1448
        %v1450 = vsel %vm1253, %v1440, %v1449
        %v1452 = vshrl.u32 %v1226, 16
        %v1454 = vrot.slane %v1452, 6
        %v1455 = vshll.u32 %v1226, 16
        %v1457 = vrot.slane %v1455, 7
        %v1458 = vor.u32 %v1454, %v1457
        %v1459 = vsel %vm1253, %v1449, %v1458
        %v1461 = vshrl.u32 %v1227, 16
        %v1463 = vrot.slane %v1461, 6
        %v1464 = vshll.u32 %v1227, 16
        %v1466 = vrot.slane %v1464, 7
        %v1467 = vor.u32 %v1463, %v1466
        %v1468 = vsel %vm1253, %v1458, %v1467
        %v1470 = vshrl.u32 %v1228, 16
        %v1472 = vrot.slane %v1470, 6
        %v1473 = vshll.u32 %v1228, 16
        %v1475 = vrot.slane %v1473, 7
        %v1476 = vor.u32 %v1472, %v1475
        %v1477 = vsel %vm1253, %v1467, %v1476
        %v1479 = vshrl.u32 %v1229, 16
        %v1481 = vrot.slane %v1479, 6
        %v1482 = vshll.u32 %v1229, 16
        %v1484 = vrot.slane %v1482, 7
        %v1485 = vor.u32 %v1481, %v1484
        %v1486 = vsel %vm1253, %v1476, %v1485
        %v1488 = vshrl.u32 %v1230, 16
        %v1490 = vrot.slane %v1488, 6
        %v1491 = vshll.u32 %v1230, 16
        %v1493 = vrot.slane %v1491, 7
        %v1494 = vor.u32 %v1490, %v1493
        %v1495 = vsel %vm1253, %v1485, %v1494
        %v1497 = vshrl.u32 %v1231, 16
        %v1499 = vrot.slane %v1497, 6
        %v1500 = vshll.u32 %v1231, 16
        %v1502 = vrot.slane %v1500, 7
        %v1503 = vor.u32 %v1499, %v1502
        %v1504 = vsel %vm1253, %v1494, %v1503
        %v1506 = vshrl.u32 %v1232, 16
        %v1508 = vrot.slane %v1506, 6
        %v1509 = vshll.u32 %v1232, 16
        %v1511 = vrot.slane %v1509, 7
        %v1512 = vor.u32 %v1508, %v1511
        %v1513 = vsel %vm1253, %v1503, %v1512
        %v1515 = vshrl.u32 %v1233, 16
        %v1517 = vrot.slane %v1515, 6
        %v1518 = vshll.u32 %v1233, 16
        %v1520 = vrot.slane %v1518, 7
        %v1521 = vor.u32 %v1517, %v1520
        %v1522 = vsel %vm1253, %v1512, %v1521
        %v1524 = vshrl.u32 %v1234, 16
        %v1526 = vrot.slane %v1524, 6
        %v1527 = vshll.u32 %v1234, 16
        %v1529 = vrot.slane %v1527, 7
        %v1530 = vor.u32 %v1526, %v1529
        %v1531 = vsel %vm1253, %v1521, %v1530
        %v1533 = vshrl.u32 %v1235, 16
        %v1535 = vrot.slane %v1533, 6
        %v1536 = vshll.u32 %v1235, 16
        %v1538 = vrot.slane %v1536, 7
        %v1539 = vor.u32 %v1535, %v1538
        %v1540 = vsel %vm1253, %v1530, %v1539
        %v1542 = vshrl.u32 %v1236, 16
        %v1544 = vrot.slane %v1542, 6
        %v1545 = vshll.u32 %v1236, 16
        %v1547 = vrot.slane %v1545, 7
        %v1548 = vor.u32 %v1544, %v1547
        %v1549 = vsel %vm1253, %v1539, %v1548
        %v1598 = vunpack.c.l.b16 %v1237
        %v1599 = vunpack.c.l.b16 %v1238
        %v1600 = vunpack.c.l.b16 %v1239
        %v1601 = vunpack.c.l.b16 %v1240
        %v1602 = vunpack.c.l.b16 %v1241
        %v1603 = vunpack.c.l.b16 %v1242
        %v1604 = vunpack.c.l.b16 %v1243
        %v1605 = vunpack.c.l.b16 %v1244
        %v1606 = vunpack.c.l.b16 %v1245
        %v1607 = vunpack.c.l.b16 %v1246
        %v1608 = vunpack.c.l.b16 %v1247
        %v1609 = vunpack.c.l.b16 %v1248
        %v1610 = vunpack.c.l.b16 %v1249
        %v1611 = vunpack.c.l.b16 %v1250
        %v1612 = vunpack.c.l.b16 %v1251
        %v1613 = vunpack.c.l.b16 %v1252
        %v1614 = vpack.c.b16 %v1599, %v1598
        %v1615 = vpack.c.b16 %v1601, %v1600
        %v1616 = vpack.c.b16 %v1603, %v1602
        %v1617 = vpack.c.b16 %v1605, %v1604
        %v1618 = vpack.c.b16 %v1607, %v1606
        %v1619 = vpack.c.b16 %v1609, %v1608
        %v1620 = vpack.c.b16 %v1611, %v1610
        %v1621 = vpack.c.b16 %v1613, %v1612
        %1630 = vmatprep.subr.bf16.mxu0 0
        %1631 = vmatpush1.bf16.msra.mxu0 %v1614
        %1632 = vmatprep.subr.bf16.mxu0 0
        %1633 = vmatpush1.bf16.msra.mxu0 %v1615
        %1634 = vmatprep.subr.bf16.mxu0 0
        %1635 = vmatpush1.bf16.msra.mxu0 %v1616
        %1636 = vmatprep.subr.bf16.mxu0 0
        %1637 = vmatpush1.bf16.msra.mxu0 %v1617
        %1638 = vmatprep.subr.bf16.mxu0 0
        %1639 = vmatpush1.bf16.msra.mxu0 %v1618
        %1640 = vmatprep.subr.bf16.mxu0 0
        %1641 = vmatpush1.bf16.msra.mxu0 %v1619
        %1642 = vmatprep.subr.bf16.mxu0 0
        %1643 = vmatpush1.bf16.msra.mxu0 %v1620
        %1644 = vmatprep.subr.bf16.mxu0 0
        %1645 = vmatpush1.bf16.msra.mxu0 %v1621
        %1646 = vmatprep.subr.bf16.mxu0 0
        %1647 = vmatpush1.bf16.msra.mxu0 0
        %1648 = vmatprep.subr.bf16.mxu0 0
        %1649 = vmatpush1.bf16.msra.mxu0 0
        %1650 = vmatprep.subr.bf16.mxu0 0
        %1651 = vmatpush1.bf16.msra.mxu0 0
        %1652 = vmatprep.subr.bf16.mxu0 0
        %1653 = vmatpush1.bf16.msra.mxu0 0
        %1654 = vmatprep.subr.bf16.mxu0 0
        %1655 = vmatpush1.bf16.msra.mxu0 0
        %1656 = vmatprep.subr.bf16.mxu0 0
        %1657 = vmatpush1.bf16.msra.mxu0 0
        %1658 = vmatprep.subr.bf16.mxu0 0
        %1659 = vmatpush1.bf16.msra.mxu0 0
        %1660 = vmatprep.subr.bf16.mxu0 0
        %1661 = vmatpush1.bf16.msra.mxu0 0
        %1662 = vmatprep.mubr.bf16.mxu0 0
        %1663 = vmatmul.mubr.bf16.gmra.mrb[0].mxu0 %v1270
        %v1664 = vpop.f32.mrb[0].mxu0
        %v1665 = vadd.f32 0.0, %v1664
        %v1666 = vpop.f32.mrb[0].mxu0
        %v1667 = vpop.f32.mrb[0].mxu0
        %v1668 = vadd.f32 0.0, %v1667
        %v1669 = vpop.f32.mrb[0].mxu0
        %1670 = vmatprep.mubr.bf16.mxu0 0
        %1671 = vmatmul.mubr.bf16.gmra.mrb[0].mxu0 %v1279
        %v1672 = vpop.f32.mrb[0].mxu0
        %v1673 = vadd.f32 0.0, %v1672
        %v1674 = vpop.f32.mrb[0].mxu0
        %v1675 = vpop.f32.mrb[0].mxu0
        %v1676 = vadd.f32 0.0, %v1675
        %v1677 = vpop.f32.mrb[0].mxu0
        %1678 = vmatprep.mubr.bf16.mxu0 0
        %1679 = vmatmul.mubr.bf16.gmra.mrb[0].mxu0 %v1288
        %v1680 = vpop.f32.mrb[0].mxu0
        %v1681 = vadd.f32 0.0, %v1680
        %v1682 = vpop.f32.mrb[0].mxu0
        %v1683 = vpop.f32.mrb[0].mxu0
        %v1684 = vadd.f32 0.0, %v1683
        %v1685 = vpop.f32.mrb[0].mxu0
        %1686 = vmatprep.mubr.bf16.mxu0 0
        %1687 = vmatmul.mubr.bf16.gmra.mrb[0].mxu0 %v1297
        %v1688 = vpop.f32.mrb[0].mxu0
        %v1689 = vadd.f32 0.0, %v1688
        %v1690 = vpop.f32.mrb[0].mxu0
        %v1691 = vpop.f32.mrb[0].mxu0
        %v1692 = vadd.f32 0.0, %v1691
        %v1693 = vpop.f32.mrb[0].mxu0
        %1694 = vmatprep.mubr.bf16.mxu0 0
        %1695 = vmatmul.mubr.bf16.gmra.mrb[0].mxu0 %v1306
        %v1696 = vpop.f32.mrb[0].mxu0
        %v1697 = vadd.f32 0.0, %v1696
        %v1698 = vpop.f32.mrb[0].mxu0
        %v1699 = vpop.f32.mrb[0].mxu0
        %v1700 = vadd.f32 0.0, %v1699
        %v1701 = vpop.f32.mrb[0].mxu0
        %1702 = vmatprep.mubr.bf16.mxu0 0
        %1703 = vmatmul.mubr.bf16.gmra.mrb[0].mxu0 %v1315
        %v1704 = vpop.f32.mrb[0].mxu0
        %v1705 = vadd.f32 0.0, %v1704
        %v1706 = vpop.f32.mrb[0].mxu0
        %v1707 = vpop.f32.mrb[0].mxu0
        %v1708 = vadd.f32 0.0, %v1707
        %v1709 = vpop.f32.mrb[0].mxu0
        %1710 = vmatprep.mubr.bf16.mxu0 0
        %1711 = vmatmul.mubr.bf16.gmra.mrb[0].mxu0 %v1324
        %v1712 = vpop.f32.mrb[0].mxu0
        %v1713 = vadd.f32 0.0, %v1712
        %v1714 = vpop.f32.mrb[0].mxu0
        %v1715 = vpop.f32.mrb[0].mxu0
        %v1716 = vadd.f32 0.0, %v1715
        %v1717 = vpop.f32.mrb[0].mxu0
        %1718 = vmatprep.mubr.bf16.mxu0 0
        %1719 = vmatmul.mubr.bf16.gmra.mrb[0].mxu0 %v1333
        %v1720 = vpop.f32.mrb[0].mxu0
        %v1721 = vadd.f32 0.0, %v1720
        %v1722 = vpop.f32.mrb[0].mxu0
        %v1723 = vpop.f32.mrb[0].mxu0
        %v1724 = vadd.f32 0.0, %v1723
        %v1725 = vpop.f32.mrb[0].mxu0
        %1726 = vmatprep.mubr.bf16.mxu0 0
        %1727 = vmatmul.mubr.bf16.gmra.mrb[0].mxu0 %v1342
        %v1728 = vpop.f32.mrb[0].mxu0
        %v1729 = vadd.f32 0.0, %v1728
        %v1730 = vpop.f32.mrb[0].mxu0
        %v1731 = vpop.f32.mrb[0].mxu0
        %v1732 = vadd.f32 0.0, %v1731
        %v1733 = vpop.f32.mrb[0].mxu0
        %1734 = vmatprep.mubr.bf16.mxu0 0
        %1735 = vmatmul.mubr.bf16.gmra.mrb[0].mxu0 %v1351
        %v1736 = vpop.f32.mrb[0].mxu0
        %v1737 = vadd.f32 0.0, %v1736
        %v1738 = vpop.f32.mrb[0].mxu0
        %v1739 = vpop.f32.mrb[0].mxu0
        %v1740 = vadd.f32 0.0, %v1739
        %v1741 = vpop.f32.mrb[0].mxu0
        %1742 = vmatprep.mubr.bf16.mxu0 0
        %1743 = vmatmul.mubr.bf16.gmra.mrb[0].mxu0 %v1360
        %v1744 = vpop.f32.mrb[0].mxu0
        %v1745 = vadd.f32 0.0, %v1744
        %v1746 = vpop.f32.mrb[0].mxu0
        %v1747 = vpop.f32.mrb[0].mxu0
        %v1748 = vadd.f32 0.0, %v1747
        %v1749 = vpop.f32.mrb[0].mxu0
        %1750 = vmatprep.mubr.bf16.mxu0 0
        %1751 = vmatmul.mubr.bf16.gmra.mrb[0].mxu0 %v1369
        %v1752 = vpop.f32.mrb[0].mxu0
        %v1753 = vadd.f32 0.0, %v1752
        %v1754 = vpop.f32.mrb[0].mxu0
        %v1755 = vpop.f32.mrb[0].mxu0
        %v1756 = vadd.f32 0.0, %v1755
        %v1757 = vpop.f32.mrb[0].mxu0
        %1758 = vmatprep.mubr.bf16.mxu0 0
        %1759 = vmatmul.mubr.bf16.gmra.mrb[0].mxu0 %v1378
        %v1760 = vpop.f32.mrb[0].mxu0
        %v1761 = vadd.f32 0.0, %v1760
        %v1762 = vpop.f32.mrb[0].mxu0
        %v1763 = vpop.f32.mrb[0].mxu0
        %v1764 = vadd.f32 0.0, %v1763
        %v1765 = vpop.f32.mrb[0].mxu0
        %1766 = vmatprep.mubr.bf16.mxu0 0
        %1767 = vmatmul.mubr.bf16.gmra.mrb[0].mxu0 %v1387
        %v1768 = vpop.f32.mrb[0].mxu0
        %v1769 = vadd.f32 0.0, %v1768
        %v1770 = vpop.f32.mrb[0].mxu0
        %v1771 = vpop.f32.mrb[0].mxu0
        %v1772 = vadd.f32 0.0, %v1771
        %v1773 = vpop.f32.mrb[0].mxu0
        %1774 = vmatprep.mubr.bf16.mxu0 0
        %1775 = vmatmul.mubr.bf16.gmra.mrb[0].mxu0 %v1396
        %v1776 = vpop.f32.mrb[0].mxu0
        %v1777 = vadd.f32 0.0, %v1776
        %v1778 = vpop.f32.mrb[0].mxu0
        %v1779 = vpop.f32.mrb[0].mxu0
        %v1780 = vadd.f32 0.0, %v1779
        %v1781 = vpop.f32.mrb[0].mxu0
        %1782 = vmatprep.mubr.bf16.mxu0 0
        %1783 = vmatmul.mubr.bf16.gmra.mrb[0].mxu0 %v1405
        %v1784 = vpop.f32.mrb[0].mxu0
        %v1785 = vadd.f32 0.0, %v1784
        %v1786 = vpop.f32.mrb[0].mxu0
        %v1787 = vpop.f32.mrb[0].mxu0
        %v1788 = vadd.f32 0.0, %v1787
        %v1789 = vpop.f32.mrb[0].mxu0
        %1790 = vmatprep.mubr.bf16.mxu0 0
        %1791 = vmatmul.mubr.bf16.gmra.mrb[0].mxu0 %v1414
        %v1792 = vpop.f32.mrb[0].mxu0
        %v1793 = vadd.f32 0.0, %v1792
        %v1794 = vpop.f32.mrb[0].mxu0
        %v1795 = vpop.f32.mrb[0].mxu0
        %v1796 = vadd.f32 0.0, %v1795
        %v1797 = vpop.f32.mrb[0].mxu0
        %1798 = vmatprep.mubr.bf16.mxu0 0
        %1799 = vmatmul.mubr.bf16.gmra.mrb[0].mxu0 %v1423
        %v1800 = vpop.f32.mrb[0].mxu0
        %v1801 = vadd.f32 0.0, %v1800
        %v1802 = vpop.f32.mrb[0].mxu0
        %v1803 = vpop.f32.mrb[0].mxu0
        %v1804 = vadd.f32 0.0, %v1803
        %v1805 = vpop.f32.mrb[0].mxu0
        %1806 = vmatprep.mubr.bf16.mxu0 0
        %1807 = vmatmul.mubr.bf16.gmra.mrb[0].mxu0 %v1432
        %v1808 = vpop.f32.mrb[0].mxu0
        %v1809 = vadd.f32 0.0, %v1808
        %v1810 = vpop.f32.mrb[0].mxu0
        %v1811 = vpop.f32.mrb[0].mxu0
        %v1812 = vadd.f32 0.0, %v1811
        %v1813 = vpop.f32.mrb[0].mxu0
        %1814 = vmatprep.mubr.bf16.mxu0 0
        %1815 = vmatmul.mubr.bf16.gmra.mrb[0].mxu0 %v1441
        %v1816 = vpop.f32.mrb[0].mxu0
        %v1817 = vadd.f32 0.0, %v1816
        %v1818 = vpop.f32.mrb[0].mxu0
        %v1819 = vpop.f32.mrb[0].mxu0
        %v1820 = vadd.f32 0.0, %v1819
        %v1821 = vpop.f32.mrb[0].mxu0
        %1822 = vmatprep.mubr.bf16.mxu0 0
        %1823 = vmatmul.mubr.bf16.gmra.mrb[0].mxu0 %v1450
        %v1824 = vpop.f32.mrb[0].mxu0
        %v1825 = vadd.f32 0.0, %v1824
        %v1826 = vpop.f32.mrb[0].mxu0
        %v1827 = vpop.f32.mrb[0].mxu0
        %v1828 = vadd.f32 0.0, %v1827
        %v1829 = vpop.f32.mrb[0].mxu0
        %1830 = vmatprep.mubr.bf16.mxu0 0
        %1831 = vmatmul.mubr.bf16.gmra.mrb[0].mxu0 %v1459
        %v1832 = vpop.f32.mrb[0].mxu0
        %v1833 = vadd.f32 0.0, %v1832
        %v1834 = vpop.f32.mrb[0].mxu0
        %v1835 = vpop.f32.mrb[0].mxu0
        %v1836 = vadd.f32 0.0, %v1835
        %v1837 = vpop.f32.mrb[0].mxu0
        %1838 = vmatprep.mubr.bf16.mxu0 0
        %1839 = vmatmul.mubr.bf16.gmra.mrb[0].mxu0 %v1468
        %v1840 = vpop.f32.mrb[0].mxu0
        %v1841 = vadd.f32 0.0, %v1840
        %v1842 = vpop.f32.mrb[0].mxu0
        %v1843 = vpop.f32.mrb[0].mxu0
        %v1844 = vadd.f32 0.0, %v1843
        %v1845 = vpop.f32.mrb[0].mxu0
        %1846 = vmatprep.mubr.bf16.mxu0 0
        %1847 = vmatmul.mubr.bf16.gmra.mrb[0].mxu0 %v1477
        %v1848 = vpop.f32.mrb[0].mxu0
        %v1849 = vadd.f32 0.0, %v1848
        %v1850 = vpop.f32.mrb[0].mxu0
        %v1851 = vpop.f32.mrb[0].mxu0
        %v1852 = vadd.f32 0.0, %v1851
        %v1853 = vpop.f32.mrb[0].mxu0
        %1854 = vmatprep.mubr.bf16.mxu0 0
        %1855 = vmatmul.mubr.bf16.gmra.mrb[0].mxu0 %v1486
        %v1856 = vpop.f32.mrb[0].mxu0
        %v1857 = vadd.f32 0.0, %v1856
        %v1858 = vpop.f32.mrb[0].mxu0
        %v1859 = vpop.f32.mrb[0].mxu0
        %v1860 = vadd.f32 0.0, %v1859
        %v1861 = vpop.f32.mrb[0].mxu0
        %1862 = vmatprep.mubr.bf16.mxu0 0
        %1863 = vmatmul.mubr.bf16.gmra.mrb[0].mxu0 %v1495
        %v1864 = vpop.f32.mrb[0].mxu0
        %v1865 = vadd.f32 0.0, %v1864
        %v1866 = vpop.f32.mrb[0].mxu0
        %v1867 = vpop.f32.mrb[0].mxu0
        %v1868 = vadd.f32 0.0, %v1867
        %v1869 = vpop.f32.mrb[0].mxu0
        %1870 = vmatprep.mubr.bf16.mxu0 0
        %1871 = vmatmul.mubr.bf16.gmra.mrb[0].mxu0 %v1504
        %v1872 = vpop.f32.mrb[0].mxu0
        %v1873 = vadd.f32 0.0, %v1872
        %v1874 = vpop.f32.mrb[0].mxu0
        %v1875 = vpop.f32.mrb[0].mxu0
        %v1876 = vadd.f32 0.0, %v1875
        %v1877 = vpop.f32.mrb[0].mxu0
        %1878 = vmatprep.mubr.bf16.mxu0 0
        %1879 = vmatmul.mubr.bf16.gmra.mrb[0].mxu0 %v1513
        %v1880 = vpop.f32.mrb[0].mxu0
        %v1881 = vadd.f32 0.0, %v1880
        %v1882 = vpop.f32.mrb[0].mxu0
        %v1883 = vpop.f32.mrb[0].mxu0
        %v1884 = vadd.f32 0.0, %v1883
        %v1885 = vpop.f32.mrb[0].mxu0
        %1886 = vmatprep.mubr.bf16.mxu0 0
        %1887 = vmatmul.mubr.bf16.gmra.mrb[0].mxu0 %v1522
        %v1888 = vpop.f32.mrb[0].mxu0
        %v1889 = vadd.f32 0.0, %v1888
        %v1890 = vpop.f32.mrb[0].mxu0
        %v1891 = vpop.f32.mrb[0].mxu0
        %v1892 = vadd.f32 0.0, %v1891
        %v1893 = vpop.f32.mrb[0].mxu0
        %1894 = vmatprep.mubr.bf16.mxu0 0
        %1895 = vmatmul.mubr.bf16.gmra.mrb[0].mxu0 %v1531
        %v1896 = vpop.f32.mrb[0].mxu0
        %v1897 = vadd.f32 0.0, %v1896
        %v1898 = vpop.f32.mrb[0].mxu0
        %v1899 = vpop.f32.mrb[0].mxu0
        %v1900 = vadd.f32 0.0, %v1899
        %v1901 = vpop.f32.mrb[0].mxu0
        %1902 = vmatprep.mubr.bf16.mxu0 0
        %1903 = vmatmul.mubr.bf16.gmra.mrb[0].mxu0 %v1540
        %v1904 = vpop.f32.mrb[0].mxu0
        %v1905 = vadd.f32 0.0, %v1904
        %v1906 = vpop.f32.mrb[0].mxu0
        %v1907 = vpop.f32.mrb[0].mxu0
        %v1908 = vadd.f32 0.0, %v1907
        %v1909 = vpop.f32.mrb[0].mxu0
        %1910 = vmatprep.mubr.bf16.mxu0 0
        %1911 = vmatmul.mubr.bf16.gmra.mrb[0].mxu0 %v1549
        %v1912 = vpop.f32.mrb[0].mxu0
        %v1913 = vadd.f32 0.0, %v1912
        %v1914 = vpop.f32.mrb[0].mxu0
        %v1915 = vpop.f32.mrb[0].mxu0
        %v1916 = vadd.f32 0.0, %v1915
        %v1917 = vpop.f32.mrb[0].mxu0
        %1918 = vdwg.mxu0
        %1919 = vst [vmem:[#allocation3] sm:$0xff] %v1665
        %1920 = vst [vmem:[#allocation3 + $0x8] sm:$0xff] %v1668
        %1921 = vst [vmem:[#allocation3 + $0x10] sm:$0xff] %v1673
        %1922 = vst [vmem:[#allocation3 + $0x18] sm:$0xff] %v1676
        %1923 = vst [vmem:[#allocation3 + $0x20] sm:$0xff] %v1681
        %1924 = vst [vmem:[#allocation3 + $0x28] sm:$0xff] %v1684
        %1925 = vst [vmem:[#allocation3 + $0x30] sm:$0xff] %v1689
        %1926 = vst [vmem:[#allocation3 + $0x38] sm:$0xff] %v1692
        %1927 = vst [vmem:[#allocation3 + $0x40] sm:$0xff] %v1697
        %1928 = vst [vmem:[#allocation3 + $0x48] sm:$0xff] %v1700
        %1929 = vst [vmem:[#allocation3 + $0x50] sm:$0xff] %v1705
        %1930 = vst [vmem:[#allocation3 + $0x58] sm:$0xff] %v1708
        %1931 = vst [vmem:[#allocation3 + $0x60] sm:$0xff] %v1713
        %1932 = vst [vmem:[#allocation3 + $0x68] sm:$0xff] %v1716
        %1933 = vst [vmem:[#allocation3 + $0x70] sm:$0xff] %v1721
        %1934 = vst [vmem:[#allocation3 + $0x78] sm:$0xff] %v1724
        %1935 = vst [vmem:[#allocation3 + $0x80] sm:$0xff] %v1729
        %1936 = vst [vmem:[#allocation3 + $0x88] sm:$0xff] %v1732
        %1937 = vst [vmem:[#allocation3 + $0x90] sm:$0xff] %v1737
        %1938 = vst [vmem:[#allocation3 + $0x98] sm:$0xff] %v1740
        %1939 = vst [vmem:[#allocation3 + $0xa0] sm:$0xff] %v1745
        %1940 = vst [vmem:[#allocation3 + $0xa8] sm:$0xff] %v1748
        %1941 = vst [vmem:[#allocation3 + $0xb0] sm:$0xff] %v1753
        %1942 = vst [vmem:[#allocation3 + $0xb8] sm:$0xff] %v1756
        %1943 = vst [vmem:[#allocation3 + $0xc0] sm:$0xff] %v1761
        %1944 = vst [vmem:[#allocation3 + $0xc8] sm:$0xff] %v1764
        %1945 = vst [vmem:[#allocation3 + $0xd0] sm:$0xff] %v1769
        %1946 = vst [vmem:[#allocation3 + $0xd8] sm:$0xff] %v1772
        %1947 = vst [vmem:[#allocation3 + $0xe0] sm:$0xff] %v1777
        %1948 = vst [vmem:[#allocation3 + $0xe8] sm:$0xff] %v1780
        %1949 = vst [vmem:[#allocation3 + $0xf0] sm:$0xff] %v1785
        %1950 = vst [vmem:[#allocation3 + $0xf8] sm:$0xff] %v1788
        %1951 = vst [vmem:[#allocation3 + $0x100] sm:$0xff] %v1793
        %1952 = vst [vmem:[#allocation3 + $0x108] sm:$0xff] %v1796
        %1953 = vst [vmem:[#allocation3 + $0x110] sm:$0xff] %v1801
        %1954 = vst [vmem:[#allocation3 + $0x118] sm:$0xff] %v1804
        %1955 = vst [vmem:[#allocation3 + $0x120] sm:$0xff] %v1809
        %1956 = vst [vmem:[#allocation3 + $0x128] sm:$0xff] %v1812
        %1957 = vst [vmem:[#allocation3 + $0x130] sm:$0xff] %v1817
        %1958 = vst [vmem:[#allocation3 + $0x138] sm:$0xff] %v1820
        %1959 = vst [vmem:[#allocation3 + $0x140] sm:$0xff] %v1825
        %1960 = vst [vmem:[#allocation3 + $0x148] sm:$0xff] %v1828
        %1961 = vst [vmem:[#allocation3 + $0x150] sm:$0xff] %v1833
        %1962 = vst [vmem:[#allocation3 + $0x158] sm:$0xff] %v1836
        %1963 = vst [vmem:[#allocation3 + $0x160] sm:$0xff] %v1841
        %1964 = vst [vmem:[#allocation3 + $0x168] sm:$0xff] %v1844
        %1965 = vst [vmem:[#allocation3 + $0x170] sm:$0xff] %v1849
        %1966 = vst [vmem:[#allocation3 + $0x178] sm:$0xff] %v1852
        %1967 = vst [vmem:[#allocation3 + $0x180] sm:$0xff] %v1857
        %1968 = vst [vmem:[#allocation3 + $0x188] sm:$0xff] %v1860
        %1969 = vst [vmem:[#allocation3 + $0x190] sm:$0xff] %v1865
        %1970 = vst [vmem:[#allocation3 + $0x198] sm:$0xff] %v1868
        %1971 = vst [vmem:[#allocation3 + $0x1a0] sm:$0xff] %v1873
        %1972 = vst [vmem:[#allocation3 + $0x1a8] sm:$0xff] %v1876
        %1973 = vst [vmem:[#allocation3 + $0x1b0] sm:$0xff] %v1881
        %1974 = vst [vmem:[#allocation3 + $0x1b8] sm:$0xff] %v1884
        %1975 = vst [vmem:[#allocation3 + $0x1c0] sm:$0xff] %v1889
        %1976 = vst [vmem:[#allocation3 + $0x1c8] sm:$0xff] %v1892
        %1977 = vst [vmem:[#allocation3 + $0x1d0] sm:$0xff] %v1897
        %1978 = vst [vmem:[#allocation3 + $0x1d8] sm:$0xff] %v1900
        %1979 = vst [vmem:[#allocation3 + $0x1e0] sm:$0xff] %v1905
        %1980 = vst [vmem:[#allocation3 + $0x1e8] sm:$0xff] %v1908
        %1981 = vst [vmem:[#allocation3 + $0x1f0] sm:$0xff] %v1913
        %1982 = vst [vmem:[#allocation3 + $0x1f8] sm:$0xff] %v1916
        %v1983 = vld [vmem:[#allocation2 + $0x28] sm:$0x80]
        %v1984 = vld [vmem:[#allocation2 + $0x30] sm:$0xff]
        %v1985 = vld [vmem:[#allocation2 + $0x38] sm:$0xff]
        %v1986 = vld [vmem:[#allocation2 + $0x40] sm:$0xff]
        %v1987 = vld [vmem:[#allocation2 + $0x48] sm:$0xff]
        %v1988 = vld [vmem:[#allocation2 + $0x50] sm:$0xff]
        %v1989 = vld [vmem:[#allocation2 + $0x58] sm:$0xff]
        %v1990 = vld [vmem:[#allocation2 + $0x60] sm:$0xff]
        %v1991 = vld [vmem:[#allocation2 + $0x68] sm:$0xff]
        %v1992 = vld [vmem:[#allocation2 + $0x70] sm:$0xff]
        %v1993 = vld [vmem:[#allocation2 + $0x78] sm:$0xff]
        %v1994 = vld [vmem:[#allocation2 + $0x80] sm:$0xff]
        %v1995 = vld [vmem:[#allocation2 + $0x88] sm:$0xff]
        %v1996 = vld [vmem:[#allocation2 + $0x90] sm:$0xff]
        %v1997 = vld [vmem:[#allocation2 + $0x98] sm:$0xff]
        %v1998 = vld [vmem:[#allocation2 + $0xa0] sm:$0xff]
        %v1999 = vld [vmem:[#allocation2 + $0xa8] sm:$0xff]
        %v2000 = vld [vmem:[#allocation2 + $0xb0] sm:$0xff]
        %v2001 = vld [vmem:[#allocation2 + $0xb8] sm:$0xff]
        %v2002 = vld [vmem:[#allocation2 + $0xc0] sm:$0xff]
        %v2003 = vld [vmem:[#allocation2 + $0xc8] sm:$0xff]
        %v2004 = vld [vmem:[#allocation2 + $0xd0] sm:$0xff]
        %v2005 = vld [vmem:[#allocation2 + $0xd8] sm:$0xff]
        %v2006 = vld [vmem:[#allocation2 + $0xe0] sm:$0xff]
        %v2007 = vld [vmem:[#allocation2 + $0xe8] sm:$0xff]
        %v2008 = vld [vmem:[#allocation2 + $0xf0] sm:$0xff]
        %v2009 = vld [vmem:[#allocation2 + $0xf8] sm:$0xff]
        %v2010 = vld [vmem:[#allocation2 + $0x100] sm:$0xff]
        %v2011 = vld [vmem:[#allocation2 + $0x108] sm:$0xff]
        %v2012 = vld [vmem:[#allocation2 + $0x110] sm:$0xff]
        %v2013 = vld [vmem:[#allocation2 + $0x118] sm:$0xff]
        %v2014 = vld [vmem:[#allocation2 + $0x120] sm:$0xff]
        %v2015 = vld [vmem:[#allocation2 + $0x128] sm:$0x7f]
        %s2016 = scalar_lea.vmem [#allocation12], 64
        %v2017 = vld [vmem:[%s2016] sm:$0xf]
        %v2018 = vld [vmem:[%s2016 + $0x4] sm:$0xf]
        %v2019 = vld [vmem:[%s2016 + $0x8] sm:$0xf]
        %v2020 = vld [vmem:[%s2016 + $0xc] sm:$0xf]
        %v2021 = vld [vmem:[%s2016 + $0x10] sm:$0xf]
        %v2022 = vld [vmem:[%s2016 + $0x14] sm:$0xf]
        %v2023 = vld [vmem:[%s2016 + $0x18] sm:$0xf]
        %v2024 = vld [vmem:[%s2016 + $0x1c] sm:$0xf]
        %v2025 = vld [vmem:[%s2016 + $0x20] sm:$0xf]
        %v2026 = vld [vmem:[%s2016 + $0x24] sm:$0xf]
        %v2027 = vld [vmem:[%s2016 + $0x28] sm:$0xf]
        %v2028 = vld [vmem:[%s2016 + $0x2c] sm:$0xf]
        %v2029 = vld [vmem:[%s2016 + $0x30] sm:$0xf]
        %v2030 = vld [vmem:[%s2016 + $0x34] sm:$0xf]
        %v2031 = vld [vmem:[%s2016 + $0x38] sm:$0xf]
        %v2032 = vld [vmem:[%s2016 + $0x3c] sm:$0xf]
        %vm2066 = vcmask 1040384
        %v2067 = vrot.slane %v1983, 7
        %v2068 = vrot.slane %v1984, 7
        %v2069 = vsel %vm2066, %v2067, %v2068
        %v2070 = vrot.slane %v1985, 7
        %v2071 = vsel %vm2066, %v2068, %v2070
        %v2072 = vrot.slane %v1986, 7
        %v2073 = vsel %vm2066, %v2070, %v2072
        %v2074 = vrot.slane %v1987, 7
        %v2075 = vsel %vm2066, %v2072, %v2074
        %v2076 = vrot.slane %v1988, 7
        %v2077 = vsel %vm2066, %v2074, %v2076
        %v2078 = vrot.slane %v1989, 7
        %v2079 = vsel %vm2066, %v2076, %v2078
        %v2080 = vrot.slane %v1990, 7
        %v2081 = vsel %vm2066, %v2078, %v2080
        %v2082 = vrot.slane %v1991, 7
        %v2083 = vsel %vm2066, %v2080, %v2082
        %v2084 = vrot.slane %v1992, 7
        %v2085 = vsel %vm2066, %v2082, %v2084
        %v2086 = vrot.slane %v1993, 7
        %v2087 = vsel %vm2066, %v2084, %v2086
        %v2088 = vrot.slane %v1994, 7
        %v2089 = vsel %vm2066, %v2086, %v2088
        %v2090 = vrot.slane %v1995, 7
        %v2091 = vsel %vm2066, %v2088, %v2090
        %v2092 = vrot.slane %v1996, 7
        %v2093 = vsel %vm2066, %v2090, %v2092
        %v2094 = vrot.slane %v1997, 7
        %v2095 = vsel %vm2066, %v2092, %v2094
        %v2096 = vrot.slane %v1998, 7
        %v2097 = vsel %vm2066, %v2094, %v2096
        %v2098 = vrot.slane %v1999, 7
        %v2099 = vsel %vm2066, %v2096, %v2098
        %v2100 = vrot.slane %v2000, 7
        %v2101 = vsel %vm2066, %v2098, %v2100
        %v2102 = vrot.slane %v2001, 7
        %v2103 = vsel %vm2066, %v2100, %v2102
        %v2104 = vrot.slane %v2002, 7
        %v2105 = vsel %vm2066, %v2102, %v2104
        %v2106 = vrot.slane %v2003, 7
        %v2107 = vsel %vm2066, %v2104, %v2106
        %v2108 = vrot.slane %v2004, 7
        %v2109 = vsel %vm2066, %v2106, %v2108
        %v2110 = vrot.slane %v2005, 7
        %v2111 = vsel %vm2066, %v2108, %v2110
        %v2112 = vrot.slane %v2006, 7
        %v2113 = vsel %vm2066, %v2110, %v2112
        %v2114 = vrot.slane %v2007, 7
        %v2115 = vsel %vm2066, %v2112, %v2114
        %v2116 = vrot.slane %v2008, 7
        %v2117 = vsel %vm2066, %v2114, %v2116
        %v2118 = vrot.slane %v2009, 7
        %v2119 = vsel %vm2066, %v2116, %v2118
        %v2120 = vrot.slane %v2010, 7
        %v2121 = vsel %vm2066, %v2118, %v2120
        %v2122 = vrot.slane %v2011, 7
        %v2123 = vsel %vm2066, %v2120, %v2122
        %v2124 = vrot.slane %v2012, 7
        %v2125 = vsel %vm2066, %v2122, %v2124
        %v2126 = vrot.slane %v2013, 7
        %v2127 = vsel %vm2066, %v2124, %v2126
        %v2128 = vrot.slane %v2014, 7
        %v2129 = vsel %vm2066, %v2126, %v2128
        %v2130 = vrot.slane %v2015, 7
        %v2131 = vsel %vm2066, %v2128, %v2130
        %v2180 = vunpack.c.l.b16 %v2017
        %v2181 = vunpack.c.l.b16 %v2018
        %v2182 = vunpack.c.l.b16 %v2019
        %v2183 = vunpack.c.l.b16 %v2020
        %v2184 = vunpack.c.l.b16 %v2021
        %v2185 = vunpack.c.l.b16 %v2022
        %v2186 = vunpack.c.l.b16 %v2023
        %v2187 = vunpack.c.l.b16 %v2024
        %v2188 = vunpack.c.l.b16 %v2025
        %v2189 = vunpack.c.l.b16 %v2026
        %v2190 = vunpack.c.l.b16 %v2027
        %v2191 = vunpack.c.l.b16 %v2028
        %v2192 = vunpack.c.l.b16 %v2029
        %v2193 = vunpack.c.l.b16 %v2030
        %v2194 = vunpack.c.l.b16 %v2031
        %v2195 = vunpack.c.l.b16 %v2032
        %v2196 = vpack.c.b16 %v2181, %v2180
        %v2197 = vpack.c.b16 %v2183, %v2182
        %v2198 = vpack.c.b16 %v2185, %v2184
        %v2199 = vpack.c.b16 %v2187, %v2186
        %v2200 = vpack.c.b16 %v2189, %v2188
        %v2201 = vpack.c.b16 %v2191, %v2190
        %v2202 = vpack.c.b16 %v2193, %v2192
        %v2203 = vpack.c.b16 %v2195, %v2194
        %2212 = vmatprep.subr.bf16.mxu0 0
        %2213 = vmatpush1.bf16.msra.mxu0 %v2196
        %2214 = vmatprep.subr.bf16.mxu0 0
        %2215 = vmatpush1.bf16.msra.mxu0 %v2197
        %2216 = vmatprep.subr.bf16.mxu0 0
        %2217 = vmatpush1.bf16.msra.mxu0 %v2198
        %2218 = vmatprep.subr.bf16.mxu0 0
        %2219 = vmatpush1.bf16.msra.mxu0 %v2199
        %2220 = vmatprep.subr.bf16.mxu0 0
        %2221 = vmatpush1.bf16.msra.mxu0 %v2200
        %2222 = vmatprep.subr.bf16.mxu0 0
        %2223 = vmatpush1.bf16.msra.mxu0 %v2201
        %2224 = vmatprep.subr.bf16.mxu0 0
        %2225 = vmatpush1.bf16.msra.mxu0 %v2202
        %2226 = vmatprep.subr.bf16.mxu0 0
        %2227 = vmatpush1.bf16.msra.mxu0 %v2203
        %2228 = vmatprep.subr.bf16.mxu0 0
        %2229 = vmatpush1.bf16.msra.mxu0 0
        %2230 = vmatprep.subr.bf16.mxu0 0
        %2231 = vmatpush1.bf16.msra.mxu0 0
        %2232 = vmatprep.subr.bf16.mxu0 0
        %2233 = vmatpush1.bf16.msra.mxu0 0
        %2234 = vmatprep.subr.bf16.mxu0 0
        %2235 = vmatpush1.bf16.msra.mxu0 0
        %2236 = vmatprep.subr.bf16.mxu0 0
        %2237 = vmatpush1.bf16.msra.mxu0 0
        %2238 = vmatprep.subr.bf16.mxu0 0
        %2239 = vmatpush1.bf16.msra.mxu0 0
        %2240 = vmatprep.subr.bf16.mxu0 0
        %2241 = vmatpush1.bf16.msra.mxu0 0
        %2242 = vmatprep.subr.bf16.mxu0 0
        %2243 = vmatpush1.bf16.msra.mxu0 0
        %2244 = vmatprep.mubr.bf16.mxu0 0
        %2245 = vmatmul.mubr.bf16.gmra.mrb[0].mxu0 %v2069
        %v2246 = vpop.f32.mrb[0].mxu0
        %v2247 = vadd.f32 0.0, %v2246
        %v2248 = vpop.f32.mrb[0].mxu0
        %v2249 = vpop.f32.mrb[0].mxu0
        %v2250 = vadd.f32 0.0, %v2249
        %v2251 = vpop.f32.mrb[0].mxu0
        %2252 = vmatprep.mubr.bf16.mxu0 0
        %2253 = vmatmul.mubr.bf16.gmra.mrb[0].mxu0 %v2071
        %v2254 = vpop.f32.mrb[0].mxu0
        %v2255 = vadd.f32 0.0, %v2254
        %v2256 = vpop.f32.mrb[0].mxu0
        %v2257 = vpop.f32.mrb[0].mxu0
        %v2258 = vadd.f32 0.0, %v2257
        %v2259 = vpop.f32.mrb[0].mxu0
        %2260 = vmatprep.mubr.bf16.mxu0 0
        %2261 = vmatmul.mubr.bf16.gmra.mrb[0].mxu0 %v2073
        %v2262 = vpop.f32.mrb[0].mxu0
        %v2263 = vadd.f32 0.0, %v2262
        %v2264 = vpop.f32.mrb[0].mxu0
        %v2265 = vpop.f32.mrb[0].mxu0
        %v2266 = vadd.f32 0.0, %v2265
        %v2267 = vpop.f32.mrb[0].mxu0
        %2268 = vmatprep.mubr.bf16.mxu0 0
        %2269 = vmatmul.mubr.bf16.gmra.mrb[0].mxu0 %v2075
        %v2270 = vpop.f32.mrb[0].mxu0
        %v2271 = vadd.f32 0.0, %v2270
        %v2272 = vpop.f32.mrb[0].mxu0
        %v2273 = vpop.f32.mrb[0].mxu0
        %v2274 = vadd.f32 0.0, %v2273
        %v2275 = vpop.f32.mrb[0].mxu0
        %2276 = vmatprep.mubr.bf16.mxu0 0
        %2277 = vmatmul.mubr.bf16.gmra.mrb[0].mxu0 %v2077
        %v2278 = vpop.f32.mrb[0].mxu0
        %v2279 = vadd.f32 0.0, %v2278
        %v2280 = vpop.f32.mrb[0].mxu0
        %v2281 = vpop.f32.mrb[0].mxu0
        %v2282 = vadd.f32 0.0, %v2281
        %v2283 = vpop.f32.mrb[0].mxu0
        %2284 = vmatprep.mubr.bf16.mxu0 0
        %2285 = vmatmul.mubr.bf16.gmra.mrb[0].mxu0 %v2079
        %v2286 = vpop.f32.mrb[0].mxu0
        %v2287 = vadd.f32 0.0, %v2286
        %v2288 = vpop.f32.mrb[0].mxu0
        %v2289 = vpop.f32.mrb[0].mxu0
        %v2290 = vadd.f32 0.0, %v2289
        %v2291 = vpop.f32.mrb[0].mxu0
        %2292 = vmatprep.mubr.bf16.mxu0 0
        %2293 = vmatmul.mubr.bf16.gmra.mrb[0].mxu0 %v2081
        %v2294 = vpop.f32.mrb[0].mxu0
        %v2295 = vadd.f32 0.0, %v2294
        %v2296 = vpop.f32.mrb[0].mxu0
        %v2297 = vpop.f32.mrb[0].mxu0
        %v2298 = vadd.f32 0.0, %v2297
        %v2299 = vpop.f32.mrb[0].mxu0
        %2300 = vmatprep.mubr.bf16.mxu0 0
        %2301 = vmatmul.mubr.bf16.gmra.mrb[0].mxu0 %v2083
        %v2302 = vpop.f32.mrb[0].mxu0
        %v2303 = vadd.f32 0.0, %v2302
        %v2304 = vpop.f32.mrb[0].mxu0
        %v2305 = vpop.f32.mrb[0].mxu0
        %v2306 = vadd.f32 0.0, %v2305
        %v2307 = vpop.f32.mrb[0].mxu0
        %2308 = vmatprep.mubr.bf16.mxu0 0
        %2309 = vmatmul.mubr.bf16.gmra.mrb[0].mxu0 %v2085
        %v2310 = vpop.f32.mrb[0].mxu0
        %v2311 = vadd.f32 0.0, %v2310
        %v2312 = vpop.f32.mrb[0].mxu0
        %v2313 = vpop.f32.mrb[0].mxu0
        %v2314 = vadd.f32 0.0, %v2313
        %v2315 = vpop.f32.mrb[0].mxu0
        %2316 = vmatprep.mubr.bf16.mxu0 0
        %2317 = vmatmul.mubr.bf16.gmra.mrb[0].mxu0 %v2087
        %v2318 = vpop.f32.mrb[0].mxu0
        %v2319 = vadd.f32 0.0, %v2318
        %v2320 = vpop.f32.mrb[0].mxu0
        %v2321 = vpop.f32.mrb[0].mxu0
        %v2322 = vadd.f32 0.0, %v2321
        %v2323 = vpop.f32.mrb[0].mxu0
        %2324 = vmatprep.mubr.bf16.mxu0 0
        %2325 = vmatmul.mubr.bf16.gmra.mrb[0].mxu0 %v2089
        %v2326 = vpop.f32.mrb[0].mxu0
        %v2327 = vadd.f32 0.0, %v2326
        %v2328 = vpop.f32.mrb[0].mxu0
        %v2329 = vpop.f32.mrb[0].mxu0
        %v2330 = vadd.f32 0.0, %v2329
        %v2331 = vpop.f32.mrb[0].mxu0
        %2332 = vmatprep.mubr.bf16.mxu0 0
        %2333 = vmatmul.mubr.bf16.gmra.mrb[0].mxu0 %v2091
        %v2334 = vpop.f32.mrb[0].mxu0
        %v2335 = vadd.f32 0.0, %v2334
        %v2336 = vpop.f32.mrb[0].mxu0
        %v2337 = vpop.f32.mrb[0].mxu0
        %v2338 = vadd.f32 0.0, %v2337
        %v2339 = vpop.f32.mrb[0].mxu0
        %2340 = vmatprep.mubr.bf16.mxu0 0
        %2341 = vmatmul.mubr.bf16.gmra.mrb[0].mxu0 %v2093
        %v2342 = vpop.f32.mrb[0].mxu0
        %v2343 = vadd.f32 0.0, %v2342
        %v2344 = vpop.f32.mrb[0].mxu0
        %v2345 = vpop.f32.mrb[0].mxu0
        %v2346 = vadd.f32 0.0, %v2345
        %v2347 = vpop.f32.mrb[0].mxu0
        %2348 = vmatprep.mubr.bf16.mxu0 0
        %2349 = vmatmul.mubr.bf16.gmra.mrb[0].mxu0 %v2095
        %v2350 = vpop.f32.mrb[0].mxu0
        %v2351 = vadd.f32 0.0, %v2350
        %v2352 = vpop.f32.mrb[0].mxu0
        %v2353 = vpop.f32.mrb[0].mxu0
        %v2354 = vadd.f32 0.0, %v2353
        %v2355 = vpop.f32.mrb[0].mxu0
        %2356 = vmatprep.mubr.bf16.mxu0 0
        %2357 = vmatmul.mubr.bf16.gmra.mrb[0].mxu0 %v2097
        %v2358 = vpop.f32.mrb[0].mxu0
        %v2359 = vadd.f32 0.0, %v2358
        %v2360 = vpop.f32.mrb[0].mxu0
        %v2361 = vpop.f32.mrb[0].mxu0
        %v2362 = vadd.f32 0.0, %v2361
        %v2363 = vpop.f32.mrb[0].mxu0
        %2364 = vmatprep.mubr.bf16.mxu0 0
        %2365 = vmatmul.mubr.bf16.gmra.mrb[0].mxu0 %v2099
        %v2366 = vpop.f32.mrb[0].mxu0
        %v2367 = vadd.f32 0.0, %v2366
        %v2368 = vpop.f32.mrb[0].mxu0
        %v2369 = vpop.f32.mrb[0].mxu0
        %v2370 = vadd.f32 0.0, %v2369
        %v2371 = vpop.f32.mrb[0].mxu0
        %2372 = vmatprep.mubr.bf16.mxu0 0
        %2373 = vmatmul.mubr.bf16.gmra.mrb[0].mxu0 %v2101
        %v2374 = vpop.f32.mrb[0].mxu0
        %v2375 = vadd.f32 0.0, %v2374
        %v2376 = vpop.f32.mrb[0].mxu0
        %v2377 = vpop.f32.mrb[0].mxu0
        %v2378 = vadd.f32 0.0, %v2377
        %v2379 = vpop.f32.mrb[0].mxu0
        %2380 = vmatprep.mubr.bf16.mxu0 0
        %2381 = vmatmul.mubr.bf16.gmra.mrb[0].mxu0 %v2103
        %v2382 = vpop.f32.mrb[0].mxu0
        %v2383 = vadd.f32 0.0, %v2382
        %v2384 = vpop.f32.mrb[0].mxu0
        %v2385 = vpop.f32.mrb[0].mxu0
        %v2386 = vadd.f32 0.0, %v2385
        %v2387 = vpop.f32.mrb[0].mxu0
        %2388 = vmatprep.mubr.bf16.mxu0 0
        %2389 = vmatmul.mubr.bf16.gmra.mrb[0].mxu0 %v2105
        %v2390 = vpop.f32.mrb[0].mxu0
        %v2391 = vadd.f32 0.0, %v2390
        %v2392 = vpop.f32.mrb[0].mxu0
        %v2393 = vpop.f32.mrb[0].mxu0
        %v2394 = vadd.f32 0.0, %v2393
        %v2395 = vpop.f32.mrb[0].mxu0
        %2396 = vmatprep.mubr.bf16.mxu0 0
        %2397 = vmatmul.mubr.bf16.gmra.mrb[0].mxu0 %v2107
        %v2398 = vpop.f32.mrb[0].mxu0
        %v2399 = vadd.f32 0.0, %v2398
        %v2400 = vpop.f32.mrb[0].mxu0
        %v2401 = vpop.f32.mrb[0].mxu0
        %v2402 = vadd.f32 0.0, %v2401
        %v2403 = vpop.f32.mrb[0].mxu0
        %2404 = vmatprep.mubr.bf16.mxu0 0
        %2405 = vmatmul.mubr.bf16.gmra.mrb[0].mxu0 %v2109
        %v2406 = vpop.f32.mrb[0].mxu0
        %v2407 = vadd.f32 0.0, %v2406
        %v2408 = vpop.f32.mrb[0].mxu0
        %v2409 = vpop.f32.mrb[0].mxu0
        %v2410 = vadd.f32 0.0, %v2409
        %v2411 = vpop.f32.mrb[0].mxu0
        %2412 = vmatprep.mubr.bf16.mxu0 0
        %2413 = vmatmul.mubr.bf16.gmra.mrb[0].mxu0 %v2111
        %v2414 = vpop.f32.mrb[0].mxu0
        %v2415 = vadd.f32 0.0, %v2414
        %v2416 = vpop.f32.mrb[0].mxu0
        %v2417 = vpop.f32.mrb[0].mxu0
        %v2418 = vadd.f32 0.0, %v2417
        %v2419 = vpop.f32.mrb[0].mxu0
        %2420 = vmatprep.mubr.bf16.mxu0 0
        %2421 = vmatmul.mubr.bf16.gmra.mrb[0].mxu0 %v2113
        %v2422 = vpop.f32.mrb[0].mxu0
        %v2423 = vadd.f32 0.0, %v2422
        %v2424 = vpop.f32.mrb[0].mxu0
        %v2425 = vpop.f32.mrb[0].mxu0
        %v2426 = vadd.f32 0.0, %v2425
        %v2427 = vpop.f32.mrb[0].mxu0
        %2428 = vmatprep.mubr.bf16.mxu0 0
        %2429 = vmatmul.mubr.bf16.gmra.mrb[0].mxu0 %v2115
        %v2430 = vpop.f32.mrb[0].mxu0
        %v2431 = vadd.f32 0.0, %v2430
        %v2432 = vpop.f32.mrb[0].mxu0
        %v2433 = vpop.f32.mrb[0].mxu0
        %v2434 = vadd.f32 0.0, %v2433
        %v2435 = vpop.f32.mrb[0].mxu0
        %2436 = vmatprep.mubr.bf16.mxu0 0
        %2437 = vmatmul.mubr.bf16.gmra.mrb[0].mxu0 %v2117
        %v2438 = vpop.f32.mrb[0].mxu0
        %v2439 = vadd.f32 0.0, %v2438
        %v2440 = vpop.f32.mrb[0].mxu0
        %v2441 = vpop.f32.mrb[0].mxu0
        %v2442 = vadd.f32 0.0, %v2441
        %v2443 = vpop.f32.mrb[0].mxu0
        %2444 = vmatprep.mubr.bf16.mxu0 0
        %2445 = vmatmul.mubr.bf16.gmra.mrb[0].mxu0 %v2119
        %v2446 = vpop.f32.mrb[0].mxu0
        %v2447 = vadd.f32 0.0, %v2446
        %v2448 = vpop.f32.mrb[0].mxu0
        %v2449 = vpop.f32.mrb[0].mxu0
        %v2450 = vadd.f32 0.0, %v2449
        %v2451 = vpop.f32.mrb[0].mxu0
        %2452 = vmatprep.mubr.bf16.mxu0 0
        %2453 = vmatmul.mubr.bf16.gmra.mrb[0].mxu0 %v2121
        %v2454 = vpop.f32.mrb[0].mxu0
        %v2455 = vadd.f32 0.0, %v2454
        %v2456 = vpop.f32.mrb[0].mxu0
        %v2457 = vpop.f32.mrb[0].mxu0
        %v2458 = vadd.f32 0.0, %v2457
        %v2459 = vpop.f32.mrb[0].mxu0
        %2460 = vmatprep.mubr.bf16.mxu0 0
        %2461 = vmatmul.mubr.bf16.gmra.mrb[0].mxu0 %v2123
        %v2462 = vpop.f32.mrb[0].mxu0
        %v2463 = vadd.f32 0.0, %v2462
        %v2464 = vpop.f32.mrb[0].mxu0
        %v2465 = vpop.f32.mrb[0].mxu0
        %v2466 = vadd.f32 0.0, %v2465
        %v2467 = vpop.f32.mrb[0].mxu0
        %2468 = vmatprep.mubr.bf16.mxu0 0
        %2469 = vmatmul.mubr.bf16.gmra.mrb[0].mxu0 %v2125
        %v2470 = vpop.f32.mrb[0].mxu0
        %v2471 = vadd.f32 0.0, %v2470
        %v2472 = vpop.f32.mrb[0].mxu0
        %v2473 = vpop.f32.mrb[0].mxu0
        %v2474 = vadd.f32 0.0, %v2473
        %v2475 = vpop.f32.mrb[0].mxu0
        %2476 = vmatprep.mubr.bf16.mxu0 0
        %2477 = vmatmul.mubr.bf16.gmra.mrb[0].mxu0 %v2127
        %v2478 = vpop.f32.mrb[0].mxu0
        %v2479 = vadd.f32 0.0, %v2478
        %v2480 = vpop.f32.mrb[0].mxu0
        %v2481 = vpop.f32.mrb[0].mxu0
        %v2482 = vadd.f32 0.0, %v2481
        %v2483 = vpop.f32.mrb[0].mxu0
        %2484 = vmatprep.mubr.bf16.mxu0 0
        %2485 = vmatmul.mubr.bf16.gmra.mrb[0].mxu0 %v2129
        %v2486 = vpop.f32.mrb[0].mxu0
        %v2487 = vadd.f32 0.0, %v2486
        %v2488 = vpop.f32.mrb[0].mxu0
        %v2489 = vpop.f32.mrb[0].mxu0
        %v2490 = vadd.f32 0.0, %v2489
        %v2491 = vpop.f32.mrb[0].mxu0
        %2492 = vmatprep.mubr.bf16.mxu0 0
        %2493 = vmatmul.mubr.bf16.gmra.mrb[0].mxu0 %v2131
        %v2494 = vpop.f32.mrb[0].mxu0
        %v2495 = vadd.f32 0.0, %v2494
        %v2496 = vpop.f32.mrb[0].mxu0
        %v2497 = vpop.f32.mrb[0].mxu0
        %v2498 = vadd.f32 0.0, %v2497
        %v2499 = vpop.f32.mrb[0].mxu0
        %2500 = vdwg.mxu0
        %v2501 = vld [vmem:[#allocation3] sm:$0xff]
        %v2502 = vld [vmem:[#allocation3 + $0x8] sm:$0xff]
        %v2503 = vld [vmem:[#allocation3 + $0x10] sm:$0xff]
        %v2504 = vld [vmem:[#allocation3 + $0x18] sm:$0xff]
        %v2505 = vld [vmem:[#allocation3 + $0x20] sm:$0xff]
        %v2506 = vld [vmem:[#allocation3 + $0x28] sm:$0xff]
        %v2507 = vld [vmem:[#allocation3 + $0x30] sm:$0xff]
        %v2508 = vld [vmem:[#allocation3 + $0x38] sm:$0xff]
        %v2509 = vld [vmem:[#allocation3 + $0x40] sm:$0xff]
        %v2510 = vld [vmem:[#allocation3 + $0x48] sm:$0xff]
        %v2511 = vld [vmem:[#allocation3 + $0x50] sm:$0xff]
        %v2512 = vld [vmem:[#allocation3 + $0x58] sm:$0xff]
        %v2513 = vld [vmem:[#allocation3 + $0x60] sm:$0xff]
        %v2514 = vld [vmem:[#allocation3 + $0x68] sm:$0xff]
        %v2515 = vld [vmem:[#allocation3 + $0x70] sm:$0xff]
        %v2516 = vld [vmem:[#allocation3 + $0x78] sm:$0xff]
        %v2517 = vld [vmem:[#allocation3 + $0x80] sm:$0xff]
        %v2518 = vld [vmem:[#allocation3 + $0x88] sm:$0xff]
        %v2519 = vld [vmem:[#allocation3 + $0x90] sm:$0xff]
        %v2520 = vld [vmem:[#allocation3 + $0x98] sm:$0xff]
        %v2521 = vld [vmem:[#allocation3 + $0xa0] sm:$0xff]
        %v2522 = vld [vmem:[#allocation3 + $0xa8] sm:$0xff]
        %v2523 = vld [vmem:[#allocation3 + $0xb0] sm:$0xff]
        %v2524 = vld [vmem:[#allocation3 + $0xb8] sm:$0xff]
        %v2525 = vld [vmem:[#allocation3 + $0xc0] sm:$0xff]
        %v2526 = vld [vmem:[#allocation3 + $0xc8] sm:$0xff]
        %v2527 = vld [vmem:[#allocation3 + $0xd0] sm:$0xff]
        %v2528 = vld [vmem:[#allocation3 + $0xd8] sm:$0xff]
        %v2529 = vld [vmem:[#allocation3 + $0xe0] sm:$0xff]
        %v2530 = vld [vmem:[#allocation3 + $0xe8] sm:$0xff]
        %v2531 = vld [vmem:[#allocation3 + $0xf0] sm:$0xff]
        %v2532 = vld [vmem:[#allocation3 + $0xf8] sm:$0xff]
        %v2533 = vld [vmem:[#allocation3 + $0x100] sm:$0xff]
        %v2534 = vld [vmem:[#allocation3 + $0x108] sm:$0xff]
        %v2535 = vld [vmem:[#allocation3 + $0x110] sm:$0xff]
        %v2536 = vld [vmem:[#allocation3 + $0x118] sm:$0xff]
        %v2537 = vld [vmem:[#allocation3 + $0x120] sm:$0xff]
        %v2538 = vld [vmem:[#allocation3 + $0x128] sm:$0xff]
        %v2539 = vld [vmem:[#allocation3 + $0x130] sm:$0xff]
        %v2540 = vld [vmem:[#allocation3 + $0x138] sm:$0xff]
        %v2541 = vld [vmem:[#allocation3 + $0x140] sm:$0xff]
        %v2542 = vld [vmem:[#allocation3 + $0x148] sm:$0xff]
        %v2543 = vld [vmem:[#allocation3 + $0x150] sm:$0xff]
        %v2544 = vld [vmem:[#allocation3 + $0x158] sm:$0xff]
        %v2545 = vld [vmem:[#allocation3 + $0x160] sm:$0xff]
        %v2546 = vld [vmem:[#allocation3 + $0x168] sm:$0xff]
        %v2547 = vld [vmem:[#allocation3 + $0x170] sm:$0xff]
        %v2548 = vld [vmem:[#allocation3 + $0x178] sm:$0xff]
        %v2549 = vld [vmem:[#allocation3 + $0x180] sm:$0xff]
        %v2550 = vld [vmem:[#allocation3 + $0x188] sm:$0xff]
        %v2551 = vld [vmem:[#allocation3 + $0x190] sm:$0xff]
        %v2552 = vld [vmem:[#allocation3 + $0x198] sm:$0xff]
        %v2553 = vld [vmem:[#allocation3 + $0x1a0] sm:$0xff]
        %v2554 = vld [vmem:[#allocation3 + $0x1a8] sm:$0xff]
        %v2555 = vld [vmem:[#allocation3 + $0x1b0] sm:$0xff]
        %v2556 = vld [vmem:[#allocation3 + $0x1b8] sm:$0xff]
        %v2557 = vld [vmem:[#allocation3 + $0x1c0] sm:$0xff]
        %v2558 = vld [vmem:[#allocation3 + $0x1c8] sm:$0xff]
        %v2559 = vld [vmem:[#allocation3 + $0x1d0] sm:$0xff]
        %v2560 = vld [vmem:[#allocation3 + $0x1d8] sm:$0xff]
        %v2561 = vld [vmem:[#allocation3 + $0x1e0] sm:$0xff]
        %v2562 = vld [vmem:[#allocation3 + $0x1e8] sm:$0xff]
        %v2563 = vld [vmem:[#allocation3 + $0x1f0] sm:$0xff]
        %v2564 = vld [vmem:[#allocation3 + $0x1f8] sm:$0xff]
        %v2565 = vadd.f32 %v2501, %v2247
        %v2566 = vadd.f32 %v2502, %v2250
        %v2567 = vadd.f32 %v2503, %v2255
        %v2568 = vadd.f32 %v2504, %v2258
        %v2569 = vadd.f32 %v2505, %v2263
        %v2570 = vadd.f32 %v2506, %v2266
        %v2571 = vadd.f32 %v2507, %v2271
        %v2572 = vadd.f32 %v2508, %v2274
        %v2573 = vadd.f32 %v2509, %v2279
        %v2574 = vadd.f32 %v2510, %v2282
        %v2575 = vadd.f32 %v2511, %v2287
        %v2576 = vadd.f32 %v2512, %v2290
        %v2577 = vadd.f32 %v2513, %v2295
        %v2578 = vadd.f32 %v2514, %v2298
        %v2579 = vadd.f32 %v2515, %v2303
        %v2580 = vadd.f32 %v2516, %v2306
        %v2581 = vadd.f32 %v2517, %v2311
        %v2582 = vadd.f32 %v2518, %v2314
        %v2583 = vadd.f32 %v2519, %v2319
        %v2584 = vadd.f32 %v2520, %v2322
        %v2585 = vadd.f32 %v2521, %v2327
        %v2586 = vadd.f32 %v2522, %v2330
        %v2587 = vadd.f32 %v2523, %v2335
        %v2588 = vadd.f32 %v2524, %v2338
        %v2589 = vadd.f32 %v2525, %v2343
        %v2590 = vadd.f32 %v2526, %v2346
        %v2591 = vadd.f32 %v2527, %v2351
        %v2592 = vadd.f32 %v2528, %v2354
        %v2593 = vadd.f32 %v2529, %v2359
        %v2594 = vadd.f32 %v2530, %v2362
        %v2595 = vadd.f32 %v2531, %v2367
        %v2596 = vadd.f32 %v2532, %v2370
        %v2597 = vadd.f32 %v2533, %v2375
        %v2598 = vadd.f32 %v2534, %v2378
        %v2599 = vadd.f32 %v2535, %v2383
        %v2600 = vadd.f32 %v2536, %v2386
        %v2601 = vadd.f32 %v2537, %v2391
        %v2602 = vadd.f32 %v2538, %v2394
        %v2603 = vadd.f32 %v2539, %v2399
        %v2604 = vadd.f32 %v2540, %v2402
        %v2605 = vadd.f32 %v2541, %v2407
        %v2606 = vadd.f32 %v2542, %v2410
        %v2607 = vadd.f32 %v2543, %v2415
        %v2608 = vadd.f32 %v2544, %v2418
        %v2609 = vadd.f32 %v2545, %v2423
        %v2610 = vadd.f32 %v2546, %v2426
        %v2611 = vadd.f32 %v2547, %v2431
        %v2612 = vadd.f32 %v2548, %v2434
        %v2613 = vadd.f32 %v2549, %v2439
        %v2614 = vadd.f32 %v2550, %v2442
        %v2615 = vadd.f32 %v2551, %v2447
        %v2616 = vadd.f32 %v2552, %v2450
        %v2617 = vadd.f32 %v2553, %v2455
        %v2618 = vadd.f32 %v2554, %v2458
        %v2619 = vadd.f32 %v2555, %v2463
        %v2620 = vadd.f32 %v2556, %v2466
        %v2621 = vadd.f32 %v2557, %v2471
        %v2622 = vadd.f32 %v2558, %v2474
        %v2623 = vadd.f32 %v2559, %v2479
        %v2624 = vadd.f32 %v2560, %v2482
        %v2625 = vadd.f32 %v2561, %v2487
        %v2626 = vadd.f32 %v2562, %v2490
        %v2627 = vadd.f32 %v2563, %v2495
        %v2628 = vadd.f32 %v2564, %v2498
        %2629 = vst [vmem:[#allocation3] sm:$0xff] %v2565
        %2630 = vst [vmem:[#allocation3 + $0x8] sm:$0xff] %v2566
        %2631 = vst [vmem:[#allocation3 + $0x10] sm:$0xff] %v2567
        %2632 = vst [vmem:[#allocation3 + $0x18] sm:$0xff] %v2568
        %2633 = vst [vmem:[#allocation3 + $0x20] sm:$0xff] %v2569
        %2634 = vst [vmem:[#allocation3 + $0x28] sm:$0xff] %v2570
        %2635 = vst [vmem:[#allocation3 + $0x30] sm:$0xff] %v2571
        %2636 = vst [vmem:[#allocation3 + $0x38] sm:$0xff] %v2572
        %2637 = vst [vmem:[#allocation3 + $0x40] sm:$0xff] %v2573
        %2638 = vst [vmem:[#allocation3 + $0x48] sm:$0xff] %v2574
        %2639 = vst [vmem:[#allocation3 + $0x50] sm:$0xff] %v2575
        %2640 = vst [vmem:[#allocation3 + $0x58] sm:$0xff] %v2576
        %2641 = vst [vmem:[#allocation3 + $0x60] sm:$0xff] %v2577
        %2642 = vst [vmem:[#allocation3 + $0x68] sm:$0xff] %v2578
        %2643 = vst [vmem:[#allocation3 + $0x70] sm:$0xff] %v2579
        %2644 = vst [vmem:[#allocation3 + $0x78] sm:$0xff] %v2580
        %2645 = vst [vmem:[#allocation3 + $0x80] sm:$0xff] %v2581
        %2646 = vst [vmem:[#allocation3 + $0x88] sm:$0xff] %v2582
        %2647 = vst [vmem:[#allocation3 + $0x90] sm:$0xff] %v2583
        %2648 = vst [vmem:[#allocation3 + $0x98] sm:$0xff] %v2584
        %2649 = vst [vmem:[#allocation3 + $0xa0] sm:$0xff] %v2585
        %2650 = vst [vmem:[#allocation3 + $0xa8] sm:$0xff] %v2586
        %2651 = vst [vmem:[#allocation3 + $0xb0] sm:$0xff] %v2587
        %2652 = vst [vmem:[#allocation3 + $0xb8] sm:$0xff] %v2588
        %2653 = vst [vmem:[#allocation3 + $0xc0] sm:$0xff] %v2589
        %2654 = vst [vmem:[#allocation3 + $0xc8] sm:$0xff] %v2590
        %2655 = vst [vmem:[#allocation3 + $0xd0] sm:$0xff] %v2591
        %2656 = vst [vmem:[#allocation3 + $0xd8] sm:$0xff] %v2592
        %2657 = vst [vmem:[#allocation3 + $0xe0] sm:$0xff] %v2593
        %2658 = vst [vmem:[#allocation3 + $0xe8] sm:$0xff] %v2594
        %2659 = vst [vmem:[#allocation3 + $0xf0] sm:$0xff] %v2595
        %2660 = vst [vmem:[#allocation3 + $0xf8] sm:$0xff] %v2596
        %2661 = vst [vmem:[#allocation3 + $0x100] sm:$0xff] %v2597
        %2662 = vst [vmem:[#allocation3 + $0x108] sm:$0xff] %v2598
        %2663 = vst [vmem:[#allocation3 + $0x110] sm:$0xff] %v2599
        %2664 = vst [vmem:[#allocation3 + $0x118] sm:$0xff] %v2600
        %2665 = vst [vmem:[#allocation3 + $0x120] sm:$0xff] %v2601
        %2666 = vst [vmem:[#allocation3 + $0x128] sm:$0xff] %v2602
        %2667 = vst [vmem:[#allocation3 + $0x130] sm:$0xff] %v2603
        %2668 = vst [vmem:[#allocation3 + $0x138] sm:$0xff] %v2604
        %2669 = vst [vmem:[#allocation3 + $0x140] sm:$0xff] %v2605
        %2670 = vst [vmem:[#allocation3 + $0x148] sm:$0xff] %v2606
        %2671 = vst [vmem:[#allocation3 + $0x150] sm:$0xff] %v2607
        %2672 = vst [vmem:[#allocation3 + $0x158] sm:$0xff] %v2608
        %2673 = vst [vmem:[#allocation3 + $0x160] sm:$0xff] %v2609
        %2674 = vst [vmem:[#allocation3 + $0x168] sm:$0xff] %v2610
        %2675 = vst [vmem:[#allocation3 + $0x170] sm:$0xff] %v2611
        %2676 = vst [vmem:[#allocation3 + $0x178] sm:$0xff] %v2612
        %2677 = vst [vmem:[#allocation3 + $0x180] sm:$0xff] %v2613
        %2678 = vst [vmem:[#allocation3 + $0x188] sm:$0xff] %v2614
        %2679 = vst [vmem:[#allocation3 + $0x190] sm:$0xff] %v2615
        %2680 = vst [vmem:[#allocation3 + $0x198] sm:$0xff] %v2616
        %2681 = vst [vmem:[#allocation3 + $0x1a0] sm:$0xff] %v2617
        %2682 = vst [vmem:[#allocation3 + $0x1a8] sm:$0xff] %v2618
        %2683 = vst [vmem:[#allocation3 + $0x1b0] sm:$0xff] %v2619
        %2684 = vst [vmem:[#allocation3 + $0x1b8] sm:$0xff] %v2620
        %2685 = vst [vmem:[#allocation3 + $0x1c0] sm:$0xff] %v2621
        %2686 = vst [vmem:[#allocation3 + $0x1c8] sm:$0xff] %v2622
        %2687 = vst [vmem:[#allocation3 + $0x1d0] sm:$0xff] %v2623
        %2688 = vst [vmem:[#allocation3 + $0x1d8] sm:$0xff] %v2624
        %2689 = vst [vmem:[#allocation3 + $0x1e0] sm:$0xff] %v2625
        %2690 = vst [vmem:[#allocation3 + $0x1e8] sm:$0xff] %v2626
        %2691 = vst [vmem:[#allocation3 + $0x1f0] sm:$0xff] %v2627
        %2692 = vst [vmem:[#allocation3 + $0x1f8] sm:$0xff] %v2628
        %v2693 = vld [vmem:[#allocation2 + $0x28] sm:$0x80]
        %v2694 = vld [vmem:[#allocation2 + $0x30] sm:$0xff]
        %v2695 = vld [vmem:[#allocation2 + $0x38] sm:$0xff]
        %v2696 = vld [vmem:[#allocation2 + $0x40] sm:$0xff]
        %v2697 = vld [vmem:[#allocation2 + $0x48] sm:$0xff]
        %v2698 = vld [vmem:[#allocation2 + $0x50] sm:$0xff]
        %v2699 = vld [vmem:[#allocation2 + $0x58] sm:$0xff]
        %v2700 = vld [vmem:[#allocation2 + $0x60] sm:$0xff]
        %v2701 = vld [vmem:[#allocation2 + $0x68] sm:$0xff]
        %v2702 = vld [vmem:[#allocation2 + $0x70] sm:$0xff]
        %v2703 = vld [vmem:[#allocation2 + $0x78] sm:$0xff]
        %v2704 = vld [vmem:[#allocation2 + $0x80] sm:$0xff]
        %v2705 = vld [vmem:[#allocation2 + $0x88] sm:$0xff]
        %v2706 = vld [vmem:[#allocation2 + $0x90] sm:$0xff]
        %v2707 = vld [vmem:[#allocation2 + $0x98] sm:$0xff]
        %v2708 = vld [vmem:[#allocation2 + $0xa0] sm:$0xff]
        %v2709 = vld [vmem:[#allocation2 + $0xa8] sm:$0xff]
        %v2710 = vld [vmem:[#allocation2 + $0xb0] sm:$0xff]
        %v2711 = vld [vmem:[#allocation2 + $0xb8] sm:$0xff]
        %v2712 = vld [vmem:[#allocation2 + $0xc0] sm:$0xff]
        %v2713 = vld [vmem:[#allocation2 + $0xc8] sm:$0xff]
        %v2714 = vld [vmem:[#allocation2 + $0xd0] sm:$0xff]
        %v2715 = vld [vmem:[#allocation2 + $0xd8] sm:$0xff]
        %v2716 = vld [vmem:[#allocation2 + $0xe0] sm:$0xff]
        %v2717 = vld [vmem:[#allocation2 + $0xe8] sm:$0xff]
        %v2718 = vld [vmem:[#allocation2 + $0xf0] sm:$0xff]
        %v2719 = vld [vmem:[#allocation2 + $0xf8] sm:$0xff]
        %v2720 = vld [vmem:[#allocation2 + $0x100] sm:$0xff]
        %v2721 = vld [vmem:[#allocation2 + $0x108] sm:$0xff]
        %v2722 = vld [vmem:[#allocation2 + $0x110] sm:$0xff]
        %v2723 = vld [vmem:[#allocation2 + $0x118] sm:$0xff]
        %v2724 = vld [vmem:[#allocation2 + $0x120] sm:$0xff]
        %v2725 = vld [vmem:[#allocation2 + $0x128] sm:$0xff]
        %s2726 = scalar_lea.vmem [#allocation12], 128
        %v2727 = vld [vmem:[%s2726] sm:$0xf]
        %v2728 = vld [vmem:[%s2726 + $0x4] sm:$0xf]
        %v2729 = vld [vmem:[%s2726 + $0x8] sm:$0xf]
        %v2730 = vld [vmem:[%s2726 + $0xc] sm:$0xf]
        %v2731 = vld [vmem:[%s2726 + $0x10] sm:$0xf]
        %v2732 = vld [vmem:[%s2726 + $0x14] sm:$0xf]
        %v2733 = vld [vmem:[%s2726 + $0x18] sm:$0xf]
        %v2734 = vld [vmem:[%s2726 + $0x1c] sm:$0xf]
        %v2735 = vld [vmem:[%s2726 + $0x20] sm:$0xf]
        %v2736 = vld [vmem:[%s2726 + $0x24] sm:$0xf]
        %v2737 = vld [vmem:[%s2726 + $0x28] sm:$0xf]
        %v2738 = vld [vmem:[%s2726 + $0x2c] sm:$0xf]
        %v2739 = vld [vmem:[%s2726 + $0x30] sm:$0xf]
        %v2740 = vld [vmem:[%s2726 + $0x34] sm:$0xf]
        %v2741 = vld [vmem:[%s2726 + $0x38] sm:$0xf]
        %v2742 = vld [vmem:[%s2726 + $0x3c] sm:$0xf]
        %vm2743 = vsmask.f32 256
        %v2745 = vshrl.u32 %v2693, 16
        %v2747 = vrot.slane %v2745, 7
        %v2749 = vshrl.u32 %v2694, 16
        %v2751 = vrot.slane %v2749, 7
        %v2752 = vshll.u32 %v2694, 16
        %v2754 = vor.u32 %v2751, %v2752
        %v2755 = vsel %vm2743, %v2747, %v2754
        %v2757 = vshrl.u32 %v2695, 16
        %v2759 = vrot.slane %v2757, 7
        %v2760 = vshll.u32 %v2695, 16
        %v2762 = vor.u32 %v2759, %v2760
        %v2763 = vsel %vm2743, %v2751, %v2762
        %v2765 = vshrl.u32 %v2696, 16
        %v2767 = vrot.slane %v2765, 7
        %v2768 = vshll.u32 %v2696, 16
        %v2770 = vor.u32 %v2767, %v2768
        %v2771 = vsel %vm2743, %v2759, %v2770
        %v2773 = vshrl.u32 %v2697, 16
        %v2775 = vrot.slane %v2773, 7
        %v2776 = vshll.u32 %v2697, 16
        %v2778 = vor.u32 %v2775, %v2776
        %v2779 = vsel %vm2743, %v2767, %v2778
        %v2781 = vshrl.u32 %v2698, 16
        %v2783 = vrot.slane %v2781, 7
        %v2784 = vshll.u32 %v2698, 16
        %v2786 = vor.u32 %v2783, %v2784
        %v2787 = vsel %vm2743, %v2775, %v2786
        %v2789 = vshrl.u32 %v2699, 16
        %v2791 = vrot.slane %v2789, 7
        %v2792 = vshll.u32 %v2699, 16
        %v2794 = vor.u32 %v2791, %v2792
        %v2795 = vsel %vm2743, %v2783, %v2794
        %v2797 = vshrl.u32 %v2700, 16
        %v2799 = vrot.slane %v2797, 7
        %v2800 = vshll.u32 %v2700, 16
        %v2802 = vor.u32 %v2799, %v2800
        %v2803 = vsel %vm2743, %v2791, %v2802
        %v2805 = vshrl.u32 %v2701, 16
        %v2807 = vrot.slane %v2805, 7
        %v2808 = vshll.u32 %v2701, 16
        %v2810 = vor.u32 %v2807, %v2808
        %v2811 = vsel %vm2743, %v2799, %v2810
        %v2813 = vshrl.u32 %v2702, 16
        %v2815 = vrot.slane %v2813, 7
        %v2816 = vshll.u32 %v2702, 16
        %v2818 = vor.u32 %v2815, %v2816
        %v2819 = vsel %vm2743, %v2807, %v2818
        %v2821 = vshrl.u32 %v2703, 16
        %v2823 = vrot.slane %v2821, 7
        %v2824 = vshll.u32 %v2703, 16
        %v2826 = vor.u32 %v2823, %v2824
        %v2827 = vsel %vm2743, %v2815, %v2826
        %v2829 = vshrl.u32 %v2704, 16
        %v2831 = vrot.slane %v2829, 7
        %v2832 = vshll.u32 %v2704, 16
        %v2834 = vor.u32 %v2831, %v2832
        %v2835 = vsel %vm2743, %v2823, %v2834
        %v2837 = vshrl.u32 %v2705, 16
        %v2839 = vrot.slane %v2837, 7
        %v2840 = vshll.u32 %v2705, 16
        %v2842 = vor.u32 %v2839, %v2840
        %v2843 = vsel %vm2743, %v2831, %v2842
        %v2845 = vshrl.u32 %v2706, 16
        %v2847 = vrot.slane %v2845, 7
        %v2848 = vshll.u32 %v2706, 16
        %v2850 = vor.u32 %v2847, %v2848
        %v2851 = vsel %vm2743, %v2839, %v2850
        %v2853 = vshrl.u32 %v2707, 16
        %v2855 = vrot.slane %v2853, 7
        %v2856 = vshll.u32 %v2707, 16
        %v2858 = vor.u32 %v2855, %v2856
        %v2859 = vsel %vm2743, %v2847, %v2858
        %v2861 = vshrl.u32 %v2708, 16
        %v2863 = vrot.slane %v2861, 7
        %v2864 = vshll.u32 %v2708, 16
        %v2866 = vor.u32 %v2863, %v2864
        %v2867 = vsel %vm2743, %v2855, %v2866
        %v2869 = vshrl.u32 %v2709, 16
        %v2871 = vrot.slane %v2869, 7
        %v2872 = vshll.u32 %v2709, 16
        %v2874 = vor.u32 %v2871, %v2872
        %v2875 = vsel %vm2743, %v2863, %v2874
        %v2877 = vshrl.u32 %v2710, 16
        %v2879 = vrot.slane %v2877, 7
        %v2880 = vshll.u32 %v2710, 16
        %v2882 = vor.u32 %v2879, %v2880
        %v2883 = vsel %vm2743, %v2871, %v2882
        %v2885 = vshrl.u32 %v2711, 16
        %v2887 = vrot.slane %v2885, 7
        %v2888 = vshll.u32 %v2711, 16
        %v2890 = vor.u32 %v2887, %v2888
        %v2891 = vsel %vm2743, %v2879, %v2890
        %v2893 = vshrl.u32 %v2712, 16
        %v2895 = vrot.slane %v2893, 7
        %v2896 = vshll.u32 %v2712, 16
        %v2898 = vor.u32 %v2895, %v2896
        %v2899 = vsel %vm2743, %v2887, %v2898
        %v2901 = vshrl.u32 %v2713, 16
        %v2903 = vrot.slane %v2901, 7
        %v2904 = vshll.u32 %v2713, 16
        %v2906 = vor.u32 %v2903, %v2904
        %v2907 = vsel %vm2743, %v2895, %v2906
        %v2909 = vshrl.u32 %v2714, 16
        %v2911 = vrot.slane %v2909, 7
        %v2912 = vshll.u32 %v2714, 16
        %v2914 = vor.u32 %v2911, %v2912
        %v2915 = vsel %vm2743, %v2903, %v2914
        %v2917 = vshrl.u32 %v2715, 16
        %v2919 = vrot.slane %v2917, 7
        %v2920 = vshll.u32 %v2715, 16
        %v2922 = vor.u32 %v2919, %v2920
        %v2923 = vsel %vm2743, %v2911, %v2922
        %v2925 = vshrl.u32 %v2716, 16
        %v2927 = vrot.slane %v2925, 7
        %v2928 = vshll.u32 %v2716, 16
        %v2930 = vor.u32 %v2927, %v2928
        %v2931 = vsel %vm2743, %v2919, %v2930
        %v2933 = vshrl.u32 %v2717, 16
        %v2935 = vrot.slane %v2933, 7
        %v2936 = vshll.u32 %v2717, 16
        %v2938 = vor.u32 %v2935, %v2936
        %v2939 = vsel %vm2743, %v2927, %v2938
        %v2941 = vshrl.u32 %v2718, 16
        %v2943 = vrot.slane %v2941, 7
        %v2944 = vshll.u32 %v2718, 16
        %v2946 = vor.u32 %v2943, %v2944
        %v2947 = vsel %vm2743, %v2935, %v2946
        %v2949 = vshrl.u32 %v2719, 16
        %v2951 = vrot.slane %v2949, 7
        %v2952 = vshll.u32 %v2719, 16
        %v2954 = vor.u32 %v2951, %v2952
        %v2955 = vsel %vm2743, %v2943, %v2954
        %v2957 = vshrl.u32 %v2720, 16
        %v2959 = vrot.slane %v2957, 7
        %v2960 = vshll.u32 %v2720, 16
        %v2962 = vor.u32 %v2959, %v2960
        %v2963 = vsel %vm2743, %v2951, %v2962
        %v2965 = vshrl.u32 %v2721, 16
        %v2967 = vrot.slane %v2965, 7
        %v2968 = vshll.u32 %v2721, 16
        %v2970 = vor.u32 %v2967, %v2968
        %v2971 = vsel %vm2743, %v2959, %v2970
        %v2973 = vshrl.u32 %v2722, 16
        %v2975 = vrot.slane %v2973, 7
        %v2976 = vshll.u32 %v2722, 16
        %v2978 = vor.u32 %v2975, %v2976
        %v2979 = vsel %vm2743, %v2967, %v2978
        %v2981 = vshrl.u32 %v2723, 16
        %v2983 = vrot.slane %v2981, 7
        %v2984 = vshll.u32 %v2723, 16
        %v2986 = vor.u32 %v2983, %v2984
        %v2987 = vsel %vm2743, %v2975, %v2986
        %v2989 = vshrl.u32 %v2724, 16
        %v2991 = vrot.slane %v2989, 7
        %v2992 = vshll.u32 %v2724, 16
        %v2994 = vor.u32 %v2991, %v2992
        %v2995 = vsel %vm2743, %v2983, %v2994
        %v2997 = vshrl.u32 %v2725, 16
        %v2999 = vrot.slane %v2997, 7
        %v3000 = vshll.u32 %v2725, 16
        %v3002 = vor.u32 %v2999, %v3000
        %v3003 = vsel %vm2743, %v2991, %v3002
        %v3052 = vunpack.c.l.b16 %v2727
        %v3053 = vunpack.c.l.b16 %v2728
        %v3054 = vunpack.c.l.b16 %v2729
        %v3055 = vunpack.c.l.b16 %v2730
        %v3056 = vunpack.c.l.b16 %v2731
        %v3057 = vunpack.c.l.b16 %v2732
        %v3058 = vunpack.c.l.b16 %v2733
        %v3059 = vunpack.c.l.b16 %v2734
        %v3060 = vunpack.c.l.b16 %v2735
        %v3061 = vunpack.c.l.b16 %v2736
        %v3062 = vunpack.c.l.b16 %v2737
        %v3063 = vunpack.c.l.b16 %v2738
        %v3064 = vunpack.c.l.b16 %v2739
        %v3065 = vunpack.c.l.b16 %v2740
        %v3066 = vunpack.c.l.b16 %v2741
        %v3067 = vunpack.c.l.b16 %v2742
        %v3068 = vpack.c.b16 %v3053, %v3052
        %v3069 = vpack.c.b16 %v3055, %v3054
        %v3070 = vpack.c.b16 %v3057, %v3056
        %v3071 = vpack.c.b16 %v3059, %v3058
        %v3072 = vpack.c.b16 %v3061, %v3060
        %v3073 = vpack.c.b16 %v3063, %v3062
        %v3074 = vpack.c.b16 %v3065, %v3064
        %v3075 = vpack.c.b16 %v3067, %v3066
        %3084 = vmatprep.subr.bf16.mxu0 0
        %3085 = vmatpush1.bf16.msra.mxu0 %v3068
        %3086 = vmatprep.subr.bf16.mxu0 0
        %3087 = vmatpush1.bf16.msra.mxu0 %v3069
        %3088 = vmatprep.subr.bf16.mxu0 0
        %3089 = vmatpush1.bf16.msra.mxu0 %v3070
        %3090 = vmatprep.subr.bf16.mxu0 0
        %3091 = vmatpush1.bf16.msra.mxu0 %v3071
        %3092 = vmatprep.subr.bf16.mxu0 0
        %3093 = vmatpush1.bf16.msra.mxu0 %v3072
        %3094 = vmatprep.subr.bf16.mxu0 0
        %3095 = vmatpush1.bf16.msra.mxu0 %v3073
        %3096 = vmatprep.subr.bf16.mxu0 0
        %3097 = vmatpush1.bf16.msra.mxu0 %v3074
        %3098 = vmatprep.subr.bf16.mxu0 0
        %3099 = vmatpush1.bf16.msra.mxu0 %v3075
        %3100 = vmatprep.subr.bf16.mxu0 0
        %3101 = vmatpush1.bf16.msra.mxu0 0
        %3102 = vmatprep.subr.bf16.mxu0 0
        %3103 = vmatpush1.bf16.msra.mxu0 0
        %3104 = vmatprep.subr.bf16.mxu0 0
        %3105 = vmatpush1.bf16.msra.mxu0 0
        %3106 = vmatprep.subr.bf16.mxu0 0
        %3107 = vmatpush1.bf16.msra.mxu0 0
        %3108 = vmatprep.subr.bf16.mxu0 0
        %3109 = vmatpush1.bf16.msra.mxu0 0
        %3110 = vmatprep.subr.bf16.mxu0 0
        %3111 = vmatpush1.bf16.msra.mxu0 0
        %3112 = vmatprep.subr.bf16.mxu0 0
        %3113 = vmatpush1.bf16.msra.mxu0 0
        %3114 = vmatprep.subr.bf16.mxu0 0
        %3115 = vmatpush1.bf16.msra.mxu0 0
        %3116 = vmatprep.mubr.bf16.mxu0 0
        %3117 = vmatmul.mubr.bf16.gmra.mrb[0].mxu0 %v2755
        %v3118 = vpop.f32.mrb[0].mxu0
        %v3119 = vadd.f32 0.0, %v3118
        %v3120 = vpop.f32.mrb[0].mxu0
        %v3121 = vpop.f32.mrb[0].mxu0
        %v3122 = vadd.f32 0.0, %v3121
        %v3123 = vpop.f32.mrb[0].mxu0
        %3124 = vmatprep.mubr.bf16.mxu0 0
        %3125 = vmatmul.mubr.bf16.gmra.mrb[0].mxu0 %v2763
        %v3126 = vpop.f32.mrb[0].mxu0
        %v3127 = vadd.f32 0.0, %v3126
        %v3128 = vpop.f32.mrb[0].mxu0
        %v3129 = vpop.f32.mrb[0].mxu0
        %v3130 = vadd.f32 0.0, %v3129
        %v3131 = vpop.f32.mrb[0].mxu0
        %3132 = vmatprep.mubr.bf16.mxu0 0
        %3133 = vmatmul.mubr.bf16.gmra.mrb[0].mxu0 %v2771
        %v3134 = vpop.f32.mrb[0].mxu0
        %v3135 = vadd.f32 0.0, %v3134
        %v3136 = vpop.f32.mrb[0].mxu0
        %v3137 = vpop.f32.mrb[0].mxu0
        %v3138 = vadd.f32 0.0, %v3137
        %v3139 = vpop.f32.mrb[0].mxu0
        %3140 = vmatprep.mubr.bf16.mxu0 0
        %3141 = vmatmul.mubr.bf16.gmra.mrb[0].mxu0 %v2779
        %v3142 = vpop.f32.mrb[0].mxu0
        %v3143 = vadd.f32 0.0, %v3142
        %v3144 = vpop.f32.mrb[0].mxu0
        %v3145 = vpop.f32.mrb[0].mxu0
        %v3146 = vadd.f32 0.0, %v3145
        %v3147 = vpop.f32.mrb[0].mxu0
        %3148 = vmatprep.mubr.bf16.mxu0 0
        %3149 = vmatmul.mubr.bf16.gmra.mrb[0].mxu0 %v2787
        %v3150 = vpop.f32.mrb[0].mxu0
        %v3151 = vadd.f32 0.0, %v3150
        %v3152 = vpop.f32.mrb[0].mxu0
        %v3153 = vpop.f32.mrb[0].mxu0
        %v3154 = vadd.f32 0.0, %v3153
        %v3155 = vpop.f32.mrb[0].mxu0
        %3156 = vmatprep.mubr.bf16.mxu0 0
        %3157 = vmatmul.mubr.bf16.gmra.mrb[0].mxu0 %v2795
        %v3158 = vpop.f32.mrb[0].mxu0
        %v3159 = vadd.f32 0.0, %v3158
        %v3160 = vpop.f32.mrb[0].mxu0
        %v3161 = vpop.f32.mrb[0].mxu0
        %v3162 = vadd.f32 0.0, %v3161
        %v3163 = vpop.f32.mrb[0].mxu0
        %3164 = vmatprep.mubr.bf16.mxu0 0
        %3165 = vmatmul.mubr.bf16.gmra.mrb[0].mxu0 %v2803
        %v3166 = vpop.f32.mrb[0].mxu0
        %v3167 = vadd.f32 0.0, %v3166
        %v3168 = vpop.f32.mrb[0].mxu0
        %v3169 = vpop.f32.mrb[0].mxu0
        %v3170 = vadd.f32 0.0, %v3169
        %v3171 = vpop.f32.mrb[0].mxu0
        %3172 = vmatprep.mubr.bf16.mxu0 0
        %3173 = vmatmul.mubr.bf16.gmra.mrb[0].mxu0 %v2811
        %v3174 = vpop.f32.mrb[0].mxu0
        %v3175 = vadd.f32 0.0, %v3174
        %v3176 = vpop.f32.mrb[0].mxu0
        %v3177 = vpop.f32.mrb[0].mxu0
        %v3178 = vadd.f32 0.0, %v3177
        %v3179 = vpop.f32.mrb[0].mxu0
        %3180 = vmatprep.mubr.bf16.mxu0 0
        %3181 = vmatmul.mubr.bf16.gmra.mrb[0].mxu0 %v2819
        %v3182 = vpop.f32.mrb[0].mxu0
        %v3183 = vadd.f32 0.0, %v3182
        %v3184 = vpop.f32.mrb[0].mxu0
        %v3185 = vpop.f32.mrb[0].mxu0
        %v3186 = vadd.f32 0.0, %v3185
        %v3187 = vpop.f32.mrb[0].mxu0
        %3188 = vmatprep.mubr.bf16.mxu0 0
        %3189 = vmatmul.mubr.bf16.gmra.mrb[0].mxu0 %v2827
        %v3190 = vpop.f32.mrb[0].mxu0
        %v3191 = vadd.f32 0.0, %v3190
        %v3192 = vpop.f32.mrb[0].mxu0
        %v3193 = vpop.f32.mrb[0].mxu0
        %v3194 = vadd.f32 0.0, %v3193
        %v3195 = vpop.f32.mrb[0].mxu0
        %3196 = vmatprep.mubr.bf16.mxu0 0
        %3197 = vmatmul.mubr.bf16.gmra.mrb[0].mxu0 %v2835
        %v3198 = vpop.f32.mrb[0].mxu0
        %v3199 = vadd.f32 0.0, %v3198
        %v3200 = vpop.f32.mrb[0].mxu0
        %v3201 = vpop.f32.mrb[0].mxu0
        %v3202 = vadd.f32 0.0, %v3201
        %v3203 = vpop.f32.mrb[0].mxu0
        %3204 = vmatprep.mubr.bf16.mxu0 0
        %3205 = vmatmul.mubr.bf16.gmra.mrb[0].mxu0 %v2843
        %v3206 = vpop.f32.mrb[0].mxu0
        %v3207 = vadd.f32 0.0, %v3206
        %v3208 = vpop.f32.mrb[0].mxu0
        %v3209 = vpop.f32.mrb[0].mxu0
        %v3210 = vadd.f32 0.0, %v3209
        %v3211 = vpop.f32.mrb[0].mxu0
        %3212 = vmatprep.mubr.bf16.mxu0 0
        %3213 = vmatmul.mubr.bf16.gmra.mrb[0].mxu0 %v2851
        %v3214 = vpop.f32.mrb[0].mxu0
        %v3215 = vadd.f32 0.0, %v3214
        %v3216 = vpop.f32.mrb[0].mxu0
        %v3217 = vpop.f32.mrb[0].mxu0
        %v3218 = vadd.f32 0.0, %v3217
        %v3219 = vpop.f32.mrb[0].mxu0
        %3220 = vmatprep.mubr.bf16.mxu0 0
        %3221 = vmatmul.mubr.bf16.gmra.mrb[0].mxu0 %v2859
        %v3222 = vpop.f32.mrb[0].mxu0
        %v3223 = vadd.f32 0.0, %v3222
        %v3224 = vpop.f32.mrb[0].mxu0
        %v3225 = vpop.f32.mrb[0].mxu0
        %v3226 = vadd.f32 0.0, %v3225
        %v3227 = vpop.f32.mrb[0].mxu0
        %3228 = vmatprep.mubr.bf16.mxu0 0
        %3229 = vmatmul.mubr.bf16.gmra.mrb[0].mxu0 %v2867
        %v3230 = vpop.f32.mrb[0].mxu0
        %v3231 = vadd.f32 0.0, %v3230
        %v3232 = vpop.f32.mrb[0].mxu0
        %v3233 = vpop.f32.mrb[0].mxu0
        %v3234 = vadd.f32 0.0, %v3233
        %v3235 = vpop.f32.mrb[0].mxu0
        %3236 = vmatprep.mubr.bf16.mxu0 0
        %3237 = vmatmul.mubr.bf16.gmra.mrb[0].mxu0 %v2875
        %v3238 = vpop.f32.mrb[0].mxu0
        %v3239 = vadd.f32 0.0, %v3238
        %v3240 = vpop.f32.mrb[0].mxu0
        %v3241 = vpop.f32.mrb[0].mxu0
        %v3242 = vadd.f32 0.0, %v3241
        %v3243 = vpop.f32.mrb[0].mxu0
        %3244 = vmatprep.mubr.bf16.mxu0 0
        %3245 = vmatmul.mubr.bf16.gmra.mrb[0].mxu0 %v2883
        %v3246 = vpop.f32.mrb[0].mxu0
        %v3247 = vadd.f32 0.0, %v3246
        %v3248 = vpop.f32.mrb[0].mxu0
        %v3249 = vpop.f32.mrb[0].mxu0
        %v3250 = vadd.f32 0.0, %v3249
        %v3251 = vpop.f32.mrb[0].mxu0
        %3252 = vmatprep.mubr.bf16.mxu0 0
        %3253 = vmatmul.mubr.bf16.gmra.mrb[0].mxu0 %v2891
        %v3254 = vpop.f32.mrb[0].mxu0
        %v3255 = vadd.f32 0.0, %v3254
        %v3256 = vpop.f32.mrb[0].mxu0
        %v3257 = vpop.f32.mrb[0].mxu0
        %v3258 = vadd.f32 0.0, %v3257
        %v3259 = vpop.f32.mrb[0].mxu0
        %3260 = vmatprep.mubr.bf16.mxu0 0
        %3261 = vmatmul.mubr.bf16.gmra.mrb[0].mxu0 %v2899
        %v3262 = vpop.f32.mrb[0].mxu0
        %v3263 = vadd.f32 0.0, %v3262
        %v3264 = vpop.f32.mrb[0].mxu0
        %v3265 = vpop.f32.mrb[0].mxu0
        %v3266 = vadd.f32 0.0, %v3265
        %v3267 = vpop.f32.mrb[0].mxu0
        %3268 = vmatprep.mubr.bf16.mxu0 0
        %3269 = vmatmul.mubr.bf16.gmra.mrb[0].mxu0 %v2907
        %v3270 = vpop.f32.mrb[0].mxu0
        %v3271 = vadd.f32 0.0, %v3270
        %v3272 = vpop.f32.mrb[0].mxu0
        %v3273 = vpop.f32.mrb[0].mxu0
        %v3274 = vadd.f32 0.0, %v3273
        %v3275 = vpop.f32.mrb[0].mxu0
        %3276 = vmatprep.mubr.bf16.mxu0 0
        %3277 = vmatmul.mubr.bf16.gmra.mrb[0].mxu0 %v2915
        %v3278 = vpop.f32.mrb[0].mxu0
        %v3279 = vadd.f32 0.0, %v3278
        %v3280 = vpop.f32.mrb[0].mxu0
        %v3281 = vpop.f32.mrb[0].mxu0
        %v3282 = vadd.f32 0.0, %v3281
        %v3283 = vpop.f32.mrb[0].mxu0
        %3284 = vmatprep.mubr.bf16.mxu0 0
        %3285 = vmatmul.mubr.bf16.gmra.mrb[0].mxu0 %v2923
        %v3286 = vpop.f32.mrb[0].mxu0
        %v3287 = vadd.f32 0.0, %v3286
        %v3288 = vpop.f32.mrb[0].mxu0
        %v3289 = vpop.f32.mrb[0].mxu0
        %v3290 = vadd.f32 0.0, %v3289
        %v3291 = vpop.f32.mrb[0].mxu0
        %3292 = vmatprep.mubr.bf16.mxu0 0
        %3293 = vmatmul.mubr.bf16.gmra.mrb[0].mxu0 %v2931
        %v3294 = vpop.f32.mrb[0].mxu0
        %v3295 = vadd.f32 0.0, %v3294
        %v3296 = vpop.f32.mrb[0].mxu0
        %v3297 = vpop.f32.mrb[0].mxu0
        %v3298 = vadd.f32 0.0, %v3297
        %v3299 = vpop.f32.mrb[0].mxu0
        %3300 = vmatprep.mubr.bf16.mxu0 0
        %3301 = vmatmul.mubr.bf16.gmra.mrb[0].mxu0 %v2939
        %v3302 = vpop.f32.mrb[0].mxu0
        %v3303 = vadd.f32 0.0, %v3302
        %v3304 = vpop.f32.mrb[0].mxu0
        %v3305 = vpop.f32.mrb[0].mxu0
        %v3306 = vadd.f32 0.0, %v3305
        %v3307 = vpop.f32.mrb[0].mxu0
        %3308 = vmatprep.mubr.bf16.mxu0 0
        %3309 = vmatmul.mubr.bf16.gmra.mrb[0].mxu0 %v2947
        %v3310 = vpop.f32.mrb[0].mxu0
        %v3311 = vadd.f32 0.0, %v3310
        %v3312 = vpop.f32.mrb[0].mxu0
        %v3313 = vpop.f32.mrb[0].mxu0
        %v3314 = vadd.f32 0.0, %v3313
        %v3315 = vpop.f32.mrb[0].mxu0
        %3316 = vmatprep.mubr.bf16.mxu0 0
        %3317 = vmatmul.mubr.bf16.gmra.mrb[0].mxu0 %v2955
        %v3318 = vpop.f32.mrb[0].mxu0
        %v3319 = vadd.f32 0.0, %v3318
        %v3320 = vpop.f32.mrb[0].mxu0
        %v3321 = vpop.f32.mrb[0].mxu0
        %v3322 = vadd.f32 0.0, %v3321
        %v3323 = vpop.f32.mrb[0].mxu0
        %3324 = vmatprep.mubr.bf16.mxu0 0
        %3325 = vmatmul.mubr.bf16.gmra.mrb[0].mxu0 %v2963
        %v3326 = vpop.f32.mrb[0].mxu0
        %v3327 = vadd.f32 0.0, %v3326
        %v3328 = vpop.f32.mrb[0].mxu0
        %v3329 = vpop.f32.mrb[0].mxu0
        %v3330 = vadd.f32 0.0, %v3329
        %v3331 = vpop.f32.mrb[0].mxu0
        %3332 = vmatprep.mubr.bf16.mxu0 0
        %3333 = vmatmul.mubr.bf16.gmra.mrb[0].mxu0 %v2971
        %v3334 = vpop.f32.mrb[0].mxu0
        %v3335 = vadd.f32 0.0, %v3334
        %v3336 = vpop.f32.mrb[0].mxu0
        %v3337 = vpop.f32.mrb[0].mxu0
        %v3338 = vadd.f32 0.0, %v3337
        %v3339 = vpop.f32.mrb[0].mxu0
        %3340 = vmatprep.mubr.bf16.mxu0 0
        %3341 = vmatmul.mubr.bf16.gmra.mrb[0].mxu0 %v2979
        %v3342 = vpop.f32.mrb[0].mxu0
        %v3343 = vadd.f32 0.0, %v3342
        %v3344 = vpop.f32.mrb[0].mxu0
        %v3345 = vpop.f32.mrb[0].mxu0
        %v3346 = vadd.f32 0.0, %v3345
        %v3347 = vpop.f32.mrb[0].mxu0
        %3348 = vmatprep.mubr.bf16.mxu0 0
        %3349 = vmatmul.mubr.bf16.gmra.mrb[0].mxu0 %v2987
        %v3350 = vpop.f32.mrb[0].mxu0
        %v3351 = vadd.f32 0.0, %v3350
        %v3352 = vpop.f32.mrb[0].mxu0
        %v3353 = vpop.f32.mrb[0].mxu0
        %v3354 = vadd.f32 0.0, %v3353
        %v3355 = vpop.f32.mrb[0].mxu0
        %3356 = vmatprep.mubr.bf16.mxu0 0
        %3357 = vmatmul.mubr.bf16.gmra.mrb[0].mxu0 %v2995
        %v3358 = vpop.f32.mrb[0].mxu0
        %v3359 = vadd.f32 0.0, %v3358
        %v3360 = vpop.f32.mrb[0].mxu0
        %v3361 = vpop.f32.mrb[0].mxu0
        %v3362 = vadd.f32 0.0, %v3361
        %v3363 = vpop.f32.mrb[0].mxu0
        %3364 = vmatprep.mubr.bf16.mxu0 0
        %3365 = vmatmul.mubr.bf16.gmra.mrb[0].mxu0 %v3003
        %v3366 = vpop.f32.mrb[0].mxu0
        %v3367 = vadd.f32 0.0, %v3366
        %v3368 = vpop.f32.mrb[0].mxu0
        %v3369 = vpop.f32.mrb[0].mxu0
        %v3370 = vadd.f32 0.0, %v3369
        %v3371 = vpop.f32.mrb[0].mxu0
        %3372 = vdwg.mxu0
        %v3373 = vld [vmem:[#allocation3] sm:$0xff]
        %v3374 = vld [vmem:[#allocation3 + $0x8] sm:$0xff]
        %v3375 = vld [vmem:[#allocation3 + $0x10] sm:$0xff]
        %v3376 = vld [vmem:[#allocation3 + $0x18] sm:$0xff]
        %v3377 = vld [vmem:[#allocation3 + $0x20] sm:$0xff]
        %v3378 = vld [vmem:[#allocation3 + $0x28] sm:$0xff]
        %v3379 = vld [vmem:[#allocation3 + $0x30] sm:$0xff]
        %v3380 = vld [vmem:[#allocation3 + $0x38] sm:$0xff]
        %v3381 = vld [vmem:[#allocation3 + $0x40] sm:$0xff]
        %v3382 = vld [vmem:[#allocation3 + $0x48] sm:$0xff]
        %v3383 = vld [vmem:[#allocation3 + $0x50] sm:$0xff]
        %v3384 = vld [vmem:[#allocation3 + $0x58] sm:$0xff]
        %v3385 = vld [vmem:[#allocation3 + $0x60] sm:$0xff]
        %v3386 = vld [vmem:[#allocation3 + $0x68] sm:$0xff]
        %v3387 = vld [vmem:[#allocation3 + $0x70] sm:$0xff]
        %v3388 = vld [vmem:[#allocation3 + $0x78] sm:$0xff]
        %v3389 = vld [vmem:[#allocation3 + $0x80] sm:$0xff]
        %v3390 = vld [vmem:[#allocation3 + $0x88] sm:$0xff]
        %v3391 = vld [vmem:[#allocation3 + $0x90] sm:$0xff]
        %v3392 = vld [vmem:[#allocation3 + $0x98] sm:$0xff]
        %v3393 = vld [vmem:[#allocation3 + $0xa0] sm:$0xff]
        %v3394 = vld [vmem:[#allocation3 + $0xa8] sm:$0xff]
        %v3395 = vld [vmem:[#allocation3 + $0xb0] sm:$0xff]
        %v3396 = vld [vmem:[#allocation3 + $0xb8] sm:$0xff]
        %v3397 = vld [vmem:[#allocation3 + $0xc0] sm:$0xff]
        %v3398 = vld [vmem:[#allocation3 + $0xc8] sm:$0xff]
        %v3399 = vld [vmem:[#allocation3 + $0xd0] sm:$0xff]
        %v3400 = vld [vmem:[#allocation3 + $0xd8] sm:$0xff]
        %v3401 = vld [vmem:[#allocation3 + $0xe0] sm:$0xff]
        %v3402 = vld [vmem:[#allocation3 + $0xe8] sm:$0xff]
        %v3403 = vld [vmem:[#allocation3 + $0xf0] sm:$0xff]
        %v3404 = vld [vmem:[#allocation3 + $0xf8] sm:$0xff]
        %v3405 = vld [vmem:[#allocation3 + $0x100] sm:$0xff]
        %v3406 = vld [vmem:[#allocation3 + $0x108] sm:$0xff]
        %v3407 = vld [vmem:[#allocation3 + $0x110] sm:$0xff]
        %v3408 = vld [vmem:[#allocation3 + $0x118] sm:$0xff]
        %v3409 = vld [vmem:[#allocation3 + $0x120] sm:$0xff]
        %v3410 = vld [vmem:[#allocation3 + $0x128] sm:$0xff]
        %v3411 = vld [vmem:[#allocation3 + $0x130] sm:$0xff]
        %v3412 = vld [vmem:[#allocation3 + $0x138] sm:$0xff]
        %v3413 = vld [vmem:[#allocation3 + $0x140] sm:$0xff]
        %v3414 = vld [vmem:[#allocation3 + $0x148] sm:$0xff]
        %v3415 = vld [vmem:[#allocation3 + $0x150] sm:$0xff]
        %v3416 = vld [vmem:[#allocation3 + $0x158] sm:$0xff]
        %v3417 = vld [vmem:[#allocation3 + $0x160] sm:$0xff]
        %v3418 = vld [vmem:[#allocation3 + $0x168] sm:$0xff]
        %v3419 = vld [vmem:[#allocation3 + $0x170] sm:$0xff]
        %v3420 = vld [vmem:[#allocation3 + $0x178] sm:$0xff]
        %v3421 = vld [vmem:[#allocation3 + $0x180] sm:$0xff]
        %v3422 = vld [vmem:[#allocation3 + $0x188] sm:$0xff]
        %v3423 = vld [vmem:[#allocation3 + $0x190] sm:$0xff]
        %v3424 = vld [vmem:[#allocation3 + $0x198] sm:$0xff]
        %v3425 = vld [vmem:[#allocation3 + $0x1a0] sm:$0xff]
        %v3426 = vld [vmem:[#allocation3 + $0x1a8] sm:$0xff]
        %v3427 = vld [vmem:[#allocation3 + $0x1b0] sm:$0xff]
        %v3428 = vld [vmem:[#allocation3 + $0x1b8] sm:$0xff]
        %v3429 = vld [vmem:[#allocation3 + $0x1c0] sm:$0xff]
        %v3430 = vld [vmem:[#allocation3 + $0x1c8] sm:$0xff]
        %v3431 = vld [vmem:[#allocation3 + $0x1d0] sm:$0xff]
        %v3432 = vld [vmem:[#allocation3 + $0x1d8] sm:$0xff]
        %v3433 = vld [vmem:[#allocation3 + $0x1e0] sm:$0xff]
        %v3434 = vld [vmem:[#allocation3 + $0x1e8] sm:$0xff]
        %v3435 = vld [vmem:[#allocation3 + $0x1f0] sm:$0xff]
        %v3436 = vld [vmem:[#allocation3 + $0x1f8] sm:$0xff]
        %v3437 = vadd.f32 %v3373, %v3119
        %v3438 = vadd.f32 %v3374, %v3122
        %v3439 = vadd.f32 %v3375, %v3127
        %v3440 = vadd.f32 %v3376, %v3130
        %v3441 = vadd.f32 %v3377, %v3135
        %v3442 = vadd.f32 %v3378, %v3138
        %v3443 = vadd.f32 %v3379, %v3143
        %v3444 = vadd.f32 %v3380, %v3146
        %v3445 = vadd.f32 %v3381, %v3151
        %v3446 = vadd.f32 %v3382, %v3154
        %v3447 = vadd.f32 %v3383, %v3159
        %v3448 = vadd.f32 %v3384, %v3162
        %v3449 = vadd.f32 %v3385, %v3167
        %v3450 = vadd.f32 %v3386, %v3170
        %v3451 = vadd.f32 %v3387, %v3175
        %v3452 = vadd.f32 %v3388, %v3178
        %v3453 = vadd.f32 %v3389, %v3183
        %v3454 = vadd.f32 %v3390, %v3186
        %v3455 = vadd.f32 %v3391, %v3191
        %v3456 = vadd.f32 %v3392, %v3194
        %v3457 = vadd.f32 %v3393, %v3199
        %v3458 = vadd.f32 %v3394, %v3202
        %v3459 = vadd.f32 %v3395, %v3207
        %v3460 = vadd.f32 %v3396, %v3210
        %v3461 = vadd.f32 %v3397, %v3215
        %v3462 = vadd.f32 %v3398, %v3218
        %v3463 = vadd.f32 %v3399, %v3223
        %v3464 = vadd.f32 %v3400, %v3226
        %v3465 = vadd.f32 %v3401, %v3231
        %v3466 = vadd.f32 %v3402, %v3234
        %v3467 = vadd.f32 %v3403, %v3239
        %v3468 = vadd.f32 %v3404, %v3242
        %v3469 = vadd.f32 %v3405, %v3247
        %v3470 = vadd.f32 %v3406, %v3250
        %v3471 = vadd.f32 %v3407, %v3255
        %v3472 = vadd.f32 %v3408, %v3258
        %v3473 = vadd.f32 %v3409, %v3263
        %v3474 = vadd.f32 %v3410, %v3266
        %v3475 = vadd.f32 %v3411, %v3271
        %v3476 = vadd.f32 %v3412, %v3274
        %v3477 = vadd.f32 %v3413, %v3279
        %v3478 = vadd.f32 %v3414, %v3282
        %v3479 = vadd.f32 %v3415, %v3287
        %v3480 = vadd.f32 %v3416, %v3290
        %v3481 = vadd.f32 %v3417, %v3295
        %v3482 = vadd.f32 %v3418, %v3298
        %v3483 = vadd.f32 %v3419, %v3303
        %v3484 = vadd.f32 %v3420, %v3306
        %v3485 = vadd.f32 %v3421, %v3311
        %v3486 = vadd.f32 %v3422, %v3314
        %v3487 = vadd.f32 %v3423, %v3319
        %v3488 = vadd.f32 %v3424, %v3322
        %v3489 = vadd.f32 %v3425, %v3327
        %v3490 = vadd.f32 %v3426, %v3330
        %v3491 = vadd.f32 %v3427, %v3335
        %v3492 = vadd.f32 %v3428, %v3338
        %v3493 = vadd.f32 %v3429, %v3343
        %v3494 = vadd.f32 %v3430, %v3346
        %v3495 = vadd.f32 %v3431, %v3351
        %v3496 = vadd.f32 %v3432, %v3354
        %v3497 = vadd.f32 %v3433, %v3359
        %v3498 = vadd.f32 %v3434, %v3362
        %v3499 = vadd.f32 %v3435, %v3367
        %v3500 = vadd.f32 %v3436, %v3370
        %3501 = vst [vmem:[#allocation3] sm:$0xff] %v3437
        %3502 = vst [vmem:[#allocation3 + $0x8] sm:$0xff] %v3438
        %3503 = vst [vmem:[#allocation3 + $0x10] sm:$0xff] %v3439
        %3504 = vst [vmem:[#allocation3 + $0x18] sm:$0xff] %v3440
        %3505 = vst [vmem:[#allocation3 + $0x20] sm:$0xff] %v3441
        %3506 = vst [vmem:[#allocation3 + $0x28] sm:$0xff] %v3442
        %3507 = vst [vmem:[#allocation3 + $0x30] sm:$0xff] %v3443
        %3508 = vst [vmem:[#allocation3 + $0x38] sm:$0xff] %v3444
        %3509 = vst [vmem:[#allocation3 + $0x40] sm:$0xff] %v3445
        %3510 = vst [vmem:[#allocation3 + $0x48] sm:$0xff] %v3446
        %3511 = vst [vmem:[#allocation3 + $0x50] sm:$0xff] %v3447
        %3512 = vst [vmem:[#allocation3 + $0x58] sm:$0xff] %v3448
        %3513 = vst [vmem:[#allocation3 + $0x60] sm:$0xff] %v3449
        %3514 = vst [vmem:[#allocation3 + $0x68] sm:$0xff] %v3450
        %3515 = vst [vmem:[#allocation3 + $0x70] sm:$0xff] %v3451
        %3516 = vst [vmem:[#allocation3 + $0x78] sm:$0xff] %v3452
        %3517 = vst [vmem:[#allocation3 + $0x80] sm:$0xff] %v3453
        %3518 = vst [vmem:[#allocation3 + $0x88] sm:$0xff] %v3454
        %3519 = vst [vmem:[#allocation3 + $0x90] sm:$0xff] %v3455
        %3520 = vst [vmem:[#allocation3 + $0x98] sm:$0xff] %v3456
        %3521 = vst [vmem:[#allocation3 + $0xa0] sm:$0xff] %v3457
        %3522 = vst [vmem:[#allocation3 + $0xa8] sm:$0xff] %v3458
        %3523 = vst [vmem:[#allocation3 + $0xb0] sm:$0xff] %v3459
        %3524 = vst [vmem:[#allocation3 + $0xb8] sm:$0xff] %v3460
        %3525 = vst [vmem:[#allocation3 + $0xc0] sm:$0xff] %v3461
        %3526 = vst [vmem:[#allocation3 + $0xc8] sm:$0xff] %v3462
        %3527 = vst [vmem:[#allocation3 + $0xd0] sm:$0xff] %v3463
        %3528 = vst [vmem:[#allocation3 + $0xd8] sm:$0xff] %v3464
        %3529 = vst [vmem:[#allocation3 + $0xe0] sm:$0xff] %v3465
        %3530 = vst [vmem:[#allocation3 + $0xe8] sm:$0xff] %v3466
        %3531 = vst [vmem:[#allocation3 + $0xf0] sm:$0xff] %v3467
        %3532 = vst [vmem:[#allocation3 + $0xf8] sm:$0xff] %v3468
        %3533 = vst [vmem:[#allocation3 + $0x100] sm:$0xff] %v3469
        %3534 = vst [vmem:[#allocation3 + $0x108] sm:$0xff] %v3470
        %3535 = vst [vmem:[#allocation3 + $0x110] sm:$0xff] %v3471
        %3536 = vst [vmem:[#allocation3 + $0x118] sm:$0xff] %v3472
        %3537 = vst [vmem:[#allocation3 + $0x120] sm:$0xff] %v3473
        %3538 = vst [vmem:[#allocation3 + $0x128] sm:$0xff] %v3474
        %3539 = vst [vmem:[#allocation3 + $0x130] sm:$0xff] %v3475
        %3540 = vst [vmem:[#allocation3 + $0x138] sm:$0xff] %v3476
        %3541 = vst [vmem:[#allocation3 + $0x140] sm:$0xff] %v3477
        %3542 = vst [vmem:[#allocation3 + $0x148] sm:$0xff] %v3478
        %3543 = vst [vmem:[#allocation3 + $0x150] sm:$0xff] %v3479
        %3544 = vst [vmem:[#allocation3 + $0x158] sm:$0xff] %v3480
        %3545 = vst [vmem:[#allocation3 + $0x160] sm:$0xff] %v3481
        %3546 = vst [vmem:[#allocation3 + $0x168] sm:$0xff] %v3482
        %3547 = vst [vmem:[#allocation3 + $0x170] sm:$0xff] %v3483
        %3548 = vst [vmem:[#allocation3 + $0x178] sm:$0xff] %v3484
        %3549 = vst [vmem:[#allocation3 + $0x180] sm:$0xff] %v3485
        %3550 = vst [vmem:[#allocation3 + $0x188] sm:$0xff] %v3486
        %3551 = vst [vmem:[#allocation3 + $0x190] sm:$0xff] %v3487
        %3552 = vst [vmem:[#allocation3 + $0x198] sm:$0xff] %v3488
        %3553 = vst [vmem:[#allocation3 + $0x1a0] sm:$0xff] %v3489
        %3554 = vst [vmem:[#allocation3 + $0x1a8] sm:$0xff] %v3490
        %3555 = vst [vmem:[#allocation3 + $0x1b0] sm:$0xff] %v3491
        %3556 = vst [vmem:[#allocation3 + $0x1b8] sm:$0xff] %v3492
        %3557 = vst [vmem:[#allocation3 + $0x1c0] sm:$0xff] %v3493
        %3558 = vst [vmem:[#allocation3 + $0x1c8] sm:$0xff] %v3494
        %3559 = vst [vmem:[#allocation3 + $0x1d0] sm:$0xff] %v3495
        %3560 = vst [vmem:[#allocation3 + $0x1d8] sm:$0xff] %v3496
        %3561 = vst [vmem:[#allocation3 + $0x1e0] sm:$0xff] %v3497
        %3562 = vst [vmem:[#allocation3 + $0x1e8] sm:$0xff] %v3498
        %3563 = vst [vmem:[#allocation3 + $0x1f0] sm:$0xff] %v3499
        %3564 = vst [vmem:[#allocation3 + $0x1f8] sm:$0xff] %v3500
        %v3565 = vld [vmem:[#allocation2 + $0x38] sm:$0x80]
        %v3566 = vld [vmem:[#allocation2 + $0x40] sm:$0xff]
        %v3567 = vld [vmem:[#allocation2 + $0x48] sm:$0xff]
        %v3568 = vld [vmem:[#allocation2 + $0x50] sm:$0xff]
        %v3569 = vld [vmem:[#allocation2 + $0x58] sm:$0xff]
        %v3570 = vld [vmem:[#allocation2 + $0x60] sm:$0xff]
        %v3571 = vld [vmem:[#allocation2 + $0x68] sm:$0xff]
        %v3572 = vld [vmem:[#allocation2 + $0x70] sm:$0xff]
        %v3573 = vld [vmem:[#allocation2 + $0x78] sm:$0xff]
        %v3574 = vld [vmem:[#allocation2 + $0x80] sm:$0xff]
        %v3575 = vld [vmem:[#allocation2 + $0x88] sm:$0xff]
        %v3576 = vld [vmem:[#allocation2 + $0x90] sm:$0xff]
        %v3577 = vld [vmem:[#allocation2 + $0x98] sm:$0xff]
        %v3578 = vld [vmem:[#allocation2 + $0xa0] sm:$0xff]
        %v3579 = vld [vmem:[#allocation2 + $0xa8] sm:$0xff]
        %v3580 = vld [vmem:[#allocation2 + $0xb0] sm:$0xff]
        %v3581 = vld [vmem:[#allocation2 + $0xb8] sm:$0xff]
        %v3582 = vld [vmem:[#allocation2 + $0xc0] sm:$0xff]
        %v3583 = vld [vmem:[#allocation2 + $0xc8] sm:$0xff]
        %v3584 = vld [vmem:[#allocation2 + $0xd0] sm:$0xff]
        %v3585 = vld [vmem:[#allocation2 + $0xd8] sm:$0xff]
        %v3586 = vld [vmem:[#allocation2 + $0xe0] sm:$0xff]
        %v3587 = vld [vmem:[#allocation2 + $0xe8] sm:$0xff]
        %v3588 = vld [vmem:[#allocation2 + $0xf0] sm:$0xff]
        %v3589 = vld [vmem:[#allocation2 + $0xf8] sm:$0xff]
        %v3590 = vld [vmem:[#allocation2 + $0x100] sm:$0xff]
        %v3591 = vld [vmem:[#allocation2 + $0x108] sm:$0xff]
        %v3592 = vld [vmem:[#allocation2 + $0x110] sm:$0xff]
        %v3593 = vld [vmem:[#allocation2 + $0x118] sm:$0xff]
        %v3594 = vld [vmem:[#allocation2 + $0x120] sm:$0xff]
        %v3595 = vld [vmem:[#allocation2 + $0x128] sm:$0xff]
        %v3596 = vld [vmem:[#allocation2 + $0x130] sm:$0xff]
        %v3597 = vld [vmem:[#allocation2 + $0x138] sm:$0xff]
        %s3598 = scalar_lea.vmem [#allocation12], 192
        %v3599 = vld [vmem:[%s3598] sm:$0xf]
        %v3600 = vld [vmem:[%s3598 + $0x4] sm:$0xf]
        %v3601 = vld [vmem:[%s3598 + $0x8] sm:$0xf]
        %v3602 = vld [vmem:[%s3598 + $0xc] sm:$0xf]
        %v3603 = vld [vmem:[%s3598 + $0x10] sm:$0xf]
        %v3604 = vld [vmem:[%s3598 + $0x14] sm:$0xf]
        %v3605 = vld [vmem:[%s3598 + $0x18] sm:$0xf]
        %v3606 = vld [vmem:[%s3598 + $0x1c] sm:$0xf]
        %v3607 = vld [vmem:[%s3598 + $0x20] sm:$0xf]
        %v3608 = vld [vmem:[%s3598 + $0x24] sm:$0xf]
        %v3609 = vld [vmem:[%s3598 + $0x28] sm:$0xf]
        %v3610 = vld [vmem:[%s3598 + $0x2c] sm:$0xf]
        %v3611 = vld [vmem:[%s3598 + $0x30] sm:$0xf]
        %v3612 = vld [vmem:[%s3598 + $0x34] sm:$0xf]
        %v3613 = vld [vmem:[%s3598 + $0x38] sm:$0xf]
        %v3614 = vld [vmem:[%s3598 + $0x3c] sm:$0xf]
        %v3616 = vshrl.u32 %v3565, 16
        %v3618 = vrot.slane %v3616, 7
        %v3620 = vshrl.u32 %v3566, 16
        %v3622 = vrot.slane %v3620, 7
        %v3623 = vshll.u32 %v3566, 16
        %v3625 = vor.u32 %v3622, %v3623
        %v3626 = vsel %vm2743, %v3618, %v3625
        %v3628 = vshrl.u32 %v3567, 16
        %v3630 = vrot.slane %v3628, 7
        %v3631 = vshll.u32 %v3567, 16
        %v3633 = vor.u32 %v3630, %v3631
        %v3634 = vsel %vm2743, %v3622, %v3633
        %v3636 = vshrl.u32 %v3568, 16
        %v3638 = vrot.slane %v3636, 7
        %v3639 = vshll.u32 %v3568, 16
        %v3641 = vor.u32 %v3638, %v3639
        %v3642 = vsel %vm2743, %v3630, %v3641
        %v3644 = vshrl.u32 %v3569, 16
        %v3646 = vrot.slane %v3644, 7
        %v3647 = vshll.u32 %v3569, 16
        %v3649 = vor.u32 %v3646, %v3647
        %v3650 = vsel %vm2743, %v3638, %v3649
        %v3652 = vshrl.u32 %v3570, 16
        %v3654 = vrot.slane %v3652, 7
        %v3655 = vshll.u32 %v3570, 16
        %v3657 = vor.u32 %v3654, %v3655
        %v3658 = vsel %vm2743, %v3646, %v3657
        %v3660 = vshrl.u32 %v3571, 16
        %v3662 = vrot.slane %v3660, 7
        %v3663 = vshll.u32 %v3571, 16
        %v3665 = vor.u32 %v3662, %v3663
        %v3666 = vsel %vm2743, %v3654, %v3665
        %v3668 = vshrl.u32 %v3572, 16
        %v3670 = vrot.slane %v3668, 7
        %v3671 = vshll.u32 %v3572, 16
        %v3673 = vor.u32 %v3670, %v3671
        %v3674 = vsel %vm2743, %v3662, %v3673
        %v3676 = vshrl.u32 %v3573, 16
        %v3678 = vrot.slane %v3676, 7
        %v3679 = vshll.u32 %v3573, 16
        %v3681 = vor.u32 %v3678, %v3679
        %v3682 = vsel %vm2743, %v3670, %v3681
        %v3684 = vshrl.u32 %v3574, 16
        %v3686 = vrot.slane %v3684, 7
        %v3687 = vshll.u32 %v3574, 16
        %v3689 = vor.u32 %v3686, %v3687
        %v3690 = vsel %vm2743, %v3678, %v3689
        %v3692 = vshrl.u32 %v3575, 16
        %v3694 = vrot.slane %v3692, 7
        %v3695 = vshll.u32 %v3575, 16
        %v3697 = vor.u32 %v3694, %v3695
        %v3698 = vsel %vm2743, %v3686, %v3697
        %v3700 = vshrl.u32 %v3576, 16
        %v3702 = vrot.slane %v3700, 7
        %v3703 = vshll.u32 %v3576, 16
        %v3705 = vor.u32 %v3702, %v3703
        %v3706 = vsel %vm2743, %v3694, %v3705
        %v3708 = vshrl.u32 %v3577, 16
        %v3710 = vrot.slane %v3708, 7
        %v3711 = vshll.u32 %v3577, 16
        %v3713 = vor.u32 %v3710, %v3711
        %v3714 = vsel %vm2743, %v3702, %v3713
        %v3716 = vshrl.u32 %v3578, 16
        %v3718 = vrot.slane %v3716, 7
        %v3719 = vshll.u32 %v3578, 16
        %v3721 = vor.u32 %v3718, %v3719
        %v3722 = vsel %vm2743, %v3710, %v3721
        %v3724 = vshrl.u32 %v3579, 16
        %v3726 = vrot.slane %v3724, 7
        %v3727 = vshll.u32 %v3579, 16
        %v3729 = vor.u32 %v3726, %v3727
        %v3730 = vsel %vm2743, %v3718, %v3729
        %v3732 = vshrl.u32 %v3580, 16
        %v3734 = vrot.slane %v3732, 7
        %v3735 = vshll.u32 %v3580, 16
        %v3737 = vor.u32 %v3734, %v3735
        %v3738 = vsel %vm2743, %v3726, %v3737
        %v3740 = vshrl.u32 %v3581, 16
        %v3742 = vrot.slane %v3740, 7
        %v3743 = vshll.u32 %v3581, 16
        %v3745 = vor.u32 %v3742, %v3743
        %v3746 = vsel %vm2743, %v3734, %v3745
        %v3748 = vshrl.u32 %v3582, 16
        %v3750 = vrot.slane %v3748, 7
        %v3751 = vshll.u32 %v3582, 16
        %v3753 = vor.u32 %v3750, %v3751
        %v3754 = vsel %vm2743, %v3742, %v3753
        %v3756 = vshrl.u32 %v3583, 16
        %v3758 = vrot.slane %v3756, 7
        %v3759 = vshll.u32 %v3583, 16
        %v3761 = vor.u32 %v3758, %v3759
        %v3762 = vsel %vm2743, %v3750, %v3761
        %v3764 = vshrl.u32 %v3584, 16
        %v3766 = vrot.slane %v3764, 7
        %v3767 = vshll.u32 %v3584, 16
        %v3769 = vor.u32 %v3766, %v3767
        %v3770 = vsel %vm2743, %v3758, %v3769
        %v3772 = vshrl.u32 %v3585, 16
        %v3774 = vrot.slane %v3772, 7
        %v3775 = vshll.u32 %v3585, 16
        %v3777 = vor.u32 %v3774, %v3775
        %v3778 = vsel %vm2743, %v3766, %v3777
        %v3780 = vshrl.u32 %v3586, 16
        %v3782 = vrot.slane %v3780, 7
        %v3783 = vshll.u32 %v3586, 16
        %v3785 = vor.u32 %v3782, %v3783
        %v3786 = vsel %vm2743, %v3774, %v3785
        %v3788 = vshrl.u32 %v3587, 16
        %v3790 = vrot.slane %v3788, 7
        %v3791 = vshll.u32 %v3587, 16
        %v3793 = vor.u32 %v3790, %v3791
        %v3794 = vsel %vm2743, %v3782, %v3793
        %v3796 = vshrl.u32 %v3588, 16
        %v3798 = vrot.slane %v3796, 7
        %v3799 = vshll.u32 %v3588, 16
        %v3801 = vor.u32 %v3798, %v3799
        %v3802 = vsel %vm2743, %v3790, %v3801
        %v3804 = vshrl.u32 %v3589, 16
        %v3806 = vrot.slane %v3804, 7
        %v3807 = vshll.u32 %v3589, 16
        %v3809 = vor.u32 %v3806, %v3807
        %v3810 = vsel %vm2743, %v3798, %v3809
        %v3812 = vshrl.u32 %v3590, 16
        %v3814 = vrot.slane %v3812, 7
        %v3815 = vshll.u32 %v3590, 16
        %v3817 = vor.u32 %v3814, %v3815
        %v3818 = vsel %vm2743, %v3806, %v3817
        %v3820 = vshrl.u32 %v3591, 16
        %v3822 = vrot.slane %v3820, 7
        %v3823 = vshll.u32 %v3591, 16
        %v3825 = vor.u32 %v3822, %v3823
        %v3826 = vsel %vm2743, %v3814, %v3825
        %v3828 = vshrl.u32 %v3592, 16
        %v3830 = vrot.slane %v3828, 7
        %v3831 = vshll.u32 %v3592, 16
        %v3833 = vor.u32 %v3830, %v3831
        %v3834 = vsel %vm2743, %v3822, %v3833
        %v3836 = vshrl.u32 %v3593, 16
        %v3838 = vrot.slane %v3836, 7
        %v3839 = vshll.u32 %v3593, 16
        %v3841 = vor.u32 %v3838, %v3839
        %v3842 = vsel %vm2743, %v3830, %v3841
        %v3844 = vshrl.u32 %v3594, 16
        %v3846 = vrot.slane %v3844, 7
        %v3847 = vshll.u32 %v3594, 16
        %v3849 = vor.u32 %v3846, %v3847
        %v3850 = vsel %vm2743, %v3838, %v3849
        %v3852 = vshrl.u32 %v3595, 16
        %v3854 = vrot.slane %v3852, 7
        %v3855 = vshll.u32 %v3595, 16
        %v3857 = vor.u32 %v3854, %v3855
        %v3858 = vsel %vm2743, %v3846, %v3857
        %v3860 = vshrl.u32 %v3596, 16
        %v3862 = vrot.slane %v3860, 7
        %v3863 = vshll.u32 %v3596, 16
        %v3865 = vor.u32 %v3862, %v3863
        %v3866 = vsel %vm2743, %v3854, %v3865
        %v3868 = vshrl.u32 %v3597, 16
        %v3870 = vrot.slane %v3868, 7
        %v3871 = vshll.u32 %v3597, 16
        %v3873 = vor.u32 %v3870, %v3871
        %v3874 = vsel %vm2743, %v3862, %v3873
        %v3923 = vunpack.c.l.b16 %v3599
        %v3924 = vunpack.c.l.b16 %v3600
        %v3925 = vunpack.c.l.b16 %v3601
        %v3926 = vunpack.c.l.b16 %v3602
        %v3927 = vunpack.c.l.b16 %v3603
        %v3928 = vunpack.c.l.b16 %v3604
        %v3929 = vunpack.c.l.b16 %v3605
        %v3930 = vunpack.c.l.b16 %v3606
        %v3931 = vunpack.c.l.b16 %v3607
        %v3932 = vunpack.c.l.b16 %v3608
        %v3933 = vunpack.c.l.b16 %v3609
        %v3934 = vunpack.c.l.b16 %v3610
        %v3935 = vunpack.c.l.b16 %v3611
        %v3936 = vunpack.c.l.b16 %v3612
        %v3937 = vunpack.c.l.b16 %v3613
        %v3938 = vunpack.c.l.b16 %v3614
        %v3939 = vpack.c.b16 %v3924, %v3923
        %v3940 = vpack.c.b16 %v3926, %v3925
        %v3941 = vpack.c.b16 %v3928, %v3927
        %v3942 = vpack.c.b16 %v3930, %v3929
        %v3943 = vpack.c.b16 %v3932, %v3931
        %v3944 = vpack.c.b16 %v3934, %v3933
        %v3945 = vpack.c.b16 %v3936, %v3935
        %v3946 = vpack.c.b16 %v3938, %v3937
        %3955 = vmatprep.subr.bf16.mxu0 0
        %3956 = vmatpush1.bf16.msra.mxu0 %v3939
        %3957 = vmatprep.subr.bf16.mxu0 0
        %3958 = vmatpush1.bf16.msra.mxu0 %v3940
        %3959 = vmatprep.subr.bf16.mxu0 0
        %3960 = vmatpush1.bf16.msra.mxu0 %v3941
        %3961 = vmatprep.subr.bf16.mxu0 0
        %3962 = vmatpush1.bf16.msra.mxu0 %v3942
        %3963 = vmatprep.subr.bf16.mxu0 0
        %3964 = vmatpush1.bf16.msra.mxu0 %v3943
        %3965 = vmatprep.subr.bf16.mxu0 0
        %3966 = vmatpush1.bf16.msra.mxu0 %v3944
        %3967 = vmatprep.subr.bf16.mxu0 0
        %3968 = vmatpush1.bf16.msra.mxu0 %v3945
        %3969 = vmatprep.subr.bf16.mxu0 0
        %3970 = vmatpush1.bf16.msra.mxu0 %v3946
        %3971 = vmatprep.subr.bf16.mxu0 0
        %3972 = vmatpush1.bf16.msra.mxu0 0
        %3973 = vmatprep.subr.bf16.mxu0 0
        %3974 = vmatpush1.bf16.msra.mxu0 0
        %3975 = vmatprep.subr.bf16.mxu0 0
        %3976 = vmatpush1.bf16.msra.mxu0 0
        %3977 = vmatprep.subr.bf16.mxu0 0
        %3978 = vmatpush1.bf16.msra.mxu0 0
        %3979 = vmatprep.subr.bf16.mxu0 0
        %3980 = vmatpush1.bf16.msra.mxu0 0
        %3981 = vmatprep.subr.bf16.mxu0 0
        %3982 = vmatpush1.bf16.msra.mxu0 0
        %3983 = vmatprep.subr.bf16.mxu0 0
        %3984 = vmatpush1.bf16.msra.mxu0 0
        %3985 = vmatprep.subr.bf16.mxu0 0
        %3986 = vmatpush1.bf16.msra.mxu0 0
        %3987 = vmatprep.mubr.bf16.mxu0 0
        %3988 = vmatmul.mubr.bf16.gmra.mrb[0].mxu0 %v3626
        %v3989 = vpop.f32.mrb[0].mxu0
        %v3990 = vadd.f32 0.0, %v3989
        %v3991 = vpop.f32.mrb[0].mxu0
        %v3992 = vpop.f32.mrb[0].mxu0
        %v3993 = vadd.f32 0.0, %v3992
        %v3994 = vpop.f32.mrb[0].mxu0
        %3995 = vmatprep.mubr.bf16.mxu0 0
        %3996 = vmatmul.mubr.bf16.gmra.mrb[0].mxu0 %v3634
        %v3997 = vpop.f32.mrb[0].mxu0
        %v3998 = vadd.f32 0.0, %v3997
        %v3999 = vpop.f32.mrb[0].mxu0
        %v4000 = vpop.f32.mrb[0].mxu0
        %v4001 = vadd.f32 0.0, %v4000
        %v4002 = vpop.f32.mrb[0].mxu0
        %4003 = vmatprep.mubr.bf16.mxu0 0
        %4004 = vmatmul.mubr.bf16.gmra.mrb[0].mxu0 %v3642
        %v4005 = vpop.f32.mrb[0].mxu0
        %v4006 = vadd.f32 0.0, %v4005
        %v4007 = vpop.f32.mrb[0].mxu0
        %v4008 = vpop.f32.mrb[0].mxu0
        %v4009 = vadd.f32 0.0, %v4008
        %v4010 = vpop.f32.mrb[0].mxu0
        %4011 = vmatprep.mubr.bf16.mxu0 0
        %4012 = vmatmul.mubr.bf16.gmra.mrb[0].mxu0 %v3650
        %v4013 = vpop.f32.mrb[0].mxu0
        %v4014 = vadd.f32 0.0, %v4013
        %v4015 = vpop.f32.mrb[0].mxu0
        %v4016 = vpop.f32.mrb[0].mxu0
        %v4017 = vadd.f32 0.0, %v4016
        %v4018 = vpop.f32.mrb[0].mxu0
        %4019 = vmatprep.mubr.bf16.mxu0 0
        %4020 = vmatmul.mubr.bf16.gmra.mrb[0].mxu0 %v3658
        %v4021 = vpop.f32.mrb[0].mxu0
        %v4022 = vadd.f32 0.0, %v4021
        %v4023 = vpop.f32.mrb[0].mxu0
        %v4024 = vpop.f32.mrb[0].mxu0
        %v4025 = vadd.f32 0.0, %v4024
        %v4026 = vpop.f32.mrb[0].mxu0
        %4027 = vmatprep.mubr.bf16.mxu0 0
        %4028 = vmatmul.mubr.bf16.gmra.mrb[0].mxu0 %v3666
        %v4029 = vpop.f32.mrb[0].mxu0
        %v4030 = vadd.f32 0.0, %v4029
        %v4031 = vpop.f32.mrb[0].mxu0
        %v4032 = vpop.f32.mrb[0].mxu0
        %v4033 = vadd.f32 0.0, %v4032
        %v4034 = vpop.f32.mrb[0].mxu0
        %4035 = vmatprep.mubr.bf16.mxu0 0
        %4036 = vmatmul.mubr.bf16.gmra.mrb[0].mxu0 %v3674
        %v4037 = vpop.f32.mrb[0].mxu0
        %v4038 = vadd.f32 0.0, %v4037
        %v4039 = vpop.f32.mrb[0].mxu0
        %v4040 = vpop.f32.mrb[0].mxu0
        %v4041 = vadd.f32 0.0, %v4040
        %v4042 = vpop.f32.mrb[0].mxu0
        %4043 = vmatprep.mubr.bf16.mxu0 0
        %4044 = vmatmul.mubr.bf16.gmra.mrb[0].mxu0 %v3682
        %v4045 = vpop.f32.mrb[0].mxu0
        %v4046 = vadd.f32 0.0, %v4045
        %v4047 = vpop.f32.mrb[0].mxu0
        %v4048 = vpop.f32.mrb[0].mxu0
        %v4049 = vadd.f32 0.0, %v4048
        %v4050 = vpop.f32.mrb[0].mxu0
        %4051 = vmatprep.mubr.bf16.mxu0 0
        %4052 = vmatmul.mubr.bf16.gmra.mrb[0].mxu0 %v3690
        %v4053 = vpop.f32.mrb[0].mxu0
        %v4054 = vadd.f32 0.0, %v4053
        %v4055 = vpop.f32.mrb[0].mxu0
        %v4056 = vpop.f32.mrb[0].mxu0
        %v4057 = vadd.f32 0.0, %v4056
        %v4058 = vpop.f32.mrb[0].mxu0
        %4059 = vmatprep.mubr.bf16.mxu0 0
        %4060 = vmatmul.mubr.bf16.gmra.mrb[0].mxu0 %v3698
        %v4061 = vpop.f32.mrb[0].mxu0
        %v4062 = vadd.f32 0.0, %v4061
        %v4063 = vpop.f32.mrb[0].mxu0
        %v4064 = vpop.f32.mrb[0].mxu0
        %v4065 = vadd.f32 0.0, %v4064
        %v4066 = vpop.f32.mrb[0].mxu0
        %4067 = vmatprep.mubr.bf16.mxu0 0
        %4068 = vmatmul.mubr.bf16.gmra.mrb[0].mxu0 %v3706
        %v4069 = vpop.f32.mrb[0].mxu0
        %v4070 = vadd.f32 0.0, %v4069
        %v4071 = vpop.f32.mrb[0].mxu0
        %v4072 = vpop.f32.mrb[0].mxu0
        %v4073 = vadd.f32 0.0, %v4072
        %v4074 = vpop.f32.mrb[0].mxu0
        %4075 = vmatprep.mubr.bf16.mxu0 0
        %4076 = vmatmul.mubr.bf16.gmra.mrb[0].mxu0 %v3714
        %v4077 = vpop.f32.mrb[0].mxu0
        %v4078 = vadd.f32 0.0, %v4077
        %v4079 = vpop.f32.mrb[0].mxu0
        %v4080 = vpop.f32.mrb[0].mxu0
        %v4081 = vadd.f32 0.0, %v4080
        %v4082 = vpop.f32.mrb[0].mxu0
        %4083 = vmatprep.mubr.bf16.mxu0 0
        %4084 = vmatmul.mubr.bf16.gmra.mrb[0].mxu0 %v3722
        %v4085 = vpop.f32.mrb[0].mxu0
        %v4086 = vadd.f32 0.0, %v4085
        %v4087 = vpop.f32.mrb[0].mxu0
        %v4088 = vpop.f32.mrb[0].mxu0
        %v4089 = vadd.f32 0.0, %v4088
        %v4090 = vpop.f32.mrb[0].mxu0
        %4091 = vmatprep.mubr.bf16.mxu0 0
        %4092 = vmatmul.mubr.bf16.gmra.mrb[0].mxu0 %v3730
        %v4093 = vpop.f32.mrb[0].mxu0
        %v4094 = vadd.f32 0.0, %v4093
        %v4095 = vpop.f32.mrb[0].mxu0
        %v4096 = vpop.f32.mrb[0].mxu0
        %v4097 = vadd.f32 0.0, %v4096
        %v4098 = vpop.f32.mrb[0].mxu0
        %4099 = vmatprep.mubr.bf16.mxu0 0
        %4100 = vmatmul.mubr.bf16.gmra.mrb[0].mxu0 %v3738
        %v4101 = vpop.f32.mrb[0].mxu0
        %v4102 = vadd.f32 0.0, %v4101
        %v4103 = vpop.f32.mrb[0].mxu0
        %v4104 = vpop.f32.mrb[0].mxu0
        %v4105 = vadd.f32 0.0, %v4104
        %v4106 = vpop.f32.mrb[0].mxu0
        %4107 = vmatprep.mubr.bf16.mxu0 0
        %4108 = vmatmul.mubr.bf16.gmra.mrb[0].mxu0 %v3746
        %v4109 = vpop.f32.mrb[0].mxu0
        %v4110 = vadd.f32 0.0, %v4109
        %v4111 = vpop.f32.mrb[0].mxu0
        %v4112 = vpop.f32.mrb[0].mxu0
        %v4113 = vadd.f32 0.0, %v4112
        %v4114 = vpop.f32.mrb[0].mxu0
        %4115 = vmatprep.mubr.bf16.mxu0 0
        %4116 = vmatmul.mubr.bf16.gmra.mrb[0].mxu0 %v3754
        %v4117 = vpop.f32.mrb[0].mxu0
        %v4118 = vadd.f32 0.0, %v4117
        %v4119 = vpop.f32.mrb[0].mxu0
        %v4120 = vpop.f32.mrb[0].mxu0
        %v4121 = vadd.f32 0.0, %v4120
        %v4122 = vpop.f32.mrb[0].mxu0
        %4123 = vmatprep.mubr.bf16.mxu0 0
        %4124 = vmatmul.mubr.bf16.gmra.mrb[0].mxu0 %v3762
        %v4125 = vpop.f32.mrb[0].mxu0
        %v4126 = vadd.f32 0.0, %v4125
        %v4127 = vpop.f32.mrb[0].mxu0
        %v4128 = vpop.f32.mrb[0].mxu0
        %v4129 = vadd.f32 0.0, %v4128
        %v4130 = vpop.f32.mrb[0].mxu0
        %4131 = vmatprep.mubr.bf16.mxu0 0
        %4132 = vmatmul.mubr.bf16.gmra.mrb[0].mxu0 %v3770
        %v4133 = vpop.f32.mrb[0].mxu0
        %v4134 = vadd.f32 0.0, %v4133
        %v4135 = vpop.f32.mrb[0].mxu0
        %v4136 = vpop.f32.mrb[0].mxu0
        %v4137 = vadd.f32 0.0, %v4136
        %v4138 = vpop.f32.mrb[0].mxu0
        %4139 = vmatprep.mubr.bf16.mxu0 0
        %4140 = vmatmul.mubr.bf16.gmra.mrb[0].mxu0 %v3778
        %v4141 = vpop.f32.mrb[0].mxu0
        %v4142 = vadd.f32 0.0, %v4141
        %v4143 = vpop.f32.mrb[0].mxu0
        %v4144 = vpop.f32.mrb[0].mxu0
        %v4145 = vadd.f32 0.0, %v4144
        %v4146 = vpop.f32.mrb[0].mxu0
        %4147 = vmatprep.mubr.bf16.mxu0 0
        %4148 = vmatmul.mubr.bf16.gmra.mrb[0].mxu0 %v3786
        %v4149 = vpop.f32.mrb[0].mxu0
        %v4150 = vadd.f32 0.0, %v4149
        %v4151 = vpop.f32.mrb[0].mxu0
        %v4152 = vpop.f32.mrb[0].mxu0
        %v4153 = vadd.f32 0.0, %v4152
        %v4154 = vpop.f32.mrb[0].mxu0
        %4155 = vmatprep.mubr.bf16.mxu0 0
        %4156 = vmatmul.mubr.bf16.gmra.mrb[0].mxu0 %v3794
        %v4157 = vpop.f32.mrb[0].mxu0
        %v4158 = vadd.f32 0.0, %v4157
        %v4159 = vpop.f32.mrb[0].mxu0
        %v4160 = vpop.f32.mrb[0].mxu0
        %v4161 = vadd.f32 0.0, %v4160
        %v4162 = vpop.f32.mrb[0].mxu0
        %4163 = vmatprep.mubr.bf16.mxu0 0
        %4164 = vmatmul.mubr.bf16.gmra.mrb[0].mxu0 %v3802
        %v4165 = vpop.f32.mrb[0].mxu0
        %v4166 = vadd.f32 0.0, %v4165
        %v4167 = vpop.f32.mrb[0].mxu0
        %v4168 = vpop.f32.mrb[0].mxu0
        %v4169 = vadd.f32 0.0, %v4168
        %v4170 = vpop.f32.mrb[0].mxu0
        %4171 = vmatprep.mubr.bf16.mxu0 0
        %4172 = vmatmul.mubr.bf16.gmra.mrb[0].mxu0 %v3810
        %v4173 = vpop.f32.mrb[0].mxu0
        %v4174 = vadd.f32 0.0, %v4173
        %v4175 = vpop.f32.mrb[0].mxu0
        %v4176 = vpop.f32.mrb[0].mxu0
        %v4177 = vadd.f32 0.0, %v4176
        %v4178 = vpop.f32.mrb[0].mxu0
        %4179 = vmatprep.mubr.bf16.mxu0 0
        %4180 = vmatmul.mubr.bf16.gmra.mrb[0].mxu0 %v3818
        %v4181 = vpop.f32.mrb[0].mxu0
        %v4182 = vadd.f32 0.0, %v4181
        %v4183 = vpop.f32.mrb[0].mxu0
        %v4184 = vpop.f32.mrb[0].mxu0
        %v4185 = vadd.f32 0.0, %v4184
        %v4186 = vpop.f32.mrb[0].mxu0
        %4187 = vmatprep.mubr.bf16.mxu0 0
        %4188 = vmatmul.mubr.bf16.gmra.mrb[0].mxu0 %v3826
        %v4189 = vpop.f32.mrb[0].mxu0
        %v4190 = vadd.f32 0.0, %v4189
        %v4191 = vpop.f32.mrb[0].mxu0
        %v4192 = vpop.f32.mrb[0].mxu0
        %v4193 = vadd.f32 0.0, %v4192
        %v4194 = vpop.f32.mrb[0].mxu0
        %4195 = vmatprep.mubr.bf16.mxu0 0
        %4196 = vmatmul.mubr.bf16.gmra.mrb[0].mxu0 %v3834
        %v4197 = vpop.f32.mrb[0].mxu0
        %v4198 = vadd.f32 0.0, %v4197
        %v4199 = vpop.f32.mrb[0].mxu0
        %v4200 = vpop.f32.mrb[0].mxu0
        %v4201 = vadd.f32 0.0, %v4200
        %v4202 = vpop.f32.mrb[0].mxu0
        %4203 = vmatprep.mubr.bf16.mxu0 0
        %4204 = vmatmul.mubr.bf16.gmra.mrb[0].mxu0 %v3842
        %v4205 = vpop.f32.mrb[0].mxu0
        %v4206 = vadd.f32 0.0, %v4205
        %v4207 = vpop.f32.mrb[0].mxu0
        %v4208 = vpop.f32.mrb[0].mxu0
        %v4209 = vadd.f32 0.0, %v4208
        %v4210 = vpop.f32.mrb[0].mxu0
        %4211 = vmatprep.mubr.bf16.mxu0 0
        %4212 = vmatmul.mubr.bf16.gmra.mrb[0].mxu0 %v3850
        %v4213 = vpop.f32.mrb[0].mxu0
        %v4214 = vadd.f32 0.0, %v4213
        %v4215 = vpop.f32.mrb[0].mxu0
        %v4216 = vpop.f32.mrb[0].mxu0
        %v4217 = vadd.f32 0.0, %v4216
        %v4218 = vpop.f32.mrb[0].mxu0
        %4219 = vmatprep.mubr.bf16.mxu0 0
        %4220 = vmatmul.mubr.bf16.gmra.mrb[0].mxu0 %v3858
        %v4221 = vpop.f32.mrb[0].mxu0
        %v4222 = vadd.f32 0.0, %v4221
        %v4223 = vpop.f32.mrb[0].mxu0
        %v4224 = vpop.f32.mrb[0].mxu0
        %v4225 = vadd.f32 0.0, %v4224
        %v4226 = vpop.f32.mrb[0].mxu0
        %4227 = vmatprep.mubr.bf16.mxu0 0
        %4228 = vmatmul.mubr.bf16.gmra.mrb[0].mxu0 %v3866
        %v4229 = vpop.f32.mrb[0].mxu0
        %v4230 = vadd.f32 0.0, %v4229
        %v4231 = vpop.f32.mrb[0].mxu0
        %v4232 = vpop.f32.mrb[0].mxu0
        %v4233 = vadd.f32 0.0, %v4232
        %v4234 = vpop.f32.mrb[0].mxu0
        %4235 = vmatprep.mubr.bf16.mxu0 0
        %4236 = vmatmul.mubr.bf16.gmra.mrb[0].mxu0 %v3874
        %v4237 = vpop.f32.mrb[0].mxu0
        %v4238 = vadd.f32 0.0, %v4237
        %v4239 = vpop.f32.mrb[0].mxu0
        %v4240 = vpop.f32.mrb[0].mxu0
        %v4241 = vadd.f32 0.0, %v4240
        %v4242 = vpop.f32.mrb[0].mxu0
        %4243 = vdwg.mxu0
        %v4244 = vld [vmem:[#allocation3] sm:$0xff]
        %v4245 = vld [vmem:[#allocation3 + $0x8] sm:$0xff]
        %v4246 = vld [vmem:[#allocation3 + $0x10] sm:$0xff]
        %v4247 = vld [vmem:[#allocation3 + $0x18] sm:$0xff]
        %v4248 = vld [vmem:[#allocation3 + $0x20] sm:$0xff]
        %v4249 = vld [vmem:[#allocation3 + $0x28] sm:$0xff]
        %v4250 = vld [vmem:[#allocation3 + $0x30] sm:$0xff]
        %v4251 = vld [vmem:[#allocation3 + $0x38] sm:$0xff]
        %v4252 = vld [vmem:[#allocation3 + $0x40] sm:$0xff]
        %v4253 = vld [vmem:[#allocation3 + $0x48] sm:$0xff]
        %v4254 = vld [vmem:[#allocation3 + $0x50] sm:$0xff]
        %v4255 = vld [vmem:[#allocation3 + $0x58] sm:$0xff]
        %v4256 = vld [vmem:[#allocation3 + $0x60] sm:$0xff]
        %v4257 = vld [vmem:[#allocation3 + $0x68] sm:$0xff]
        %v4258 = vld [vmem:[#allocation3 + $0x70] sm:$0xff]
        %v4259 = vld [vmem:[#allocation3 + $0x78] sm:$0xff]
        %v4260 = vld [vmem:[#allocation3 + $0x80] sm:$0xff]
        %v4261 = vld [vmem:[#allocation3 + $0x88] sm:$0xff]
        %v4262 = vld [vmem:[#allocation3 + $0x90] sm:$0xff]
        %v4263 = vld [vmem:[#allocation3 + $0x98] sm:$0xff]
        %v4264 = vld [vmem:[#allocation3 + $0xa0] sm:$0xff]
        %v4265 = vld [vmem:[#allocation3 + $0xa8] sm:$0xff]
        %v4266 = vld [vmem:[#allocation3 + $0xb0] sm:$0xff]
        %v4267 = vld [vmem:[#allocation3 + $0xb8] sm:$0xff]
        %v4268 = vld [vmem:[#allocation3 + $0xc0] sm:$0xff]
        %v4269 = vld [vmem:[#allocation3 + $0xc8] sm:$0xff]
        %v4270 = vld [vmem:[#allocation3 + $0xd0] sm:$0xff]
        %v4271 = vld [vmem:[#allocation3 + $0xd8] sm:$0xff]
        %v4272 = vld [vmem:[#allocation3 + $0xe0] sm:$0xff]
        %v4273 = vld [vmem:[#allocation3 + $0xe8] sm:$0xff]
        %v4274 = vld [vmem:[#allocation3 + $0xf0] sm:$0xff]
        %v4275 = vld [vmem:[#allocation3 + $0xf8] sm:$0xff]
        %v4276 = vld [vmem:[#allocation3 + $0x100] sm:$0xff]
        %v4277 = vld [vmem:[#allocation3 + $0x108] sm:$0xff]
        %v4278 = vld [vmem:[#allocation3 + $0x110] sm:$0xff]
        %v4279 = vld [vmem:[#allocation3 + $0x118] sm:$0xff]
        %v4280 = vld [vmem:[#allocation3 + $0x120] sm:$0xff]
        %v4281 = vld [vmem:[#allocation3 + $0x128] sm:$0xff]
        %v4282 = vld [vmem:[#allocation3 + $0x130] sm:$0xff]
        %v4283 = vld [vmem:[#allocation3 + $0x138] sm:$0xff]
        %v4284 = vld [vmem:[#allocation3 + $0x140] sm:$0xff]
        %v4285 = vld [vmem:[#allocation3 + $0x148] sm:$0xff]
        %v4286 = vld [vmem:[#allocation3 + $0x150] sm:$0xff]
        %v4287 = vld [vmem:[#allocation3 + $0x158] sm:$0xff]
        %v4288 = vld [vmem:[#allocation3 + $0x160] sm:$0xff]
        %v4289 = vld [vmem:[#allocation3 + $0x168] sm:$0xff]
        %v4290 = vld [vmem:[#allocation3 + $0x170] sm:$0xff]
        %v4291 = vld [vmem:[#allocation3 + $0x178] sm:$0xff]
        %v4292 = vld [vmem:[#allocation3 + $0x180] sm:$0xff]
        %v4293 = vld [vmem:[#allocation3 + $0x188] sm:$0xff]
        %v4294 = vld [vmem:[#allocation3 + $0x190] sm:$0xff]
        %v4295 = vld [vmem:[#allocation3 + $0x198] sm:$0xff]
        %v4296 = vld [vmem:[#allocation3 + $0x1a0] sm:$0xff]
        %v4297 = vld [vmem:[#allocation3 + $0x1a8] sm:$0xff]
        %v4298 = vld [vmem:[#allocation3 + $0x1b0] sm:$0xff]
        %v4299 = vld [vmem:[#allocation3 + $0x1b8] sm:$0xff]
        %v4300 = vld [vmem:[#allocation3 + $0x1c0] sm:$0xff]
        %v4301 = vld [vmem:[#allocation3 + $0x1c8] sm:$0xff]
        %v4302 = vld [vmem:[#allocation3 + $0x1d0] sm:$0xff]
        %v4303 = vld [vmem:[#allocation3 + $0x1d8] sm:$0xff]
        %v4304 = vld [vmem:[#allocation3 + $0x1e0] sm:$0xff]
        %v4305 = vld [vmem:[#allocation3 + $0x1e8] sm:$0xff]
        %v4306 = vld [vmem:[#allocation3 + $0x1f0] sm:$0xff]
        %v4307 = vld [vmem:[#allocation3 + $0x1f8] sm:$0xff]
        %v4308 = vadd.f32 %v4244, %v3990
        %v4309 = vadd.f32 %v4245, %v3993
        %v4310 = vadd.f32 %v4246, %v3998
        %v4311 = vadd.f32 %v4247, %v4001
        %v4312 = vadd.f32 %v4248, %v4006
        %v4313 = vadd.f32 %v4249, %v4009
        %v4314 = vadd.f32 %v4250, %v4014
        %v4315 = vadd.f32 %v4251, %v4017
        %v4316 = vadd.f32 %v4252, %v4022
        %v4317 = vadd.f32 %v4253, %v4025
        %v4318 = vadd.f32 %v4254, %v4030
        %v4319 = vadd.f32 %v4255, %v4033
        %v4320 = vadd.f32 %v4256, %v4038
        %v4321 = vadd.f32 %v4257, %v4041
        %v4322 = vadd.f32 %v4258, %v4046
        %v4323 = vadd.f32 %v4259, %v4049
        %v4324 = vadd.f32 %v4260, %v4054
        %v4325 = vadd.f32 %v4261, %v4057
        %v4326 = vadd.f32 %v4262, %v4062
        %v4327 = vadd.f32 %v4263, %v4065
        %v4328 = vadd.f32 %v4264, %v4070
        %v4329 = vadd.f32 %v4265, %v4073
        %v4330 = vadd.f32 %v4266, %v4078
        %v4331 = vadd.f32 %v4267, %v4081
        %v4332 = vadd.f32 %v4268, %v4086
        %v4333 = vadd.f32 %v4269, %v4089
        %v4334 = vadd.f32 %v4270, %v4094
        %v4335 = vadd.f32 %v4271, %v4097
        %v4336 = vadd.f32 %v4272, %v4102
        %v4337 = vadd.f32 %v4273, %v4105
        %v4338 = vadd.f32 %v4274, %v4110
        %v4339 = vadd.f32 %v4275, %v4113
        %v4340 = vadd.f32 %v4276, %v4118
        %v4341 = vadd.f32 %v4277, %v4121
        %v4342 = vadd.f32 %v4278, %v4126
        %v4343 = vadd.f32 %v4279, %v4129
        %v4344 = vadd.f32 %v4280, %v4134
        %v4345 = vadd.f32 %v4281, %v4137
        %v4346 = vadd.f32 %v4282, %v4142
        %v4347 = vadd.f32 %v4283, %v4145
        %v4348 = vadd.f32 %v4284, %v4150
        %v4349 = vadd.f32 %v4285, %v4153
        %v4350 = vadd.f32 %v4286, %v4158
        %v4351 = vadd.f32 %v4287, %v4161
        %v4352 = vadd.f32 %v4288, %v4166
        %v4353 = vadd.f32 %v4289, %v4169
        %v4354 = vadd.f32 %v4290, %v4174
        %v4355 = vadd.f32 %v4291, %v4177
        %v4356 = vadd.f32 %v4292, %v4182
        %v4357 = vadd.f32 %v4293, %v4185
        %v4358 = vadd.f32 %v4294, %v4190
        %v4359 = vadd.f32 %v4295, %v4193
        %v4360 = vadd.f32 %v4296, %v4198
        %v4361 = vadd.f32 %v4297, %v4201
        %v4362 = vadd.f32 %v4298, %v4206
        %v4363 = vadd.f32 %v4299, %v4209
        %v4364 = vadd.f32 %v4300, %v4214
        %v4365 = vadd.f32 %v4301, %v4217
        %v4366 = vadd.f32 %v4302, %v4222
        %v4367 = vadd.f32 %v4303, %v4225
        %v4368 = vadd.f32 %v4304, %v4230
        %v4369 = vadd.f32 %v4305, %v4233
        %v4370 = vadd.f32 %v4306, %v4238
        %v4371 = vadd.f32 %v4307, %v4241
        %4372 = vst [vmem:[#allocation3] sm:$0xff] %v4308
        %4373 = vst [vmem:[#allocation3 + $0x8] sm:$0xff] %v4309
        %4374 = vst [vmem:[#allocation3 + $0x10] sm:$0xff] %v4310
        %4375 = vst [vmem:[#allocation3 + $0x18] sm:$0xff] %v4311
        %4376 = vst [vmem:[#allocation3 + $0x20] sm:$0xff] %v4312
        %4377 = vst [vmem:[#allocation3 + $0x28] sm:$0xff] %v4313
        %4378 = vst [vmem:[#allocation3 + $0x30] sm:$0xff] %v4314
        %4379 = vst [vmem:[#allocation3 + $0x38] sm:$0xff] %v4315
        %4380 = vst [vmem:[#allocation3 + $0x40] sm:$0xff] %v4316
        %4381 = vst [vmem:[#allocation3 + $0x48] sm:$0xff] %v4317
        %4382 = vst [vmem:[#allocation3 + $0x50] sm:$0xff] %v4318
        %4383 = vst [vmem:[#allocation3 + $0x58] sm:$0xff] %v4319
        %4384 = vst [vmem:[#allocation3 + $0x60] sm:$0xff] %v4320
        %4385 = vst [vmem:[#allocation3 + $0x68] sm:$0xff] %v4321
        %4386 = vst [vmem:[#allocation3 + $0x70] sm:$0xff] %v4322
        %4387 = vst [vmem:[#allocation3 + $0x78] sm:$0xff] %v4323
        %4388 = vst [vmem:[#allocation3 + $0x80] sm:$0xff] %v4324
        %4389 = vst [vmem:[#allocation3 + $0x88] sm:$0xff] %v4325
        %4390 = vst [vmem:[#allocation3 + $0x90] sm:$0xff] %v4326
        %4391 = vst [vmem:[#allocation3 + $0x98] sm:$0xff] %v4327
        %4392 = vst [vmem:[#allocation3 + $0xa0] sm:$0xff] %v4328
        %4393 = vst [vmem:[#allocation3 + $0xa8] sm:$0xff] %v4329
        %4394 = vst [vmem:[#allocation3 + $0xb0] sm:$0xff] %v4330
        %4395 = vst [vmem:[#allocation3 + $0xb8] sm:$0xff] %v4331
        %4396 = vst [vmem:[#allocation3 + $0xc0] sm:$0xff] %v4332
        %4397 = vst [vmem:[#allocation3 + $0xc8] sm:$0xff] %v4333
        %4398 = vst [vmem:[#allocation3 + $0xd0] sm:$0xff] %v4334
        %4399 = vst [vmem:[#allocation3 + $0xd8] sm:$0xff] %v4335
        %4400 = vst [vmem:[#allocation3 + $0xe0] sm:$0xff] %v4336
        %4401 = vst [vmem:[#allocation3 + $0xe8] sm:$0xff] %v4337
        %4402 = vst [vmem:[#allocation3 + $0xf0] sm:$0xff] %v4338
        %4403 = vst [vmem:[#allocation3 + $0xf8] sm:$0xff] %v4339
        %4404 = vst [vmem:[#allocation3 + $0x100] sm:$0xff] %v4340
        %4405 = vst [vmem:[#allocation3 + $0x108] sm:$0xff] %v4341
        %4406 = vst [vmem:[#allocation3 + $0x110] sm:$0xff] %v4342
        %4407 = vst [vmem:[#allocation3 + $0x118] sm:$0xff] %v4343
        %4408 = vst [vmem:[#allocation3 + $0x120] sm:$0xff] %v4344
        %4409 = vst [vmem:[#allocation3 + $0x128] sm:$0xff] %v4345
        %4410 = vst [vmem:[#allocation3 + $0x130] sm:$0xff] %v4346
        %4411 = vst [vmem:[#allocation3 + $0x138] sm:$0xff] %v4347
        %4412 = vst [vmem:[#allocation3 + $0x140] sm:$0xff] %v4348
        %4413 = vst [vmem:[#allocation3 + $0x148] sm:$0xff] %v4349
        %4414 = vst [vmem:[#allocation3 + $0x150] sm:$0xff] %v4350
        %4415 = vst [vmem:[#allocation3 + $0x158] sm:$0xff] %v4351
        %4416 = vst [vmem:[#allocation3 + $0x160] sm:$0xff] %v4352
        %4417 = vst [vmem:[#allocation3 + $0x168] sm:$0xff] %v4353
        %4418 = vst [vmem:[#allocation3 + $0x170] sm:$0xff] %v4354
        %4419 = vst [vmem:[#allocation3 + $0x178] sm:$0xff] %v4355
        %4420 = vst [vmem:[#allocation3 + $0x180] sm:$0xff] %v4356
        %4421 = vst [vmem:[#allocation3 + $0x188] sm:$0xff] %v4357
        %4422 = vst [vmem:[#allocation3 + $0x190] sm:$0xff] %v4358
        %4423 = vst [vmem:[#allocation3 + $0x198] sm:$0xff] %v4359
        %4424 = vst [vmem:[#allocation3 + $0x1a0] sm:$0xff] %v4360
        %4425 = vst [vmem:[#allocation3 + $0x1a8] sm:$0xff] %v4361
        %4426 = vst [vmem:[#allocation3 + $0x1b0] sm:$0xff] %v4362
        %4427 = vst [vmem:[#allocation3 + $0x1b8] sm:$0xff] %v4363
        %4428 = vst [vmem:[#allocation3 + $0x1c0] sm:$0xff] %v4364
        %4429 = vst [vmem:[#allocation3 + $0x1c8] sm:$0xff] %v4365
        %4430 = vst [vmem:[#allocation3 + $0x1d0] sm:$0xff] %v4366
        %4431 = vst [vmem:[#allocation3 + $0x1d8] sm:$0xff] %v4367
        %4432 = vst [vmem:[#allocation3 + $0x1e0] sm:$0xff] %v4368
        %4433 = vst [vmem:[#allocation3 + $0x1e8] sm:$0xff] %v4369
        %4434 = vst [vmem:[#allocation3 + $0x1f0] sm:$0xff] %v4370
        %4435 = vst [vmem:[#allocation3 + $0x1f8] sm:$0xff] %v4371
        %v4436 = vld [vmem:[#allocation2 + $0x40] sm:$0xff]
        %v4437 = vld [vmem:[#allocation2 + $0x48] sm:$0xff]
        %v4438 = vld [vmem:[#allocation2 + $0x50] sm:$0xff]
        %v4439 = vld [vmem:[#allocation2 + $0x58] sm:$0xff]
        %v4440 = vld [vmem:[#allocation2 + $0x60] sm:$0xff]
        %v4441 = vld [vmem:[#allocation2 + $0x68] sm:$0xff]
        %v4442 = vld [vmem:[#allocation2 + $0x70] sm:$0xff]
        %v4443 = vld [vmem:[#allocation2 + $0x78] sm:$0xff]
        %v4444 = vld [vmem:[#allocation2 + $0x80] sm:$0xff]
        %v4445 = vld [vmem:[#allocation2 + $0x88] sm:$0xff]
        %v4446 = vld [vmem:[#allocation2 + $0x90] sm:$0xff]
        %v4447 = vld [vmem:[#allocation2 + $0x98] sm:$0xff]
        %v4448 = vld [vmem:[#allocation2 + $0xa0] sm:$0xff]
        %v4449 = vld [vmem:[#allocation2 + $0xa8] sm:$0xff]
        %v4450 = vld [vmem:[#allocation2 + $0xb0] sm:$0xff]
        %v4451 = vld [vmem:[#allocation2 + $0xb8] sm:$0xff]
        %v4452 = vld [vmem:[#allocation2 + $0xc0] sm:$0xff]
        %v4453 = vld [vmem:[#allocation2 + $0xc8] sm:$0xff]
        %v4454 = vld [vmem:[#allocation2 + $0xd0] sm:$0xff]
        %v4455 = vld [vmem:[#allocation2 + $0xd8] sm:$0xff]
        %v4456 = vld [vmem:[#allocation2 + $0xe0] sm:$0xff]
        %v4457 = vld [vmem:[#allocation2 + $0xe8] sm:$0xff]
        %v4458 = vld [vmem:[#allocation2 + $0xf0] sm:$0xff]
        %v4459 = vld [vmem:[#allocation2 + $0xf8] sm:$0xff]
        %v4460 = vld [vmem:[#allocation2 + $0x100] sm:$0xff]
        %v4461 = vld [vmem:[#allocation2 + $0x108] sm:$0xff]
        %v4462 = vld [vmem:[#allocation2 + $0x110] sm:$0xff]
        %v4463 = vld [vmem:[#allocation2 + $0x118] sm:$0xff]
        %v4464 = vld [vmem:[#allocation2 + $0x120] sm:$0xff]
        %v4465 = vld [vmem:[#allocation2 + $0x128] sm:$0xff]
        %v4466 = vld [vmem:[#allocation2 + $0x130] sm:$0xff]
        %v4467 = vld [vmem:[#allocation2 + $0x138] sm:$0xff]
        %s4468 = scalar_lea.vmem [#allocation12], 256
        %v4469 = vld [vmem:[%s4468] sm:$0xf]
        %v4470 = vld [vmem:[%s4468 + $0x4] sm:$0xf]
        %v4471 = vld [vmem:[%s4468 + $0x8] sm:$0xf]
        %v4472 = vld [vmem:[%s4468 + $0xc] sm:$0xf]
        %v4473 = vld [vmem:[%s4468 + $0x10] sm:$0xf]
        %v4474 = vld [vmem:[%s4468 + $0x14] sm:$0xf]
        %v4475 = vld [vmem:[%s4468 + $0x18] sm:$0xf]
        %v4476 = vld [vmem:[%s4468 + $0x1c] sm:$0xf]
        %v4477 = vld [vmem:[%s4468 + $0x20] sm:$0xf]
        %v4478 = vld [vmem:[%s4468 + $0x24] sm:$0xf]
        %v4479 = vld [vmem:[%s4468 + $0x28] sm:$0xf]
        %v4480 = vld [vmem:[%s4468 + $0x2c] sm:$0xf]
        %v4481 = vld [vmem:[%s4468 + $0x30] sm:$0xf]
        %v4482 = vld [vmem:[%s4468 + $0x34] sm:$0xf]
        %v4483 = vld [vmem:[%s4468 + $0x38] sm:$0xf]
        %v4484 = vld [vmem:[%s4468 + $0x3c] sm:$0xf]
        %v4501 = vunpack.c.l.b16 %v4469
        %v4502 = vunpack.c.l.b16 %v4470
        %v4503 = vunpack.c.l.b16 %v4471
        %v4504 = vunpack.c.l.b16 %v4472
        %v4505 = vunpack.c.l.b16 %v4473
        %v4506 = vunpack.c.l.b16 %v4474
        %v4507 = vunpack.c.l.b16 %v4475
        %v4508 = vunpack.c.l.b16 %v4476
        %v4509 = vunpack.c.l.b16 %v4477
        %v4510 = vunpack.c.l.b16 %v4478
        %v4511 = vunpack.c.l.b16 %v4479
        %v4512 = vunpack.c.l.b16 %v4480
        %v4513 = vunpack.c.l.b16 %v4481
        %v4514 = vunpack.c.l.b16 %v4482
        %v4515 = vunpack.c.l.b16 %v4483
        %v4516 = vunpack.c.l.b16 %v4484
        %v4517 = vpack.c.b16 %v4502, %v4501
        %v4518 = vpack.c.b16 %v4504, %v4503
        %v4519 = vpack.c.b16 %v4506, %v4505
        %v4520 = vpack.c.b16 %v4508, %v4507
        %v4521 = vpack.c.b16 %v4510, %v4509
        %v4522 = vpack.c.b16 %v4512, %v4511
        %v4523 = vpack.c.b16 %v4514, %v4513
        %v4524 = vpack.c.b16 %v4516, %v4515
        %4533 = vmatprep.subr.bf16.mxu0 0
        %4534 = vmatpush1.bf16.msra.mxu0 %v4517
        %4535 = vmatprep.subr.bf16.mxu0 0
        %4536 = vmatpush1.bf16.msra.mxu0 %v4518
        %4537 = vmatprep.subr.bf16.mxu0 0
        %4538 = vmatpush1.bf16.msra.mxu0 %v4519
        %4539 = vmatprep.subr.bf16.mxu0 0
        %4540 = vmatpush1.bf16.msra.mxu0 %v4520
        %4541 = vmatprep.subr.bf16.mxu0 0
        %4542 = vmatpush1.bf16.msra.mxu0 %v4521
        %4543 = vmatprep.subr.bf16.mxu0 0
        %4544 = vmatpush1.bf16.msra.mxu0 %v4522
        %4545 = vmatprep.subr.bf16.mxu0 0
        %4546 = vmatpush1.bf16.msra.mxu0 %v4523
        %4547 = vmatprep.subr.bf16.mxu0 0
        %4548 = vmatpush1.bf16.msra.mxu0 %v4524
        %4549 = vmatprep.subr.bf16.mxu0 0
        %4550 = vmatpush1.bf16.msra.mxu0 0
        %4551 = vmatprep.subr.bf16.mxu0 0
        %4552 = vmatpush1.bf16.msra.mxu0 0
        %4553 = vmatprep.subr.bf16.mxu0 0
        %4554 = vmatpush1.bf16.msra.mxu0 0
        %4555 = vmatprep.subr.bf16.mxu0 0
        %4556 = vmatpush1.bf16.msra.mxu0 0
        %4557 = vmatprep.subr.bf16.mxu0 0
        %4558 = vmatpush1.bf16.msra.mxu0 0
        %4559 = vmatprep.subr.bf16.mxu0 0
        %4560 = vmatpush1.bf16.msra.mxu0 0
        %4561 = vmatprep.subr.bf16.mxu0 0
        %4562 = vmatpush1.bf16.msra.mxu0 0
        %4563 = vmatprep.subr.bf16.mxu0 0
        %4564 = vmatpush1.bf16.msra.mxu0 0
        %4565 = vmatprep.mubr.bf16.mxu0 0
        %4566 = vmatmul.mubr.bf16.gmra.mrb[0].mxu0 %v4436
        %v4567 = vpop.f32.mrb[0].mxu0
        %v4568 = vadd.f32 0.0, %v4567
        %v4569 = vpop.f32.mrb[0].mxu0
        %v4570 = vpop.f32.mrb[0].mxu0
        %v4571 = vadd.f32 0.0, %v4570
        %v4572 = vpop.f32.mrb[0].mxu0
        %4573 = vmatprep.mubr.bf16.mxu0 0
        %4574 = vmatmul.mubr.bf16.gmra.mrb[0].mxu0 %v4437
        %v4575 = vpop.f32.mrb[0].mxu0
        %v4576 = vadd.f32 0.0, %v4575
        %v4577 = vpop.f32.mrb[0].mxu0
        %v4578 = vpop.f32.mrb[0].mxu0
        %v4579 = vadd.f32 0.0, %v4578
        %v4580 = vpop.f32.mrb[0].mxu0
        %4581 = vmatprep.mubr.bf16.mxu0 0
        %4582 = vmatmul.mubr.bf16.gmra.mrb[0].mxu0 %v4438
        %v4583 = vpop.f32.mrb[0].mxu0
        %v4584 = vadd.f32 0.0, %v4583
        %v4585 = vpop.f32.mrb[0].mxu0
        %v4586 = vpop.f32.mrb[0].mxu0
        %v4587 = vadd.f32 0.0, %v4586
        %v4588 = vpop.f32.mrb[0].mxu0
        %4589 = vmatprep.mubr.bf16.mxu0 0
        %4590 = vmatmul.mubr.bf16.gmra.mrb[0].mxu0 %v4439
        %v4591 = vpop.f32.mrb[0].mxu0
        %v4592 = vadd.f32 0.0, %v4591
        %v4593 = vpop.f32.mrb[0].mxu0
        %v4594 = vpop.f32.mrb[0].mxu0
        %v4595 = vadd.f32 0.0, %v4594
        %v4596 = vpop.f32.mrb[0].mxu0
        %4597 = vmatprep.mubr.bf16.mxu0 0
        %4598 = vmatmul.mubr.bf16.gmra.mrb[0].mxu0 %v4440
        %v4599 = vpop.f32.mrb[0].mxu0
        %v4600 = vadd.f32 0.0, %v4599
        %v4601 = vpop.f32.mrb[0].mxu0
        %v4602 = vpop.f32.mrb[0].mxu0
        %v4603 = vadd.f32 0.0, %v4602
        %v4604 = vpop.f32.mrb[0].mxu0
        %4605 = vmatprep.mubr.bf16.mxu0 0
        %4606 = vmatmul.mubr.bf16.gmra.mrb[0].mxu0 %v4441
        %v4607 = vpop.f32.mrb[0].mxu0
        %v4608 = vadd.f32 0.0, %v4607
        %v4609 = vpop.f32.mrb[0].mxu0
        %v4610 = vpop.f32.mrb[0].mxu0
        %v4611 = vadd.f32 0.0, %v4610
        %v4612 = vpop.f32.mrb[0].mxu0
        %4613 = vmatprep.mubr.bf16.mxu0 0
        %4614 = vmatmul.mubr.bf16.gmra.mrb[0].mxu0 %v4442
        %v4615 = vpop.f32.mrb[0].mxu0
        %v4616 = vadd.f32 0.0, %v4615
        %v4617 = vpop.f32.mrb[0].mxu0
        %v4618 = vpop.f32.mrb[0].mxu0
        %v4619 = vadd.f32 0.0, %v4618
        %v4620 = vpop.f32.mrb[0].mxu0
        %4621 = vmatprep.mubr.bf16.mxu0 0
        %4622 = vmatmul.mubr.bf16.gmra.mrb[0].mxu0 %v4443
        %v4623 = vpop.f32.mrb[0].mxu0
        %v4624 = vadd.f32 0.0, %v4623
        %v4625 = vpop.f32.mrb[0].mxu0
        %v4626 = vpop.f32.mrb[0].mxu0
        %v4627 = vadd.f32 0.0, %v4626
        %v4628 = vpop.f32.mrb[0].mxu0
        %4629 = vmatprep.mubr.bf16.mxu0 0
        %4630 = vmatmul.mubr.bf16.gmra.mrb[0].mxu0 %v4444
        %v4631 = vpop.f32.mrb[0].mxu0
        %v4632 = vadd.f32 0.0, %v4631
        %v4633 = vpop.f32.mrb[0].mxu0
        %v4634 = vpop.f32.mrb[0].mxu0
        %v4635 = vadd.f32 0.0, %v4634
        %v4636 = vpop.f32.mrb[0].mxu0
        %4637 = vmatprep.mubr.bf16.mxu0 0
        %4638 = vmatmul.mubr.bf16.gmra.mrb[0].mxu0 %v4445
        %v4639 = vpop.f32.mrb[0].mxu0
        %v4640 = vadd.f32 0.0, %v4639
        %v4641 = vpop.f32.mrb[0].mxu0
        %v4642 = vpop.f32.mrb[0].mxu0
        %v4643 = vadd.f32 0.0, %v4642
        %v4644 = vpop.f32.mrb[0].mxu0
        %4645 = vmatprep.mubr.bf16.mxu0 0
        %4646 = vmatmul.mubr.bf16.gmra.mrb[0].mxu0 %v4446
        %v4647 = vpop.f32.mrb[0].mxu0
        %v4648 = vadd.f32 0.0, %v4647
        %v4649 = vpop.f32.mrb[0].mxu0
        %v4650 = vpop.f32.mrb[0].mxu0
        %v4651 = vadd.f32 0.0, %v4650
        %v4652 = vpop.f32.mrb[0].mxu0
        %4653 = vmatprep.mubr.bf16.mxu0 0
        %4654 = vmatmul.mubr.bf16.gmra.mrb[0].mxu0 %v4447
        %v4655 = vpop.f32.mrb[0].mxu0
        %v4656 = vadd.f32 0.0, %v4655
        %v4657 = vpop.f32.mrb[0].mxu0
        %v4658 = vpop.f32.mrb[0].mxu0
        %v4659 = vadd.f32 0.0, %v4658
        %v4660 = vpop.f32.mrb[0].mxu0
        %4661 = vmatprep.mubr.bf16.mxu0 0
        %4662 = vmatmul.mubr.bf16.gmra.mrb[0].mxu0 %v4448
        %v4663 = vpop.f32.mrb[0].mxu0
        %v4664 = vadd.f32 0.0, %v4663
        %v4665 = vpop.f32.mrb[0].mxu0
        %v4666 = vpop.f32.mrb[0].mxu0
        %v4667 = vadd.f32 0.0, %v4666
        %v4668 = vpop.f32.mrb[0].mxu0
        %4669 = vmatprep.mubr.bf16.mxu0 0
        %4670 = vmatmul.mubr.bf16.gmra.mrb[0].mxu0 %v4449
        %v4671 = vpop.f32.mrb[0].mxu0
        %v4672 = vadd.f32 0.0, %v4671
        %v4673 = vpop.f32.mrb[0].mxu0
        %v4674 = vpop.f32.mrb[0].mxu0
        %v4675 = vadd.f32 0.0, %v4674
        %v4676 = vpop.f32.mrb[0].mxu0
        %4677 = vmatprep.mubr.bf16.mxu0 0
        %4678 = vmatmul.mubr.bf16.gmra.mrb[0].mxu0 %v4450
        %v4679 = vpop.f32.mrb[0].mxu0
        %v4680 = vadd.f32 0.0, %v4679
        %v4681 = vpop.f32.mrb[0].mxu0
        %v4682 = vpop.f32.mrb[0].mxu0
        %v4683 = vadd.f32 0.0, %v4682
        %v4684 = vpop.f32.mrb[0].mxu0
        %4685 = vmatprep.mubr.bf16.mxu0 0
        %4686 = vmatmul.mubr.bf16.gmra.mrb[0].mxu0 %v4451
        %v4687 = vpop.f32.mrb[0].mxu0
        %v4688 = vadd.f32 0.0, %v4687
        %v4689 = vpop.f32.mrb[0].mxu0
        %v4690 = vpop.f32.mrb[0].mxu0
        %v4691 = vadd.f32 0.0, %v4690
        %v4692 = vpop.f32.mrb[0].mxu0
        %4693 = vmatprep.mubr.bf16.mxu0 0
        %4694 = vmatmul.mubr.bf16.gmra.mrb[0].mxu0 %v4452
        %v4695 = vpop.f32.mrb[0].mxu0
        %v4696 = vadd.f32 0.0, %v4695
        %v4697 = vpop.f32.mrb[0].mxu0
        %v4698 = vpop.f32.mrb[0].mxu0
        %v4699 = vadd.f32 0.0, %v4698
        %v4700 = vpop.f32.mrb[0].mxu0
        %4701 = vmatprep.mubr.bf16.mxu0 0
        %4702 = vmatmul.mubr.bf16.gmra.mrb[0].mxu0 %v4453
        %v4703 = vpop.f32.mrb[0].mxu0
        %v4704 = vadd.f32 0.0, %v4703
        %v4705 = vpop.f32.mrb[0].mxu0
        %v4706 = vpop.f32.mrb[0].mxu0
        %v4707 = vadd.f32 0.0, %v4706
        %v4708 = vpop.f32.mrb[0].mxu0
        %4709 = vmatprep.mubr.bf16.mxu0 0
        %4710 = vmatmul.mubr.bf16.gmra.mrb[0].mxu0 %v4454
        %v4711 = vpop.f32.mrb[0].mxu0
        %v4712 = vadd.f32 0.0, %v4711
        %v4713 = vpop.f32.mrb[0].mxu0
        %v4714 = vpop.f32.mrb[0].mxu0
        %v4715 = vadd.f32 0.0, %v4714
        %v4716 = vpop.f32.mrb[0].mxu0
        %4717 = vmatprep.mubr.bf16.mxu0 0
        %4718 = vmatmul.mubr.bf16.gmra.mrb[0].mxu0 %v4455
        %v4719 = vpop.f32.mrb[0].mxu0
        %v4720 = vadd.f32 0.0, %v4719
        %v4721 = vpop.f32.mrb[0].mxu0
        %v4722 = vpop.f32.mrb[0].mxu0
        %v4723 = vadd.f32 0.0, %v4722
        %v4724 = vpop.f32.mrb[0].mxu0
        %4725 = vmatprep.mubr.bf16.mxu0 0
        %4726 = vmatmul.mubr.bf16.gmra.mrb[0].mxu0 %v4456
        %v4727 = vpop.f32.mrb[0].mxu0
        %v4728 = vadd.f32 0.0, %v4727
        %v4729 = vpop.f32.mrb[0].mxu0
        %v4730 = vpop.f32.mrb[0].mxu0
        %v4731 = vadd.f32 0.0, %v4730
        %v4732 = vpop.f32.mrb[0].mxu0
        %4733 = vmatprep.mubr.bf16.mxu0 0
        %4734 = vmatmul.mubr.bf16.gmra.mrb[0].mxu0 %v4457
        %v4735 = vpop.f32.mrb[0].mxu0
        %v4736 = vadd.f32 0.0, %v4735
        %v4737 = vpop.f32.mrb[0].mxu0
        %v4738 = vpop.f32.mrb[0].mxu0
        %v4739 = vadd.f32 0.0, %v4738
        %v4740 = vpop.f32.mrb[0].mxu0
        %4741 = vmatprep.mubr.bf16.mxu0 0
        %4742 = vmatmul.mubr.bf16.gmra.mrb[0].mxu0 %v4458
        %v4743 = vpop.f32.mrb[0].mxu0
        %v4744 = vadd.f32 0.0, %v4743
        %v4745 = vpop.f32.mrb[0].mxu0
        %v4746 = vpop.f32.mrb[0].mxu0
        %v4747 = vadd.f32 0.0, %v4746
        %v4748 = vpop.f32.mrb[0].mxu0
        %4749 = vmatprep.mubr.bf16.mxu0 0
        %4750 = vmatmul.mubr.bf16.gmra.mrb[0].mxu0 %v4459
        %v4751 = vpop.f32.mrb[0].mxu0
        %v4752 = vadd.f32 0.0, %v4751
        %v4753 = vpop.f32.mrb[0].mxu0
        %v4754 = vpop.f32.mrb[0].mxu0
        %v4755 = vadd.f32 0.0, %v4754
        %v4756 = vpop.f32.mrb[0].mxu0
        %4757 = vmatprep.mubr.bf16.mxu0 0
        %4758 = vmatmul.mubr.bf16.gmra.mrb[0].mxu0 %v4460
        %v4759 = vpop.f32.mrb[0].mxu0
        %v4760 = vadd.f32 0.0, %v4759
        %v4761 = vpop.f32.mrb[0].mxu0
        %v4762 = vpop.f32.mrb[0].mxu0
        %v4763 = vadd.f32 0.0, %v4762
        %v4764 = vpop.f32.mrb[0].mxu0
        %4765 = vmatprep.mubr.bf16.mxu0 0
        %4766 = vmatmul.mubr.bf16.gmra.mrb[0].mxu0 %v4461
        %v4767 = vpop.f32.mrb[0].mxu0
        %v4768 = vadd.f32 0.0, %v4767
        %v4769 = vpop.f32.mrb[0].mxu0
        %v4770 = vpop.f32.mrb[0].mxu0
        %v4771 = vadd.f32 0.0, %v4770
        %v4772 = vpop.f32.mrb[0].mxu0
        %4773 = vmatprep.mubr.bf16.mxu0 0
        %4774 = vmatmul.mubr.bf16.gmra.mrb[0].mxu0 %v4462
        %v4775 = vpop.f32.mrb[0].mxu0
        %v4776 = vadd.f32 0.0, %v4775
        %v4777 = vpop.f32.mrb[0].mxu0
        %v4778 = vpop.f32.mrb[0].mxu0
        %v4779 = vadd.f32 0.0, %v4778
        %v4780 = vpop.f32.mrb[0].mxu0
        %4781 = vmatprep.mubr.bf16.mxu0 0
        %4782 = vmatmul.mubr.bf16.gmra.mrb[0].mxu0 %v4463
        %v4783 = vpop.f32.mrb[0].mxu0
        %v4784 = vadd.f32 0.0, %v4783
        %v4785 = vpop.f32.mrb[0].mxu0
        %v4786 = vpop.f32.mrb[0].mxu0
        %v4787 = vadd.f32 0.0, %v4786
        %v4788 = vpop.f32.mrb[0].mxu0
        %4789 = vmatprep.mubr.bf16.mxu0 0
        %4790 = vmatmul.mubr.bf16.gmra.mrb[0].mxu0 %v4464
        %v4791 = vpop.f32.mrb[0].mxu0
        %v4792 = vadd.f32 0.0, %v4791
        %v4793 = vpop.f32.mrb[0].mxu0
        %v4794 = vpop.f32.mrb[0].mxu0
        %v4795 = vadd.f32 0.0, %v4794
        %v4796 = vpop.f32.mrb[0].mxu0
        %4797 = vmatprep.mubr.bf16.mxu0 0
        %4798 = vmatmul.mubr.bf16.gmra.mrb[0].mxu0 %v4465
        %v4799 = vpop.f32.mrb[0].mxu0
        %v4800 = vadd.f32 0.0, %v4799
        %v4801 = vpop.f32.mrb[0].mxu0
        %v4802 = vpop.f32.mrb[0].mxu0
        %v4803 = vadd.f32 0.0, %v4802
        %v4804 = vpop.f32.mrb[0].mxu0
        %4805 = vmatprep.mubr.bf16.mxu0 0
        %4806 = vmatmul.mubr.bf16.gmra.mrb[0].mxu0 %v4466
        %v4807 = vpop.f32.mrb[0].mxu0
        %v4808 = vadd.f32 0.0, %v4807
        %v4809 = vpop.f32.mrb[0].mxu0
        %v4810 = vpop.f32.mrb[0].mxu0
        %v4811 = vadd.f32 0.0, %v4810
        %v4812 = vpop.f32.mrb[0].mxu0
        %4813 = vmatprep.mubr.bf16.mxu0 0
        %4814 = vmatmul.mubr.bf16.gmra.mrb[0].mxu0 %v4467
        %v4815 = vpop.f32.mrb[0].mxu0
        %v4816 = vadd.f32 0.0, %v4815
        %v4817 = vpop.f32.mrb[0].mxu0
        %v4818 = vpop.f32.mrb[0].mxu0
        %v4819 = vadd.f32 0.0, %v4818
        %v4820 = vpop.f32.mrb[0].mxu0
        %4821 = vdwg.mxu0
        %v4822 = vld [vmem:[#allocation3] sm:$0xff]
        %v4823 = vld [vmem:[#allocation3 + $0x8] sm:$0xff]
        %v4824 = vld [vmem:[#allocation3 + $0x10] sm:$0xff]
        %v4825 = vld [vmem:[#allocation3 + $0x18] sm:$0xff]
        %v4826 = vld [vmem:[#allocation3 + $0x20] sm:$0xff]
        %v4827 = vld [vmem:[#allocation3 + $0x28] sm:$0xff]
        %v4828 = vld [vmem:[#allocation3 + $0x30] sm:$0xff]
        %v4829 = vld [vmem:[#allocation3 + $0x38] sm:$0xff]
        %v4830 = vld [vmem:[#allocation3 + $0x40] sm:$0xff]
        %v4831 = vld [vmem:[#allocation3 + $0x48] sm:$0xff]
        %v4832 = vld [vmem:[#allocation3 + $0x50] sm:$0xff]
        %v4833 = vld [vmem:[#allocation3 + $0x58] sm:$0xff]
        %v4834 = vld [vmem:[#allocation3 + $0x60] sm:$0xff]
        %v4835 = vld [vmem:[#allocation3 + $0x68] sm:$0xff]
        %v4836 = vld [vmem:[#allocation3 + $0x70] sm:$0xff]
        %v4837 = vld [vmem:[#allocation3 + $0x78] sm:$0xff]
        %v4838 = vld [vmem:[#allocation3 + $0x80] sm:$0xff]
        %v4839 = vld [vmem:[#allocation3 + $0x88] sm:$0xff]
        %v4840 = vld [vmem:[#allocation3 + $0x90] sm:$0xff]
        %v4841 = vld [vmem:[#allocation3 + $0x98] sm:$0xff]
        %v4842 = vld [vmem:[#allocation3 + $0xa0] sm:$0xff]
        %v4843 = vld [vmem:[#allocation3 + $0xa8] sm:$0xff]
        %v4844 = vld [vmem:[#allocation3 + $0xb0] sm:$0xff]
        %v4845 = vld [vmem:[#allocation3 + $0xb8] sm:$0xff]
        %v4846 = vld [vmem:[#allocation3 + $0xc0] sm:$0xff]
        %v4847 = vld [vmem:[#allocation3 + $0xc8] sm:$0xff]
        %v4848 = vld [vmem:[#allocation3 + $0xd0] sm:$0xff]
        %v4849 = vld [vmem:[#allocation3 + $0xd8] sm:$0xff]
        %v4850 = vld [vmem:[#allocation3 + $0xe0] sm:$0xff]
        %v4851 = vld [vmem:[#allocation3 + $0xe8] sm:$0xff]
        %v4852 = vld [vmem:[#allocation3 + $0xf0] sm:$0xff]
        %v4853 = vld [vmem:[#allocation3 + $0xf8] sm:$0xff]
        %v4854 = vld [vmem:[#allocation3 + $0x100] sm:$0xff]
        %v4855 = vld [vmem:[#allocation3 + $0x108] sm:$0xff]
        %v4856 = vld [vmem:[#allocation3 + $0x110] sm:$0xff]
        %v4857 = vld [vmem:[#allocation3 + $0x118] sm:$0xff]
        %v4858 = vld [vmem:[#allocation3 + $0x120] sm:$0xff]
        %v4859 = vld [vmem:[#allocation3 + $0x128] sm:$0xff]
        %v4860 = vld [vmem:[#allocation3 + $0x130] sm:$0xff]
        %v4861 = vld [vmem:[#allocation3 + $0x138] sm:$0xff]
        %v4862 = vld [vmem:[#allocation3 + $0x140] sm:$0xff]
        %v4863 = vld [vmem:[#allocation3 + $0x148] sm:$0xff]
        %v4864 = vld [vmem:[#allocation3 + $0x150] sm:$0xff]
        %v4865 = vld [vmem:[#allocation3 + $0x158] sm:$0xff]
        %v4866 = vld [vmem:[#allocation3 + $0x160] sm:$0xff]
        %v4867 = vld [vmem:[#allocation3 + $0x168] sm:$0xff]
        %v4868 = vld [vmem:[#allocation3 + $0x170] sm:$0xff]
        %v4869 = vld [vmem:[#allocation3 + $0x178] sm:$0xff]
        %v4870 = vld [vmem:[#allocation3 + $0x180] sm:$0xff]
        %v4871 = vld [vmem:[#allocation3 + $0x188] sm:$0xff]
        %v4872 = vld [vmem:[#allocation3 + $0x190] sm:$0xff]
        %v4873 = vld [vmem:[#allocation3 + $0x198] sm:$0xff]
        %v4874 = vld [vmem:[#allocation3 + $0x1a0] sm:$0xff]
        %v4875 = vld [vmem:[#allocation3 + $0x1a8] sm:$0xff]
        %v4876 = vld [vmem:[#allocation3 + $0x1b0] sm:$0xff]
        %v4877 = vld [vmem:[#allocation3 + $0x1b8] sm:$0xff]
        %v4878 = vld [vmem:[#allocation3 + $0x1c0] sm:$0xff]
        %v4879 = vld [vmem:[#allocation3 + $0x1c8] sm:$0xff]
        %v4880 = vld [vmem:[#allocation3 + $0x1d0] sm:$0xff]
        %v4881 = vld [vmem:[#allocation3 + $0x1d8] sm:$0xff]
        %v4882 = vld [vmem:[#allocation3 + $0x1e0] sm:$0xff]
        %v4883 = vld [vmem:[#allocation3 + $0x1e8] sm:$0xff]
        %v4884 = vld [vmem:[#allocation3 + $0x1f0] sm:$0xff]
        %v4885 = vld [vmem:[#allocation3 + $0x1f8] sm:$0xff]
        %v4886 = vadd.f32 %v4822, %v4568
        %v4887 = vadd.f32 %v4823, %v4571
        %v4888 = vadd.f32 %v4824, %v4576
        %v4889 = vadd.f32 %v4825, %v4579
        %v4890 = vadd.f32 %v4826, %v4584
        %v4891 = vadd.f32 %v4827, %v4587
        %v4892 = vadd.f32 %v4828, %v4592
        %v4893 = vadd.f32 %v4829, %v4595
        %v4894 = vadd.f32 %v4830, %v4600
        %v4895 = vadd.f32 %v4831, %v4603
        %v4896 = vadd.f32 %v4832, %v4608
        %v4897 = vadd.f32 %v4833, %v4611
        %v4898 = vadd.f32 %v4834, %v4616
        %v4899 = vadd.f32 %v4835, %v4619
        %v4900 = vadd.f32 %v4836, %v4624
        %v4901 = vadd.f32 %v4837, %v4627
        %v4902 = vadd.f32 %v4838, %v4632
        %v4903 = vadd.f32 %v4839, %v4635
        %v4904 = vadd.f32 %v4840, %v4640
        %v4905 = vadd.f32 %v4841, %v4643
        %v4906 = vadd.f32 %v4842, %v4648
        %v4907 = vadd.f32 %v4843, %v4651
        %v4908 = vadd.f32 %v4844, %v4656
        %v4909 = vadd.f32 %v4845, %v4659
        %v4910 = vadd.f32 %v4846, %v4664
        %v4911 = vadd.f32 %v4847, %v4667
        %v4912 = vadd.f32 %v4848, %v4672
        %v4913 = vadd.f32 %v4849, %v4675
        %v4914 = vadd.f32 %v4850, %v4680
        %v4915 = vadd.f32 %v4851, %v4683
        %v4916 = vadd.f32 %v4852, %v4688
        %v4917 = vadd.f32 %v4853, %v4691
        %v4918 = vadd.f32 %v4854, %v4696
        %v4919 = vadd.f32 %v4855, %v4699
        %v4920 = vadd.f32 %v4856, %v4704
        %v4921 = vadd.f32 %v4857, %v4707
        %v4922 = vadd.f32 %v4858, %v4712
        %v4923 = vadd.f32 %v4859, %v4715
        %v4924 = vadd.f32 %v4860, %v4720
        %v4925 = vadd.f32 %v4861, %v4723
        %v4926 = vadd.f32 %v4862, %v4728
        %v4927 = vadd.f32 %v4863, %v4731
        %v4928 = vadd.f32 %v4864, %v4736
        %v4929 = vadd.f32 %v4865, %v4739
        %v4930 = vadd.f32 %v4866, %v4744
        %v4931 = vadd.f32 %v4867, %v4747
        %v4932 = vadd.f32 %v4868, %v4752
        %v4933 = vadd.f32 %v4869, %v4755
        %v4934 = vadd.f32 %v4870, %v4760
        %v4935 = vadd.f32 %v4871, %v4763
        %v4936 = vadd.f32 %v4872, %v4768
        %v4937 = vadd.f32 %v4873, %v4771
        %v4938 = vadd.f32 %v4874, %v4776
        %v4939 = vadd.f32 %v4875, %v4779
        %v4940 = vadd.f32 %v4876, %v4784
        %v4941 = vadd.f32 %v4877, %v4787
        %v4942 = vadd.f32 %v4878, %v4792
        %v4943 = vadd.f32 %v4879, %v4795
        %v4944 = vadd.f32 %v4880, %v4800
        %v4945 = vadd.f32 %v4881, %v4803
        %v4946 = vadd.f32 %v4882, %v4808
        %v4947 = vadd.f32 %v4883, %v4811
        %v4948 = vadd.f32 %v4884, %v4816
        %v4949 = vadd.f32 %v4885, %v4819
        %4950 = vst [vmem:[#allocation3] sm:$0xff] %v4886
        %4951 = vst [vmem:[#allocation3 + $0x8] sm:$0xff] %v4887
        %4952 = vst [vmem:[#allocation3 + $0x10] sm:$0xff] %v4888
        %4953 = vst [vmem:[#allocation3 + $0x18] sm:$0xff] %v4889
        %4954 = vst [vmem:[#allocation3 + $0x20] sm:$0xff] %v4890
        %4955 = vst [vmem:[#allocation3 + $0x28] sm:$0xff] %v4891
        %4956 = vst [vmem:[#allocation3 + $0x30] sm:$0xff] %v4892
        %4957 = vst [vmem:[#allocation3 + $0x38] sm:$0xff] %v4893
        %4958 = vst [vmem:[#allocation3 + $0x40] sm:$0xff] %v4894
        %4959 = vst [vmem:[#allocation3 + $0x48] sm:$0xff] %v4895
        %4960 = vst [vmem:[#allocation3 + $0x50] sm:$0xff] %v4896
        %4961 = vst [vmem:[#allocation3 + $0x58] sm:$0xff] %v4897
        %4962 = vst [vmem:[#allocation3 + $0x60] sm:$0xff] %v4898
        %4963 = vst [vmem:[#allocation3 + $0x68] sm:$0xff] %v4899
        %4964 = vst [vmem:[#allocation3 + $0x70] sm:$0xff] %v4900
        %4965 = vst [vmem:[#allocation3 + $0x78] sm:$0xff] %v4901
        %4966 = vst [vmem:[#allocation3 + $0x80] sm:$0xff] %v4902
        %4967 = vst [vmem:[#allocation3 + $0x88] sm:$0xff] %v4903
        %4968 = vst [vmem:[#allocation3 + $0x90] sm:$0xff] %v4904
        %4969 = vst [vmem:[#allocation3 + $0x98] sm:$0xff] %v4905
        %4970 = vst [vmem:[#allocation3 + $0xa0] sm:$0xff] %v4906
        %4971 = vst [vmem:[#allocation3 + $0xa8] sm:$0xff] %v4907
        %4972 = vst [vmem:[#allocation3 + $0xb0] sm:$0xff] %v4908
        %4973 = vst [vmem:[#allocation3 + $0xb8] sm:$0xff] %v4909
        %4974 = vst [vmem:[#allocation3 + $0xc0] sm:$0xff] %v4910
        %4975 = vst [vmem:[#allocation3 + $0xc8] sm:$0xff] %v4911
        %4976 = vst [vmem:[#allocation3 + $0xd0] sm:$0xff] %v4912
        %4977 = vst [vmem:[#allocation3 + $0xd8] sm:$0xff] %v4913
        %4978 = vst [vmem:[#allocation3 + $0xe0] sm:$0xff] %v4914
        %4979 = vst [vmem:[#allocation3 + $0xe8] sm:$0xff] %v4915
        %4980 = vst [vmem:[#allocation3 + $0xf0] sm:$0xff] %v4916
        %4981 = vst [vmem:[#allocation3 + $0xf8] sm:$0xff] %v4917
        %4982 = vst [vmem:[#allocation3 + $0x100] sm:$0xff] %v4918
        %4983 = vst [vmem:[#allocation3 + $0x108] sm:$0xff] %v4919
        %4984 = vst [vmem:[#allocation3 + $0x110] sm:$0xff] %v4920
        %4985 = vst [vmem:[#allocation3 + $0x118] sm:$0xff] %v4921
        %4986 = vst [vmem:[#allocation3 + $0x120] sm:$0xff] %v4922
        %4987 = vst [vmem:[#allocation3 + $0x128] sm:$0xff] %v4923
        %4988 = vst [vmem:[#allocation3 + $0x130] sm:$0xff] %v4924
        %4989 = vst [vmem:[#allocation3 + $0x138] sm:$0xff] %v4925
        %4990 = vst [vmem:[#allocation3 + $0x140] sm:$0xff] %v4926
        %4991 = vst [vmem:[#allocation3 + $0x148] sm:$0xff] %v4927
        %4992 = vst [vmem:[#allocation3 + $0x150] sm:$0xff] %v4928
        %4993 = vst [vmem:[#allocation3 + $0x158] sm:$0xff] %v4929
        %4994 = vst [vmem:[#allocation3 + $0x160] sm:$0xff] %v4930
        %4995 = vst [vmem:[#allocation3 + $0x168] sm:$0xff] %v4931
        %4996 = vst [vmem:[#allocation3 + $0x170] sm:$0xff] %v4932
        %4997 = vst [vmem:[#allocation3 + $0x178] sm:$0xff] %v4933
        %4998 = vst [vmem:[#allocation3 + $0x180] sm:$0xff] %v4934
        %4999 = vst [vmem:[#allocation3 + $0x188] sm:$0xff] %v4935
        %5000 = vst [vmem:[#allocation3 + $0x190] sm:$0xff] %v4936
        %5001 = vst [vmem:[#allocation3 + $0x198] sm:$0xff] %v4937
        %5002 = vst [vmem:[#allocation3 + $0x1a0] sm:$0xff] %v4938
        %5003 = vst [vmem:[#allocation3 + $0x1a8] sm:$0xff] %v4939
        %5004 = vst [vmem:[#allocation3 + $0x1b0] sm:$0xff] %v4940
        %5005 = vst [vmem:[#allocation3 + $0x1b8] sm:$0xff] %v4941
        %5006 = vst [vmem:[#allocation3 + $0x1c0] sm:$0xff] %v4942
        %5007 = vst [vmem:[#allocation3 + $0x1c8] sm:$0xff] %v4943
        %5008 = vst [vmem:[#allocation3 + $0x1d0] sm:$0xff] %v4944
        %5009 = vst [vmem:[#allocation3 + $0x1d8] sm:$0xff] %v4945
        %5010 = vst [vmem:[#allocation3 + $0x1e0] sm:$0xff] %v4946
        %5011 = vst [vmem:[#allocation3 + $0x1e8] sm:$0xff] %v4947
        %5012 = vst [vmem:[#allocation3 + $0x1f0] sm:$0xff] %v4948
        %5013 = vst [vmem:[#allocation3 + $0x1f8] sm:$0xff] %v4949
        %v5014 = vld [vmem:[#allocation2 + $0x40] sm:$0xff]
        %v5015 = vld [vmem:[#allocation2 + $0x48] sm:$0xff]
        %v5016 = vld [vmem:[#allocation2 + $0x50] sm:$0xff]
        %v5017 = vld [vmem:[#allocation2 + $0x58] sm:$0xff]
        %v5018 = vld [vmem:[#allocation2 + $0x60] sm:$0xff]
        %v5019 = vld [vmem:[#allocation2 + $0x68] sm:$0xff]
        %v5020 = vld [vmem:[#allocation2 + $0x70] sm:$0xff]
        %v5021 = vld [vmem:[#allocation2 + $0x78] sm:$0xff]
        %v5022 = vld [vmem:[#allocation2 + $0x80] sm:$0xff]
        %v5023 = vld [vmem:[#allocation2 + $0x88] sm:$0xff]
        %v5024 = vld [vmem:[#allocation2 + $0x90] sm:$0xff]
        %v5025 = vld [vmem:[#allocation2 + $0x98] sm:$0xff]
        %v5026 = vld [vmem:[#allocation2 + $0xa0] sm:$0xff]
        %v5027 = vld [vmem:[#allocation2 + $0xa8] sm:$0xff]
        %v5028 = vld [vmem:[#allocation2 + $0xb0] sm:$0xff]
        %v5029 = vld [vmem:[#allocation2 + $0xb8] sm:$0xff]
        %v5030 = vld [vmem:[#allocation2 + $0xc0] sm:$0xff]
        %v5031 = vld [vmem:[#allocation2 + $0xc8] sm:$0xff]
        %v5032 = vld [vmem:[#allocation2 + $0xd0] sm:$0xff]
        %v5033 = vld [vmem:[#allocation2 + $0xd8] sm:$0xff]
        %v5034 = vld [vmem:[#allocation2 + $0xe0] sm:$0xff]
        %v5035 = vld [vmem:[#allocation2 + $0xe8] sm:$0xff]
        %v5036 = vld [vmem:[#allocation2 + $0xf0] sm:$0xff]
        %v5037 = vld [vmem:[#allocation2 + $0xf8] sm:$0xff]
        %v5038 = vld [vmem:[#allocation2 + $0x100] sm:$0xff]
        %v5039 = vld [vmem:[#allocation2 + $0x108] sm:$0xff]
        %v5040 = vld [vmem:[#allocation2 + $0x110] sm:$0xff]
        %v5041 = vld [vmem:[#allocation2 + $0x118] sm:$0xff]
        %v5042 = vld [vmem:[#allocation2 + $0x120] sm:$0xff]
        %v5043 = vld [vmem:[#allocation2 + $0x128] sm:$0xff]
        %v5044 = vld [vmem:[#allocation2 + $0x130] sm:$0xff]
        %v5045 = vld [vmem:[#allocation2 + $0x138] sm:$0xff]
        %v5046 = vld [vmem:[#allocation2 + $0x140] sm:$0x1]
        %s5047 = scalar_lea.vmem [#allocation12], 320
        %v5048 = vld [vmem:[%s5047] sm:$0xf]
        %v5049 = vld [vmem:[%s5047 + $0x4] sm:$0xf]
        %v5050 = vld [vmem:[%s5047 + $0x8] sm:$0xf]
        %v5051 = vld [vmem:[%s5047 + $0xc] sm:$0xf]
        %v5052 = vld [vmem:[%s5047 + $0x10] sm:$0xf]
        %v5053 = vld [vmem:[%s5047 + $0x14] sm:$0xf]
        %v5054 = vld [vmem:[%s5047 + $0x18] sm:$0xf]
        %v5055 = vld [vmem:[%s5047 + $0x1c] sm:$0xf]
        %v5056 = vld [vmem:[%s5047 + $0x20] sm:$0xf]
        %v5057 = vld [vmem:[%s5047 + $0x24] sm:$0xf]
        %v5058 = vld [vmem:[%s5047 + $0x28] sm:$0xf]
        %v5059 = vld [vmem:[%s5047 + $0x2c] sm:$0xf]
        %v5060 = vld [vmem:[%s5047 + $0x30] sm:$0xf]
        %v5061 = vld [vmem:[%s5047 + $0x34] sm:$0xf]
        %v5062 = vld [vmem:[%s5047 + $0x38] sm:$0xf]
        %v5063 = vld [vmem:[%s5047 + $0x3c] sm:$0xf]
        %vm5064 = vsmask.f32 7424
        %v5066 = vshrl.u32 %v5014, 16
        %v5068 = vshll.u32 %v5014, 16
        %v5070 = vrot.slane %v5068, 1
        %v5071 = vor.u32 %v5066, %v5070
        %v5073 = vshll.u32 %v5015, 16
        %v5075 = vrot.slane %v5073, 1
        %v5076 = vsel %vm5064, %v5071, %v5075
        %v5077 = vshrl.u32 %v5015, 16
        %v5079 = vor.u32 %v5077, %v5075
        %v5081 = vshll.u32 %v5016, 16
        %v5083 = vrot.slane %v5081, 1
        %v5084 = vsel %vm5064, %v5079, %v5083
        %v5085 = vshrl.u32 %v5016, 16
        %v5087 = vor.u32 %v5085, %v5083
        %v5089 = vshll.u32 %v5017, 16
        %v5091 = vrot.slane %v5089, 1
        %v5092 = vsel %vm5064, %v5087, %v5091
        %v5093 = vshrl.u32 %v5017, 16
        %v5095 = vor.u32 %v5093, %v5091
        %v5097 = vshll.u32 %v5018, 16
        %v5099 = vrot.slane %v5097, 1
        %v5100 = vsel %vm5064, %v5095, %v5099
        %v5101 = vshrl.u32 %v5018, 16
        %v5103 = vor.u32 %v5101, %v5099
        %v5105 = vshll.u32 %v5019, 16
        %v5107 = vrot.slane %v5105, 1
        %v5108 = vsel %vm5064, %v5103, %v5107
        %v5109 = vshrl.u32 %v5019, 16
        %v5111 = vor.u32 %v5109, %v5107
        %v5113 = vshll.u32 %v5020, 16
        %v5115 = vrot.slane %v5113, 1
        %v5116 = vsel %vm5064, %v5111, %v5115
        %v5117 = vshrl.u32 %v5020, 16
        %v5119 = vor.u32 %v5117, %v5115
        %v5121 = vshll.u32 %v5021, 16
        %v5123 = vrot.slane %v5121, 1
        %v5124 = vsel %vm5064, %v5119, %v5123
        %v5125 = vshrl.u32 %v5021, 16
        %v5127 = vor.u32 %v5125, %v5123
        %v5129 = vshll.u32 %v5022, 16
        %v5131 = vrot.slane %v5129, 1
        %v5132 = vsel %vm5064, %v5127, %v5131
        %v5133 = vshrl.u32 %v5022, 16
        %v5135 = vor.u32 %v5133, %v5131
        %v5137 = vshll.u32 %v5023, 16
        %v5139 = vrot.slane %v5137, 1
        %v5140 = vsel %vm5064, %v5135, %v5139
        %v5141 = vshrl.u32 %v5023, 16
        %v5143 = vor.u32 %v5141, %v5139
        %v5145 = vshll.u32 %v5024, 16
        %v5147 = vrot.slane %v5145, 1
        %v5148 = vsel %vm5064, %v5143, %v5147
        %v5149 = vshrl.u32 %v5024, 16
        %v5151 = vor.u32 %v5149, %v5147
        %v5153 = vshll.u32 %v5025, 16
        %v5155 = vrot.slane %v5153, 1
        %v5156 = vsel %vm5064, %v5151, %v5155
        %v5157 = vshrl.u32 %v5025, 16
        %v5159 = vor.u32 %v5157, %v5155
        %v5161 = vshll.u32 %v5026, 16
        %v5163 = vrot.slane %v5161, 1
        %v5164 = vsel %vm5064, %v5159, %v5163
        %v5165 = vshrl.u32 %v5026, 16
        %v5167 = vor.u32 %v5165, %v5163
        %v5169 = vshll.u32 %v5027, 16
        %v5171 = vrot.slane %v5169, 1
        %v5172 = vsel %vm5064, %v5167, %v5171
        %v5173 = vshrl.u32 %v5027, 16
        %v5175 = vor.u32 %v5173, %v5171
        %v5177 = vshll.u32 %v5028, 16
        %v5179 = vrot.slane %v5177, 1
        %v5180 = vsel %vm5064, %v5175, %v5179
        %v5181 = vshrl.u32 %v5028, 16
        %v5183 = vor.u32 %v5181, %v5179
        %v5185 = vshll.u32 %v5029, 16
        %v5187 = vrot.slane %v5185, 1
        %v5188 = vsel %vm5064, %v5183, %v5187
        %v5189 = vshrl.u32 %v5029, 16
        %v5191 = vor.u32 %v5189, %v5187
        %v5193 = vshll.u32 %v5030, 16
        %v5195 = vrot.slane %v5193, 1
        %v5196 = vsel %vm5064, %v5191, %v5195
        %v5197 = vshrl.u32 %v5030, 16
        %v5199 = vor.u32 %v5197, %v5195
        %v5201 = vshll.u32 %v5031, 16
        %v5203 = vrot.slane %v5201, 1
        %v5204 = vsel %vm5064, %v5199, %v5203
        %v5205 = vshrl.u32 %v5031, 16
        %v5207 = vor.u32 %v5205, %v5203
        %v5209 = vshll.u32 %v5032, 16
        %v5211 = vrot.slane %v5209, 1
        %v5212 = vsel %vm5064, %v5207, %v5211
        %v5213 = vshrl.u32 %v5032, 16
        %v5215 = vor.u32 %v5213, %v5211
        %v5217 = vshll.u32 %v5033, 16
        %v5219 = vrot.slane %v5217, 1
        %v5220 = vsel %vm5064, %v5215, %v5219
        %v5221 = vshrl.u32 %v5033, 16
        %v5223 = vor.u32 %v5221, %v5219
        %v5225 = vshll.u32 %v5034, 16
        %v5227 = vrot.slane %v5225, 1
        %v5228 = vsel %vm5064, %v5223, %v5227
        %v5229 = vshrl.u32 %v5034, 16
        %v5231 = vor.u32 %v5229, %v5227
        %v5233 = vshll.u32 %v5035, 16
        %v5235 = vrot.slane %v5233, 1
        %v5236 = vsel %vm5064, %v5231, %v5235
        %v5237 = vshrl.u32 %v5035, 16
        %v5239 = vor.u32 %v5237, %v5235
        %v5241 = vshll.u32 %v5036, 16
        %v5243 = vrot.slane %v5241, 1
        %v5244 = vsel %vm5064, %v5239, %v5243
        %v5245 = vshrl.u32 %v5036, 16
        %v5247 = vor.u32 %v5245, %v5243
        %v5249 = vshll.u32 %v5037, 16
        %v5251 = vrot.slane %v5249, 1
        %v5252 = vsel %vm5064, %v5247, %v5251
        %v5253 = vshrl.u32 %v5037, 16
        %v5255 = vor.u32 %v5253, %v5251
        %v5257 = vshll.u32 %v5038, 16
        %v5259 = vrot.slane %v5257, 1
        %v5260 = vsel %vm5064, %v5255, %v5259
        %v5261 = vshrl.u32 %v5038, 16
        %v5263 = vor.u32 %v5261, %v5259
        %v5265 = vshll.u32 %v5039, 16
        %v5267 = vrot.slane %v5265, 1
        %v5268 = vsel %vm5064, %v5263, %v5267
        %v5269 = vshrl.u32 %v5039, 16
        %v5271 = vor.u32 %v5269, %v5267
        %v5273 = vshll.u32 %v5040, 16
        %v5275 = vrot.slane %v5273, 1
        %v5276 = vsel %vm5064, %v5271, %v5275
        %v5277 = vshrl.u32 %v5040, 16
        %v5279 = vor.u32 %v5277, %v5275
        %v5281 = vshll.u32 %v5041, 16
        %v5283 = vrot.slane %v5281, 1
        %v5284 = vsel %vm5064, %v5279, %v5283
        %v5285 = vshrl.u32 %v5041, 16
        %v5287 = vor.u32 %v5285, %v5283
        %v5289 = vshll.u32 %v5042, 16
        %v5291 = vrot.slane %v5289, 1
        %v5292 = vsel %vm5064, %v5287, %v5291
        %v5293 = vshrl.u32 %v5042, 16
        %v5295 = vor.u32 %v5293, %v5291
        %v5297 = vshll.u32 %v5043, 16
        %v5299 = vrot.slane %v5297, 1
        %v5300 = vsel %vm5064, %v5295, %v5299
        %v5301 = vshrl.u32 %v5043, 16
        %v5303 = vor.u32 %v5301, %v5299
        %v5305 = vshll.u32 %v5044, 16
        %v5307 = vrot.slane %v5305, 1
        %v5308 = vsel %vm5064, %v5303, %v5307
        %v5309 = vshrl.u32 %v5044, 16
        %v5311 = vor.u32 %v5309, %v5307
        %v5313 = vshll.u32 %v5045, 16
        %v5315 = vrot.slane %v5313, 1
        %v5316 = vsel %vm5064, %v5311, %v5315
        %v5317 = vshrl.u32 %v5045, 16
        %v5319 = vor.u32 %v5317, %v5315
        %v5321 = vshll.u32 %v5046, 16
        %v5323 = vrot.slane %v5321, 1
        %v5324 = vsel %vm5064, %v5319, %v5323
        %v5373 = vunpack.c.l.b16 %v5048
        %v5374 = vunpack.c.l.b16 %v5049
        %v5375 = vunpack.c.l.b16 %v5050
        %v5376 = vunpack.c.l.b16 %v5051
        %v5377 = vunpack.c.l.b16 %v5052
        %v5378 = vunpack.c.l.b16 %v5053
        %v5379 = vunpack.c.l.b16 %v5054
        %v5380 = vunpack.c.l.b16 %v5055
        %v5381 = vunpack.c.l.b16 %v5056
        %v5382 = vunpack.c.l.b16 %v5057
        %v5383 = vunpack.c.l.b16 %v5058
        %v5384 = vunpack.c.l.b16 %v5059
        %v5385 = vunpack.c.l.b16 %v5060
        %v5386 = vunpack.c.l.b16 %v5061
        %v5387 = vunpack.c.l.b16 %v5062
        %v5388 = vunpack.c.l.b16 %v5063
        %v5389 = vpack.c.b16 %v5374, %v5373
        %v5390 = vpack.c.b16 %v5376, %v5375
        %v5391 = vpack.c.b16 %v5378, %v5377
        %v5392 = vpack.c.b16 %v5380, %v5379
        %v5393 = vpack.c.b16 %v5382, %v5381
        %v5394 = vpack.c.b16 %v5384, %v5383
        %v5395 = vpack.c.b16 %v5386, %v5385
        %v5396 = vpack.c.b16 %v5388, %v5387
        %5405 = vmatprep.subr.bf16.mxu0 0
        %5406 = vmatpush1.bf16.msra.mxu0 %v5389
        %5407 = vmatprep.subr.bf16.mxu0 0
        %5408 = vmatpush1.bf16.msra.mxu0 %v5390
        %5409 = vmatprep.subr.bf16.mxu0 0
        %5410 = vmatpush1.bf16.msra.mxu0 %v5391
        %5411 = vmatprep.subr.bf16.mxu0 0
        %5412 = vmatpush1.bf16.msra.mxu0 %v5392
        %5413 = vmatprep.subr.bf16.mxu0 0
        %5414 = vmatpush1.bf16.msra.mxu0 %v5393
        %5415 = vmatprep.subr.bf16.mxu0 0
        %5416 = vmatpush1.bf16.msra.mxu0 %v5394
        %5417 = vmatprep.subr.bf16.mxu0 0
        %5418 = vmatpush1.bf16.msra.mxu0 %v5395
        %5419 = vmatprep.subr.bf16.mxu0 0
        %5420 = vmatpush1.bf16.msra.mxu0 %v5396
        %5421 = vmatprep.subr.bf16.mxu0 0
        %5422 = vmatpush1.bf16.msra.mxu0 0
        %5423 = vmatprep.subr.bf16.mxu0 0
        %5424 = vmatpush1.bf16.msra.mxu0 0
        %5425 = vmatprep.subr.bf16.mxu0 0
        %5426 = vmatpush1.bf16.msra.mxu0 0
        %5427 = vmatprep.subr.bf16.mxu0 0
        %5428 = vmatpush1.bf16.msra.mxu0 0
        %5429 = vmatprep.subr.bf16.mxu0 0
        %5430 = vmatpush1.bf16.msra.mxu0 0
        %5431 = vmatprep.subr.bf16.mxu0 0
        %5432 = vmatpush1.bf16.msra.mxu0 0
        %5433 = vmatprep.subr.bf16.mxu0 0
        %5434 = vmatpush1.bf16.msra.mxu0 0
        %5435 = vmatprep.subr.bf16.mxu0 0
        %5436 = vmatpush1.bf16.msra.mxu0 0
        %5437 = vmatprep.mubr.bf16.mxu0 0
        %5438 = vmatmul.mubr.bf16.gmra.mrb[0].mxu0 %v5076
        %v5439 = vpop.f32.mrb[0].mxu0
        %v5440 = vadd.f32 0.0, %v5439
        %v5441 = vpop.f32.mrb[0].mxu0
        %v5442 = vpop.f32.mrb[0].mxu0
        %v5443 = vadd.f32 0.0, %v5442
        %v5444 = vpop.f32.mrb[0].mxu0
        %5445 = vmatprep.mubr.bf16.mxu0 0
        %5446 = vmatmul.mubr.bf16.gmra.mrb[0].mxu0 %v5084
        %v5447 = vpop.f32.mrb[0].mxu0
        %v5448 = vadd.f32 0.0, %v5447
        %v5449 = vpop.f32.mrb[0].mxu0
        %v5450 = vpop.f32.mrb[0].mxu0
        %v5451 = vadd.f32 0.0, %v5450
        %v5452 = vpop.f32.mrb[0].mxu0
        %5453 = vmatprep.mubr.bf16.mxu0 0
        %5454 = vmatmul.mubr.bf16.gmra.mrb[0].mxu0 %v5092
        %v5455 = vpop.f32.mrb[0].mxu0
        %v5456 = vadd.f32 0.0, %v5455
        %v5457 = vpop.f32.mrb[0].mxu0
        %v5458 = vpop.f32.mrb[0].mxu0
        %v5459 = vadd.f32 0.0, %v5458
        %v5460 = vpop.f32.mrb[0].mxu0
        %5461 = vmatprep.mubr.bf16.mxu0 0
        %5462 = vmatmul.mubr.bf16.gmra.mrb[0].mxu0 %v5100
        %v5463 = vpop.f32.mrb[0].mxu0
        %v5464 = vadd.f32 0.0, %v5463
        %v5465 = vpop.f32.mrb[0].mxu0
        %v5466 = vpop.f32.mrb[0].mxu0
        %v5467 = vadd.f32 0.0, %v5466
        %v5468 = vpop.f32.mrb[0].mxu0
        %5469 = vmatprep.mubr.bf16.mxu0 0
        %5470 = vmatmul.mubr.bf16.gmra.mrb[0].mxu0 %v5108
        %v5471 = vpop.f32.mrb[0].mxu0
        %v5472 = vadd.f32 0.0, %v5471
        %v5473 = vpop.f32.mrb[0].mxu0
        %v5474 = vpop.f32.mrb[0].mxu0
        %v5475 = vadd.f32 0.0, %v5474
        %v5476 = vpop.f32.mrb[0].mxu0
        %5477 = vmatprep.mubr.bf16.mxu0 0
        %5478 = vmatmul.mubr.bf16.gmra.mrb[0].mxu0 %v5116
        %v5479 = vpop.f32.mrb[0].mxu0
        %v5480 = vadd.f32 0.0, %v5479
        %v5481 = vpop.f32.mrb[0].mxu0
        %v5482 = vpop.f32.mrb[0].mxu0
        %v5483 = vadd.f32 0.0, %v5482
        %v5484 = vpop.f32.mrb[0].mxu0
        %5485 = vmatprep.mubr.bf16.mxu0 0
        %5486 = vmatmul.mubr.bf16.gmra.mrb[0].mxu0 %v5124
        %v5487 = vpop.f32.mrb[0].mxu0
        %v5488 = vadd.f32 0.0, %v5487
        %v5489 = vpop.f32.mrb[0].mxu0
        %v5490 = vpop.f32.mrb[0].mxu0
        %v5491 = vadd.f32 0.0, %v5490
        %v5492 = vpop.f32.mrb[0].mxu0
        %5493 = vmatprep.mubr.bf16.mxu0 0
        %5494 = vmatmul.mubr.bf16.gmra.mrb[0].mxu0 %v5132
        %v5495 = vpop.f32.mrb[0].mxu0
        %v5496 = vadd.f32 0.0, %v5495
        %v5497 = vpop.f32.mrb[0].mxu0
        %v5498 = vpop.f32.mrb[0].mxu0
        %v5499 = vadd.f32 0.0, %v5498
        %v5500 = vpop.f32.mrb[0].mxu0
        %5501 = vmatprep.mubr.bf16.mxu0 0
        %5502 = vmatmul.mubr.bf16.gmra.mrb[0].mxu0 %v5140
        %v5503 = vpop.f32.mrb[0].mxu0
        %v5504 = vadd.f32 0.0, %v5503
        %v5505 = vpop.f32.mrb[0].mxu0
        %v5506 = vpop.f32.mrb[0].mxu0
        %v5507 = vadd.f32 0.0, %v5506
        %v5508 = vpop.f32.mrb[0].mxu0
        %5509 = vmatprep.mubr.bf16.mxu0 0
        %5510 = vmatmul.mubr.bf16.gmra.mrb[0].mxu0 %v5148
        %v5511 = vpop.f32.mrb[0].mxu0
        %v5512 = vadd.f32 0.0, %v5511
        %v5513 = vpop.f32.mrb[0].mxu0
        %v5514 = vpop.f32.mrb[0].mxu0
        %v5515 = vadd.f32 0.0, %v5514
        %v5516 = vpop.f32.mrb[0].mxu0
        %5517 = vmatprep.mubr.bf16.mxu0 0
        %5518 = vmatmul.mubr.bf16.gmra.mrb[0].mxu0 %v5156
        %v5519 = vpop.f32.mrb[0].mxu0
        %v5520 = vadd.f32 0.0, %v5519
        %v5521 = vpop.f32.mrb[0].mxu0
        %v5522 = vpop.f32.mrb[0].mxu0
        %v5523 = vadd.f32 0.0, %v5522
        %v5524 = vpop.f32.mrb[0].mxu0
        %5525 = vmatprep.mubr.bf16.mxu0 0
        %5526 = vmatmul.mubr.bf16.gmra.mrb[0].mxu0 %v5164
        %v5527 = vpop.f32.mrb[0].mxu0
        %v5528 = vadd.f32 0.0, %v5527
        %v5529 = vpop.f32.mrb[0].mxu0
        %v5530 = vpop.f32.mrb[0].mxu0
        %v5531 = vadd.f32 0.0, %v5530
        %v5532 = vpop.f32.mrb[0].mxu0
        %5533 = vmatprep.mubr.bf16.mxu0 0
        %5534 = vmatmul.mubr.bf16.gmra.mrb[0].mxu0 %v5172
        %v5535 = vpop.f32.mrb[0].mxu0
        %v5536 = vadd.f32 0.0, %v5535
        %v5537 = vpop.f32.mrb[0].mxu0
        %v5538 = vpop.f32.mrb[0].mxu0
        %v5539 = vadd.f32 0.0, %v5538
        %v5540 = vpop.f32.mrb[0].mxu0
        %5541 = vmatprep.mubr.bf16.mxu0 0
        %5542 = vmatmul.mubr.bf16.gmra.mrb[0].mxu0 %v5180
        %v5543 = vpop.f32.mrb[0].mxu0
        %v5544 = vadd.f32 0.0, %v5543
        %v5545 = vpop.f32.mrb[0].mxu0
        %v5546 = vpop.f32.mrb[0].mxu0
        %v5547 = vadd.f32 0.0, %v5546
        %v5548 = vpop.f32.mrb[0].mxu0
        %5549 = vmatprep.mubr.bf16.mxu0 0
        %5550 = vmatmul.mubr.bf16.gmra.mrb[0].mxu0 %v5188
        %v5551 = vpop.f32.mrb[0].mxu0
        %v5552 = vadd.f32 0.0, %v5551
        %v5553 = vpop.f32.mrb[0].mxu0
        %v5554 = vpop.f32.mrb[0].mxu0
        %v5555 = vadd.f32 0.0, %v5554
        %v5556 = vpop.f32.mrb[0].mxu0
        %5557 = vmatprep.mubr.bf16.mxu0 0
        %5558 = vmatmul.mubr.bf16.gmra.mrb[0].mxu0 %v5196
        %v5559 = vpop.f32.mrb[0].mxu0
        %v5560 = vadd.f32 0.0, %v5559
        %v5561 = vpop.f32.mrb[0].mxu0
        %v5562 = vpop.f32.mrb[0].mxu0
        %v5563 = vadd.f32 0.0, %v5562
        %v5564 = vpop.f32.mrb[0].mxu0
        %5565 = vmatprep.mubr.bf16.mxu0 0
        %5566 = vmatmul.mubr.bf16.gmra.mrb[0].mxu0 %v5204
        %v5567 = vpop.f32.mrb[0].mxu0
        %v5568 = vadd.f32 0.0, %v5567
        %v5569 = vpop.f32.mrb[0].mxu0
        %v5570 = vpop.f32.mrb[0].mxu0
        %v5571 = vadd.f32 0.0, %v5570
        %v5572 = vpop.f32.mrb[0].mxu0
        %5573 = vmatprep.mubr.bf16.mxu0 0
        %5574 = vmatmul.mubr.bf16.gmra.mrb[0].mxu0 %v5212
        %v5575 = vpop.f32.mrb[0].mxu0
        %v5576 = vadd.f32 0.0, %v5575
        %v5577 = vpop.f32.mrb[0].mxu0
        %v5578 = vpop.f32.mrb[0].mxu0
        %v5579 = vadd.f32 0.0, %v5578
        %v5580 = vpop.f32.mrb[0].mxu0
        %5581 = vmatprep.mubr.bf16.mxu0 0
        %5582 = vmatmul.mubr.bf16.gmra.mrb[0].mxu0 %v5220
        %v5583 = vpop.f32.mrb[0].mxu0
        %v5584 = vadd.f32 0.0, %v5583
        %v5585 = vpop.f32.mrb[0].mxu0
        %v5586 = vpop.f32.mrb[0].mxu0
        %v5587 = vadd.f32 0.0, %v5586
        %v5588 = vpop.f32.mrb[0].mxu0
        %5589 = vmatprep.mubr.bf16.mxu0 0
        %5590 = vmatmul.mubr.bf16.gmra.mrb[0].mxu0 %v5228
        %v5591 = vpop.f32.mrb[0].mxu0
        %v5592 = vadd.f32 0.0, %v5591
        %v5593 = vpop.f32.mrb[0].mxu0
        %v5594 = vpop.f32.mrb[0].mxu0
        %v5595 = vadd.f32 0.0, %v5594
        %v5596 = vpop.f32.mrb[0].mxu0
        %5597 = vmatprep.mubr.bf16.mxu0 0
        %5598 = vmatmul.mubr.bf16.gmra.mrb[0].mxu0 %v5236
        %v5599 = vpop.f32.mrb[0].mxu0
        %v5600 = vadd.f32 0.0, %v5599
        %v5601 = vpop.f32.mrb[0].mxu0
        %v5602 = vpop.f32.mrb[0].mxu0
        %v5603 = vadd.f32 0.0, %v5602
        %v5604 = vpop.f32.mrb[0].mxu0
        %5605 = vmatprep.mubr.bf16.mxu0 0
        %5606 = vmatmul.mubr.bf16.gmra.mrb[0].mxu0 %v5244
        %v5607 = vpop.f32.mrb[0].mxu0
        %v5608 = vadd.f32 0.0, %v5607
        %v5609 = vpop.f32.mrb[0].mxu0
        %v5610 = vpop.f32.mrb[0].mxu0
        %v5611 = vadd.f32 0.0, %v5610
        %v5612 = vpop.f32.mrb[0].mxu0
        %5613 = vmatprep.mubr.bf16.mxu0 0
        %5614 = vmatmul.mubr.bf16.gmra.mrb[0].mxu0 %v5252
        %v5615 = vpop.f32.mrb[0].mxu0
        %v5616 = vadd.f32 0.0, %v5615
        %v5617 = vpop.f32.mrb[0].mxu0
        %v5618 = vpop.f32.mrb[0].mxu0
        %v5619 = vadd.f32 0.0, %v5618
        %v5620 = vpop.f32.mrb[0].mxu0
        %5621 = vmatprep.mubr.bf16.mxu0 0
        %5622 = vmatmul.mubr.bf16.gmra.mrb[0].mxu0 %v5260
        %v5623 = vpop.f32.mrb[0].mxu0
        %v5624 = vadd.f32 0.0, %v5623
        %v5625 = vpop.f32.mrb[0].mxu0
        %v5626 = vpop.f32.mrb[0].mxu0
        %v5627 = vadd.f32 0.0, %v5626
        %v5628 = vpop.f32.mrb[0].mxu0
        %5629 = vmatprep.mubr.bf16.mxu0 0
        %5630 = vmatmul.mubr.bf16.gmra.mrb[0].mxu0 %v5268
        %v5631 = vpop.f32.mrb[0].mxu0
        %v5632 = vadd.f32 0.0, %v5631
        %v5633 = vpop.f32.mrb[0].mxu0
        %v5634 = vpop.f32.mrb[0].mxu0
        %v5635 = vadd.f32 0.0, %v5634
        %v5636 = vpop.f32.mrb[0].mxu0
        %5637 = vmatprep.mubr.bf16.mxu0 0
        %5638 = vmatmul.mubr.bf16.gmra.mrb[0].mxu0 %v5276
        %v5639 = vpop.f32.mrb[0].mxu0
        %v5640 = vadd.f32 0.0, %v5639
        %v5641 = vpop.f32.mrb[0].mxu0
        %v5642 = vpop.f32.mrb[0].mxu0
        %v5643 = vadd.f32 0.0, %v5642
        %v5644 = vpop.f32.mrb[0].mxu0
        %5645 = vmatprep.mubr.bf16.mxu0 0
        %5646 = vmatmul.mubr.bf16.gmra.mrb[0].mxu0 %v5284
        %v5647 = vpop.f32.mrb[0].mxu0
        %v5648 = vadd.f32 0.0, %v5647
        %v5649 = vpop.f32.mrb[0].mxu0
        %v5650 = vpop.f32.mrb[0].mxu0
        %v5651 = vadd.f32 0.0, %v5650
        %v5652 = vpop.f32.mrb[0].mxu0
        %5653 = vmatprep.mubr.bf16.mxu0 0
        %5654 = vmatmul.mubr.bf16.gmra.mrb[0].mxu0 %v5292
        %v5655 = vpop.f32.mrb[0].mxu0
        %v5656 = vadd.f32 0.0, %v5655
        %v5657 = vpop.f32.mrb[0].mxu0
        %v5658 = vpop.f32.mrb[0].mxu0
        %v5659 = vadd.f32 0.0, %v5658
        %v5660 = vpop.f32.mrb[0].mxu0
        %5661 = vmatprep.mubr.bf16.mxu0 0
        %5662 = vmatmul.mubr.bf16.gmra.mrb[0].mxu0 %v5300
        %v5663 = vpop.f32.mrb[0].mxu0
        %v5664 = vadd.f32 0.0, %v5663
        %v5665 = vpop.f32.mrb[0].mxu0
        %v5666 = vpop.f32.mrb[0].mxu0
        %v5667 = vadd.f32 0.0, %v5666
        %v5668 = vpop.f32.mrb[0].mxu0
        %5669 = vmatprep.mubr.bf16.mxu0 0
        %5670 = vmatmul.mubr.bf16.gmra.mrb[0].mxu0 %v5308
        %v5671 = vpop.f32.mrb[0].mxu0
        %v5672 = vadd.f32 0.0, %v5671
        %v5673 = vpop.f32.mrb[0].mxu0
        %v5674 = vpop.f32.mrb[0].mxu0
        %v5675 = vadd.f32 0.0, %v5674
        %v5676 = vpop.f32.mrb[0].mxu0
        %5677 = vmatprep.mubr.bf16.mxu0 0
        %5678 = vmatmul.mubr.bf16.gmra.mrb[0].mxu0 %v5316
        %v5679 = vpop.f32.mrb[0].mxu0
        %v5680 = vadd.f32 0.0, %v5679
        %v5681 = vpop.f32.mrb[0].mxu0
        %v5682 = vpop.f32.mrb[0].mxu0
        %v5683 = vadd.f32 0.0, %v5682
        %v5684 = vpop.f32.mrb[0].mxu0
        %5685 = vmatprep.mubr.bf16.mxu0 0
        %5686 = vmatmul.mubr.bf16.gmra.mrb[0].mxu0 %v5324
        %v5687 = vpop.f32.mrb[0].mxu0
        %v5688 = vadd.f32 0.0, %v5687
        %v5689 = vpop.f32.mrb[0].mxu0
        %v5690 = vpop.f32.mrb[0].mxu0
        %v5691 = vadd.f32 0.0, %v5690
        %v5692 = vpop.f32.mrb[0].mxu0
        %5693 = vdwg.mxu0
        %v5694 = vld [vmem:[#allocation3] sm:$0xff]
        %v5695 = vld [vmem:[#allocation3 + $0x8] sm:$0xff]
        %v5696 = vld [vmem:[#allocation3 + $0x10] sm:$0xff]
        %v5697 = vld [vmem:[#allocation3 + $0x18] sm:$0xff]
        %v5698 = vld [vmem:[#allocation3 + $0x20] sm:$0xff]
        %v5699 = vld [vmem:[#allocation3 + $0x28] sm:$0xff]
        %v5700 = vld [vmem:[#allocation3 + $0x30] sm:$0xff]
        %v5701 = vld [vmem:[#allocation3 + $0x38] sm:$0xff]
        %v5702 = vld [vmem:[#allocation3 + $0x40] sm:$0xff]
        %v5703 = vld [vmem:[#allocation3 + $0x48] sm:$0xff]
        %v5704 = vld [vmem:[#allocation3 + $0x50] sm:$0xff]
        %v5705 = vld [vmem:[#allocation3 + $0x58] sm:$0xff]
        %v5706 = vld [vmem:[#allocation3 + $0x60] sm:$0xff]
        %v5707 = vld [vmem:[#allocation3 + $0x68] sm:$0xff]
        %v5708 = vld [vmem:[#allocation3 + $0x70] sm:$0xff]
        %v5709 = vld [vmem:[#allocation3 + $0x78] sm:$0xff]
        %v5710 = vld [vmem:[#allocation3 + $0x80] sm:$0xff]
        %v5711 = vld [vmem:[#allocation3 + $0x88] sm:$0xff]
        %v5712 = vld [vmem:[#allocation3 + $0x90] sm:$0xff]
        %v5713 = vld [vmem:[#allocation3 + $0x98] sm:$0xff]
        %v5714 = vld [vmem:[#allocation3 + $0xa0] sm:$0xff]
        %v5715 = vld [vmem:[#allocation3 + $0xa8] sm:$0xff]
        %v5716 = vld [vmem:[#allocation3 + $0xb0] sm:$0xff]
        %v5717 = vld [vmem:[#allocation3 + $0xb8] sm:$0xff]
        %v5718 = vld [vmem:[#allocation3 + $0xc0] sm:$0xff]
        %v5719 = vld [vmem:[#allocation3 + $0xc8] sm:$0xff]
        %v5720 = vld [vmem:[#allocation3 + $0xd0] sm:$0xff]
        %v5721 = vld [vmem:[#allocation3 + $0xd8] sm:$0xff]
        %v5722 = vld [vmem:[#allocation3 + $0xe0] sm:$0xff]
        %v5723 = vld [vmem:[#allocation3 + $0xe8] sm:$0xff]
        %v5724 = vld [vmem:[#allocation3 + $0xf0] sm:$0xff]
        %v5725 = vld [vmem:[#allocation3 + $0xf8] sm:$0xff]
        %v5726 = vld [vmem:[#allocation3 + $0x100] sm:$0xff]
        %v5727 = vld [vmem:[#allocation3 + $0x108] sm:$0xff]
        %v5728 = vld [vmem:[#allocation3 + $0x110] sm:$0xff]
        %v5729 = vld [vmem:[#allocation3 + $0x118] sm:$0xff]
        %v5730 = vld [vmem:[#allocation3 + $0x120] sm:$0xff]
        %v5731 = vld [vmem:[#allocation3 + $0x128] sm:$0xff]
        %v5732 = vld [vmem:[#allocation3 + $0x130] sm:$0xff]
        %v5733 = vld [vmem:[#allocation3 + $0x138] sm:$0xff]
        %v5734 = vld [vmem:[#allocation3 + $0x140] sm:$0xff]
        %v5735 = vld [vmem:[#allocation3 + $0x148] sm:$0xff]
        %v5736 = vld [vmem:[#allocation3 + $0x150] sm:$0xff]
        %v5737 = vld [vmem:[#allocation3 + $0x158] sm:$0xff]
        %v5738 = vld [vmem:[#allocation3 + $0x160] sm:$0xff]
        %v5739 = vld [vmem:[#allocation3 + $0x168] sm:$0xff]
        %v5740 = vld [vmem:[#allocation3 + $0x170] sm:$0xff]
        %v5741 = vld [vmem:[#allocation3 + $0x178] sm:$0xff]
        %v5742 = vld [vmem:[#allocation3 + $0x180] sm:$0xff]
        %v5743 = vld [vmem:[#allocation3 + $0x188] sm:$0xff]
        %v5744 = vld [vmem:[#allocation3 + $0x190] sm:$0xff]
        %v5745 = vld [vmem:[#allocation3 + $0x198] sm:$0xff]
        %v5746 = vld [vmem:[#allocation3 + $0x1a0] sm:$0xff]
        %v5747 = vld [vmem:[#allocation3 + $0x1a8] sm:$0xff]
        %v5748 = vld [vmem:[#allocation3 + $0x1b0] sm:$0xff]
        %v5749 = vld [vmem:[#allocation3 + $0x1b8] sm:$0xff]
        %v5750 = vld [vmem:[#allocation3 + $0x1c0] sm:$0xff]
        %v5751 = vld [vmem:[#allocation3 + $0x1c8] sm:$0xff]
        %v5752 = vld [vmem:[#allocation3 + $0x1d0] sm:$0xff]
        %v5753 = vld [vmem:[#allocation3 + $0x1d8] sm:$0xff]
        %v5754 = vld [vmem:[#allocation3 + $0x1e0] sm:$0xff]
        %v5755 = vld [vmem:[#allocation3 + $0x1e8] sm:$0xff]
        %v5756 = vld [vmem:[#allocation3 + $0x1f0] sm:$0xff]
        %v5757 = vld [vmem:[#allocation3 + $0x1f8] sm:$0xff]
        %v5758 = vadd.f32 %v5694, %v5440
        %v5759 = vadd.f32 %v5695, %v5443
        %v5760 = vadd.f32 %v5696, %v5448
        %v5761 = vadd.f32 %v5697, %v5451
        %v5762 = vadd.f32 %v5698, %v5456
        %v5763 = vadd.f32 %v5699, %v5459
        %v5764 = vadd.f32 %v5700, %v5464
        %v5765 = vadd.f32 %v5701, %v5467
        %v5766 = vadd.f32 %v5702, %v5472
        %v5767 = vadd.f32 %v5703, %v5475
        %v5768 = vadd.f32 %v5704, %v5480
        %v5769 = vadd.f32 %v5705, %v5483
        %v5770 = vadd.f32 %v5706, %v5488
        %v5771 = vadd.f32 %v5707, %v5491
        %v5772 = vadd.f32 %v5708, %v5496
        %v5773 = vadd.f32 %v5709, %v5499
        %v5774 = vadd.f32 %v5710, %v5504
        %v5775 = vadd.f32 %v5711, %v5507
        %v5776 = vadd.f32 %v5712, %v5512
        %v5777 = vadd.f32 %v5713, %v5515
        %v5778 = vadd.f32 %v5714, %v5520
        %v5779 = vadd.f32 %v5715, %v5523
        %v5780 = vadd.f32 %v5716, %v5528
        %v5781 = vadd.f32 %v5717, %v5531
        %v5782 = vadd.f32 %v5718, %v5536
        %v5783 = vadd.f32 %v5719, %v5539
        %v5784 = vadd.f32 %v5720, %v5544
        %v5785 = vadd.f32 %v5721, %v5547
        %v5786 = vadd.f32 %v5722, %v5552
        %v5787 = vadd.f32 %v5723, %v5555
        %v5788 = vadd.f32 %v5724, %v5560
        %v5789 = vadd.f32 %v5725, %v5563
        %v5790 = vadd.f32 %v5726, %v5568
        %v5791 = vadd.f32 %v5727, %v5571
        %v5792 = vadd.f32 %v5728, %v5576
        %v5793 = vadd.f32 %v5729, %v5579
        %v5794 = vadd.f32 %v5730, %v5584
        %v5795 = vadd.f32 %v5731, %v5587
        %v5796 = vadd.f32 %v5732, %v5592
        %v5797 = vadd.f32 %v5733, %v5595
        %v5798 = vadd.f32 %v5734, %v5600
        %v5799 = vadd.f32 %v5735, %v5603
        %v5800 = vadd.f32 %v5736, %v5608
        %v5801 = vadd.f32 %v5737, %v5611
        %v5802 = vadd.f32 %v5738, %v5616
        %v5803 = vadd.f32 %v5739, %v5619
        %v5804 = vadd.f32 %v5740, %v5624
        %v5805 = vadd.f32 %v5741, %v5627
        %v5806 = vadd.f32 %v5742, %v5632
        %v5807 = vadd.f32 %v5743, %v5635
        %v5808 = vadd.f32 %v5744, %v5640
        %v5809 = vadd.f32 %v5745, %v5643
        %v5810 = vadd.f32 %v5746, %v5648
        %v5811 = vadd.f32 %v5747, %v5651
        %v5812 = vadd.f32 %v5748, %v5656
        %v5813 = vadd.f32 %v5749, %v5659
        %v5814 = vadd.f32 %v5750, %v5664
        %v5815 = vadd.f32 %v5751, %v5667
        %v5816 = vadd.f32 %v5752, %v5672
        %v5817 = vadd.f32 %v5753, %v5675
        %v5818 = vadd.f32 %v5754, %v5680
        %v5819 = vadd.f32 %v5755, %v5683
        %v5820 = vadd.f32 %v5756, %v5688
        %v5821 = vadd.f32 %v5757, %v5691
        %5822 = vst [vmem:[#allocation3] sm:$0xff] %v5758
        %5823 = vst [vmem:[#allocation3 + $0x8] sm:$0xff] %v5759
        %5824 = vst [vmem:[#allocation3 + $0x10] sm:$0xff] %v5760
        %5825 = vst [vmem:[#allocation3 + $0x18] sm:$0xff] %v5761
        %5826 = vst [vmem:[#allocation3 + $0x20] sm:$0xff] %v5762
        %5827 = vst [vmem:[#allocation3 + $0x28] sm:$0xff] %v5763
        %5828 = vst [vmem:[#allocation3 + $0x30] sm:$0xff] %v5764
        %5829 = vst [vmem:[#allocation3 + $0x38] sm:$0xff] %v5765
        %5830 = vst [vmem:[#allocation3 + $0x40] sm:$0xff] %v5766
        %5831 = vst [vmem:[#allocation3 + $0x48] sm:$0xff] %v5767
        %5832 = vst [vmem:[#allocation3 + $0x50] sm:$0xff] %v5768
        %5833 = vst [vmem:[#allocation3 + $0x58] sm:$0xff] %v5769
        %5834 = vst [vmem:[#allocation3 + $0x60] sm:$0xff] %v5770
        %5835 = vst [vmem:[#allocation3 + $0x68] sm:$0xff] %v5771
        %5836 = vst [vmem:[#allocation3 + $0x70] sm:$0xff] %v5772
        %5837 = vst [vmem:[#allocation3 + $0x78] sm:$0xff] %v5773
        %5838 = vst [vmem:[#allocation3 + $0x80] sm:$0xff] %v5774
        %5839 = vst [vmem:[#allocation3 + $0x88] sm:$0xff] %v5775
        %5840 = vst [vmem:[#allocation3 + $0x90] sm:$0xff] %v5776
        %5841 = vst [vmem:[#allocation3 + $0x98] sm:$0xff] %v5777
        %5842 = vst [vmem:[#allocation3 + $0xa0] sm:$0xff] %v5778
        %5843 = vst [vmem:[#allocation3 + $0xa8] sm:$0xff] %v5779
        %5844 = vst [vmem:[#allocation3 + $0xb0] sm:$0xff] %v5780
        %5845 = vst [vmem:[#allocation3 + $0xb8] sm:$0xff] %v5781
        %5846 = vst [vmem:[#allocation3 + $0xc0] sm:$0xff] %v5782
        %5847 = vst [vmem:[#allocation3 + $0xc8] sm:$0xff] %v5783
        %5848 = vst [vmem:[#allocation3 + $0xd0] sm:$0xff] %v5784
        %5849 = vst [vmem:[#allocation3 + $0xd8] sm:$0xff] %v5785
        %5850 = vst [vmem:[#allocation3 + $0xe0] sm:$0xff] %v5786
        %5851 = vst [vmem:[#allocation3 + $0xe8] sm:$0xff] %v5787
        %5852 = vst [vmem:[#allocation3 + $0xf0] sm:$0xff] %v5788
        %5853 = vst [vmem:[#allocation3 + $0xf8] sm:$0xff] %v5789
        %5854 = vst [vmem:[#allocation3 + $0x100] sm:$0xff] %v5790
        %5855 = vst [vmem:[#allocation3 + $0x108] sm:$0xff] %v5791
        %5856 = vst [vmem:[#allocation3 + $0x110] sm:$0xff] %v5792
        %5857 = vst [vmem:[#allocation3 + $0x118] sm:$0xff] %v5793
        %5858 = vst [vmem:[#allocation3 + $0x120] sm:$0xff] %v5794
        %5859 = vst [vmem:[#allocation3 + $0x128] sm:$0xff] %v5795
        %5860 = vst [vmem:[#allocation3 + $0x130] sm:$0xff] %v5796
        %5861 = vst [vmem:[#allocation3 + $0x138] sm:$0xff] %v5797
        %5862 = vst [vmem:[#allocation3 + $0x140] sm:$0xff] %v5798
        %5863 = vst [vmem:[#allocation3 + $0x148] sm:$0xff] %v5799
        %5864 = vst [vmem:[#allocation3 + $0x150] sm:$0xff] %v5800
        %5865 = vst [vmem:[#allocation3 + $0x158] sm:$0xff] %v5801
        %5866 = vst [vmem:[#allocation3 + $0x160] sm:$0xff] %v5802
        %5867 = vst [vmem:[#allocation3 + $0x168] sm:$0xff] %v5803
        %5868 = vst [vmem:[#allocation3 + $0x170] sm:$0xff] %v5804
        %5869 = vst [vmem:[#allocation3 + $0x178] sm:$0xff] %v5805
        %5870 = vst [vmem:[#allocation3 + $0x180] sm:$0xff] %v5806
        %5871 = vst [vmem:[#allocation3 + $0x188] sm:$0xff] %v5807
        %5872 = vst [vmem:[#allocation3 + $0x190] sm:$0xff] %v5808
        %5873 = vst [vmem:[#allocation3 + $0x198] sm:$0xff] %v5809
        %5874 = vst [vmem:[#allocation3 + $0x1a0] sm:$0xff] %v5810
        %5875 = vst [vmem:[#allocation3 + $0x1a8] sm:$0xff] %v5811
        %5876 = vst [vmem:[#allocation3 + $0x1b0] sm:$0xff] %v5812
        %5877 = vst [vmem:[#allocation3 + $0x1b8] sm:$0xff] %v5813
        %5878 = vst [vmem:[#allocation3 + $0x1c0] sm:$0xff] %v5814
        %5879 = vst [vmem:[#allocation3 + $0x1c8] sm:$0xff] %v5815
        %5880 = vst [vmem:[#allocation3 + $0x1d0] sm:$0xff] %v5816
        %5881 = vst [vmem:[#allocation3 + $0x1d8] sm:$0xff] %v5817
        %5882 = vst [vmem:[#allocation3 + $0x1e0] sm:$0xff] %v5818
        %5883 = vst [vmem:[#allocation3 + $0x1e8] sm:$0xff] %v5819
        %5884 = vst [vmem:[#allocation3 + $0x1f0] sm:$0xff] %v5820
        %5885 = vst [vmem:[#allocation3 + $0x1f8] sm:$0xff] %v5821
        %v5886 = vld [vmem:[#allocation2 + $0x50] sm:$0xff]
        %v5887 = vld [vmem:[#allocation2 + $0x58] sm:$0xff]
        %v5888 = vld [vmem:[#allocation2 + $0x60] sm:$0xff]
        %v5889 = vld [vmem:[#allocation2 + $0x68] sm:$0xff]
        %v5890 = vld [vmem:[#allocation2 + $0x70] sm:$0xff]
        %v5891 = vld [vmem:[#allocation2 + $0x78] sm:$0xff]
        %v5892 = vld [vmem:[#allocation2 + $0x80] sm:$0xff]
        %v5893 = vld [vmem:[#allocation2 + $0x88] sm:$0xff]
        %v5894 = vld [vmem:[#allocation2 + $0x90] sm:$0xff]
        %v5895 = vld [vmem:[#allocation2 + $0x98] sm:$0xff]
        %v5896 = vld [vmem:[#allocation2 + $0xa0] sm:$0xff]
        %v5897 = vld [vmem:[#allocation2 + $0xa8] sm:$0xff]
        %v5898 = vld [vmem:[#allocation2 + $0xb0] sm:$0xff]
        %v5899 = vld [vmem:[#allocation2 + $0xb8] sm:$0xff]
        %v5900 = vld [vmem:[#allocation2 + $0xc0] sm:$0xff]
        %v5901 = vld [vmem:[#allocation2 + $0xc8] sm:$0xff]
        %v5902 = vld [vmem:[#allocation2 + $0xd0] sm:$0xff]
        %v5903 = vld [vmem:[#allocation2 + $0xd8] sm:$0xff]
        %v5904 = vld [vmem:[#allocation2 + $0xe0] sm:$0xff]
        %v5905 = vld [vmem:[#allocation2 + $0xe8] sm:$0xff]
        %v5906 = vld [vmem:[#allocation2 + $0xf0] sm:$0xff]
        %v5907 = vld [vmem:[#allocation2 + $0xf8] sm:$0xff]
        %v5908 = vld [vmem:[#allocation2 + $0x100] sm:$0xff]
        %v5909 = vld [vmem:[#allocation2 + $0x108] sm:$0xff]
        %v5910 = vld [vmem:[#allocation2 + $0x110] sm:$0xff]
        %v5911 = vld [vmem:[#allocation2 + $0x118] sm:$0xff]
        %v5912 = vld [vmem:[#allocation2 + $0x120] sm:$0xff]
        %v5913 = vld [vmem:[#allocation2 + $0x128] sm:$0xff]
        %v5914 = vld [vmem:[#allocation2 + $0x130] sm:$0xff]
        %v5915 = vld [vmem:[#allocation2 + $0x138] sm:$0xff]
        %v5916 = vld [vmem:[#allocation2 + $0x140] sm:$0xff]
        %v5917 = vld [vmem:[#allocation2 + $0x148] sm:$0xff]
        %v5918 = vld [vmem:[#allocation2 + $0x150] sm:$0x1]
        %s5919 = scalar_lea.vmem [#allocation12], 384
        %v5920 = vld [vmem:[%s5919] sm:$0xf]
        %v5921 = vld [vmem:[%s5919 + $0x4] sm:$0xf]
        %v5922 = vld [vmem:[%s5919 + $0x8] sm:$0xf]
        %v5923 = vld [vmem:[%s5919 + $0xc] sm:$0xf]
        %v5924 = vld [vmem:[%s5919 + $0x10] sm:$0xf]
        %v5925 = vld [vmem:[%s5919 + $0x14] sm:$0xf]
        %v5926 = vld [vmem:[%s5919 + $0x18] sm:$0xf]
        %v5927 = vld [vmem:[%s5919 + $0x1c] sm:$0xf]
        %v5928 = vld [vmem:[%s5919 + $0x20] sm:$0xf]
        %v5929 = vld [vmem:[%s5919 + $0x24] sm:$0xf]
        %v5930 = vld [vmem:[%s5919 + $0x28] sm:$0xf]
        %v5931 = vld [vmem:[%s5919 + $0x2c] sm:$0xf]
        %v5932 = vld [vmem:[%s5919 + $0x30] sm:$0xf]
        %v5933 = vld [vmem:[%s5919 + $0x34] sm:$0xf]
        %v5934 = vld [vmem:[%s5919 + $0x38] sm:$0xf]
        %v5935 = vld [vmem:[%s5919 + $0x3c] sm:$0xf]
        %v5937 = vshrl.u32 %v5886, 16
        %v5939 = vshll.u32 %v5886, 16
        %v5941 = vrot.slane %v5939, 1
        %v5942 = vor.u32 %v5937, %v5941
        %v5944 = vshll.u32 %v5887, 16
        %v5946 = vrot.slane %v5944, 1
        %v5947 = vsel %vm5064, %v5942, %v5946
        %v5948 = vshrl.u32 %v5887, 16
        %v5950 = vor.u32 %v5948, %v5946
        %v5952 = vshll.u32 %v5888, 16
        %v5954 = vrot.slane %v5952, 1
        %v5955 = vsel %vm5064, %v5950, %v5954
        %v5956 = vshrl.u32 %v5888, 16
        %v5958 = vor.u32 %v5956, %v5954
        %v5960 = vshll.u32 %v5889, 16
        %v5962 = vrot.slane %v5960, 1
        %v5963 = vsel %vm5064, %v5958, %v5962
        %v5964 = vshrl.u32 %v5889, 16
        %v5966 = vor.u32 %v5964, %v5962
        %v5968 = vshll.u32 %v5890, 16
        %v5970 = vrot.slane %v5968, 1
        %v5971 = vsel %vm5064, %v5966, %v5970
        %v5972 = vshrl.u32 %v5890, 16
        %v5974 = vor.u32 %v5972, %v5970
        %v5976 = vshll.u32 %v5891, 16
        %v5978 = vrot.slane %v5976, 1
        %v5979 = vsel %vm5064, %v5974, %v5978
        %v5980 = vshrl.u32 %v5891, 16
        %v5982 = vor.u32 %v5980, %v5978
        %v5984 = vshll.u32 %v5892, 16
        %v5986 = vrot.slane %v5984, 1
        %v5987 = vsel %vm5064, %v5982, %v5986
        %v5988 = vshrl.u32 %v5892, 16
        %v5990 = vor.u32 %v5988, %v5986
        %v5992 = vshll.u32 %v5893, 16
        %v5994 = vrot.slane %v5992, 1
        %v5995 = vsel %vm5064, %v5990, %v5994
        %v5996 = vshrl.u32 %v5893, 16
        %v5998 = vor.u32 %v5996, %v5994
        %v6000 = vshll.u32 %v5894, 16
        %v6002 = vrot.slane %v6000, 1
        %v6003 = vsel %vm5064, %v5998, %v6002
        %v6004 = vshrl.u32 %v5894, 16
        %v6006 = vor.u32 %v6004, %v6002
        %v6008 = vshll.u32 %v5895, 16
        %v6010 = vrot.slane %v6008, 1
        %v6011 = vsel %vm5064, %v6006, %v6010
        %v6012 = vshrl.u32 %v5895, 16
        %v6014 = vor.u32 %v6012, %v6010
        %v6016 = vshll.u32 %v5896, 16
        %v6018 = vrot.slane %v6016, 1
        %v6019 = vsel %vm5064, %v6014, %v6018
        %v6020 = vshrl.u32 %v5896, 16
        %v6022 = vor.u32 %v6020, %v6018
        %v6024 = vshll.u32 %v5897, 16
        %v6026 = vrot.slane %v6024, 1
        %v6027 = vsel %vm5064, %v6022, %v6026
        %v6028 = vshrl.u32 %v5897, 16
        %v6030 = vor.u32 %v6028, %v6026
        %v6032 = vshll.u32 %v5898, 16
        %v6034 = vrot.slane %v6032, 1
        %v6035 = vsel %vm5064, %v6030, %v6034
        %v6036 = vshrl.u32 %v5898, 16
        %v6038 = vor.u32 %v6036, %v6034
        %v6040 = vshll.u32 %v5899, 16
        %v6042 = vrot.slane %v6040, 1
        %v6043 = vsel %vm5064, %v6038, %v6042
        %v6044 = vshrl.u32 %v5899, 16
        %v6046 = vor.u32 %v6044, %v6042
        %v6048 = vshll.u32 %v5900, 16
        %v6050 = vrot.slane %v6048, 1
        %v6051 = vsel %vm5064, %v6046, %v6050
        %v6052 = vshrl.u32 %v5900, 16
        %v6054 = vor.u32 %v6052, %v6050
        %v6056 = vshll.u32 %v5901, 16
        %v6058 = vrot.slane %v6056, 1
        %v6059 = vsel %vm5064, %v6054, %v6058
        %v6060 = vshrl.u32 %v5901, 16
        %v6062 = vor.u32 %v6060, %v6058
        %v6064 = vshll.u32 %v5902, 16
        %v6066 = vrot.slane %v6064, 1
        %v6067 = vsel %vm5064, %v6062, %v6066
        %v6068 = vshrl.u32 %v5902, 16
        %v6070 = vor.u32 %v6068, %v6066
        %v6072 = vshll.u32 %v5903, 16
        %v6074 = vrot.slane %v6072, 1
        %v6075 = vsel %vm5064, %v6070, %v6074
        %v6076 = vshrl.u32 %v5903, 16
        %v6078 = vor.u32 %v6076, %v6074
        %v6080 = vshll.u32 %v5904, 16
        %v6082 = vrot.slane %v6080, 1
        %v6083 = vsel %vm5064, %v6078, %v6082
        %v6084 = vshrl.u32 %v5904, 16
        %v6086 = vor.u32 %v6084, %v6082
        %v6088 = vshll.u32 %v5905, 16
        %v6090 = vrot.slane %v6088, 1
        %v6091 = vsel %vm5064, %v6086, %v6090
        %v6092 = vshrl.u32 %v5905, 16
        %v6094 = vor.u32 %v6092, %v6090
        %v6096 = vshll.u32 %v5906, 16
        %v6098 = vrot.slane %v6096, 1
        %v6099 = vsel %vm5064, %v6094, %v6098
        %v6100 = vshrl.u32 %v5906, 16
        %v6102 = vor.u32 %v6100, %v6098
        %v6104 = vshll.u32 %v5907, 16
        %v6106 = vrot.slane %v6104, 1
        %v6107 = vsel %vm5064, %v6102, %v6106
        %v6108 = vshrl.u32 %v5907, 16
        %v6110 = vor.u32 %v6108, %v6106
        %v6112 = vshll.u32 %v5908, 16
        %v6114 = vrot.slane %v6112, 1
        %v6115 = vsel %vm5064, %v6110, %v6114
        %v6116 = vshrl.u32 %v5908, 16
        %v6118 = vor.u32 %v6116, %v6114
        %v6120 = vshll.u32 %v5909, 16
        %v6122 = vrot.slane %v6120, 1
        %v6123 = vsel %vm5064, %v6118, %v6122
        %v6124 = vshrl.u32 %v5909, 16
        %v6126 = vor.u32 %v6124, %v6122
        %v6128 = vshll.u32 %v5910, 16
        %v6130 = vrot.slane %v6128, 1
        %v6131 = vsel %vm5064, %v6126, %v6130
        %v6132 = vshrl.u32 %v5910, 16
        %v6134 = vor.u32 %v6132, %v6130
        %v6136 = vshll.u32 %v5911, 16
        %v6138 = vrot.slane %v6136, 1
        %v6139 = vsel %vm5064, %v6134, %v6138
        %v6140 = vshrl.u32 %v5911, 16
        %v6142 = vor.u32 %v6140, %v6138
        %v6144 = vshll.u32 %v5912, 16
        %v6146 = vrot.slane %v6144, 1
        %v6147 = vsel %vm5064, %v6142, %v6146
        %v6148 = vshrl.u32 %v5912, 16
        %v6150 = vor.u32 %v6148, %v6146
        %v6152 = vshll.u32 %v5913, 16
        %v6154 = vrot.slane %v6152, 1
        %v6155 = vsel %vm5064, %v6150, %v6154
        %v6156 = vshrl.u32 %v5913, 16
        %v6158 = vor.u32 %v6156, %v6154
        %v6160 = vshll.u32 %v5914, 16
        %v6162 = vrot.slane %v6160, 1
        %v6163 = vsel %vm5064, %v6158, %v6162
        %v6164 = vshrl.u32 %v5914, 16
        %v6166 = vor.u32 %v6164, %v6162
        %v6168 = vshll.u32 %v5915, 16
        %v6170 = vrot.slane %v6168, 1
        %v6171 = vsel %vm5064, %v6166, %v6170
        %v6172 = vshrl.u32 %v5915, 16
        %v6174 = vor.u32 %v6172, %v6170
        %v6176 = vshll.u32 %v5916, 16
        %v6178 = vrot.slane %v6176, 1
        %v6179 = vsel %vm5064, %v6174, %v6178
        %v6180 = vshrl.u32 %v5916, 16
        %v6182 = vor.u32 %v6180, %v6178
        %v6184 = vshll.u32 %v5917, 16
        %v6186 = vrot.slane %v6184, 1
        %v6187 = vsel %vm5064, %v6182, %v6186
        %v6188 = vshrl.u32 %v5917, 16
        %v6190 = vor.u32 %v6188, %v6186
        %v6192 = vshll.u32 %v5918, 16
        %v6194 = vrot.slane %v6192, 1
        %v6195 = vsel %vm5064, %v6190, %v6194
        %v6244 = vunpack.c.l.b16 %v5920
        %v6245 = vunpack.c.l.b16 %v5921
        %v6246 = vunpack.c.l.b16 %v5922
        %v6247 = vunpack.c.l.b16 %v5923
        %v6248 = vunpack.c.l.b16 %v5924
        %v6249 = vunpack.c.l.b16 %v5925
        %v6250 = vunpack.c.l.b16 %v5926
        %v6251 = vunpack.c.l.b16 %v5927
        %v6252 = vunpack.c.l.b16 %v5928
        %v6253 = vunpack.c.l.b16 %v5929
        %v6254 = vunpack.c.l.b16 %v5930
        %v6255 = vunpack.c.l.b16 %v5931
        %v6256 = vunpack.c.l.b16 %v5932
        %v6257 = vunpack.c.l.b16 %v5933
        %v6258 = vunpack.c.l.b16 %v5934
        %v6259 = vunpack.c.l.b16 %v5935
        %v6260 = vpack.c.b16 %v6245, %v6244
        %v6261 = vpack.c.b16 %v6247, %v6246
        %v6262 = vpack.c.b16 %v6249, %v6248
        %v6263 = vpack.c.b16 %v6251, %v6250
        %v6264 = vpack.c.b16 %v6253, %v6252
        %v6265 = vpack.c.b16 %v6255, %v6254
        %v6266 = vpack.c.b16 %v6257, %v6256
        %v6267 = vpack.c.b16 %v6259, %v6258
        %6276 = vmatprep.subr.bf16.mxu0 0
        %6277 = vmatpush1.bf16.msra.mxu0 %v6260
        %6278 = vmatprep.subr.bf16.mxu0 0
        %6279 = vmatpush1.bf16.msra.mxu0 %v6261
        %6280 = vmatprep.subr.bf16.mxu0 0
        %6281 = vmatpush1.bf16.msra.mxu0 %v6262
        %6282 = vmatprep.subr.bf16.mxu0 0
        %6283 = vmatpush1.bf16.msra.mxu0 %v6263
        %6284 = vmatprep.subr.bf16.mxu0 0
        %6285 = vmatpush1.bf16.msra.mxu0 %v6264
        %6286 = vmatprep.subr.bf16.mxu0 0
        %6287 = vmatpush1.bf16.msra.mxu0 %v6265
        %6288 = vmatprep.subr.bf16.mxu0 0
        %6289 = vmatpush1.bf16.msra.mxu0 %v6266
        %6290 = vmatprep.subr.bf16.mxu0 0
        %6291 = vmatpush1.bf16.msra.mxu0 %v6267
        %6292 = vmatprep.subr.bf16.mxu0 0
        %6293 = vmatpush1.bf16.msra.mxu0 0
        %6294 = vmatprep.subr.bf16.mxu0 0
        %6295 = vmatpush1.bf16.msra.mxu0 0
        %6296 = vmatprep.subr.bf16.mxu0 0
        %6297 = vmatpush1.bf16.msra.mxu0 0
        %6298 = vmatprep.subr.bf16.mxu0 0
        %6299 = vmatpush1.bf16.msra.mxu0 0
        %6300 = vmatprep.subr.bf16.mxu0 0
        %6301 = vmatpush1.bf16.msra.mxu0 0
        %6302 = vmatprep.subr.bf16.mxu0 0
        %6303 = vmatpush1.bf16.msra.mxu0 0
        %6304 = vmatprep.subr.bf16.mxu0 0
        %6305 = vmatpush1.bf16.msra.mxu0 0
        %6306 = vmatprep.subr.bf16.mxu0 0
        %6307 = vmatpush1.bf16.msra.mxu0 0
        %6308 = vmatprep.mubr.bf16.mxu0 0
        %6309 = vmatmul.mubr.bf16.gmra.mrb[0].mxu0 %v5947
        %v6310 = vpop.f32.mrb[0].mxu0
        %v6311 = vadd.f32 0.0, %v6310
        %v6312 = vpop.f32.mrb[0].mxu0
        %v6313 = vpop.f32.mrb[0].mxu0
        %v6314 = vadd.f32 0.0, %v6313
        %v6315 = vpop.f32.mrb[0].mxu0
        %6316 = vmatprep.mubr.bf16.mxu0 0
        %6317 = vmatmul.mubr.bf16.gmra.mrb[0].mxu0 %v5955
        %v6318 = vpop.f32.mrb[0].mxu0
        %v6319 = vadd.f32 0.0, %v6318
        %v6320 = vpop.f32.mrb[0].mxu0
        %v6321 = vpop.f32.mrb[0].mxu0
        %v6322 = vadd.f32 0.0, %v6321
        %v6323 = vpop.f32.mrb[0].mxu0
        %6324 = vmatprep.mubr.bf16.mxu0 0
        %6325 = vmatmul.mubr.bf16.gmra.mrb[0].mxu0 %v5963
        %v6326 = vpop.f32.mrb[0].mxu0
        %v6327 = vadd.f32 0.0, %v6326
        %v6328 = vpop.f32.mrb[0].mxu0
        %v6329 = vpop.f32.mrb[0].mxu0
        %v6330 = vadd.f32 0.0, %v6329
        %v6331 = vpop.f32.mrb[0].mxu0
        %6332 = vmatprep.mubr.bf16.mxu0 0
        %6333 = vmatmul.mubr.bf16.gmra.mrb[0].mxu0 %v5971
        %v6334 = vpop.f32.mrb[0].mxu0
        %v6335 = vadd.f32 0.0, %v6334
        %v6336 = vpop.f32.mrb[0].mxu0
        %v6337 = vpop.f32.mrb[0].mxu0
        %v6338 = vadd.f32 0.0, %v6337
        %v6339 = vpop.f32.mrb[0].mxu0
        %6340 = vmatprep.mubr.bf16.mxu0 0
        %6341 = vmatmul.mubr.bf16.gmra.mrb[0].mxu0 %v5979
        %v6342 = vpop.f32.mrb[0].mxu0
        %v6343 = vadd.f32 0.0, %v6342
        %v6344 = vpop.f32.mrb[0].mxu0
        %v6345 = vpop.f32.mrb[0].mxu0
        %v6346 = vadd.f32 0.0, %v6345
        %v6347 = vpop.f32.mrb[0].mxu0
        %6348 = vmatprep.mubr.bf16.mxu0 0
        %6349 = vmatmul.mubr.bf16.gmra.mrb[0].mxu0 %v5987
        %v6350 = vpop.f32.mrb[0].mxu0
        %v6351 = vadd.f32 0.0, %v6350
        %v6352 = vpop.f32.mrb[0].mxu0
        %v6353 = vpop.f32.mrb[0].mxu0
        %v6354 = vadd.f32 0.0, %v6353
        %v6355 = vpop.f32.mrb[0].mxu0
        %6356 = vmatprep.mubr.bf16.mxu0 0
        %6357 = vmatmul.mubr.bf16.gmra.mrb[0].mxu0 %v5995
        %v6358 = vpop.f32.mrb[0].mxu0
        %v6359 = vadd.f32 0.0, %v6358
        %v6360 = vpop.f32.mrb[0].mxu0
        %v6361 = vpop.f32.mrb[0].mxu0
        %v6362 = vadd.f32 0.0, %v6361
        %v6363 = vpop.f32.mrb[0].mxu0
        %6364 = vmatprep.mubr.bf16.mxu0 0
        %6365 = vmatmul.mubr.bf16.gmra.mrb[0].mxu0 %v6003
        %v6366 = vpop.f32.mrb[0].mxu0
        %v6367 = vadd.f32 0.0, %v6366
        %v6368 = vpop.f32.mrb[0].mxu0
        %v6369 = vpop.f32.mrb[0].mxu0
        %v6370 = vadd.f32 0.0, %v6369
        %v6371 = vpop.f32.mrb[0].mxu0
        %6372 = vmatprep.mubr.bf16.mxu0 0
        %6373 = vmatmul.mubr.bf16.gmra.mrb[0].mxu0 %v6011
        %v6374 = vpop.f32.mrb[0].mxu0
        %v6375 = vadd.f32 0.0, %v6374
        %v6376 = vpop.f32.mrb[0].mxu0
        %v6377 = vpop.f32.mrb[0].mxu0
        %v6378 = vadd.f32 0.0, %v6377
        %v6379 = vpop.f32.mrb[0].mxu0
        %6380 = vmatprep.mubr.bf16.mxu0 0
        %6381 = vmatmul.mubr.bf16.gmra.mrb[0].mxu0 %v6019
        %v6382 = vpop.f32.mrb[0].mxu0
        %v6383 = vadd.f32 0.0, %v6382
        %v6384 = vpop.f32.mrb[0].mxu0
        %v6385 = vpop.f32.mrb[0].mxu0
        %v6386 = vadd.f32 0.0, %v6385
        %v6387 = vpop.f32.mrb[0].mxu0
        %6388 = vmatprep.mubr.bf16.mxu0 0
        %6389 = vmatmul.mubr.bf16.gmra.mrb[0].mxu0 %v6027
        %v6390 = vpop.f32.mrb[0].mxu0
        %v6391 = vadd.f32 0.0, %v6390
        %v6392 = vpop.f32.mrb[0].mxu0
        %v6393 = vpop.f32.mrb[0].mxu0
        %v6394 = vadd.f32 0.0, %v6393
        %v6395 = vpop.f32.mrb[0].mxu0
        %6396 = vmatprep.mubr.bf16.mxu0 0
        %6397 = vmatmul.mubr.bf16.gmra.mrb[0].mxu0 %v6035
        %v6398 = vpop.f32.mrb[0].mxu0
        %v6399 = vadd.f32 0.0, %v6398
        %v6400 = vpop.f32.mrb[0].mxu0
        %v6401 = vpop.f32.mrb[0].mxu0
        %v6402 = vadd.f32 0.0, %v6401
        %v6403 = vpop.f32.mrb[0].mxu0
        %6404 = vmatprep.mubr.bf16.mxu0 0
        %6405 = vmatmul.mubr.bf16.gmra.mrb[0].mxu0 %v6043
        %v6406 = vpop.f32.mrb[0].mxu0
        %v6407 = vadd.f32 0.0, %v6406
        %v6408 = vpop.f32.mrb[0].mxu0
        %v6409 = vpop.f32.mrb[0].mxu0
        %v6410 = vadd.f32 0.0, %v6409
        %v6411 = vpop.f32.mrb[0].mxu0
        %6412 = vmatprep.mubr.bf16.mxu0 0
        %6413 = vmatmul.mubr.bf16.gmra.mrb[0].mxu0 %v6051
        %v6414 = vpop.f32.mrb[0].mxu0
        %v6415 = vadd.f32 0.0, %v6414
        %v6416 = vpop.f32.mrb[0].mxu0
        %v6417 = vpop.f32.mrb[0].mxu0
        %v6418 = vadd.f32 0.0, %v6417
        %v6419 = vpop.f32.mrb[0].mxu0
        %6420 = vmatprep.mubr.bf16.mxu0 0
        %6421 = vmatmul.mubr.bf16.gmra.mrb[0].mxu0 %v6059
        %v6422 = vpop.f32.mrb[0].mxu0
        %v6423 = vadd.f32 0.0, %v6422
        %v6424 = vpop.f32.mrb[0].mxu0
        %v6425 = vpop.f32.mrb[0].mxu0
        %v6426 = vadd.f32 0.0, %v6425
        %v6427 = vpop.f32.mrb[0].mxu0
        %6428 = vmatprep.mubr.bf16.mxu0 0
        %6429 = vmatmul.mubr.bf16.gmra.mrb[0].mxu0 %v6067
        %v6430 = vpop.f32.mrb[0].mxu0
        %v6431 = vadd.f32 0.0, %v6430
        %v6432 = vpop.f32.mrb[0].mxu0
        %v6433 = vpop.f32.mrb[0].mxu0
        %v6434 = vadd.f32 0.0, %v6433
        %v6435 = vpop.f32.mrb[0].mxu0
        %6436 = vmatprep.mubr.bf16.mxu0 0
        %6437 = vmatmul.mubr.bf16.gmra.mrb[0].mxu0 %v6075
        %v6438 = vpop.f32.mrb[0].mxu0
        %v6439 = vadd.f32 0.0, %v6438
        %v6440 = vpop.f32.mrb[0].mxu0
        %v6441 = vpop.f32.mrb[0].mxu0
        %v6442 = vadd.f32 0.0, %v6441
        %v6443 = vpop.f32.mrb[0].mxu0
        %6444 = vmatprep.mubr.bf16.mxu0 0
        %6445 = vmatmul.mubr.bf16.gmra.mrb[0].mxu0 %v6083
        %v6446 = vpop.f32.mrb[0].mxu0
        %v6447 = vadd.f32 0.0, %v6446
        %v6448 = vpop.f32.mrb[0].mxu0
        %v6449 = vpop.f32.mrb[0].mxu0
        %v6450 = vadd.f32 0.0, %v6449
        %v6451 = vpop.f32.mrb[0].mxu0
        %6452 = vmatprep.mubr.bf16.mxu0 0
        %6453 = vmatmul.mubr.bf16.gmra.mrb[0].mxu0 %v6091
        %v6454 = vpop.f32.mrb[0].mxu0
        %v6455 = vadd.f32 0.0, %v6454
        %v6456 = vpop.f32.mrb[0].mxu0
        %v6457 = vpop.f32.mrb[0].mxu0
        %v6458 = vadd.f32 0.0, %v6457
        %v6459 = vpop.f32.mrb[0].mxu0
        %6460 = vmatprep.mubr.bf16.mxu0 0
        %6461 = vmatmul.mubr.bf16.gmra.mrb[0].mxu0 %v6099
        %v6462 = vpop.f32.mrb[0].mxu0
        %v6463 = vadd.f32 0.0, %v6462
        %v6464 = vpop.f32.mrb[0].mxu0
        %v6465 = vpop.f32.mrb[0].mxu0
        %v6466 = vadd.f32 0.0, %v6465
        %v6467 = vpop.f32.mrb[0].mxu0
        %6468 = vmatprep.mubr.bf16.mxu0 0
        %6469 = vmatmul.mubr.bf16.gmra.mrb[0].mxu0 %v6107
        %v6470 = vpop.f32.mrb[0].mxu0
        %v6471 = vadd.f32 0.0, %v6470
        %v6472 = vpop.f32.mrb[0].mxu0
        %v6473 = vpop.f32.mrb[0].mxu0
        %v6474 = vadd.f32 0.0, %v6473
        %v6475 = vpop.f32.mrb[0].mxu0
        %6476 = vmatprep.mubr.bf16.mxu0 0
        %6477 = vmatmul.mubr.bf16.gmra.mrb[0].mxu0 %v6115
        %v6478 = vpop.f32.mrb[0].mxu0
        %v6479 = vadd.f32 0.0, %v6478
        %v6480 = vpop.f32.mrb[0].mxu0
        %v6481 = vpop.f32.mrb[0].mxu0
        %v6482 = vadd.f32 0.0, %v6481
        %v6483 = vpop.f32.mrb[0].mxu0
        %6484 = vmatprep.mubr.bf16.mxu0 0
        %6485 = vmatmul.mubr.bf16.gmra.mrb[0].mxu0 %v6123
        %v6486 = vpop.f32.mrb[0].mxu0
        %v6487 = vadd.f32 0.0, %v6486
        %v6488 = vpop.f32.mrb[0].mxu0
        %v6489 = vpop.f32.mrb[0].mxu0
        %v6490 = vadd.f32 0.0, %v6489
        %v6491 = vpop.f32.mrb[0].mxu0
        %6492 = vmatprep.mubr.bf16.mxu0 0
        %6493 = vmatmul.mubr.bf16.gmra.mrb[0].mxu0 %v6131
        %v6494 = vpop.f32.mrb[0].mxu0
        %v6495 = vadd.f32 0.0, %v6494
        %v6496 = vpop.f32.mrb[0].mxu0
        %v6497 = vpop.f32.mrb[0].mxu0
        %v6498 = vadd.f32 0.0, %v6497
        %v6499 = vpop.f32.mrb[0].mxu0
        %6500 = vmatprep.mubr.bf16.mxu0 0
        %6501 = vmatmul.mubr.bf16.gmra.mrb[0].mxu0 %v6139
        %v6502 = vpop.f32.mrb[0].mxu0
        %v6503 = vadd.f32 0.0, %v6502
        %v6504 = vpop.f32.mrb[0].mxu0
        %v6505 = vpop.f32.mrb[0].mxu0
        %v6506 = vadd.f32 0.0, %v6505
        %v6507 = vpop.f32.mrb[0].mxu0
        %6508 = vmatprep.mubr.bf16.mxu0 0
        %6509 = vmatmul.mubr.bf16.gmra.mrb[0].mxu0 %v6147
        %v6510 = vpop.f32.mrb[0].mxu0
        %v6511 = vadd.f32 0.0, %v6510
        %v6512 = vpop.f32.mrb[0].mxu0
        %v6513 = vpop.f32.mrb[0].mxu0
        %v6514 = vadd.f32 0.0, %v6513
        %v6515 = vpop.f32.mrb[0].mxu0
        %6516 = vmatprep.mubr.bf16.mxu0 0
        %6517 = vmatmul.mubr.bf16.gmra.mrb[0].mxu0 %v6155
        %v6518 = vpop.f32.mrb[0].mxu0
        %v6519 = vadd.f32 0.0, %v6518
        %v6520 = vpop.f32.mrb[0].mxu0
        %v6521 = vpop.f32.mrb[0].mxu0
        %v6522 = vadd.f32 0.0, %v6521
        %v6523 = vpop.f32.mrb[0].mxu0
        %6524 = vmatprep.mubr.bf16.mxu0 0
        %6525 = vmatmul.mubr.bf16.gmra.mrb[0].mxu0 %v6163
        %v6526 = vpop.f32.mrb[0].mxu0
        %v6527 = vadd.f32 0.0, %v6526
        %v6528 = vpop.f32.mrb[0].mxu0
        %v6529 = vpop.f32.mrb[0].mxu0
        %v6530 = vadd.f32 0.0, %v6529
        %v6531 = vpop.f32.mrb[0].mxu0
        %6532 = vmatprep.mubr.bf16.mxu0 0
        %6533 = vmatmul.mubr.bf16.gmra.mrb[0].mxu0 %v6171
        %v6534 = vpop.f32.mrb[0].mxu0
        %v6535 = vadd.f32 0.0, %v6534
        %v6536 = vpop.f32.mrb[0].mxu0
        %v6537 = vpop.f32.mrb[0].mxu0
        %v6538 = vadd.f32 0.0, %v6537
        %v6539 = vpop.f32.mrb[0].mxu0
        %6540 = vmatprep.mubr.bf16.mxu0 0
        %6541 = vmatmul.mubr.bf16.gmra.mrb[0].mxu0 %v6179
        %v6542 = vpop.f32.mrb[0].mxu0
        %v6543 = vadd.f32 0.0, %v6542
        %v6544 = vpop.f32.mrb[0].mxu0
        %v6545 = vpop.f32.mrb[0].mxu0
        %v6546 = vadd.f32 0.0, %v6545
        %v6547 = vpop.f32.mrb[0].mxu0
        %6548 = vmatprep.mubr.bf16.mxu0 0
        %6549 = vmatmul.mubr.bf16.gmra.mrb[0].mxu0 %v6187
        %v6550 = vpop.f32.mrb[0].mxu0
        %v6551 = vadd.f32 0.0, %v6550
        %v6552 = vpop.f32.mrb[0].mxu0
        %v6553 = vpop.f32.mrb[0].mxu0
        %v6554 = vadd.f32 0.0, %v6553
        %v6555 = vpop.f32.mrb[0].mxu0
        %6556 = vmatprep.mubr.bf16.mxu0 0
        %6557 = vmatmul.mubr.bf16.gmra.mrb[0].mxu0 %v6195
        %v6558 = vpop.f32.mrb[0].mxu0
        %v6559 = vadd.f32 0.0, %v6558
        %v6560 = vpop.f32.mrb[0].mxu0
        %v6561 = vpop.f32.mrb[0].mxu0
        %v6562 = vadd.f32 0.0, %v6561
        %v6563 = vpop.f32.mrb[0].mxu0
        %6564 = vdwg.mxu0
        %v6565 = vld [vmem:[#allocation3] sm:$0xff]
        %v6566 = vld [vmem:[#allocation3 + $0x8] sm:$0xff]
        %v6567 = vld [vmem:[#allocation3 + $0x10] sm:$0xff]
        %v6568 = vld [vmem:[#allocation3 + $0x18] sm:$0xff]
        %v6569 = vld [vmem:[#allocation3 + $0x20] sm:$0xff]
        %v6570 = vld [vmem:[#allocation3 + $0x28] sm:$0xff]
        %v6571 = vld [vmem:[#allocation3 + $0x30] sm:$0xff]
        %v6572 = vld [vmem:[#allocation3 + $0x38] sm:$0xff]
        %v6573 = vld [vmem:[#allocation3 + $0x40] sm:$0xff]
        %v6574 = vld [vmem:[#allocation3 + $0x48] sm:$0xff]
        %v6575 = vld [vmem:[#allocation3 + $0x50] sm:$0xff]
        %v6576 = vld [vmem:[#allocation3 + $0x58] sm:$0xff]
        %v6577 = vld [vmem:[#allocation3 + $0x60] sm:$0xff]
        %v6578 = vld [vmem:[#allocation3 + $0x68] sm:$0xff]
        %v6579 = vld [vmem:[#allocation3 + $0x70] sm:$0xff]
        %v6580 = vld [vmem:[#allocation3 + $0x78] sm:$0xff]
        %v6581 = vld [vmem:[#allocation3 + $0x80] sm:$0xff]
        %v6582 = vld [vmem:[#allocation3 + $0x88] sm:$0xff]
        %v6583 = vld [vmem:[#allocation3 + $0x90] sm:$0xff]
        %v6584 = vld [vmem:[#allocation3 + $0x98] sm:$0xff]
        %v6585 = vld [vmem:[#allocation3 + $0xa0] sm:$0xff]
        %v6586 = vld [vmem:[#allocation3 + $0xa8] sm:$0xff]
        %v6587 = vld [vmem:[#allocation3 + $0xb0] sm:$0xff]
        %v6588 = vld [vmem:[#allocation3 + $0xb8] sm:$0xff]
        %v6589 = vld [vmem:[#allocation3 + $0xc0] sm:$0xff]
        %v6590 = vld [vmem:[#allocation3 + $0xc8] sm:$0xff]
        %v6591 = vld [vmem:[#allocation3 + $0xd0] sm:$0xff]
        %v6592 = vld [vmem:[#allocation3 + $0xd8] sm:$0xff]
        %v6593 = vld [vmem:[#allocation3 + $0xe0] sm:$0xff]
        %v6594 = vld [vmem:[#allocation3 + $0xe8] sm:$0xff]
        %v6595 = vld [vmem:[#allocation3 + $0xf0] sm:$0xff]
        %v6596 = vld [vmem:[#allocation3 + $0xf8] sm:$0xff]
        %v6597 = vld [vmem:[#allocation3 + $0x100] sm:$0xff]
        %v6598 = vld [vmem:[#allocation3 + $0x108] sm:$0xff]
        %v6599 = vld [vmem:[#allocation3 + $0x110] sm:$0xff]
        %v6600 = vld [vmem:[#allocation3 + $0x118] sm:$0xff]
        %v6601 = vld [vmem:[#allocation3 + $0x120] sm:$0xff]
        %v6602 = vld [vmem:[#allocation3 + $0x128] sm:$0xff]
        %v6603 = vld [vmem:[#allocation3 + $0x130] sm:$0xff]
        %v6604 = vld [vmem:[#allocation3 + $0x138] sm:$0xff]
        %v6605 = vld [vmem:[#allocation3 + $0x140] sm:$0xff]
        %v6606 = vld [vmem:[#allocation3 + $0x148] sm:$0xff]
        %v6607 = vld [vmem:[#allocation3 + $0x150] sm:$0xff]
        %v6608 = vld [vmem:[#allocation3 + $0x158] sm:$0xff]
        %v6609 = vld [vmem:[#allocation3 + $0x160] sm:$0xff]
        %v6610 = vld [vmem:[#allocation3 + $0x168] sm:$0xff]
        %v6611 = vld [vmem:[#allocation3 + $0x170] sm:$0xff]
        %v6612 = vld [vmem:[#allocation3 + $0x178] sm:$0xff]
        %v6613 = vld [vmem:[#allocation3 + $0x180] sm:$0xff]
        %v6614 = vld [vmem:[#allocation3 + $0x188] sm:$0xff]
        %v6615 = vld [vmem:[#allocation3 + $0x190] sm:$0xff]
        %v6616 = vld [vmem:[#allocation3 + $0x198] sm:$0xff]
        %v6617 = vld [vmem:[#allocation3 + $0x1a0] sm:$0xff]
        %v6618 = vld [vmem:[#allocation3 + $0x1a8] sm:$0xff]
        %v6619 = vld [vmem:[#allocation3 + $0x1b0] sm:$0xff]
        %v6620 = vld [vmem:[#allocation3 + $0x1b8] sm:$0xff]
        %v6621 = vld [vmem:[#allocation3 + $0x1c0] sm:$0xff]
        %v6622 = vld [vmem:[#allocation3 + $0x1c8] sm:$0xff]
        %v6623 = vld [vmem:[#allocation3 + $0x1d0] sm:$0xff]
        %v6624 = vld [vmem:[#allocation3 + $0x1d8] sm:$0xff]
        %v6625 = vld [vmem:[#allocation3 + $0x1e0] sm:$0xff]
        %v6626 = vld [vmem:[#allocation3 + $0x1e8] sm:$0xff]
        %v6627 = vld [vmem:[#allocation3 + $0x1f0] sm:$0xff]
        %v6628 = vld [vmem:[#allocation3 + $0x1f8] sm:$0xff]
        %v6629 = vadd.f32 %v6565, %v6311
        %v6630 = vadd.f32 %v6566, %v6314
        %v6631 = vadd.f32 %v6567, %v6319
        %v6632 = vadd.f32 %v6568, %v6322
        %v6633 = vadd.f32 %v6569, %v6327
        %v6634 = vadd.f32 %v6570, %v6330
        %v6635 = vadd.f32 %v6571, %v6335
        %v6636 = vadd.f32 %v6572, %v6338
        %v6637 = vadd.f32 %v6573, %v6343
        %v6638 = vadd.f32 %v6574, %v6346
        %v6639 = vadd.f32 %v6575, %v6351
        %v6640 = vadd.f32 %v6576, %v6354
        %v6641 = vadd.f32 %v6577, %v6359
        %v6642 = vadd.f32 %v6578, %v6362
        %v6643 = vadd.f32 %v6579, %v6367
        %v6644 = vadd.f32 %v6580, %v6370
        %v6645 = vadd.f32 %v6581, %v6375
        %v6646 = vadd.f32 %v6582, %v6378
        %v6647 = vadd.f32 %v6583, %v6383
        %v6648 = vadd.f32 %v6584, %v6386
        %v6649 = vadd.f32 %v6585, %v6391
        %v6650 = vadd.f32 %v6586, %v6394
        %v6651 = vadd.f32 %v6587, %v6399
        %v6652 = vadd.f32 %v6588, %v6402
        %v6653 = vadd.f32 %v6589, %v6407
        %v6654 = vadd.f32 %v6590, %v6410
        %v6655 = vadd.f32 %v6591, %v6415
        %v6656 = vadd.f32 %v6592, %v6418
        %v6657 = vadd.f32 %v6593, %v6423
        %v6658 = vadd.f32 %v6594, %v6426
        %v6659 = vadd.f32 %v6595, %v6431
        %v6660 = vadd.f32 %v6596, %v6434
        %v6661 = vadd.f32 %v6597, %v6439
        %v6662 = vadd.f32 %v6598, %v6442
        %v6663 = vadd.f32 %v6599, %v6447
        %v6664 = vadd.f32 %v6600, %v6450
        %v6665 = vadd.f32 %v6601, %v6455
        %v6666 = vadd.f32 %v6602, %v6458
        %v6667 = vadd.f32 %v6603, %v6463
        %v6668 = vadd.f32 %v6604, %v6466
        %v6669 = vadd.f32 %v6605, %v6471
        %v6670 = vadd.f32 %v6606, %v6474
        %v6671 = vadd.f32 %v6607, %v6479
        %v6672 = vadd.f32 %v6608, %v6482
        %v6673 = vadd.f32 %v6609, %v6487
        %v6674 = vadd.f32 %v6610, %v6490
        %v6675 = vadd.f32 %v6611, %v6495
        %v6676 = vadd.f32 %v6612, %v6498
        %v6677 = vadd.f32 %v6613, %v6503
        %v6678 = vadd.f32 %v6614, %v6506
        %v6679 = vadd.f32 %v6615, %v6511
        %v6680 = vadd.f32 %v6616, %v6514
        %v6681 = vadd.f32 %v6617, %v6519
        %v6682 = vadd.f32 %v6618, %v6522
        %v6683 = vadd.f32 %v6619, %v6527
        %v6684 = vadd.f32 %v6620, %v6530
        %v6685 = vadd.f32 %v6621, %v6535
        %v6686 = vadd.f32 %v6622, %v6538
        %v6687 = vadd.f32 %v6623, %v6543
        %v6688 = vadd.f32 %v6624, %v6546
        %v6689 = vadd.f32 %v6625, %v6551
        %v6690 = vadd.f32 %v6626, %v6554
        %v6691 = vadd.f32 %v6627, %v6559
        %v6692 = vadd.f32 %v6628, %v6562
        %6693 = vst [vmem:[#allocation3] sm:$0xff] %v6629
        %6694 = vst [vmem:[#allocation3 + $0x8] sm:$0xff] %v6630
        %6695 = vst [vmem:[#allocation3 + $0x10] sm:$0xff] %v6631
        %6696 = vst [vmem:[#allocation3 + $0x18] sm:$0xff] %v6632
        %6697 = vst [vmem:[#allocation3 + $0x20] sm:$0xff] %v6633
        %6698 = vst [vmem:[#allocation3 + $0x28] sm:$0xff] %v6634
        %6699 = vst [vmem:[#allocation3 + $0x30] sm:$0xff] %v6635
        %6700 = vst [vmem:[#allocation3 + $0x38] sm:$0xff] %v6636
        %6701 = vst [vmem:[#allocation3 + $0x40] sm:$0xff] %v6637
        %6702 = vst [vmem:[#allocation3 + $0x48] sm:$0xff] %v6638
        %6703 = vst [vmem:[#allocation3 + $0x50] sm:$0xff] %v6639
        %6704 = vst [vmem:[#allocation3 + $0x58] sm:$0xff] %v6640
        %6705 = vst [vmem:[#allocation3 + $0x60] sm:$0xff] %v6641
        %6706 = vst [vmem:[#allocation3 + $0x68] sm:$0xff] %v6642
        %6707 = vst [vmem:[#allocation3 + $0x70] sm:$0xff] %v6643
        %6708 = vst [vmem:[#allocation3 + $0x78] sm:$0xff] %v6644
        %6709 = vst [vmem:[#allocation3 + $0x80] sm:$0xff] %v6645
        %6710 = vst [vmem:[#allocation3 + $0x88] sm:$0xff] %v6646
        %6711 = vst [vmem:[#allocation3 + $0x90] sm:$0xff] %v6647
        %6712 = vst [vmem:[#allocation3 + $0x98] sm:$0xff] %v6648
        %6713 = vst [vmem:[#allocation3 + $0xa0] sm:$0xff] %v6649
        %6714 = vst [vmem:[#allocation3 + $0xa8] sm:$0xff] %v6650
        %6715 = vst [vmem:[#allocation3 + $0xb0] sm:$0xff] %v6651
        %6716 = vst [vmem:[#allocation3 + $0xb8] sm:$0xff] %v6652
        %6717 = vst [vmem:[#allocation3 + $0xc0] sm:$0xff] %v6653
        %6718 = vst [vmem:[#allocation3 + $0xc8] sm:$0xff] %v6654
        %6719 = vst [vmem:[#allocation3 + $0xd0] sm:$0xff] %v6655
        %6720 = vst [vmem:[#allocation3 + $0xd8] sm:$0xff] %v6656
        %6721 = vst [vmem:[#allocation3 + $0xe0] sm:$0xff] %v6657
        %6722 = vst [vmem:[#allocation3 + $0xe8] sm:$0xff] %v6658
        %6723 = vst [vmem:[#allocation3 + $0xf0] sm:$0xff] %v6659
        %6724 = vst [vmem:[#allocation3 + $0xf8] sm:$0xff] %v6660
        %6725 = vst [vmem:[#allocation3 + $0x100] sm:$0xff] %v6661
        %6726 = vst [vmem:[#allocation3 + $0x108] sm:$0xff] %v6662
        %6727 = vst [vmem:[#allocation3 + $0x110] sm:$0xff] %v6663
        %6728 = vst [vmem:[#allocation3 + $0x118] sm:$0xff] %v6664
        %6729 = vst [vmem:[#allocation3 + $0x120] sm:$0xff] %v6665
        %6730 = vst [vmem:[#allocation3 + $0x128] sm:$0xff] %v6666
        %6731 = vst [vmem:[#allocation3 + $0x130] sm:$0xff] %v6667
        %6732 = vst [vmem:[#allocation3 + $0x138] sm:$0xff] %v6668
        %6733 = vst [vmem:[#allocation3 + $0x140] sm:$0xff] %v6669
        %6734 = vst [vmem:[#allocation3 + $0x148] sm:$0xff] %v6670
        %6735 = vst [vmem:[#allocation3 + $0x150] sm:$0xff] %v6671
        %6736 = vst [vmem:[#allocation3 + $0x158] sm:$0xff] %v6672
        %6737 = vst [vmem:[#allocation3 + $0x160] sm:$0xff] %v6673
        %6738 = vst [vmem:[#allocation3 + $0x168] sm:$0xff] %v6674
        %6739 = vst [vmem:[#allocation3 + $0x170] sm:$0xff] %v6675
        %6740 = vst [vmem:[#allocation3 + $0x178] sm:$0xff] %v6676
        %6741 = vst [vmem:[#allocation3 + $0x180] sm:$0xff] %v6677
        %6742 = vst [vmem:[#allocation3 + $0x188] sm:$0xff] %v6678
        %6743 = vst [vmem:[#allocation3 + $0x190] sm:$0xff] %v6679
        %6744 = vst [vmem:[#allocation3 + $0x198] sm:$0xff] %v6680
        %6745 = vst [vmem:[#allocation3 + $0x1a0] sm:$0xff] %v6681
        %6746 = vst [vmem:[#allocation3 + $0x1a8] sm:$0xff] %v6682
        %6747 = vst [vmem:[#allocation3 + $0x1b0] sm:$0xff] %v6683
        %6748 = vst [vmem:[#allocation3 + $0x1b8] sm:$0xff] %v6684
        %6749 = vst [vmem:[#allocation3 + $0x1c0] sm:$0xff] %v6685
        %6750 = vst [vmem:[#allocation3 + $0x1c8] sm:$0xff] %v6686
        %6751 = vst [vmem:[#allocation3 + $0x1d0] sm:$0xff] %v6687
        %6752 = vst [vmem:[#allocation3 + $0x1d8] sm:$0xff] %v6688
        %6753 = vst [vmem:[#allocation3 + $0x1e0] sm:$0xff] %v6689
        %6754 = vst [vmem:[#allocation3 + $0x1e8] sm:$0xff] %v6690
        %6755 = vst [vmem:[#allocation3 + $0x1f0] sm:$0xff] %v6691
        %6756 = vst [vmem:[#allocation3 + $0x1f8] sm:$0xff] %v6692
        %v6757 = vld [vmem:[#allocation2 + $0x50] sm:$0xfe]
        %v6758 = vld [vmem:[#allocation2 + $0x58] sm:$0xff]
        %v6759 = vld [vmem:[#allocation2 + $0x60] sm:$0xff]
        %v6760 = vld [vmem:[#allocation2 + $0x68] sm:$0xff]
        %v6761 = vld [vmem:[#allocation2 + $0x70] sm:$0xff]
        %v6762 = vld [vmem:[#allocation2 + $0x78] sm:$0xff]
        %v6763 = vld [vmem:[#allocation2 + $0x80] sm:$0xff]
        %v6764 = vld [vmem:[#allocation2 + $0x88] sm:$0xff]
        %v6765 = vld [vmem:[#allocation2 + $0x90] sm:$0xff]
        %v6766 = vld [vmem:[#allocation2 + $0x98] sm:$0xff]
        %v6767 = vld [vmem:[#allocation2 + $0xa0] sm:$0xff]
        %v6768 = vld [vmem:[#allocation2 + $0xa8] sm:$0xff]
        %v6769 = vld [vmem:[#allocation2 + $0xb0] sm:$0xff]
        %v6770 = vld [vmem:[#allocation2 + $0xb8] sm:$0xff]
        %v6771 = vld [vmem:[#allocation2 + $0xc0] sm:$0xff]
        %v6772 = vld [vmem:[#allocation2 + $0xc8] sm:$0xff]
        %v6773 = vld [vmem:[#allocation2 + $0xd0] sm:$0xff]
        %v6774 = vld [vmem:[#allocation2 + $0xd8] sm:$0xff]
        %v6775 = vld [vmem:[#allocation2 + $0xe0] sm:$0xff]
        %v6776 = vld [vmem:[#allocation2 + $0xe8] sm:$0xff]
        %v6777 = vld [vmem:[#allocation2 + $0xf0] sm:$0xff]
        %v6778 = vld [vmem:[#allocation2 + $0xf8] sm:$0xff]
        %v6779 = vld [vmem:[#allocation2 + $0x100] sm:$0xff]
        %v6780 = vld [vmem:[#allocation2 + $0x108] sm:$0xff]
        %v6781 = vld [vmem:[#allocation2 + $0x110] sm:$0xff]
        %v6782 = vld [vmem:[#allocation2 + $0x118] sm:$0xff]
        %v6783 = vld [vmem:[#allocation2 + $0x120] sm:$0xff]
        %v6784 = vld [vmem:[#allocation2 + $0x128] sm:$0xff]
        %v6785 = vld [vmem:[#allocation2 + $0x130] sm:$0xff]
        %v6786 = vld [vmem:[#allocation2 + $0x138] sm:$0xff]
        %v6787 = vld [vmem:[#allocation2 + $0x140] sm:$0xff]
        %v6788 = vld [vmem:[#allocation2 + $0x148] sm:$0xff]
        %v6789 = vld [vmem:[#allocation2 + $0x150] sm:$0x1]
        %s6790 = scalar_lea.vmem [#allocation12], 448
        %v6791 = vld [vmem:[%s6790] sm:$0xf]
        %v6792 = vld [vmem:[%s6790 + $0x4] sm:$0xf]
        %v6793 = vld [vmem:[%s6790 + $0x8] sm:$0xf]
        %v6794 = vld [vmem:[%s6790 + $0xc] sm:$0xf]
        %v6795 = vld [vmem:[%s6790 + $0x10] sm:$0xf]
        %v6796 = vld [vmem:[%s6790 + $0x14] sm:$0xf]
        %v6797 = vld [vmem:[%s6790 + $0x18] sm:$0xf]
        %v6798 = vld [vmem:[%s6790 + $0x1c] sm:$0xf]
        %v6799 = vld [vmem:[%s6790 + $0x20] sm:$0xf]
        %v6800 = vld [vmem:[%s6790 + $0x24] sm:$0xf]
        %v6801 = vld [vmem:[%s6790 + $0x28] sm:$0xf]
        %v6802 = vld [vmem:[%s6790 + $0x2c] sm:$0xf]
        %v6803 = vld [vmem:[%s6790 + $0x30] sm:$0xf]
        %v6804 = vld [vmem:[%s6790 + $0x34] sm:$0xf]
        %v6805 = vld [vmem:[%s6790 + $0x38] sm:$0xf]
        %v6806 = vld [vmem:[%s6790 + $0x3c] sm:$0xf]
        %vm6840 = vcmask 1046528
        %v6841 = vrot.slane %v6757, 1
        %v6842 = vrot.slane %v6758, 1
        %v6843 = vsel %vm6840, %v6841, %v6842
        %v6844 = vrot.slane %v6759, 1
        %v6845 = vsel %vm6840, %v6842, %v6844
        %v6846 = vrot.slane %v6760, 1
        %v6847 = vsel %vm6840, %v6844, %v6846
        %v6848 = vrot.slane %v6761, 1
        %v6849 = vsel %vm6840, %v6846, %v6848
        %v6850 = vrot.slane %v6762, 1
        %v6851 = vsel %vm6840, %v6848, %v6850
        %v6852 = vrot.slane %v6763, 1
        %v6853 = vsel %vm6840, %v6850, %v6852
        %v6854 = vrot.slane %v6764, 1
        %v6855 = vsel %vm6840, %v6852, %v6854
        %v6856 = vrot.slane %v6765, 1
        %v6857 = vsel %vm6840, %v6854, %v6856
        %v6858 = vrot.slane %v6766, 1
        %v6859 = vsel %vm6840, %v6856, %v6858
        %v6860 = vrot.slane %v6767, 1
        %v6861 = vsel %vm6840, %v6858, %v6860
        %v6862 = vrot.slane %v6768, 1
        %v6863 = vsel %vm6840, %v6860, %v6862
        %v6864 = vrot.slane %v6769, 1
        %v6865 = vsel %vm6840, %v6862, %v6864
        %v6866 = vrot.slane %v6770, 1
        %v6867 = vsel %vm6840, %v6864, %v6866
        %v6868 = vrot.slane %v6771, 1
        %v6869 = vsel %vm6840, %v6866, %v6868
        %v6870 = vrot.slane %v6772, 1
        %v6871 = vsel %vm6840, %v6868, %v6870
        %v6872 = vrot.slane %v6773, 1
        %v6873 = vsel %vm6840, %v6870, %v6872
        %v6874 = vrot.slane %v6774, 1
        %v6875 = vsel %vm6840, %v6872, %v6874
        %v6876 = vrot.slane %v6775, 1
        %v6877 = vsel %vm6840, %v6874, %v6876
        %v6878 = vrot.slane %v6776, 1
        %v6879 = vsel %vm6840, %v6876, %v6878
        %v6880 = vrot.slane %v6777, 1
        %v6881 = vsel %vm6840, %v6878, %v6880
        %v6882 = vrot.slane %v6778, 1
        %v6883 = vsel %vm6840, %v6880, %v6882
        %v6884 = vrot.slane %v6779, 1
        %v6885 = vsel %vm6840, %v6882, %v6884
        %v6886 = vrot.slane %v6780, 1
        %v6887 = vsel %vm6840, %v6884, %v6886
        %v6888 = vrot.slane %v6781, 1
        %v6889 = vsel %vm6840, %v6886, %v6888
        %v6890 = vrot.slane %v6782, 1
        %v6891 = vsel %vm6840, %v6888, %v6890
        %v6892 = vrot.slane %v6783, 1
        %v6893 = vsel %vm6840, %v6890, %v6892
        %v6894 = vrot.slane %v6784, 1
        %v6895 = vsel %vm6840, %v6892, %v6894
        %v6896 = vrot.slane %v6785, 1
        %v6897 = vsel %vm6840, %v6894, %v6896
        %v6898 = vrot.slane %v6786, 1
        %v6899 = vsel %vm6840, %v6896, %v6898
        %v6900 = vrot.slane %v6787, 1
        %v6901 = vsel %vm6840, %v6898, %v6900
        %v6902 = vrot.slane %v6788, 1
        %v6903 = vsel %vm6840, %v6900, %v6902
        %v6904 = vrot.slane %v6789, 1
        %v6905 = vsel %vm6840, %v6902, %v6904
        %v6954 = vunpack.c.l.b16 %v6791
        %v6955 = vunpack.c.l.b16 %v6792
        %v6956 = vunpack.c.l.b16 %v6793
        %v6957 = vunpack.c.l.b16 %v6794
        %v6958 = vunpack.c.l.b16 %v6795
        %v6959 = vunpack.c.l.b16 %v6796
        %v6960 = vunpack.c.l.b16 %v6797
        %v6961 = vunpack.c.l.b16 %v6798
        %v6962 = vunpack.c.l.b16 %v6799
        %v6963 = vunpack.c.l.b16 %v6800
        %v6964 = vunpack.c.l.b16 %v6801
        %v6965 = vunpack.c.l.b16 %v6802
        %v6966 = vunpack.c.l.b16 %v6803
        %v6967 = vunpack.c.l.b16 %v6804
        %v6968 = vunpack.c.l.b16 %v6805
        %v6969 = vunpack.c.l.b16 %v6806
        %v6970 = vpack.c.b16 %v6955, %v6954
        %v6971 = vpack.c.b16 %v6957, %v6956
        %v6972 = vpack.c.b16 %v6959, %v6958
        %v6973 = vpack.c.b16 %v6961, %v6960
        %v6974 = vpack.c.b16 %v6963, %v6962
        %v6975 = vpack.c.b16 %v6965, %v6964
        %v6976 = vpack.c.b16 %v6967, %v6966
        %v6977 = vpack.c.b16 %v6969, %v6968
        %6986 = vmatprep.subr.bf16.mxu0 0
        %6987 = vmatpush1.bf16.msra.mxu0 %v6970
        %6988 = vmatprep.subr.bf16.mxu0 0
        %6989 = vmatpush1.bf16.msra.mxu0 %v6971
        %6990 = vmatprep.subr.bf16.mxu0 0
        %6991 = vmatpush1.bf16.msra.mxu0 %v6972
        %6992 = vmatprep.subr.bf16.mxu0 0
        %6993 = vmatpush1.bf16.msra.mxu0 %v6973
        %6994 = vmatprep.subr.bf16.mxu0 0
        %6995 = vmatpush1.bf16.msra.mxu0 %v6974
        %6996 = vmatprep.subr.bf16.mxu0 0
        %6997 = vmatpush1.bf16.msra.mxu0 %v6975
        %6998 = vmatprep.subr.bf16.mxu0 0
        %6999 = vmatpush1.bf16.msra.mxu0 %v6976
        %7000 = vmatprep.subr.bf16.mxu0 0
        %7001 = vmatpush1.bf16.msra.mxu0 %v6977
        %7002 = vmatprep.subr.bf16.mxu0 0
        %7003 = vmatpush1.bf16.msra.mxu0 0
        %7004 = vmatprep.subr.bf16.mxu0 0
        %7005 = vmatpush1.bf16.msra.mxu0 0
        %7006 = vmatprep.subr.bf16.mxu0 0
        %7007 = vmatpush1.bf16.msra.mxu0 0
        %7008 = vmatprep.subr.bf16.mxu0 0
        %7009 = vmatpush1.bf16.msra.mxu0 0
        %7010 = vmatprep.subr.bf16.mxu0 0
        %7011 = vmatpush1.bf16.msra.mxu0 0
        %7012 = vmatprep.subr.bf16.mxu0 0
        %7013 = vmatpush1.bf16.msra.mxu0 0
        %7014 = vmatprep.subr.bf16.mxu0 0
        %7015 = vmatpush1.bf16.msra.mxu0 0
        %7016 = vmatprep.subr.bf16.mxu0 0
        %7017 = vmatpush1.bf16.msra.mxu0 0
        %7018 = vmatprep.mubr.bf16.mxu0 0
        %7019 = vmatmul.mubr.bf16.gmra.mrb[0].mxu0 %v6843
        %v7020 = vpop.f32.mrb[0].mxu0
        %v7021 = vadd.f32 0.0, %v7020
        %v7022 = vpop.f32.mrb[0].mxu0
        %v7023 = vpop.f32.mrb[0].mxu0
        %v7024 = vadd.f32 0.0, %v7023
        %v7025 = vpop.f32.mrb[0].mxu0
        %7026 = vmatprep.mubr.bf16.mxu0 0
        %7027 = vmatmul.mubr.bf16.gmra.mrb[0].mxu0 %v6845
        %v7028 = vpop.f32.mrb[0].mxu0
        %v7029 = vadd.f32 0.0, %v7028
        %v7030 = vpop.f32.mrb[0].mxu0
        %v7031 = vpop.f32.mrb[0].mxu0
        %v7032 = vadd.f32 0.0, %v7031
        %v7033 = vpop.f32.mrb[0].mxu0
        %7034 = vmatprep.mubr.bf16.mxu0 0
        %7035 = vmatmul.mubr.bf16.gmra.mrb[0].mxu0 %v6847
        %v7036 = vpop.f32.mrb[0].mxu0
        %v7037 = vadd.f32 0.0, %v7036
        %v7038 = vpop.f32.mrb[0].mxu0
        %v7039 = vpop.f32.mrb[0].mxu0
        %v7040 = vadd.f32 0.0, %v7039
        %v7041 = vpop.f32.mrb[0].mxu0
        %7042 = vmatprep.mubr.bf16.mxu0 0
        %7043 = vmatmul.mubr.bf16.gmra.mrb[0].mxu0 %v6849
        %v7044 = vpop.f32.mrb[0].mxu0
        %v7045 = vadd.f32 0.0, %v7044
        %v7046 = vpop.f32.mrb[0].mxu0
        %v7047 = vpop.f32.mrb[0].mxu0
        %v7048 = vadd.f32 0.0, %v7047
        %v7049 = vpop.f32.mrb[0].mxu0
        %7050 = vmatprep.mubr.bf16.mxu0 0
        %7051 = vmatmul.mubr.bf16.gmra.mrb[0].mxu0 %v6851
        %v7052 = vpop.f32.mrb[0].mxu0
        %v7053 = vadd.f32 0.0, %v7052
        %v7054 = vpop.f32.mrb[0].mxu0
        %v7055 = vpop.f32.mrb[0].mxu0
        %v7056 = vadd.f32 0.0, %v7055
        %v7057 = vpop.f32.mrb[0].mxu0
        %7058 = vmatprep.mubr.bf16.mxu0 0
        %7059 = vmatmul.mubr.bf16.gmra.mrb[0].mxu0 %v6853
        %v7060 = vpop.f32.mrb[0].mxu0
        %v7061 = vadd.f32 0.0, %v7060
        %v7062 = vpop.f32.mrb[0].mxu0
        %v7063 = vpop.f32.mrb[0].mxu0
        %v7064 = vadd.f32 0.0, %v7063
        %v7065 = vpop.f32.mrb[0].mxu0
        %7066 = vmatprep.mubr.bf16.mxu0 0
        %7067 = vmatmul.mubr.bf16.gmra.mrb[0].mxu0 %v6855
        %v7068 = vpop.f32.mrb[0].mxu0
        %v7069 = vadd.f32 0.0, %v7068
        %v7070 = vpop.f32.mrb[0].mxu0
        %v7071 = vpop.f32.mrb[0].mxu0
        %v7072 = vadd.f32 0.0, %v7071
        %v7073 = vpop.f32.mrb[0].mxu0
        %7074 = vmatprep.mubr.bf16.mxu0 0
        %7075 = vmatmul.mubr.bf16.gmra.mrb[0].mxu0 %v6857
        %v7076 = vpop.f32.mrb[0].mxu0
        %v7077 = vadd.f32 0.0, %v7076
        %v7078 = vpop.f32.mrb[0].mxu0
        %v7079 = vpop.f32.mrb[0].mxu0
        %v7080 = vadd.f32 0.0, %v7079
        %v7081 = vpop.f32.mrb[0].mxu0
        %7082 = vmatprep.mubr.bf16.mxu0 0
        %7083 = vmatmul.mubr.bf16.gmra.mrb[0].mxu0 %v6859
        %v7084 = vpop.f32.mrb[0].mxu0
        %v7085 = vadd.f32 0.0, %v7084
        %v7086 = vpop.f32.mrb[0].mxu0
        %v7087 = vpop.f32.mrb[0].mxu0
        %v7088 = vadd.f32 0.0, %v7087
        %v7089 = vpop.f32.mrb[0].mxu0
        %7090 = vmatprep.mubr.bf16.mxu0 0
        %7091 = vmatmul.mubr.bf16.gmra.mrb[0].mxu0 %v6861
        %v7092 = vpop.f32.mrb[0].mxu0
        %v7093 = vadd.f32 0.0, %v7092
        %v7094 = vpop.f32.mrb[0].mxu0
        %v7095 = vpop.f32.mrb[0].mxu0
        %v7096 = vadd.f32 0.0, %v7095
        %v7097 = vpop.f32.mrb[0].mxu0
        %7098 = vmatprep.mubr.bf16.mxu0 0
        %7099 = vmatmul.mubr.bf16.gmra.mrb[0].mxu0 %v6863
        %v7100 = vpop.f32.mrb[0].mxu0
        %v7101 = vadd.f32 0.0, %v7100
        %v7102 = vpop.f32.mrb[0].mxu0
        %v7103 = vpop.f32.mrb[0].mxu0
        %v7104 = vadd.f32 0.0, %v7103
        %v7105 = vpop.f32.mrb[0].mxu0
        %7106 = vmatprep.mubr.bf16.mxu0 0
        %7107 = vmatmul.mubr.bf16.gmra.mrb[0].mxu0 %v6865
        %v7108 = vpop.f32.mrb[0].mxu0
        %v7109 = vadd.f32 0.0, %v7108
        %v7110 = vpop.f32.mrb[0].mxu0
        %v7111 = vpop.f32.mrb[0].mxu0
        %v7112 = vadd.f32 0.0, %v7111
        %v7113 = vpop.f32.mrb[0].mxu0
        %7114 = vmatprep.mubr.bf16.mxu0 0
        %7115 = vmatmul.mubr.bf16.gmra.mrb[0].mxu0 %v6867
        %v7116 = vpop.f32.mrb[0].mxu0
        %v7117 = vadd.f32 0.0, %v7116
        %v7118 = vpop.f32.mrb[0].mxu0
        %v7119 = vpop.f32.mrb[0].mxu0
        %v7120 = vadd.f32 0.0, %v7119
        %v7121 = vpop.f32.mrb[0].mxu0
        %7122 = vmatprep.mubr.bf16.mxu0 0
        %7123 = vmatmul.mubr.bf16.gmra.mrb[0].mxu0 %v6869
        %v7124 = vpop.f32.mrb[0].mxu0
        %v7125 = vadd.f32 0.0, %v7124
        %v7126 = vpop.f32.mrb[0].mxu0
        %v7127 = vpop.f32.mrb[0].mxu0
        %v7128 = vadd.f32 0.0, %v7127
        %v7129 = vpop.f32.mrb[0].mxu0
        %7130 = vmatprep.mubr.bf16.mxu0 0
        %7131 = vmatmul.mubr.bf16.gmra.mrb[0].mxu0 %v6871
        %v7132 = vpop.f32.mrb[0].mxu0
        %v7133 = vadd.f32 0.0, %v7132
        %v7134 = vpop.f32.mrb[0].mxu0
        %v7135 = vpop.f32.mrb[0].mxu0
        %v7136 = vadd.f32 0.0, %v7135
        %v7137 = vpop.f32.mrb[0].mxu0
        %7138 = vmatprep.mubr.bf16.mxu0 0
        %7139 = vmatmul.mubr.bf16.gmra.mrb[0].mxu0 %v6873
        %v7140 = vpop.f32.mrb[0].mxu0
        %v7141 = vadd.f32 0.0, %v7140
        %v7142 = vpop.f32.mrb[0].mxu0
        %v7143 = vpop.f32.mrb[0].mxu0
        %v7144 = vadd.f32 0.0, %v7143
        %v7145 = vpop.f32.mrb[0].mxu0
        %7146 = vmatprep.mubr.bf16.mxu0 0
        %7147 = vmatmul.mubr.bf16.gmra.mrb[0].mxu0 %v6875
        %v7148 = vpop.f32.mrb[0].mxu0
        %v7149 = vadd.f32 0.0, %v7148
        %v7150 = vpop.f32.mrb[0].mxu0
        %v7151 = vpop.f32.mrb[0].mxu0
        %v7152 = vadd.f32 0.0, %v7151
        %v7153 = vpop.f32.mrb[0].mxu0
        %7154 = vmatprep.mubr.bf16.mxu0 0
        %7155 = vmatmul.mubr.bf16.gmra.mrb[0].mxu0 %v6877
        %v7156 = vpop.f32.mrb[0].mxu0
        %v7157 = vadd.f32 0.0, %v7156
        %v7158 = vpop.f32.mrb[0].mxu0
        %v7159 = vpop.f32.mrb[0].mxu0
        %v7160 = vadd.f32 0.0, %v7159
        %v7161 = vpop.f32.mrb[0].mxu0
        %7162 = vmatprep.mubr.bf16.mxu0 0
        %7163 = vmatmul.mubr.bf16.gmra.mrb[0].mxu0 %v6879
        %v7164 = vpop.f32.mrb[0].mxu0
        %v7165 = vadd.f32 0.0, %v7164
        %v7166 = vpop.f32.mrb[0].mxu0
        %v7167 = vpop.f32.mrb[0].mxu0
        %v7168 = vadd.f32 0.0, %v7167
        %v7169 = vpop.f32.mrb[0].mxu0
        %7170 = vmatprep.mubr.bf16.mxu0 0
        %7171 = vmatmul.mubr.bf16.gmra.mrb[0].mxu0 %v6881
        %v7172 = vpop.f32.mrb[0].mxu0
        %v7173 = vadd.f32 0.0, %v7172
        %v7174 = vpop.f32.mrb[0].mxu0
        %v7175 = vpop.f32.mrb[0].mxu0
        %v7176 = vadd.f32 0.0, %v7175
        %v7177 = vpop.f32.mrb[0].mxu0
        %7178 = vmatprep.mubr.bf16.mxu0 0
        %7179 = vmatmul.mubr.bf16.gmra.mrb[0].mxu0 %v6883
        %v7180 = vpop.f32.mrb[0].mxu0
        %v7181 = vadd.f32 0.0, %v7180
        %v7182 = vpop.f32.mrb[0].mxu0
        %v7183 = vpop.f32.mrb[0].mxu0
        %v7184 = vadd.f32 0.0, %v7183
        %v7185 = vpop.f32.mrb[0].mxu0
        %7186 = vmatprep.mubr.bf16.mxu0 0
        %7187 = vmatmul.mubr.bf16.gmra.mrb[0].mxu0 %v6885
        %v7188 = vpop.f32.mrb[0].mxu0
        %v7189 = vadd.f32 0.0, %v7188
        %v7190 = vpop.f32.mrb[0].mxu0
        %v7191 = vpop.f32.mrb[0].mxu0
        %v7192 = vadd.f32 0.0, %v7191
        %v7193 = vpop.f32.mrb[0].mxu0
        %7194 = vmatprep.mubr.bf16.mxu0 0
        %7195 = vmatmul.mubr.bf16.gmra.mrb[0].mxu0 %v6887
        %v7196 = vpop.f32.mrb[0].mxu0
        %v7197 = vadd.f32 0.0, %v7196
        %v7198 = vpop.f32.mrb[0].mxu0
        %v7199 = vpop.f32.mrb[0].mxu0
        %v7200 = vadd.f32 0.0, %v7199
        %v7201 = vpop.f32.mrb[0].mxu0
        %7202 = vmatprep.mubr.bf16.mxu0 0
        %7203 = vmatmul.mubr.bf16.gmra.mrb[0].mxu0 %v6889
        %v7204 = vpop.f32.mrb[0].mxu0
        %v7205 = vadd.f32 0.0, %v7204
        %v7206 = vpop.f32.mrb[0].mxu0
        %v7207 = vpop.f32.mrb[0].mxu0
        %v7208 = vadd.f32 0.0, %v7207
        %v7209 = vpop.f32.mrb[0].mxu0
        %7210 = vmatprep.mubr.bf16.mxu0 0
        %7211 = vmatmul.mubr.bf16.gmra.mrb[0].mxu0 %v6891
        %v7212 = vpop.f32.mrb[0].mxu0
        %v7213 = vadd.f32 0.0, %v7212
        %v7214 = vpop.f32.mrb[0].mxu0
        %v7215 = vpop.f32.mrb[0].mxu0
        %v7216 = vadd.f32 0.0, %v7215
        %v7217 = vpop.f32.mrb[0].mxu0
        %7218 = vmatprep.mubr.bf16.mxu0 0
        %7219 = vmatmul.mubr.bf16.gmra.mrb[0].mxu0 %v6893
        %v7220 = vpop.f32.mrb[0].mxu0
        %v7221 = vadd.f32 0.0, %v7220
        %v7222 = vpop.f32.mrb[0].mxu0
        %v7223 = vpop.f32.mrb[0].mxu0
        %v7224 = vadd.f32 0.0, %v7223
        %v7225 = vpop.f32.mrb[0].mxu0
        %7226 = vmatprep.mubr.bf16.mxu0 0
        %7227 = vmatmul.mubr.bf16.gmra.mrb[0].mxu0 %v6895
        %v7228 = vpop.f32.mrb[0].mxu0
        %v7229 = vadd.f32 0.0, %v7228
        %v7230 = vpop.f32.mrb[0].mxu0
        %v7231 = vpop.f32.mrb[0].mxu0
        %v7232 = vadd.f32 0.0, %v7231
        %v7233 = vpop.f32.mrb[0].mxu0
        %7234 = vmatprep.mubr.bf16.mxu0 0
        %7235 = vmatmul.mubr.bf16.gmra.mrb[0].mxu0 %v6897
        %v7236 = vpop.f32.mrb[0].mxu0
        %v7237 = vadd.f32 0.0, %v7236
        %v7238 = vpop.f32.mrb[0].mxu0
        %v7239 = vpop.f32.mrb[0].mxu0
        %v7240 = vadd.f32 0.0, %v7239
        %v7241 = vpop.f32.mrb[0].mxu0
        %7242 = vmatprep.mubr.bf16.mxu0 0
        %7243 = vmatmul.mubr.bf16.gmra.mrb[0].mxu0 %v6899
        %v7244 = vpop.f32.mrb[0].mxu0
        %v7245 = vadd.f32 0.0, %v7244
        %v7246 = vpop.f32.mrb[0].mxu0
        %v7247 = vpop.f32.mrb[0].mxu0
        %v7248 = vadd.f32 0.0, %v7247
        %v7249 = vpop.f32.mrb[0].mxu0
        %7250 = vmatprep.mubr.bf16.mxu0 0
        %7251 = vmatmul.mubr.bf16.gmra.mrb[0].mxu0 %v6901
        %v7252 = vpop.f32.mrb[0].mxu0
        %v7253 = vadd.f32 0.0, %v7252
        %v7254 = vpop.f32.mrb[0].mxu0
        %v7255 = vpop.f32.mrb[0].mxu0
        %v7256 = vadd.f32 0.0, %v7255
        %v7257 = vpop.f32.mrb[0].mxu0
        %7258 = vmatprep.mubr.bf16.mxu0 0
        %7259 = vmatmul.mubr.bf16.gmra.mrb[0].mxu0 %v6903
        %v7260 = vpop.f32.mrb[0].mxu0
        %v7261 = vadd.f32 0.0, %v7260
        %v7262 = vpop.f32.mrb[0].mxu0
        %v7263 = vpop.f32.mrb[0].mxu0
        %v7264 = vadd.f32 0.0, %v7263
        %v7265 = vpop.f32.mrb[0].mxu0
        %7266 = vmatprep.mubr.bf16.mxu0 0
        %7267 = vmatmul.mubr.bf16.gmra.mrb[0].mxu0 %v6905
        %v7268 = vpop.f32.mrb[0].mxu0
        %v7269 = vadd.f32 0.0, %v7268
        %v7270 = vpop.f32.mrb[0].mxu0
        %v7271 = vpop.f32.mrb[0].mxu0
        %v7272 = vadd.f32 0.0, %v7271
        %v7273 = vpop.f32.mrb[0].mxu0
        %7274 = vdwg.mxu0
        %v7275 = vld [vmem:[#allocation3] sm:$0xff]
        %v7276 = vld [vmem:[#allocation3 + $0x8] sm:$0xff]
        %v7277 = vld [vmem:[#allocation3 + $0x10] sm:$0xff]
        %v7278 = vld [vmem:[#allocation3 + $0x18] sm:$0xff]
        %v7279 = vld [vmem:[#allocation3 + $0x20] sm:$0xff]
        %v7280 = vld [vmem:[#allocation3 + $0x28] sm:$0xff]
        %v7281 = vld [vmem:[#allocation3 + $0x30] sm:$0xff]
        %v7282 = vld [vmem:[#allocation3 + $0x38] sm:$0xff]
        %v7283 = vld [vmem:[#allocation3 + $0x40] sm:$0xff]
        %v7284 = vld [vmem:[#allocation3 + $0x48] sm:$0xff]
        %v7285 = vld [vmem:[#allocation3 + $0x50] sm:$0xff]
        %v7286 = vld [vmem:[#allocation3 + $0x58] sm:$0xff]
        %v7287 = vld [vmem:[#allocation3 + $0x60] sm:$0xff]
        %v7288 = vld [vmem:[#allocation3 + $0x68] sm:$0xff]
        %v7289 = vld [vmem:[#allocation3 + $0x70] sm:$0xff]
        %v7290 = vld [vmem:[#allocation3 + $0x78] sm:$0xff]
        %v7291 = vld [vmem:[#allocation3 + $0x80] sm:$0xff]
        %v7292 = vld [vmem:[#allocation3 + $0x88] sm:$0xff]
        %v7293 = vld [vmem:[#allocation3 + $0x90] sm:$0xff]
        %v7294 = vld [vmem:[#allocation3 + $0x98] sm:$0xff]
        %v7295 = vld [vmem:[#allocation3 + $0xa0] sm:$0xff]
        %v7296 = vld [vmem:[#allocation3 + $0xa8] sm:$0xff]
        %v7297 = vld [vmem:[#allocation3 + $0xb0] sm:$0xff]
        %v7298 = vld [vmem:[#allocation3 + $0xb8] sm:$0xff]
        %v7299 = vld [vmem:[#allocation3 + $0xc0] sm:$0xff]
        %v7300 = vld [vmem:[#allocation3 + $0xc8] sm:$0xff]
        %v7301 = vld [vmem:[#allocation3 + $0xd0] sm:$0xff]
        %v7302 = vld [vmem:[#allocation3 + $0xd8] sm:$0xff]
        %v7303 = vld [vmem:[#allocation3 + $0xe0] sm:$0xff]
        %v7304 = vld [vmem:[#allocation3 + $0xe8] sm:$0xff]
        %v7305 = vld [vmem:[#allocation3 + $0xf0] sm:$0xff]
        %v7306 = vld [vmem:[#allocation3 + $0xf8] sm:$0xff]
        %v7307 = vld [vmem:[#allocation3 + $0x100] sm:$0xff]
        %v7308 = vld [vmem:[#allocation3 + $0x108] sm:$0xff]
        %v7309 = vld [vmem:[#allocation3 + $0x110] sm:$0xff]
        %v7310 = vld [vmem:[#allocation3 + $0x118] sm:$0xff]
        %v7311 = vld [vmem:[#allocation3 + $0x120] sm:$0xff]
        %v7312 = vld [vmem:[#allocation3 + $0x128] sm:$0xff]
        %v7313 = vld [vmem:[#allocation3 + $0x130] sm:$0xff]
        %v7314 = vld [vmem:[#allocation3 + $0x138] sm:$0xff]
        %v7315 = vld [vmem:[#allocation3 + $0x140] sm:$0xff]
        %v7316 = vld [vmem:[#allocation3 + $0x148] sm:$0xff]
        %v7317 = vld [vmem:[#allocation3 + $0x150] sm:$0xff]
        %v7318 = vld [vmem:[#allocation3 + $0x158] sm:$0xff]
        %v7319 = vld [vmem:[#allocation3 + $0x160] sm:$0xff]
        %v7320 = vld [vmem:[#allocation3 + $0x168] sm:$0xff]
        %v7321 = vld [vmem:[#allocation3 + $0x170] sm:$0xff]
        %v7322 = vld [vmem:[#allocation3 + $0x178] sm:$0xff]
        %v7323 = vld [vmem:[#allocation3 + $0x180] sm:$0xff]
        %v7324 = vld [vmem:[#allocation3 + $0x188] sm:$0xff]
        %v7325 = vld [vmem:[#allocation3 + $0x190] sm:$0xff]
        %v7326 = vld [vmem:[#allocation3 + $0x198] sm:$0xff]
        %v7327 = vld [vmem:[#allocation3 + $0x1a0] sm:$0xff]
        %v7328 = vld [vmem:[#allocation3 + $0x1a8] sm:$0xff]
        %v7329 = vld [vmem:[#allocation3 + $0x1b0] sm:$0xff]
        %v7330 = vld [vmem:[#allocation3 + $0x1b8] sm:$0xff]
        %v7331 = vld [vmem:[#allocation3 + $0x1c0] sm:$0xff]
        %v7332 = vld [vmem:[#allocation3 + $0x1c8] sm:$0xff]
        %v7333 = vld [vmem:[#allocation3 + $0x1d0] sm:$0xff]
        %v7334 = vld [vmem:[#allocation3 + $0x1d8] sm:$0xff]
        %v7335 = vld [vmem:[#allocation3 + $0x1e0] sm:$0xff]
        %v7336 = vld [vmem:[#allocation3 + $0x1e8] sm:$0xff]
        %v7337 = vld [vmem:[#allocation3 + $0x1f0] sm:$0xff]
        %v7338 = vld [vmem:[#allocation3 + $0x1f8] sm:$0xff]
        %v7339 = vadd.f32 %v7275, %v7021
        %v7340 = vadd.f32 %v7276, %v7024
        %v7341 = vadd.f32 %v7277, %v7029
        %v7342 = vadd.f32 %v7278, %v7032
        %v7343 = vadd.f32 %v7279, %v7037
        %v7344 = vadd.f32 %v7280, %v7040
        %v7345 = vadd.f32 %v7281, %v7045
        %v7346 = vadd.f32 %v7282, %v7048
        %v7347 = vadd.f32 %v7283, %v7053
        %v7348 = vadd.f32 %v7284, %v7056
        %v7349 = vadd.f32 %v7285, %v7061
        %v7350 = vadd.f32 %v7286, %v7064
        %v7351 = vadd.f32 %v7287, %v7069
        %v7352 = vadd.f32 %v7288, %v7072
        %v7353 = vadd.f32 %v7289, %v7077
        %v7354 = vadd.f32 %v7290, %v7080
        %v7355 = vadd.f32 %v7291, %v7085
        %v7356 = vadd.f32 %v7292, %v7088
        %v7357 = vadd.f32 %v7293, %v7093
        %v7358 = vadd.f32 %v7294, %v7096
        %v7359 = vadd.f32 %v7295, %v7101
        %v7360 = vadd.f32 %v7296, %v7104
        %v7361 = vadd.f32 %v7297, %v7109
        %v7362 = vadd.f32 %v7298, %v7112
        %v7363 = vadd.f32 %v7299, %v7117
        %v7364 = vadd.f32 %v7300, %v7120
        %v7365 = vadd.f32 %v7301, %v7125
        %v7366 = vadd.f32 %v7302, %v7128
        %v7367 = vadd.f32 %v7303, %v7133
        %v7368 = vadd.f32 %v7304, %v7136
        %v7369 = vadd.f32 %v7305, %v7141
        %v7370 = vadd.f32 %v7306, %v7144
        %v7371 = vadd.f32 %v7307, %v7149
        %v7372 = vadd.f32 %v7308, %v7152
        %v7373 = vadd.f32 %v7309, %v7157
        %v7374 = vadd.f32 %v7310, %v7160
        %v7375 = vadd.f32 %v7311, %v7165
        %v7376 = vadd.f32 %v7312, %v7168
        %v7377 = vadd.f32 %v7313, %v7173
        %v7378 = vadd.f32 %v7314, %v7176
        %v7379 = vadd.f32 %v7315, %v7181
        %v7380 = vadd.f32 %v7316, %v7184
        %v7381 = vadd.f32 %v7317, %v7189
        %v7382 = vadd.f32 %v7318, %v7192
        %v7383 = vadd.f32 %v7319, %v7197
        %v7384 = vadd.f32 %v7320, %v7200
        %v7385 = vadd.f32 %v7321, %v7205
        %v7386 = vadd.f32 %v7322, %v7208
        %v7387 = vadd.f32 %v7323, %v7213
        %v7388 = vadd.f32 %v7324, %v7216
        %v7389 = vadd.f32 %v7325, %v7221
        %v7390 = vadd.f32 %v7326, %v7224
        %v7391 = vadd.f32 %v7327, %v7229
        %v7392 = vadd.f32 %v7328, %v7232
        %v7393 = vadd.f32 %v7329, %v7237
        %v7394 = vadd.f32 %v7330, %v7240
        %v7395 = vadd.f32 %v7331, %v7245
        %v7396 = vadd.f32 %v7332, %v7248
        %v7397 = vadd.f32 %v7333, %v7253
        %v7398 = vadd.f32 %v7334, %v7256
        %v7399 = vadd.f32 %v7335, %v7261
        %v7400 = vadd.f32 %v7336, %v7264
        %v7401 = vadd.f32 %v7337, %v7269
        %v7402 = vadd.f32 %v7338, %v7272
        %7403 = vst [vmem:[#allocation3] sm:$0xff] %v7339
        %7404 = vst [vmem:[#allocation3 + $0x8] sm:$0xff] %v7340
        %7405 = vst [vmem:[#allocation3 + $0x10] sm:$0xff] %v7341
        %7406 = vst [vmem:[#allocation3 + $0x18] sm:$0xff] %v7342
        %7407 = vst [vmem:[#allocation3 + $0x20] sm:$0xff] %v7343
        %7408 = vst [vmem:[#allocation3 + $0x28] sm:$0xff] %v7344
        %7409 = vst [vmem:[#allocation3 + $0x30] sm:$0xff] %v7345
        %7410 = vst [vmem:[#allocation3 + $0x38] sm:$0xff] %v7346
        %7411 = vst [vmem:[#allocation3 + $0x40] sm:$0xff] %v7347
        %7412 = vst [vmem:[#allocation3 + $0x48] sm:$0xff] %v7348
        %7413 = vst [vmem:[#allocation3 + $0x50] sm:$0xff] %v7349
        %7414 = vst [vmem:[#allocation3 + $0x58] sm:$0xff] %v7350
        %7415 = vst [vmem:[#allocation3 + $0x60] sm:$0xff] %v7351
        %7416 = vst [vmem:[#allocation3 + $0x68] sm:$0xff] %v7352
        %7417 = vst [vmem:[#allocation3 + $0x70] sm:$0xff] %v7353
        %7418 = vst [vmem:[#allocation3 + $0x78] sm:$0xff] %v7354
        %7419 = vst [vmem:[#allocation3 + $0x80] sm:$0xff] %v7355
        %7420 = vst [vmem:[#allocation3 + $0x88] sm:$0xff] %v7356
        %7421 = vst [vmem:[#allocation3 + $0x90] sm:$0xff] %v7357
        %7422 = vst [vmem:[#allocation3 + $0x98] sm:$0xff] %v7358
        %7423 = vst [vmem:[#allocation3 + $0xa0] sm:$0xff] %v7359
        %7424 = vst [vmem:[#allocation3 + $0xa8] sm:$0xff] %v7360
        %7425 = vst [vmem:[#allocation3 + $0xb0] sm:$0xff] %v7361
        %7426 = vst [vmem:[#allocation3 + $0xb8] sm:$0xff] %v7362
        %7427 = vst [vmem:[#allocation3 + $0xc0] sm:$0xff] %v7363
        %7428 = vst [vmem:[#allocation3 + $0xc8] sm:$0xff] %v7364
        %7429 = vst [vmem:[#allocation3 + $0xd0] sm:$0xff] %v7365
        %7430 = vst [vmem:[#allocation3 + $0xd8] sm:$0xff] %v7366
        %7431 = vst [vmem:[#allocation3 + $0xe0] sm:$0xff] %v7367
        %7432 = vst [vmem:[#allocation3 + $0xe8] sm:$0xff] %v7368
        %7433 = vst [vmem:[#allocation3 + $0xf0] sm:$0xff] %v7369
        %7434 = vst [vmem:[#allocation3 + $0xf8] sm:$0xff] %v7370
        %7435 = vst [vmem:[#allocation3 + $0x100] sm:$0xff] %v7371
        %7436 = vst [vmem:[#allocation3 + $0x108] sm:$0xff] %v7372
        %7437 = vst [vmem:[#allocation3 + $0x110] sm:$0xff] %v7373
        %7438 = vst [vmem:[#allocation3 + $0x118] sm:$0xff] %v7374
        %7439 = vst [vmem:[#allocation3 + $0x120] sm:$0xff] %v7375
        %7440 = vst [vmem:[#allocation3 + $0x128] sm:$0xff] %v7376
        %7441 = vst [vmem:[#allocation3 + $0x130] sm:$0xff] %v7377
        %7442 = vst [vmem:[#allocation3 + $0x138] sm:$0xff] %v7378
        %7443 = vst [vmem:[#allocation3 + $0x140] sm:$0xff] %v7379
        %7444 = vst [vmem:[#allocation3 + $0x148] sm:$0xff] %v7380
        %7445 = vst [vmem:[#allocation3 + $0x150] sm:$0xff] %v7381
        %7446 = vst [vmem:[#allocation3 + $0x158] sm:$0xff] %v7382
        %7447 = vst [vmem:[#allocation3 + $0x160] sm:$0xff] %v7383
        %7448 = vst [vmem:[#allocation3 + $0x168] sm:$0xff] %v7384
        %7449 = vst [vmem:[#allocation3 + $0x170] sm:$0xff] %v7385
        %7450 = vst [vmem:[#allocation3 + $0x178] sm:$0xff] %v7386
        %7451 = vst [vmem:[#allocation3 + $0x180] sm:$0xff] %v7387
        %7452 = vst [vmem:[#allocation3 + $0x188] sm:$0xff] %v7388
        %7453 = vst [vmem:[#allocation3 + $0x190] sm:$0xff] %v7389
        %7454 = vst [vmem:[#allocation3 + $0x198] sm:$0xff] %v7390
        %7455 = vst [vmem:[#allocation3 + $0x1a0] sm:$0xff] %v7391
        %7456 = vst [vmem:[#allocation3 + $0x1a8] sm:$0xff] %v7392
        %7457 = vst [vmem:[#allocation3 + $0x1b0] sm:$0xff] %v7393
        %7458 = vst [vmem:[#allocation3 + $0x1b8] sm:$0xff] %v7394
        %7459 = vst [vmem:[#allocation3 + $0x1c0] sm:$0xff] %v7395
        %7460 = vst [vmem:[#allocation3 + $0x1c8] sm:$0xff] %v7396
        %7461 = vst [vmem:[#allocation3 + $0x1d0] sm:$0xff] %v7397
        %7462 = vst [vmem:[#allocation3 + $0x1d8] sm:$0xff] %v7398
        %7463 = vst [vmem:[#allocation3 + $0x1e0] sm:$0xff] %v7399
        %7464 = vst [vmem:[#allocation3 + $0x1e8] sm:$0xff] %v7400
        %7465 = vst [vmem:[#allocation3 + $0x1f0] sm:$0xff] %v7401
        %7466 = vst [vmem:[#allocation3 + $0x1f8] sm:$0xff] %v7402
        %v7467 = vld [vmem:[#allocation2 + $0x50] sm:$0xfe]
        %v7468 = vld [vmem:[#allocation2 + $0x58] sm:$0xff]
        %v7469 = vld [vmem:[#allocation2 + $0x60] sm:$0xff]
        %v7470 = vld [vmem:[#allocation2 + $0x68] sm:$0xff]
        %v7471 = vld [vmem:[#allocation2 + $0x70] sm:$0xff]
        %v7472 = vld [vmem:[#allocation2 + $0x78] sm:$0xff]
        %v7473 = vld [vmem:[#allocation2 + $0x80] sm:$0xff]
        %v7474 = vld [vmem:[#allocation2 + $0x88] sm:$0xff]
        %v7475 = vld [vmem:[#allocation2 + $0x90] sm:$0xff]
        %v7476 = vld [vmem:[#allocation2 + $0x98] sm:$0xff]
        %v7477 = vld [vmem:[#allocation2 + $0xa0] sm:$0xff]
        %v7478 = vld [vmem:[#allocation2 + $0xa8] sm:$0xff]
        %v7479 = vld [vmem:[#allocation2 + $0xb0] sm:$0xff]
        %v7480 = vld [vmem:[#allocation2 + $0xb8] sm:$0xff]
        %v7481 = vld [vmem:[#allocation2 + $0xc0] sm:$0xff]
        %v7482 = vld [vmem:[#allocation2 + $0xc8] sm:$0xff]
        %v7483 = vld [vmem:[#allocation2 + $0xd0] sm:$0xff]
        %v7484 = vld [vmem:[#allocation2 + $0xd8] sm:$0xff]
        %v7485 = vld [vmem:[#allocation2 + $0xe0] sm:$0xff]
        %v7486 = vld [vmem:[#allocation2 + $0xe8] sm:$0xff]
        %v7487 = vld [vmem:[#allocation2 + $0xf0] sm:$0xff]
        %v7488 = vld [vmem:[#allocation2 + $0xf8] sm:$0xff]
        %v7489 = vld [vmem:[#allocation2 + $0x100] sm:$0xff]
        %v7490 = vld [vmem:[#allocation2 + $0x108] sm:$0xff]
        %v7491 = vld [vmem:[#allocation2 + $0x110] sm:$0xff]
        %v7492 = vld [vmem:[#allocation2 + $0x118] sm:$0xff]
        %v7493 = vld [vmem:[#allocation2 + $0x120] sm:$0xff]
        %v7494 = vld [vmem:[#allocation2 + $0x128] sm:$0xff]
        %v7495 = vld [vmem:[#allocation2 + $0x130] sm:$0xff]
        %v7496 = vld [vmem:[#allocation2 + $0x138] sm:$0xff]
        %v7497 = vld [vmem:[#allocation2 + $0x140] sm:$0xff]
        %v7498 = vld [vmem:[#allocation2 + $0x148] sm:$0xff]
        %v7499 = vld [vmem:[#allocation2 + $0x150] sm:$0x3]
        %s7500 = scalar_lea.vmem [#allocation12], 512
        %v7501 = vld [vmem:[%s7500] sm:$0xf]
        %v7502 = vld [vmem:[%s7500 + $0x4] sm:$0xf]
        %v7503 = vld [vmem:[%s7500 + $0x8] sm:$0xf]
        %v7504 = vld [vmem:[%s7500 + $0xc] sm:$0xf]
        %v7505 = vld [vmem:[%s7500 + $0x10] sm:$0xf]
        %v7506 = vld [vmem:[%s7500 + $0x14] sm:$0xf]
        %v7507 = vld [vmem:[%s7500 + $0x18] sm:$0xf]
        %v7508 = vld [vmem:[%s7500 + $0x1c] sm:$0xf]
        %v7509 = vld [vmem:[%s7500 + $0x20] sm:$0xf]
        %v7510 = vld [vmem:[%s7500 + $0x24] sm:$0xf]
        %v7511 = vld [vmem:[%s7500 + $0x28] sm:$0xf]
        %v7512 = vld [vmem:[%s7500 + $0x2c] sm:$0xf]
        %v7513 = vld [vmem:[%s7500 + $0x30] sm:$0xf]
        %v7514 = vld [vmem:[%s7500 + $0x34] sm:$0xf]
        %v7515 = vld [vmem:[%s7500 + $0x38] sm:$0xf]
        %v7516 = vld [vmem:[%s7500 + $0x3c] sm:$0xf]
        %vm7517 = vsmask.f32 6400
        %v7519 = vshrl.u32 %v7467, 16
        %v7521 = vrot.slane %v7519, 1
        %v7522 = vshll.u32 %v7467, 16
        %v7524 = vrot.slane %v7522, 2
        %v7525 = vor.u32 %v7521, %v7524
        %v7527 = vshrl.u32 %v7468, 16
        %v7529 = vrot.slane %v7527, 1
        %v7530 = vshll.u32 %v7468, 16
        %v7532 = vrot.slane %v7530, 2
        %v7533 = vor.u32 %v7529, %v7532
        %v7534 = vsel %vm7517, %v7525, %v7533
        %v7536 = vshrl.u32 %v7469, 16
        %v7538 = vrot.slane %v7536, 1
        %v7539 = vshll.u32 %v7469, 16
        %v7541 = vrot.slane %v7539, 2
        %v7542 = vor.u32 %v7538, %v7541
        %v7543 = vsel %vm7517, %v7533, %v7542
        %v7545 = vshrl.u32 %v7470, 16
        %v7547 = vrot.slane %v7545, 1
        %v7548 = vshll.u32 %v7470, 16
        %v7550 = vrot.slane %v7548, 2
        %v7551 = vor.u32 %v7547, %v7550
        %v7552 = vsel %vm7517, %v7542, %v7551
        %v7554 = vshrl.u32 %v7471, 16
        %v7556 = vrot.slane %v7554, 1
        %v7557 = vshll.u32 %v7471, 16
        %v7559 = vrot.slane %v7557, 2
        %v7560 = vor.u32 %v7556, %v7559
        %v7561 = vsel %vm7517, %v7551, %v7560
        %v7563 = vshrl.u32 %v7472, 16
        %v7565 = vrot.slane %v7563, 1
        %v7566 = vshll.u32 %v7472, 16
        %v7568 = vrot.slane %v7566, 2
        %v7569 = vor.u32 %v7565, %v7568
        %v7570 = vsel %vm7517, %v7560, %v7569
        %v7572 = vshrl.u32 %v7473, 16
        %v7574 = vrot.slane %v7572, 1
        %v7575 = vshll.u32 %v7473, 16
        %v7577 = vrot.slane %v7575, 2
        %v7578 = vor.u32 %v7574, %v7577
        %v7579 = vsel %vm7517, %v7569, %v7578
        %v7581 = vshrl.u32 %v7474, 16
        %v7583 = vrot.slane %v7581, 1
        %v7584 = vshll.u32 %v7474, 16
        %v7586 = vrot.slane %v7584, 2
        %v7587 = vor.u32 %v7583, %v7586
        %v7588 = vsel %vm7517, %v7578, %v7587
        %v7590 = vshrl.u32 %v7475, 16
        %v7592 = vrot.slane %v7590, 1
        %v7593 = vshll.u32 %v7475, 16
        %v7595 = vrot.slane %v7593, 2
        %v7596 = vor.u32 %v7592, %v7595
        %v7597 = vsel %vm7517, %v7587, %v7596
        %v7599 = vshrl.u32 %v7476, 16
        %v7601 = vrot.slane %v7599, 1
        %v7602 = vshll.u32 %v7476, 16
        %v7604 = vrot.slane %v7602, 2
        %v7605 = vor.u32 %v7601, %v7604
        %v7606 = vsel %vm7517, %v7596, %v7605
        %v7608 = vshrl.u32 %v7477, 16
        %v7610 = vrot.slane %v7608, 1
        %v7611 = vshll.u32 %v7477, 16
        %v7613 = vrot.slane %v7611, 2
        %v7614 = vor.u32 %v7610, %v7613
        %v7615 = vsel %vm7517, %v7605, %v7614
        %v7617 = vshrl.u32 %v7478, 16
        %v7619 = vrot.slane %v7617, 1
        %v7620 = vshll.u32 %v7478, 16
        %v7622 = vrot.slane %v7620, 2
        %v7623 = vor.u32 %v7619, %v7622
        %v7624 = vsel %vm7517, %v7614, %v7623
        %v7626 = vshrl.u32 %v7479, 16
        %v7628 = vrot.slane %v7626, 1
        %v7629 = vshll.u32 %v7479, 16
        %v7631 = vrot.slane %v7629, 2
        %v7632 = vor.u32 %v7628, %v7631
        %v7633 = vsel %vm7517, %v7623, %v7632
        %v7635 = vshrl.u32 %v7480, 16
        %v7637 = vrot.slane %v7635, 1
        %v7638 = vshll.u32 %v7480, 16
        %v7640 = vrot.slane %v7638, 2
        %v7641 = vor.u32 %v7637, %v7640
        %v7642 = vsel %vm7517, %v7632, %v7641
        %v7644 = vshrl.u32 %v7481, 16
        %v7646 = vrot.slane %v7644, 1
        %v7647 = vshll.u32 %v7481, 16
        %v7649 = vrot.slane %v7647, 2
        %v7650 = vor.u32 %v7646, %v7649
        %v7651 = vsel %vm7517, %v7641, %v7650
        %v7653 = vshrl.u32 %v7482, 16
        %v7655 = vrot.slane %v7653, 1
        %v7656 = vshll.u32 %v7482, 16
        %v7658 = vrot.slane %v7656, 2
        %v7659 = vor.u32 %v7655, %v7658
        %v7660 = vsel %vm7517, %v7650, %v7659
        %v7662 = vshrl.u32 %v7483, 16
        %v7664 = vrot.slane %v7662, 1
        %v7665 = vshll.u32 %v7483, 16
        %v7667 = vrot.slane %v7665, 2
        %v7668 = vor.u32 %v7664, %v7667
        %v7669 = vsel %vm7517, %v7659, %v7668
        %v7671 = vshrl.u32 %v7484, 16
        %v7673 = vrot.slane %v7671, 1
        %v7674 = vshll.u32 %v7484, 16
        %v7676 = vrot.slane %v7674, 2
        %v7677 = vor.u32 %v7673, %v7676
        %v7678 = vsel %vm7517, %v7668, %v7677
        %v7680 = vshrl.u32 %v7485, 16
        %v7682 = vrot.slane %v7680, 1
        %v7683 = vshll.u32 %v7485, 16
        %v7685 = vrot.slane %v7683, 2
        %v7686 = vor.u32 %v7682, %v7685
        %v7687 = vsel %vm7517, %v7677, %v7686
        %v7689 = vshrl.u32 %v7486, 16
        %v7691 = vrot.slane %v7689, 1
        %v7692 = vshll.u32 %v7486, 16
        %v7694 = vrot.slane %v7692, 2
        %v7695 = vor.u32 %v7691, %v7694
        %v7696 = vsel %vm7517, %v7686, %v7695
        %v7698 = vshrl.u32 %v7487, 16
        %v7700 = vrot.slane %v7698, 1
        %v7701 = vshll.u32 %v7487, 16
        %v7703 = vrot.slane %v7701, 2
        %v7704 = vor.u32 %v7700, %v7703
        %v7705 = vsel %vm7517, %v7695, %v7704
        %v7707 = vshrl.u32 %v7488, 16
        %v7709 = vrot.slane %v7707, 1
        %v7710 = vshll.u32 %v7488, 16
        %v7712 = vrot.slane %v7710, 2
        %v7713 = vor.u32 %v7709, %v7712
        %v7714 = vsel %vm7517, %v7704, %v7713
        %v7716 = vshrl.u32 %v7489, 16
        %v7718 = vrot.slane %v7716, 1
        %v7719 = vshll.u32 %v7489, 16
        %v7721 = vrot.slane %v7719, 2
        %v7722 = vor.u32 %v7718, %v7721
        %v7723 = vsel %vm7517, %v7713, %v7722
        %v7725 = vshrl.u32 %v7490, 16
        %v7727 = vrot.slane %v7725, 1
        %v7728 = vshll.u32 %v7490, 16
        %v7730 = vrot.slane %v7728, 2
        %v7731 = vor.u32 %v7727, %v7730
        %v7732 = vsel %vm7517, %v7722, %v7731
        %v7734 = vshrl.u32 %v7491, 16
        %v7736 = vrot.slane %v7734, 1
        %v7737 = vshll.u32 %v7491, 16
        %v7739 = vrot.slane %v7737, 2
        %v7740 = vor.u32 %v7736, %v7739
        %v7741 = vsel %vm7517, %v7731, %v7740
        %v7743 = vshrl.u32 %v7492, 16
        %v7745 = vrot.slane %v7743, 1
        %v7746 = vshll.u32 %v7492, 16
        %v7748 = vrot.slane %v7746, 2
        %v7749 = vor.u32 %v7745, %v7748
        %v7750 = vsel %vm7517, %v7740, %v7749
        %v7752 = vshrl.u32 %v7493, 16
        %v7754 = vrot.slane %v7752, 1
        %v7755 = vshll.u32 %v7493, 16
        %v7757 = vrot.slane %v7755, 2
        %v7758 = vor.u32 %v7754, %v7757
        %v7759 = vsel %vm7517, %v7749, %v7758
        %v7761 = vshrl.u32 %v7494, 16
        %v7763 = vrot.slane %v7761, 1
        %v7764 = vshll.u32 %v7494, 16
        %v7766 = vrot.slane %v7764, 2
        %v7767 = vor.u32 %v7763, %v7766
        %v7768 = vsel %vm7517, %v7758, %v7767
        %v7770 = vshrl.u32 %v7495, 16
        %v7772 = vrot.slane %v7770, 1
        %v7773 = vshll.u32 %v7495, 16
        %v7775 = vrot.slane %v7773, 2
        %v7776 = vor.u32 %v7772, %v7775
        %v7777 = vsel %vm7517, %v7767, %v7776
        %v7779 = vshrl.u32 %v7496, 16
        %v7781 = vrot.slane %v7779, 1
        %v7782 = vshll.u32 %v7496, 16
        %v7784 = vrot.slane %v7782, 2
        %v7785 = vor.u32 %v7781, %v7784
        %v7786 = vsel %vm7517, %v7776, %v7785
        %v7788 = vshrl.u32 %v7497, 16
        %v7790 = vrot.slane %v7788, 1
        %v7791 = vshll.u32 %v7497, 16
        %v7793 = vrot.slane %v7791, 2
        %v7794 = vor.u32 %v7790, %v7793
        %v7795 = vsel %vm7517, %v7785, %v7794
        %v7797 = vshrl.u32 %v7498, 16
        %v7799 = vrot.slane %v7797, 1
        %v7800 = vshll.u32 %v7498, 16
        %v7802 = vrot.slane %v7800, 2
        %v7803 = vor.u32 %v7799, %v7802
        %v7804 = vsel %vm7517, %v7794, %v7803
        %v7806 = vshrl.u32 %v7499, 16
        %v7808 = vrot.slane %v7806, 1
        %v7809 = vshll.u32 %v7499, 16
        %v7811 = vrot.slane %v7809, 2
        %v7812 = vor.u32 %v7808, %v7811
        %v7813 = vsel %vm7517, %v7803, %v7812
        %v7862 = vunpack.c.l.b16 %v7501
        %v7863 = vunpack.c.l.b16 %v7502
        %v7864 = vunpack.c.l.b16 %v7503
        %v7865 = vunpack.c.l.b16 %v7504
        %v7866 = vunpack.c.l.b16 %v7505
        %v7867 = vunpack.c.l.b16 %v7506
        %v7868 = vunpack.c.l.b16 %v7507
        %v7869 = vunpack.c.l.b16 %v7508
        %v7870 = vunpack.c.l.b16 %v7509
        %v7871 = vunpack.c.l.b16 %v7510
        %v7872 = vunpack.c.l.b16 %v7511
        %v7873 = vunpack.c.l.b16 %v7512
        %v7874 = vunpack.c.l.b16 %v7513
        %v7875 = vunpack.c.l.b16 %v7514
        %v7876 = vunpack.c.l.b16 %v7515
        %v7877 = vunpack.c.l.b16 %v7516
        %v7878 = vpack.c.b16 %v7863, %v7862
        %v7879 = vpack.c.b16 %v7865, %v7864
        %v7880 = vpack.c.b16 %v7867, %v7866
        %v7881 = vpack.c.b16 %v7869, %v7868
        %v7882 = vpack.c.b16 %v7871, %v7870
        %v7883 = vpack.c.b16 %v7873, %v7872
        %v7884 = vpack.c.b16 %v7875, %v7874
        %v7885 = vpack.c.b16 %v7877, %v7876
        %7894 = vmatprep.subr.bf16.mxu0 0
        %7895 = vmatpush1.bf16.msra.mxu0 %v7878
        %7896 = vmatprep.subr.bf16.mxu0 0
        %7897 = vmatpush1.bf16.msra.mxu0 %v7879
        %7898 = vmatprep.subr.bf16.mxu0 0
        %7899 = vmatpush1.bf16.msra.mxu0 %v7880
        %7900 = vmatprep.subr.bf16.mxu0 0
        %7901 = vmatpush1.bf16.msra.mxu0 %v7881
        %7902 = vmatprep.subr.bf16.mxu0 0
        %7903 = vmatpush1.bf16.msra.mxu0 %v7882
        %7904 = vmatprep.subr.bf16.mxu0 0
        %7905 = vmatpush1.bf16.msra.mxu0 %v7883
        %7906 = vmatprep.subr.bf16.mxu0 0
        %7907 = vmatpush1.bf16.msra.mxu0 %v7884
        %7908 = vmatprep.subr.bf16.mxu0 0
        %7909 = vmatpush1.bf16.msra.mxu0 %v7885
        %7910 = vmatprep.subr.bf16.mxu0 0
        %7911 = vmatpush1.bf16.msra.mxu0 0
        %7912 = vmatprep.subr.bf16.mxu0 0
        %7913 = vmatpush1.bf16.msra.mxu0 0
        %7914 = vmatprep.subr.bf16.mxu0 0
        %7915 = vmatpush1.bf16.msra.mxu0 0
        %7916 = vmatprep.subr.bf16.mxu0 0
        %7917 = vmatpush1.bf16.msra.mxu0 0
        %7918 = vmatprep.subr.bf16.mxu0 0
        %7919 = vmatpush1.bf16.msra.mxu0 0
        %7920 = vmatprep.subr.bf16.mxu0 0
        %7921 = vmatpush1.bf16.msra.mxu0 0
        %7922 = vmatprep.subr.bf16.mxu0 0
        %7923 = vmatpush1.bf16.msra.mxu0 0
        %7924 = vmatprep.subr.bf16.mxu0 0
        %7925 = vmatpush1.bf16.msra.mxu0 0
        %7926 = vmatprep.mubr.bf16.mxu0 0
        %7927 = vmatmul.mubr.bf16.gmra.mrb[0].mxu0 %v7534
        %v7928 = vpop.f32.mrb[0].mxu0
        %v7929 = vadd.f32 0.0, %v7928
        %v7930 = vpop.f32.mrb[0].mxu0
        %v7931 = vpop.f32.mrb[0].mxu0
        %v7932 = vadd.f32 0.0, %v7931
        %v7933 = vpop.f32.mrb[0].mxu0
        %7934 = vmatprep.mubr.bf16.mxu0 0
        %7935 = vmatmul.mubr.bf16.gmra.mrb[0].mxu0 %v7543
        %v7936 = vpop.f32.mrb[0].mxu0
        %v7937 = vadd.f32 0.0, %v7936
        %v7938 = vpop.f32.mrb[0].mxu0
        %v7939 = vpop.f32.mrb[0].mxu0
        %v7940 = vadd.f32 0.0, %v7939
        %v7941 = vpop.f32.mrb[0].mxu0
        %7942 = vmatprep.mubr.bf16.mxu0 0
        %7943 = vmatmul.mubr.bf16.gmra.mrb[0].mxu0 %v7552
        %v7944 = vpop.f32.mrb[0].mxu0
        %v7945 = vadd.f32 0.0, %v7944
        %v7946 = vpop.f32.mrb[0].mxu0
        %v7947 = vpop.f32.mrb[0].mxu0
        %v7948 = vadd.f32 0.0, %v7947
        %v7949 = vpop.f32.mrb[0].mxu0
        %7950 = vmatprep.mubr.bf16.mxu0 0
        %7951 = vmatmul.mubr.bf16.gmra.mrb[0].mxu0 %v7561
        %v7952 = vpop.f32.mrb[0].mxu0
        %v7953 = vadd.f32 0.0, %v7952
        %v7954 = vpop.f32.mrb[0].mxu0
        %v7955 = vpop.f32.mrb[0].mxu0
        %v7956 = vadd.f32 0.0, %v7955
        %v7957 = vpop.f32.mrb[0].mxu0
        %7958 = vmatprep.mubr.bf16.mxu0 0
        %7959 = vmatmul.mubr.bf16.gmra.mrb[0].mxu0 %v7570
        %v7960 = vpop.f32.mrb[0].mxu0
        %v7961 = vadd.f32 0.0, %v7960
        %v7962 = vpop.f32.mrb[0].mxu0
        %v7963 = vpop.f32.mrb[0].mxu0
        %v7964 = vadd.f32 0.0, %v7963
        %v7965 = vpop.f32.mrb[0].mxu0
        %7966 = vmatprep.mubr.bf16.mxu0 0
        %7967 = vmatmul.mubr.bf16.gmra.mrb[0].mxu0 %v7579
        %v7968 = vpop.f32.mrb[0].mxu0
        %v7969 = vadd.f32 0.0, %v7968
        %v7970 = vpop.f32.mrb[0].mxu0
        %v7971 = vpop.f32.mrb[0].mxu0
        %v7972 = vadd.f32 0.0, %v7971
        %v7973 = vpop.f32.mrb[0].mxu0
        %7974 = vmatprep.mubr.bf16.mxu0 0
        %7975 = vmatmul.mubr.bf16.gmra.mrb[0].mxu0 %v7588
        %v7976 = vpop.f32.mrb[0].mxu0
        %v7977 = vadd.f32 0.0, %v7976
        %v7978 = vpop.f32.mrb[0].mxu0
        %v7979 = vpop.f32.mrb[0].mxu0
        %v7980 = vadd.f32 0.0, %v7979
        %v7981 = vpop.f32.mrb[0].mxu0
        %7982 = vmatprep.mubr.bf16.mxu0 0
        %7983 = vmatmul.mubr.bf16.gmra.mrb[0].mxu0 %v7597
        %v7984 = vpop.f32.mrb[0].mxu0
        %v7985 = vadd.f32 0.0, %v7984
        %v7986 = vpop.f32.mrb[0].mxu0
        %v7987 = vpop.f32.mrb[0].mxu0
        %v7988 = vadd.f32 0.0, %v7987
        %v7989 = vpop.f32.mrb[0].mxu0
        %7990 = vmatprep.mubr.bf16.mxu0 0
        %7991 = vmatmul.mubr.bf16.gmra.mrb[0].mxu0 %v7606
        %v7992 = vpop.f32.mrb[0].mxu0
        %v7993 = vadd.f32 0.0, %v7992
        %v7994 = vpop.f32.mrb[0].mxu0
        %v7995 = vpop.f32.mrb[0].mxu0
        %v7996 = vadd.f32 0.0, %v7995
        %v7997 = vpop.f32.mrb[0].mxu0
        %7998 = vmatprep.mubr.bf16.mxu0 0
        %7999 = vmatmul.mubr.bf16.gmra.mrb[0].mxu0 %v7615
        %v8000 = vpop.f32.mrb[0].mxu0
        %v8001 = vadd.f32 0.0, %v8000
        %v8002 = vpop.f32.mrb[0].mxu0
        %v8003 = vpop.f32.mrb[0].mxu0
        %v8004 = vadd.f32 0.0, %v8003
        %v8005 = vpop.f32.mrb[0].mxu0
        %8006 = vmatprep.mubr.bf16.mxu0 0
        %8007 = vmatmul.mubr.bf16.gmra.mrb[0].mxu0 %v7624
        %v8008 = vpop.f32.mrb[0].mxu0
        %v8009 = vadd.f32 0.0, %v8008
        %v8010 = vpop.f32.mrb[0].mxu0
        %v8011 = vpop.f32.mrb[0].mxu0
        %v8012 = vadd.f32 0.0, %v8011
        %v8013 = vpop.f32.mrb[0].mxu0
        %8014 = vmatprep.mubr.bf16.mxu0 0
        %8015 = vmatmul.mubr.bf16.gmra.mrb[0].mxu0 %v7633
        %v8016 = vpop.f32.mrb[0].mxu0
        %v8017 = vadd.f32 0.0, %v8016
        %v8018 = vpop.f32.mrb[0].mxu0
        %v8019 = vpop.f32.mrb[0].mxu0
        %v8020 = vadd.f32 0.0, %v8019
        %v8021 = vpop.f32.mrb[0].mxu0
        %8022 = vmatprep.mubr.bf16.mxu0 0
        %8023 = vmatmul.mubr.bf16.gmra.mrb[0].mxu0 %v7642
        %v8024 = vpop.f32.mrb[0].mxu0
        %v8025 = vadd.f32 0.0, %v8024
        %v8026 = vpop.f32.mrb[0].mxu0
        %v8027 = vpop.f32.mrb[0].mxu0
        %v8028 = vadd.f32 0.0, %v8027
        %v8029 = vpop.f32.mrb[0].mxu0
        %8030 = vmatprep.mubr.bf16.mxu0 0
        %8031 = vmatmul.mubr.bf16.gmra.mrb[0].mxu0 %v7651
        %v8032 = vpop.f32.mrb[0].mxu0
        %v8033 = vadd.f32 0.0, %v8032
        %v8034 = vpop.f32.mrb[0].mxu0
        %v8035 = vpop.f32.mrb[0].mxu0
        %v8036 = vadd.f32 0.0, %v8035
        %v8037 = vpop.f32.mrb[0].mxu0
        %8038 = vmatprep.mubr.bf16.mxu0 0
        %8039 = vmatmul.mubr.bf16.gmra.mrb[0].mxu0 %v7660
        %v8040 = vpop.f32.mrb[0].mxu0
        %v8041 = vadd.f32 0.0, %v8040
        %v8042 = vpop.f32.mrb[0].mxu0
        %v8043 = vpop.f32.mrb[0].mxu0
        %v8044 = vadd.f32 0.0, %v8043
        %v8045 = vpop.f32.mrb[0].mxu0
        %8046 = vmatprep.mubr.bf16.mxu0 0
        %8047 = vmatmul.mubr.bf16.gmra.mrb[0].mxu0 %v7669
        %v8048 = vpop.f32.mrb[0].mxu0
        %v8049 = vadd.f32 0.0, %v8048
        %v8050 = vpop.f32.mrb[0].mxu0
        %v8051 = vpop.f32.mrb[0].mxu0
        %v8052 = vadd.f32 0.0, %v8051
        %v8053 = vpop.f32.mrb[0].mxu0
        %8054 = vmatprep.mubr.bf16.mxu0 0
        %8055 = vmatmul.mubr.bf16.gmra.mrb[0].mxu0 %v7678
        %v8056 = vpop.f32.mrb[0].mxu0
        %v8057 = vadd.f32 0.0, %v8056
        %v8058 = vpop.f32.mrb[0].mxu0
        %v8059 = vpop.f32.mrb[0].mxu0
        %v8060 = vadd.f32 0.0, %v8059
        %v8061 = vpop.f32.mrb[0].mxu0
        %8062 = vmatprep.mubr.bf16.mxu0 0
        %8063 = vmatmul.mubr.bf16.gmra.mrb[0].mxu0 %v7687
        %v8064 = vpop.f32.mrb[0].mxu0
        %v8065 = vadd.f32 0.0, %v8064
        %v8066 = vpop.f32.mrb[0].mxu0
        %v8067 = vpop.f32.mrb[0].mxu0
        %v8068 = vadd.f32 0.0, %v8067
        %v8069 = vpop.f32.mrb[0].mxu0
        %8070 = vmatprep.mubr.bf16.mxu0 0
        %8071 = vmatmul.mubr.bf16.gmra.mrb[0].mxu0 %v7696
        %v8072 = vpop.f32.mrb[0].mxu0
        %v8073 = vadd.f32 0.0, %v8072
        %v8074 = vpop.f32.mrb[0].mxu0
        %v8075 = vpop.f32.mrb[0].mxu0
        %v8076 = vadd.f32 0.0, %v8075
        %v8077 = vpop.f32.mrb[0].mxu0
        %8078 = vmatprep.mubr.bf16.mxu0 0
        %8079 = vmatmul.mubr.bf16.gmra.mrb[0].mxu0 %v7705
        %v8080 = vpop.f32.mrb[0].mxu0
        %v8081 = vadd.f32 0.0, %v8080
        %v8082 = vpop.f32.mrb[0].mxu0
        %v8083 = vpop.f32.mrb[0].mxu0
        %v8084 = vadd.f32 0.0, %v8083
        %v8085 = vpop.f32.mrb[0].mxu0
        %8086 = vmatprep.mubr.bf16.mxu0 0
        %8087 = vmatmul.mubr.bf16.gmra.mrb[0].mxu0 %v7714
        %v8088 = vpop.f32.mrb[0].mxu0
        %v8089 = vadd.f32 0.0, %v8088
        %v8090 = vpop.f32.mrb[0].mxu0
        %v8091 = vpop.f32.mrb[0].mxu0
        %v8092 = vadd.f32 0.0, %v8091
        %v8093 = vpop.f32.mrb[0].mxu0
        %8094 = vmatprep.mubr.bf16.mxu0 0
        %8095 = vmatmul.mubr.bf16.gmra.mrb[0].mxu0 %v7723
        %v8096 = vpop.f32.mrb[0].mxu0
        %v8097 = vadd.f32 0.0, %v8096
        %v8098 = vpop.f32.mrb[0].mxu0
        %v8099 = vpop.f32.mrb[0].mxu0
        %v8100 = vadd.f32 0.0, %v8099
        %v8101 = vpop.f32.mrb[0].mxu0
        %8102 = vmatprep.mubr.bf16.mxu0 0
        %8103 = vmatmul.mubr.bf16.gmra.mrb[0].mxu0 %v7732
        %v8104 = vpop.f32.mrb[0].mxu0
        %v8105 = vadd.f32 0.0, %v8104
        %v8106 = vpop.f32.mrb[0].mxu0
        %v8107 = vpop.f32.mrb[0].mxu0
        %v8108 = vadd.f32 0.0, %v8107
        %v8109 = vpop.f32.mrb[0].mxu0
        %8110 = vmatprep.mubr.bf16.mxu0 0
        %8111 = vmatmul.mubr.bf16.gmra.mrb[0].mxu0 %v7741
        %v8112 = vpop.f32.mrb[0].mxu0
        %v8113 = vadd.f32 0.0, %v8112
        %v8114 = vpop.f32.mrb[0].mxu0
        %v8115 = vpop.f32.mrb[0].mxu0
        %v8116 = vadd.f32 0.0, %v8115
        %v8117 = vpop.f32.mrb[0].mxu0
        %8118 = vmatprep.mubr.bf16.mxu0 0
        %8119 = vmatmul.mubr.bf16.gmra.mrb[0].mxu0 %v7750
        %v8120 = vpop.f32.mrb[0].mxu0
        %v8121 = vadd.f32 0.0, %v8120
        %v8122 = vpop.f32.mrb[0].mxu0
        %v8123 = vpop.f32.mrb[0].mxu0
        %v8124 = vadd.f32 0.0, %v8123
        %v8125 = vpop.f32.mrb[0].mxu0
        %8126 = vmatprep.mubr.bf16.mxu0 0
        %8127 = vmatmul.mubr.bf16.gmra.mrb[0].mxu0 %v7759
        %v8128 = vpop.f32.mrb[0].mxu0
        %v8129 = vadd.f32 0.0, %v8128
        %v8130 = vpop.f32.mrb[0].mxu0
        %v8131 = vpop.f32.mrb[0].mxu0
        %v8132 = vadd.f32 0.0, %v8131
        %v8133 = vpop.f32.mrb[0].mxu0
        %8134 = vmatprep.mubr.bf16.mxu0 0
        %8135 = vmatmul.mubr.bf16.gmra.mrb[0].mxu0 %v7768
        %v8136 = vpop.f32.mrb[0].mxu0
        %v8137 = vadd.f32 0.0, %v8136
        %v8138 = vpop.f32.mrb[0].mxu0
        %v8139 = vpop.f32.mrb[0].mxu0
        %v8140 = vadd.f32 0.0, %v8139
        %v8141 = vpop.f32.mrb[0].mxu0
        %8142 = vmatprep.mubr.bf16.mxu0 0
        %8143 = vmatmul.mubr.bf16.gmra.mrb[0].mxu0 %v7777
        %v8144 = vpop.f32.mrb[0].mxu0
        %v8145 = vadd.f32 0.0, %v8144
        %v8146 = vpop.f32.mrb[0].mxu0
        %v8147 = vpop.f32.mrb[0].mxu0
        %v8148 = vadd.f32 0.0, %v8147
        %v8149 = vpop.f32.mrb[0].mxu0
        %8150 = vmatprep.mubr.bf16.mxu0 0
        %8151 = vmatmul.mubr.bf16.gmra.mrb[0].mxu0 %v7786
        %v8152 = vpop.f32.mrb[0].mxu0
        %v8153 = vadd.f32 0.0, %v8152
        %v8154 = vpop.f32.mrb[0].mxu0
        %v8155 = vpop.f32.mrb[0].mxu0
        %v8156 = vadd.f32 0.0, %v8155
        %v8157 = vpop.f32.mrb[0].mxu0
        %8158 = vmatprep.mubr.bf16.mxu0 0
        %8159 = vmatmul.mubr.bf16.gmra.mrb[0].mxu0 %v7795
        %v8160 = vpop.f32.mrb[0].mxu0
        %v8161 = vadd.f32 0.0, %v8160
        %v8162 = vpop.f32.mrb[0].mxu0
        %v8163 = vpop.f32.mrb[0].mxu0
        %v8164 = vadd.f32 0.0, %v8163
        %v8165 = vpop.f32.mrb[0].mxu0
        %8166 = vmatprep.mubr.bf16.mxu0 0
        %8167 = vmatmul.mubr.bf16.gmra.mrb[0].mxu0 %v7804
        %v8168 = vpop.f32.mrb[0].mxu0
        %v8169 = vadd.f32 0.0, %v8168
        %v8170 = vpop.f32.mrb[0].mxu0
        %v8171 = vpop.f32.mrb[0].mxu0
        %v8172 = vadd.f32 0.0, %v8171
        %v8173 = vpop.f32.mrb[0].mxu0
        %8174 = vmatprep.mubr.bf16.mxu0 0
        %8175 = vmatmul.mubr.bf16.gmra.mrb[0].mxu0 %v7813
        %v8176 = vpop.f32.mrb[0].mxu0
        %v8177 = vadd.f32 0.0, %v8176
        %v8178 = vpop.f32.mrb[0].mxu0
        %v8179 = vpop.f32.mrb[0].mxu0
        %v8180 = vadd.f32 0.0, %v8179
        %v8181 = vpop.f32.mrb[0].mxu0
        %8182 = vdwg.mxu0
        %v8183 = vld [vmem:[#allocation3] sm:$0xff]
        %v8184 = vld [vmem:[#allocation3 + $0x8] sm:$0xff]
        %v8185 = vld [vmem:[#allocation3 + $0x10] sm:$0xff]
        %v8186 = vld [vmem:[#allocation3 + $0x18] sm:$0xff]
        %v8187 = vld [vmem:[#allocation3 + $0x20] sm:$0xff]
        %v8188 = vld [vmem:[#allocation3 + $0x28] sm:$0xff]
        %v8189 = vld [vmem:[#allocation3 + $0x30] sm:$0xff]
        %v8190 = vld [vmem:[#allocation3 + $0x38] sm:$0xff]
        %v8191 = vld [vmem:[#allocation3 + $0x40] sm:$0xff]
        %v8192 = vld [vmem:[#allocation3 + $0x48] sm:$0xff]
        %v8193 = vld [vmem:[#allocation3 + $0x50] sm:$0xff]
        %v8194 = vld [vmem:[#allocation3 + $0x58] sm:$0xff]
        %v8195 = vld [vmem:[#allocation3 + $0x60] sm:$0xff]
        %v8196 = vld [vmem:[#allocation3 + $0x68] sm:$0xff]
        %v8197 = vld [vmem:[#allocation3 + $0x70] sm:$0xff]
        %v8198 = vld [vmem:[#allocation3 + $0x78] sm:$0xff]
        %v8199 = vld [vmem:[#allocation3 + $0x80] sm:$0xff]
        %v8200 = vld [vmem:[#allocation3 + $0x88] sm:$0xff]
        %v8201 = vld [vmem:[#allocation3 + $0x90] sm:$0xff]
        %v8202 = vld [vmem:[#allocation3 + $0x98] sm:$0xff]
        %v8203 = vld [vmem:[#allocation3 + $0xa0] sm:$0xff]
        %v8204 = vld [vmem:[#allocation3 + $0xa8] sm:$0xff]
        %v8205 = vld [vmem:[#allocation3 + $0xb0] sm:$0xff]
        %v8206 = vld [vmem:[#allocation3 + $0xb8] sm:$0xff]
        %v8207 = vld [vmem:[#allocation3 + $0xc0] sm:$0xff]
        %v8208 = vld [vmem:[#allocation3 + $0xc8] sm:$0xff]
        %v8209 = vld [vmem:[#allocation3 + $0xd0] sm:$0xff]
        %v8210 = vld [vmem:[#allocation3 + $0xd8] sm:$0xff]
        %v8211 = vld [vmem:[#allocation3 + $0xe0] sm:$0xff]
        %v8212 = vld [vmem:[#allocation3 + $0xe8] sm:$0xff]
        %v8213 = vld [vmem:[#allocation3 + $0xf0] sm:$0xff]
        %v8214 = vld [vmem:[#allocation3 + $0xf8] sm:$0xff]
        %v8215 = vld [vmem:[#allocation3 + $0x100] sm:$0xff]
        %v8216 = vld [vmem:[#allocation3 + $0x108] sm:$0xff]
        %v8217 = vld [vmem:[#allocation3 + $0x110] sm:$0xff]
        %v8218 = vld [vmem:[#allocation3 + $0x118] sm:$0xff]
        %v8219 = vld [vmem:[#allocation3 + $0x120] sm:$0xff]
        %v8220 = vld [vmem:[#allocation3 + $0x128] sm:$0xff]
        %v8221 = vld [vmem:[#allocation3 + $0x130] sm:$0xff]
        %v8222 = vld [vmem:[#allocation3 + $0x138] sm:$0xff]
        %v8223 = vld [vmem:[#allocation3 + $0x140] sm:$0xff]
        %v8224 = vld [vmem:[#allocation3 + $0x148] sm:$0xff]
        %v8225 = vld [vmem:[#allocation3 + $0x150] sm:$0xff]
        %v8226 = vld [vmem:[#allocation3 + $0x158] sm:$0xff]
        %v8227 = vld [vmem:[#allocation3 + $0x160] sm:$0xff]
        %v8228 = vld [vmem:[#allocation3 + $0x168] sm:$0xff]
        %v8229 = vld [vmem:[#allocation3 + $0x170] sm:$0xff]
        %v8230 = vld [vmem:[#allocation3 + $0x178] sm:$0xff]
        %v8231 = vld [vmem:[#allocation3 + $0x180] sm:$0xff]
        %v8232 = vld [vmem:[#allocation3 + $0x188] sm:$0xff]
        %v8233 = vld [vmem:[#allocation3 + $0x190] sm:$0xff]
        %v8234 = vld [vmem:[#allocation3 + $0x198] sm:$0xff]
        %v8235 = vld [vmem:[#allocation3 + $0x1a0] sm:$0xff]
        %v8236 = vld [vmem:[#allocation3 + $0x1a8] sm:$0xff]
        %v8237 = vld [vmem:[#allocation3 + $0x1b0] sm:$0xff]
        %v8238 = vld [vmem:[#allocation3 + $0x1b8] sm:$0xff]
        %v8239 = vld [vmem:[#allocation3 + $0x1c0] sm:$0xff]
        %v8240 = vld [vmem:[#allocation3 + $0x1c8] sm:$0xff]
        %v8241 = vld [vmem:[#allocation3 + $0x1d0] sm:$0xff]
        %v8242 = vld [vmem:[#allocation3 + $0x1d8] sm:$0xff]
        %v8243 = vld [vmem:[#allocation3 + $0x1e0] sm:$0xff]
        %v8244 = vld [vmem:[#allocation3 + $0x1e8] sm:$0xff]
        %v8245 = vld [vmem:[#allocation3 + $0x1f0] sm:$0xff]
        %v8246 = vld [vmem:[#allocation3 + $0x1f8] sm:$0xff]
        %v8247 = vadd.f32 %v8183, %v7929
        %v8248 = vadd.f32 %v8184, %v7932
        %v8249 = vadd.f32 %v8185, %v7937
        %v8250 = vadd.f32 %v8186, %v7940
        %v8251 = vadd.f32 %v8187, %v7945
        %v8252 = vadd.f32 %v8188, %v7948
        %v8253 = vadd.f32 %v8189, %v7953
        %v8254 = vadd.f32 %v8190, %v7956
        %v8255 = vadd.f32 %v8191, %v7961
        %v8256 = vadd.f32 %v8192, %v7964
        %v8257 = vadd.f32 %v8193, %v7969
        %v8258 = vadd.f32 %v8194, %v7972
        %v8259 = vadd.f32 %v8195, %v7977
        %v8260 = vadd.f32 %v8196, %v7980
        %v8261 = vadd.f32 %v8197, %v7985
        %v8262 = vadd.f32 %v8198, %v7988
        %v8263 = vadd.f32 %v8199, %v7993
        %v8264 = vadd.f32 %v8200, %v7996
        %v8265 = vadd.f32 %v8201, %v8001
        %v8266 = vadd.f32 %v8202, %v8004
        %v8267 = vadd.f32 %v8203, %v8009
        %v8268 = vadd.f32 %v8204, %v8012
        %v8269 = vadd.f32 %v8205, %v8017
        %v8270 = vadd.f32 %v8206, %v8020
        %v8271 = vadd.f32 %v8207, %v8025
        %v8272 = vadd.f32 %v8208, %v8028
        %v8273 = vadd.f32 %v8209, %v8033
        %v8274 = vadd.f32 %v8210, %v8036
        %v8275 = vadd.f32 %v8211, %v8041
        %v8276 = vadd.f32 %v8212, %v8044
        %v8277 = vadd.f32 %v8213, %v8049
        %v8278 = vadd.f32 %v8214, %v8052
        %v8279 = vadd.f32 %v8215, %v8057
        %v8280 = vadd.f32 %v8216, %v8060
        %v8281 = vadd.f32 %v8217, %v8065
        %v8282 = vadd.f32 %v8218, %v8068
        %v8283 = vadd.f32 %v8219, %v8073
        %v8284 = vadd.f32 %v8220, %v8076
        %v8285 = vadd.f32 %v8221, %v8081
        %v8286 = vadd.f32 %v8222, %v8084
        %v8287 = vadd.f32 %v8223, %v8089
        %v8288 = vadd.f32 %v8224, %v8092
        %v8289 = vadd.f32 %v8225, %v8097
        %v8290 = vadd.f32 %v8226, %v8100
        %v8291 = vadd.f32 %v8227, %v8105
        %v8292 = vadd.f32 %v8228, %v8108
        %v8293 = vadd.f32 %v8229, %v8113
        %v8294 = vadd.f32 %v8230, %v8116
        %v8295 = vadd.f32 %v8231, %v8121
        %v8296 = vadd.f32 %v8232, %v8124
        %v8297 = vadd.f32 %v8233, %v8129
        %v8298 = vadd.f32 %v8234, %v8132
        %v8299 = vadd.f32 %v8235, %v8137
        %v8300 = vadd.f32 %v8236, %v8140
        %v8301 = vadd.f32 %v8237, %v8145
        %v8302 = vadd.f32 %v8238, %v8148
        %v8303 = vadd.f32 %v8239, %v8153
        %v8304 = vadd.f32 %v8240, %v8156
        %v8305 = vadd.f32 %v8241, %v8161
        %v8306 = vadd.f32 %v8242, %v8164
        %v8307 = vadd.f32 %v8243, %v8169
        %v8308 = vadd.f32 %v8244, %v8172
        %v8309 = vadd.f32 %v8245, %v8177
        %v8310 = vadd.f32 %v8246, %v8180
        %8311 = vst [vmem:[#allocation3] sm:$0xff] %v8247
        %8312 = vst [vmem:[#allocation3 + $0x8] sm:$0xff] %v8248
        %8313 = vst [vmem:[#allocation3 + $0x10] sm:$0xff] %v8249
        %8314 = vst [vmem:[#allocation3 + $0x18] sm:$0xff] %v8250
        %8315 = vst [vmem:[#allocation3 + $0x20] sm:$0xff] %v8251
        %8316 = vst [vmem:[#allocation3 + $0x28] sm:$0xff] %v8252
        %8317 = vst [vmem:[#allocation3 + $0x30] sm:$0xff] %v8253
        %8318 = vst [vmem:[#allocation3 + $0x38] sm:$0xff] %v8254
        %8319 = vst [vmem:[#allocation3 + $0x40] sm:$0xff] %v8255
        %8320 = vst [vmem:[#allocation3 + $0x48] sm:$0xff] %v8256
        %8321 = vst [vmem:[#allocation3 + $0x50] sm:$0xff] %v8257
        %8322 = vst [vmem:[#allocation3 + $0x58] sm:$0xff] %v8258
        %8323 = vst [vmem:[#allocation3 + $0x60] sm:$0xff] %v8259
        %8324 = vst [vmem:[#allocation3 + $0x68] sm:$0xff] %v8260
        %8325 = vst [vmem:[#allocation3 + $0x70] sm:$0xff] %v8261
        %8326 = vst [vmem:[#allocation3 + $0x78] sm:$0xff] %v8262
        %8327 = vst [vmem:[#allocation3 + $0x80] sm:$0xff] %v8263
        %8328 = vst [vmem:[#allocation3 + $0x88] sm:$0xff] %v8264
        %8329 = vst [vmem:[#allocation3 + $0x90] sm:$0xff] %v8265
        %8330 = vst [vmem:[#allocation3 + $0x98] sm:$0xff] %v8266
        %8331 = vst [vmem:[#allocation3 + $0xa0] sm:$0xff] %v8267
        %8332 = vst [vmem:[#allocation3 + $0xa8] sm:$0xff] %v8268
        %8333 = vst [vmem:[#allocation3 + $0xb0] sm:$0xff] %v8269
        %8334 = vst [vmem:[#allocation3 + $0xb8] sm:$0xff] %v8270
        %8335 = vst [vmem:[#allocation3 + $0xc0] sm:$0xff] %v8271
        %8336 = vst [vmem:[#allocation3 + $0xc8] sm:$0xff] %v8272
        %8337 = vst [vmem:[#allocation3 + $0xd0] sm:$0xff] %v8273
        %8338 = vst [vmem:[#allocation3 + $0xd8] sm:$0xff] %v8274
        %8339 = vst [vmem:[#allocation3 + $0xe0] sm:$0xff] %v8275
        %8340 = vst [vmem:[#allocation3 + $0xe8] sm:$0xff] %v8276
        %8341 = vst [vmem:[#allocation3 + $0xf0] sm:$0xff] %v8277
        %8342 = vst [vmem:[#allocation3 + $0xf8] sm:$0xff] %v8278
        %8343 = vst [vmem:[#allocation3 + $0x100] sm:$0xff] %v8279
        %8344 = vst [vmem:[#allocation3 + $0x108] sm:$0xff] %v8280
        %8345 = vst [vmem:[#allocation3 + $0x110] sm:$0xff] %v8281
        %8346 = vst [vmem:[#allocation3 + $0x118] sm:$0xff] %v8282
        %8347 = vst [vmem:[#allocation3 + $0x120] sm:$0xff] %v8283
        %8348 = vst [vmem:[#allocation3 + $0x128] sm:$0xff] %v8284
        %8349 = vst [vmem:[#allocation3 + $0x130] sm:$0xff] %v8285
        %8350 = vst [vmem:[#allocation3 + $0x138] sm:$0xff] %v8286
        %8351 = vst [vmem:[#allocation3 + $0x140] sm:$0xff] %v8287
        %8352 = vst [vmem:[#allocation3 + $0x148] sm:$0xff] %v8288
        %8353 = vst [vmem:[#allocation3 + $0x150] sm:$0xff] %v8289
        %8354 = vst [vmem:[#allocation3 + $0x158] sm:$0xff] %v8290
        %8355 = vst [vmem:[#allocation3 + $0x160] sm:$0xff] %v8291
        %8356 = vst [vmem:[#allocation3 + $0x168] sm:$0xff] %v8292
        %8357 = vst [vmem:[#allocation3 + $0x170] sm:$0xff] %v8293
        %8358 = vst [vmem:[#allocation3 + $0x178] sm:$0xff] %v8294
        %8359 = vst [vmem:[#allocation3 + $0x180] sm:$0xff] %v8295
        %8360 = vst [vmem:[#allocation3 + $0x188] sm:$0xff] %v8296
        %8361 = vst [vmem:[#allocation3 + $0x190] sm:$0xff] %v8297
        %8362 = vst [vmem:[#allocation3 + $0x198] sm:$0xff] %v8298
        %8363 = vst [vmem:[#allocation3 + $0x1a0] sm:$0xff] %v8299
        %8364 = vst [vmem:[#allocation3 + $0x1a8] sm:$0xff] %v8300
        %8365 = vst [vmem:[#allocation3 + $0x1b0] sm:$0xff] %v8301
        %8366 = vst [vmem:[#allocation3 + $0x1b8] sm:$0xff] %v8302
        %8367 = vst [vmem:[#allocation3 + $0x1c0] sm:$0xff] %v8303
        %8368 = vst [vmem:[#allocation3 + $0x1c8] sm:$0xff] %v8304
        %8369 = vst [vmem:[#allocation3 + $0x1d0] sm:$0xff] %v8305
        %8370 = vst [vmem:[#allocation3 + $0x1d8] sm:$0xff] %v8306
        %8371 = vst [vmem:[#allocation3 + $0x1e0] sm:$0xff] %v8307
        %8372 = vst [vmem:[#allocation3 + $0x1e8] sm:$0xff] %v8308
        %8373 = vst [vmem:[#allocation3 + $0x1f0] sm:$0xff] %v8309
        %8374 = vst [vmem:[#allocation3 + $0x1f8] sm:$0xff] %v8310
        %v8375 = vld [vmem:[#allocation3] sm:$0xff]
        %v8376 = vld [vmem:[#allocation3 + $0x8] sm:$0xff]
        %v8377 = vld [vmem:[#allocation3 + $0x10] sm:$0xff]
        %v8378 = vld [vmem:[#allocation3 + $0x18] sm:$0xff]
        %v8379 = vld [vmem:[#allocation3 + $0x20] sm:$0xff]
        %v8380 = vld [vmem:[#allocation3 + $0x28] sm:$0xff]
        %v8381 = vld [vmem:[#allocation3 + $0x30] sm:$0xff]
        %v8382 = vld [vmem:[#allocation3 + $0x38] sm:$0xff]
        %v8383 = vld [vmem:[#allocation3 + $0x40] sm:$0xff]
        %v8384 = vld [vmem:[#allocation3 + $0x48] sm:$0xff]
        %v8385 = vld [vmem:[#allocation3 + $0x50] sm:$0xff]
        %v8386 = vld [vmem:[#allocation3 + $0x58] sm:$0xff]
        %v8387 = vld [vmem:[#allocation3 + $0x60] sm:$0xff]
        %v8388 = vld [vmem:[#allocation3 + $0x68] sm:$0xff]
        %v8389 = vld [vmem:[#allocation3 + $0x70] sm:$0xff]
        %v8390 = vld [vmem:[#allocation3 + $0x78] sm:$0xff]
        %v8391 = vld [vmem:[#allocation3 + $0x80] sm:$0xff]
        %v8392 = vld [vmem:[#allocation3 + $0x88] sm:$0xff]
        %v8393 = vld [vmem:[#allocation3 + $0x90] sm:$0xff]
        %v8394 = vld [vmem:[#allocation3 + $0x98] sm:$0xff]
        %v8395 = vld [vmem:[#allocation3 + $0xa0] sm:$0xff]
        %v8396 = vld [vmem:[#allocation3 + $0xa8] sm:$0xff]
        %v8397 = vld [vmem:[#allocation3 + $0xb0] sm:$0xff]
        %v8398 = vld [vmem:[#allocation3 + $0xb8] sm:$0xff]
        %v8399 = vld [vmem:[#allocation3 + $0xc0] sm:$0xff]
        %v8400 = vld [vmem:[#allocation3 + $0xc8] sm:$0xff]
        %v8401 = vld [vmem:[#allocation3 + $0xd0] sm:$0xff]
        %v8402 = vld [vmem:[#allocation3 + $0xd8] sm:$0xff]
        %v8403 = vld [vmem:[#allocation3 + $0xe0] sm:$0xff]
        %v8404 = vld [vmem:[#allocation3 + $0xe8] sm:$0xff]
        %v8405 = vld [vmem:[#allocation3 + $0xf0] sm:$0xff]
        %v8406 = vld [vmem:[#allocation3 + $0xf8] sm:$0xff]
        %v8407 = vld [vmem:[#allocation3 + $0x100] sm:$0xff]
        %v8408 = vld [vmem:[#allocation3 + $0x108] sm:$0xff]
        %v8409 = vld [vmem:[#allocation3 + $0x110] sm:$0xff]
        %v8410 = vld [vmem:[#allocation3 + $0x118] sm:$0xff]
        %v8411 = vld [vmem:[#allocation3 + $0x120] sm:$0xff]
        %v8412 = vld [vmem:[#allocation3 + $0x128] sm:$0xff]
        %v8413 = vld [vmem:[#allocation3 + $0x130] sm:$0xff]
        %v8414 = vld [vmem:[#allocation3 + $0x138] sm:$0xff]
        %v8415 = vld [vmem:[#allocation3 + $0x140] sm:$0xff]
        %v8416 = vld [vmem:[#allocation3 + $0x148] sm:$0xff]
        %v8417 = vld [vmem:[#allocation3 + $0x150] sm:$0xff]
        %v8418 = vld [vmem:[#allocation3 + $0x158] sm:$0xff]
        %v8419 = vld [vmem:[#allocation3 + $0x160] sm:$0xff]
        %v8420 = vld [vmem:[#allocation3 + $0x168] sm:$0xff]
        %v8421 = vld [vmem:[#allocation3 + $0x170] sm:$0xff]
        %v8422 = vld [vmem:[#allocation3 + $0x178] sm:$0xff]
        %v8423 = vld [vmem:[#allocation3 + $0x180] sm:$0xff]
        %v8424 = vld [vmem:[#allocation3 + $0x188] sm:$0xff]
        %v8425 = vld [vmem:[#allocation3 + $0x190] sm:$0xff]
        %v8426 = vld [vmem:[#allocation3 + $0x198] sm:$0xff]
        %v8427 = vld [vmem:[#allocation3 + $0x1a0] sm:$0xff]
        %v8428 = vld [vmem:[#allocation3 + $0x1a8] sm:$0xff]
        %v8429 = vld [vmem:[#allocation3 + $0x1b0] sm:$0xff]
        %v8430 = vld [vmem:[#allocation3 + $0x1b8] sm:$0xff]
        %v8431 = vld [vmem:[#allocation3 + $0x1c0] sm:$0xff]
        %v8432 = vld [vmem:[#allocation3 + $0x1c8] sm:$0xff]
        %v8433 = vld [vmem:[#allocation3 + $0x1d0] sm:$0xff]
        %v8434 = vld [vmem:[#allocation3 + $0x1d8] sm:$0xff]
        %v8435 = vld [vmem:[#allocation3 + $0x1e0] sm:$0xff]
        %v8436 = vld [vmem:[#allocation3 + $0x1e8] sm:$0xff]
        %v8437 = vld [vmem:[#allocation3 + $0x1f0] sm:$0xff]
        %v8438 = vld [vmem:[#allocation3 + $0x1f8] sm:$0xff]
        %v8439 = vld [vmem:[%s768] sm:$0xff]
        %v8440 = vld [vmem:[%s768 + $0x8] sm:$0xff]
        %v8441 = vld [vmem:[%s768 + $0x10] sm:$0xff]
        %v8442 = vld [vmem:[%s768 + $0x18] sm:$0xff]
        %v8443 = vld [vmem:[%s768 + $0x20] sm:$0xff]
        %v8444 = vld [vmem:[%s768 + $0x28] sm:$0xff]
        %v8445 = vld [vmem:[%s768 + $0x30] sm:$0xff]
        %v8446 = vld [vmem:[%s768 + $0x38] sm:$0xff]
        %v8447 = vld [vmem:[%s768 + $0x40] sm:$0xff]
        %v8448 = vld [vmem:[%s768 + $0x48] sm:$0xff]
        %v8449 = vld [vmem:[%s768 + $0x50] sm:$0xff]
        %v8450 = vld [vmem:[%s768 + $0x58] sm:$0xff]
        %v8451 = vld [vmem:[%s768 + $0x60] sm:$0xff]
        %v8452 = vld [vmem:[%s768 + $0x68] sm:$0xff]
        %v8453 = vld [vmem:[%s768 + $0x70] sm:$0xff]
        %v8454 = vld [vmem:[%s768 + $0x78] sm:$0xff]
        %v8455 = vld [vmem:[%s768 + $0x80] sm:$0xff]
        %v8456 = vld [vmem:[%s768 + $0x88] sm:$0xff]
        %v8457 = vld [vmem:[%s768 + $0x90] sm:$0xff]
        %v8458 = vld [vmem:[%s768 + $0x98] sm:$0xff]
        %v8459 = vld [vmem:[%s768 + $0xa0] sm:$0xff]
        %v8460 = vld [vmem:[%s768 + $0xa8] sm:$0xff]
        %v8461 = vld [vmem:[%s768 + $0xb0] sm:$0xff]
        %v8462 = vld [vmem:[%s768 + $0xb8] sm:$0xff]
        %v8463 = vld [vmem:[%s768 + $0xc0] sm:$0xff]
        %v8464 = vld [vmem:[%s768 + $0xc8] sm:$0xff]
        %v8465 = vld [vmem:[%s768 + $0xd0] sm:$0xff]
        %v8466 = vld [vmem:[%s768 + $0xd8] sm:$0xff]
        %v8467 = vld [vmem:[%s768 + $0xe0] sm:$0xff]
        %v8468 = vld [vmem:[%s768 + $0xe8] sm:$0xff]
        %v8469 = vld [vmem:[%s768 + $0xf0] sm:$0xff]
        %v8470 = vld [vmem:[%s768 + $0xf8] sm:$0xff]
        %v8471 = vld [vmem:[%s768 + $0x100] sm:$0xff]
        %v8472 = vld [vmem:[%s768 + $0x108] sm:$0xff]
        %v8473 = vld [vmem:[%s768 + $0x110] sm:$0xff]
        %v8474 = vld [vmem:[%s768 + $0x118] sm:$0xff]
        %v8475 = vld [vmem:[%s768 + $0x120] sm:$0xff]
        %v8476 = vld [vmem:[%s768 + $0x128] sm:$0xff]
        %v8477 = vld [vmem:[%s768 + $0x130] sm:$0xff]
        %v8478 = vld [vmem:[%s768 + $0x138] sm:$0xff]
        %v8479 = vld [vmem:[%s768 + $0x140] sm:$0xff]
        %v8480 = vld [vmem:[%s768 + $0x148] sm:$0xff]
        %v8481 = vld [vmem:[%s768 + $0x150] sm:$0xff]
        %v8482 = vld [vmem:[%s768 + $0x158] sm:$0xff]
        %v8483 = vld [vmem:[%s768 + $0x160] sm:$0xff]
        %v8484 = vld [vmem:[%s768 + $0x168] sm:$0xff]
        %v8485 = vld [vmem:[%s768 + $0x170] sm:$0xff]
        %v8486 = vld [vmem:[%s768 + $0x178] sm:$0xff]
        %v8487 = vld [vmem:[%s768 + $0x180] sm:$0xff]
        %v8488 = vld [vmem:[%s768 + $0x188] sm:$0xff]
        %v8489 = vld [vmem:[%s768 + $0x190] sm:$0xff]
        %v8490 = vld [vmem:[%s768 + $0x198] sm:$0xff]
        %v8491 = vld [vmem:[%s768 + $0x1a0] sm:$0xff]
        %v8492 = vld [vmem:[%s768 + $0x1a8] sm:$0xff]
        %v8493 = vld [vmem:[%s768 + $0x1b0] sm:$0xff]
        %v8494 = vld [vmem:[%s768 + $0x1b8] sm:$0xff]
        %v8495 = vld [vmem:[%s768 + $0x1c0] sm:$0xff]
        %v8496 = vld [vmem:[%s768 + $0x1c8] sm:$0xff]
        %v8497 = vld [vmem:[%s768 + $0x1d0] sm:$0xff]
        %v8498 = vld [vmem:[%s768 + $0x1d8] sm:$0xff]
        %v8499 = vld [vmem:[%s768 + $0x1e0] sm:$0xff]
        %v8500 = vld [vmem:[%s768 + $0x1e8] sm:$0xff]
        %v8501 = vld [vmem:[%s768 + $0x1f0] sm:$0xff]
        %v8502 = vld [vmem:[%s768 + $0x1f8] sm:$0xff]
        %8504 = vset.pattern.permute.xlu0 0
        %8505 = vperm.xlu0 %8504, %v8439
        %v8506 = vpop.permute.xlu0 %8505
        %8509 = vset.pattern.permute.xlu0 0
        %8510 = vperm.xlu0 %8509, %v8440
        %v8511 = vpop.permute.xlu0 %8510
        %8514 = vset.pattern.permute.xlu0 0
        %8515 = vperm.xlu0 %8514, %v8441
        %v8516 = vpop.permute.xlu0 %8515
        %8519 = vset.pattern.permute.xlu0 0
        %8520 = vperm.xlu0 %8519, %v8442
        %v8521 = vpop.permute.xlu0 %8520
        %8524 = vset.pattern.permute.xlu0 0
        %8525 = vperm.xlu0 %8524, %v8443
        %v8526 = vpop.permute.xlu0 %8525
        %8529 = vset.pattern.permute.xlu0 0
        %8530 = vperm.xlu0 %8529, %v8444
        %v8531 = vpop.permute.xlu0 %8530
        %8534 = vset.pattern.permute.xlu0 0
        %8535 = vperm.xlu0 %8534, %v8445
        %v8536 = vpop.permute.xlu0 %8535
        %8539 = vset.pattern.permute.xlu0 0
        %8540 = vperm.xlu0 %8539, %v8446
        %v8541 = vpop.permute.xlu0 %8540
        %8544 = vset.pattern.permute.xlu0 0
        %8545 = vperm.xlu0 %8544, %v8447
        %v8546 = vpop.permute.xlu0 %8545
        %8549 = vset.pattern.permute.xlu0 0
        %8550 = vperm.xlu0 %8549, %v8448
        %v8551 = vpop.permute.xlu0 %8550
        %8554 = vset.pattern.permute.xlu0 0
        %8555 = vperm.xlu0 %8554, %v8449
        %v8556 = vpop.permute.xlu0 %8555
        %8559 = vset.pattern.permute.xlu0 0
        %8560 = vperm.xlu0 %8559, %v8450
        %v8561 = vpop.permute.xlu0 %8560
        %8564 = vset.pattern.permute.xlu0 0
        %8565 = vperm.xlu0 %8564, %v8451
        %v8566 = vpop.permute.xlu0 %8565
        %8569 = vset.pattern.permute.xlu0 0
        %8570 = vperm.xlu0 %8569, %v8452
        %v8571 = vpop.permute.xlu0 %8570
        %8574 = vset.pattern.permute.xlu0 0
        %8575 = vperm.xlu0 %8574, %v8453
        %v8576 = vpop.permute.xlu0 %8575
        %8579 = vset.pattern.permute.xlu0 0
        %8580 = vperm.xlu0 %8579, %v8454
        %v8581 = vpop.permute.xlu0 %8580
        %8584 = vset.pattern.permute.xlu0 0
        %8585 = vperm.xlu0 %8584, %v8455
        %v8586 = vpop.permute.xlu0 %8585
        %8589 = vset.pattern.permute.xlu0 0
        %8590 = vperm.xlu0 %8589, %v8456
        %v8591 = vpop.permute.xlu0 %8590
        %8594 = vset.pattern.permute.xlu0 0
        %8595 = vperm.xlu0 %8594, %v8457
        %v8596 = vpop.permute.xlu0 %8595
        %8599 = vset.pattern.permute.xlu0 0
        %8600 = vperm.xlu0 %8599, %v8458
        %v8601 = vpop.permute.xlu0 %8600
        %8604 = vset.pattern.permute.xlu0 0
        %8605 = vperm.xlu0 %8604, %v8459
        %v8606 = vpop.permute.xlu0 %8605
        %8609 = vset.pattern.permute.xlu0 0
        %8610 = vperm.xlu0 %8609, %v8460
        %v8611 = vpop.permute.xlu0 %8610
        %8614 = vset.pattern.permute.xlu0 0
        %8615 = vperm.xlu0 %8614, %v8461
        %v8616 = vpop.permute.xlu0 %8615
        %8619 = vset.pattern.permute.xlu0 0
        %8620 = vperm.xlu0 %8619, %v8462
        %v8621 = vpop.permute.xlu0 %8620
        %8624 = vset.pattern.permute.xlu0 0
        %8625 = vperm.xlu0 %8624, %v8463
        %v8626 = vpop.permute.xlu0 %8625
        %8629 = vset.pattern.permute.xlu0 0
        %8630 = vperm.xlu0 %8629, %v8464
        %v8631 = vpop.permute.xlu0 %8630
        %8634 = vset.pattern.permute.xlu0 0
        %8635 = vperm.xlu0 %8634, %v8465
        %v8636 = vpop.permute.xlu0 %8635
        %8639 = vset.pattern.permute.xlu0 0
        %8640 = vperm.xlu0 %8639, %v8466
        %v8641 = vpop.permute.xlu0 %8640
        %8644 = vset.pattern.permute.xlu0 0
        %8645 = vperm.xlu0 %8644, %v8467
        %v8646 = vpop.permute.xlu0 %8645
        %8649 = vset.pattern.permute.xlu0 0
        %8650 = vperm.xlu0 %8649, %v8468
        %v8651 = vpop.permute.xlu0 %8650
        %8654 = vset.pattern.permute.xlu0 0
        %8655 = vperm.xlu0 %8654, %v8469
        %v8656 = vpop.permute.xlu0 %8655
        %8659 = vset.pattern.permute.xlu0 0
        %8660 = vperm.xlu0 %8659, %v8470
        %v8661 = vpop.permute.xlu0 %8660
        %8664 = vset.pattern.permute.xlu0 0
        %8665 = vperm.xlu0 %8664, %v8471
        %v8666 = vpop.permute.xlu0 %8665
        %8669 = vset.pattern.permute.xlu0 0
        %8670 = vperm.xlu0 %8669, %v8472
        %v8671 = vpop.permute.xlu0 %8670
        %8674 = vset.pattern.permute.xlu0 0
        %8675 = vperm.xlu0 %8674, %v8473
        %v8676 = vpop.permute.xlu0 %8675
        %8679 = vset.pattern.permute.xlu0 0
        %8680 = vperm.xlu0 %8679, %v8474
        %v8681 = vpop.permute.xlu0 %8680
        %8684 = vset.pattern.permute.xlu0 0
        %8685 = vperm.xlu0 %8684, %v8475
        %v8686 = vpop.permute.xlu0 %8685
        %8689 = vset.pattern.permute.xlu0 0
        %8690 = vperm.xlu0 %8689, %v8476
        %v8691 = vpop.permute.xlu0 %8690
        %8694 = vset.pattern.permute.xlu0 0
        %8695 = vperm.xlu0 %8694, %v8477
        %v8696 = vpop.permute.xlu0 %8695
        %8699 = vset.pattern.permute.xlu0 0
        %8700 = vperm.xlu0 %8699, %v8478
        %v8701 = vpop.permute.xlu0 %8700
        %8704 = vset.pattern.permute.xlu0 0
        %8705 = vperm.xlu0 %8704, %v8479
        %v8706 = vpop.permute.xlu0 %8705
        %8709 = vset.pattern.permute.xlu0 0
        %8710 = vperm.xlu0 %8709, %v8480
        %v8711 = vpop.permute.xlu0 %8710
        %8714 = vset.pattern.permute.xlu0 0
        %8715 = vperm.xlu0 %8714, %v8481
        %v8716 = vpop.permute.xlu0 %8715
        %8719 = vset.pattern.permute.xlu0 0
        %8720 = vperm.xlu0 %8719, %v8482
        %v8721 = vpop.permute.xlu0 %8720
        %8724 = vset.pattern.permute.xlu0 0
        %8725 = vperm.xlu0 %8724, %v8483
        %v8726 = vpop.permute.xlu0 %8725
        %8729 = vset.pattern.permute.xlu0 0
        %8730 = vperm.xlu0 %8729, %v8484
        %v8731 = vpop.permute.xlu0 %8730
        %8734 = vset.pattern.permute.xlu0 0
        %8735 = vperm.xlu0 %8734, %v8485
        %v8736 = vpop.permute.xlu0 %8735
        %8739 = vset.pattern.permute.xlu0 0
        %8740 = vperm.xlu0 %8739, %v8486
        %v8741 = vpop.permute.xlu0 %8740
        %8744 = vset.pattern.permute.xlu0 0
        %8745 = vperm.xlu0 %8744, %v8487
        %v8746 = vpop.permute.xlu0 %8745
        %8749 = vset.pattern.permute.xlu0 0
        %8750 = vperm.xlu0 %8749, %v8488
        %v8751 = vpop.permute.xlu0 %8750
        %8754 = vset.pattern.permute.xlu0 0
        %8755 = vperm.xlu0 %8754, %v8489
        %v8756 = vpop.permute.xlu0 %8755
        %8759 = vset.pattern.permute.xlu0 0
        %8760 = vperm.xlu0 %8759, %v8490
        %v8761 = vpop.permute.xlu0 %8760
        %8764 = vset.pattern.permute.xlu0 0
        %8765 = vperm.xlu0 %8764, %v8491
        %v8766 = vpop.permute.xlu0 %8765
        %8769 = vset.pattern.permute.xlu0 0
        %8770 = vperm.xlu0 %8769, %v8492
        %v8771 = vpop.permute.xlu0 %8770
        %8774 = vset.pattern.permute.xlu0 0
        %8775 = vperm.xlu0 %8774, %v8493
        %v8776 = vpop.permute.xlu0 %8775
        %8779 = vset.pattern.permute.xlu0 0
        %8780 = vperm.xlu0 %8779, %v8494
        %v8781 = vpop.permute.xlu0 %8780
        %8784 = vset.pattern.permute.xlu0 0
        %8785 = vperm.xlu0 %8784, %v8495
        %v8786 = vpop.permute.xlu0 %8785
        %8789 = vset.pattern.permute.xlu0 0
        %8790 = vperm.xlu0 %8789, %v8496
        %v8791 = vpop.permute.xlu0 %8790
        %8794 = vset.pattern.permute.xlu0 0
        %8795 = vperm.xlu0 %8794, %v8497
        %v8796 = vpop.permute.xlu0 %8795
        %8799 = vset.pattern.permute.xlu0 0
        %8800 = vperm.xlu0 %8799, %v8498
        %v8801 = vpop.permute.xlu0 %8800
        %8804 = vset.pattern.permute.xlu0 0
        %8805 = vperm.xlu0 %8804, %v8499
        %v8806 = vpop.permute.xlu0 %8805
        %8809 = vset.pattern.permute.xlu0 0
        %8810 = vperm.xlu0 %8809, %v8500
        %v8811 = vpop.permute.xlu0 %8810
        %8814 = vset.pattern.permute.xlu0 0
        %8815 = vperm.xlu0 %8814, %v8501
        %v8816 = vpop.permute.xlu0 %8815
        %8819 = vset.pattern.permute.xlu0 0
        %8820 = vperm.xlu0 %8819, %v8502
        %v8821 = vpop.permute.xlu0 %8820
        %v8823 = vmul.f32 %v8375, %v8506
        %v8824 = vmul.f32 %v8376, %v8511
        %v8825 = vmul.f32 %v8377, %v8516
        %v8826 = vmul.f32 %v8378, %v8521
        %v8827 = vmul.f32 %v8379, %v8526
        %v8828 = vmul.f32 %v8380, %v8531
        %v8829 = vmul.f32 %v8381, %v8536
        %v8830 = vmul.f32 %v8382, %v8541
        %v8831 = vmul.f32 %v8383, %v8546
        %v8832 = vmul.f32 %v8384, %v8551
        %v8833 = vmul.f32 %v8385, %v8556
        %v8834 = vmul.f32 %v8386, %v8561
        %v8835 = vmul.f32 %v8387, %v8566
        %v8836 = vmul.f32 %v8388, %v8571
        %v8837 = vmul.f32 %v8389, %v8576
        %v8838 = vmul.f32 %v8390, %v8581
        %v8839 = vmul.f32 %v8391, %v8586
        %v8840 = vmul.f32 %v8392, %v8591
        %v8841 = vmul.f32 %v8393, %v8596
        %v8842 = vmul.f32 %v8394, %v8601
        %v8843 = vmul.f32 %v8395, %v8606
        %v8844 = vmul.f32 %v8396, %v8611
        %v8845 = vmul.f32 %v8397, %v8616
        %v8846 = vmul.f32 %v8398, %v8621
        %v8847 = vmul.f32 %v8399, %v8626
        %v8848 = vmul.f32 %v8400, %v8631
        %v8849 = vmul.f32 %v8401, %v8636
        %v8850 = vmul.f32 %v8402, %v8641
        %v8851 = vmul.f32 %v8403, %v8646
        %v8852 = vmul.f32 %v8404, %v8651
        %v8853 = vmul.f32 %v8405, %v8656
        %v8854 = vmul.f32 %v8406, %v8661
        %v8855 = vmul.f32 %v8407, %v8666
        %v8856 = vmul.f32 %v8408, %v8671
        %v8857 = vmul.f32 %v8409, %v8676
        %v8858 = vmul.f32 %v8410, %v8681
        %v8859 = vmul.f32 %v8411, %v8686
        %v8860 = vmul.f32 %v8412, %v8691
        %v8861 = vmul.f32 %v8413, %v8696
        %v8862 = vmul.f32 %v8414, %v8701
        %v8863 = vmul.f32 %v8415, %v8706
        %v8864 = vmul.f32 %v8416, %v8711
        %v8865 = vmul.f32 %v8417, %v8716
        %v8866 = vmul.f32 %v8418, %v8721
        %v8867 = vmul.f32 %v8419, %v8726
        %v8868 = vmul.f32 %v8420, %v8731
        %v8869 = vmul.f32 %v8421, %v8736
        %v8870 = vmul.f32 %v8422, %v8741
        %v8871 = vmul.f32 %v8423, %v8746
        %v8872 = vmul.f32 %v8424, %v8751
        %v8873 = vmul.f32 %v8425, %v8756
        %v8874 = vmul.f32 %v8426, %v8761
        %v8875 = vmul.f32 %v8427, %v8766
        %v8876 = vmul.f32 %v8428, %v8771
        %v8877 = vmul.f32 %v8429, %v8776
        %v8878 = vmul.f32 %v8430, %v8781
        %v8879 = vmul.f32 %v8431, %v8786
        %v8880 = vmul.f32 %v8432, %v8791
        %v8881 = vmul.f32 %v8433, %v8796
        %v8882 = vmul.f32 %v8434, %v8801
        %v8883 = vmul.f32 %v8435, %v8806
        %v8884 = vmul.f32 %v8436, %v8811
        %v8885 = vmul.f32 %v8437, %v8816
        %v8886 = vmul.f32 %v8438, %v8821
        %v8887 = vpack.c.bf16 %v8824, %v8823
        %v8888 = vpack.c.bf16 %v8826, %v8825
        %v8889 = vpack.c.bf16 %v8828, %v8827
        %v8890 = vpack.c.bf16 %v8830, %v8829
        %v8891 = vpack.c.bf16 %v8832, %v8831
        %v8892 = vpack.c.bf16 %v8834, %v8833
        %v8893 = vpack.c.bf16 %v8836, %v8835
        %v8894 = vpack.c.bf16 %v8838, %v8837
        %v8895 = vpack.c.bf16 %v8840, %v8839
        %v8896 = vpack.c.bf16 %v8842, %v8841
        %v8897 = vpack.c.bf16 %v8844, %v8843
        %v8898 = vpack.c.bf16 %v8846, %v8845
        %v8899 = vpack.c.bf16 %v8848, %v8847
        %v8900 = vpack.c.bf16 %v8850, %v8849
        %v8901 = vpack.c.bf16 %v8852, %v8851
        %v8902 = vpack.c.bf16 %v8854, %v8853
        %v8903 = vpack.c.bf16 %v8856, %v8855
        %v8904 = vpack.c.bf16 %v8858, %v8857
        %v8905 = vpack.c.bf16 %v8860, %v8859
        %v8906 = vpack.c.bf16 %v8862, %v8861
        %v8907 = vpack.c.bf16 %v8864, %v8863
        %v8908 = vpack.c.bf16 %v8866, %v8865
        %v8909 = vpack.c.bf16 %v8868, %v8867
        %v8910 = vpack.c.bf16 %v8870, %v8869
        %v8911 = vpack.c.bf16 %v8872, %v8871
        %v8912 = vpack.c.bf16 %v8874, %v8873
        %v8913 = vpack.c.bf16 %v8876, %v8875
        %v8914 = vpack.c.bf16 %v8878, %v8877
        %v8915 = vpack.c.bf16 %v8880, %v8879
        %v8916 = vpack.c.bf16 %v8882, %v8881
        %v8917 = vpack.c.bf16 %v8884, %v8883
        %v8918 = vpack.c.bf16 %v8886, %v8885
        %v8951 = vunpack.c.l.b16 %v8887
        %v8952 = vunpack.c.h.b16 %v8887
        %v8953 = vunpack.c.l.b16 %v8888
        %v8954 = vunpack.c.h.b16 %v8888
        %v8955 = vunpack.c.l.b16 %v8889
        %v8956 = vunpack.c.h.b16 %v8889
        %v8957 = vunpack.c.l.b16 %v8890
        %v8958 = vunpack.c.h.b16 %v8890
        %v8959 = vunpack.c.l.b16 %v8891
        %v8960 = vunpack.c.h.b16 %v8891
        %v8961 = vunpack.c.l.b16 %v8892
        %v8962 = vunpack.c.h.b16 %v8892
        %v8963 = vunpack.c.l.b16 %v8893
        %v8964 = vunpack.c.h.b16 %v8893
        %v8965 = vunpack.c.l.b16 %v8894
        %v8966 = vunpack.c.h.b16 %v8894
        %v8967 = vunpack.c.l.b16 %v8895
        %v8968 = vunpack.c.h.b16 %v8895
        %v8969 = vunpack.c.l.b16 %v8896
        %v8970 = vunpack.c.h.b16 %v8896
        %v8971 = vunpack.c.l.b16 %v8897
        %v8972 = vunpack.c.h.b16 %v8897
        %v8973 = vunpack.c.l.b16 %v8898
        %v8974 = vunpack.c.h.b16 %v8898
        %v8975 = vunpack.c.l.b16 %v8899
        %v8976 = vunpack.c.h.b16 %v8899
        %v8977 = vunpack.c.l.b16 %v8900
        %v8978 = vunpack.c.h.b16 %v8900
        %v8979 = vunpack.c.l.b16 %v8901
        %v8980 = vunpack.c.h.b16 %v8901
        %v8981 = vunpack.c.l.b16 %v8902
        %v8982 = vunpack.c.h.b16 %v8902
        %v8983 = vunpack.c.l.b16 %v8903
        %v8984 = vunpack.c.h.b16 %v8903
        %v8985 = vunpack.c.l.b16 %v8904
        %v8986 = vunpack.c.h.b16 %v8904
        %v8987 = vunpack.c.l.b16 %v8905
        %v8988 = vunpack.c.h.b16 %v8905
        %v8989 = vunpack.c.l.b16 %v8906
        %v8990 = vunpack.c.h.b16 %v8906
        %v8991 = vunpack.c.l.b16 %v8907
        %v8992 = vunpack.c.h.b16 %v8907
        %v8993 = vunpack.c.l.b16 %v8908
        %v8994 = vunpack.c.h.b16 %v8908
        %v8995 = vunpack.c.l.b16 %v8909
        %v8996 = vunpack.c.h.b16 %v8909
        %v8997 = vunpack.c.l.b16 %v8910
        %v8998 = vunpack.c.h.b16 %v8910
        %v8999 = vunpack.c.l.b16 %v8911
        %v9000 = vunpack.c.h.b16 %v8911
        %v9001 = vunpack.c.l.b16 %v8912
        %v9002 = vunpack.c.h.b16 %v8912
        %v9003 = vunpack.c.l.b16 %v8913
        %v9004 = vunpack.c.h.b16 %v8913
        %v9005 = vunpack.c.l.b16 %v8914
        %v9006 = vunpack.c.h.b16 %v8914
        %v9007 = vunpack.c.l.b16 %v8915
        %v9008 = vunpack.c.h.b16 %v8915
        %v9009 = vunpack.c.l.b16 %v8916
        %v9010 = vunpack.c.h.b16 %v8916
        %v9011 = vunpack.c.l.b16 %v8917
        %v9012 = vunpack.c.h.b16 %v8917
        %v9013 = vunpack.c.l.b16 %v8918
        %v9014 = vunpack.c.h.b16 %v8918
        %v9015 = vpack.c.b16 %v8951, %v8951
        %v9016 = vpack.c.b16 %v8952, %v8952
        %v9017 = vpack.c.b16 %v8953, %v8953
        %v9018 = vpack.c.b16 %v8954, %v8954
        %v9019 = vpack.c.b16 %v8955, %v8955
        %v9020 = vpack.c.b16 %v8956, %v8956
        %v9021 = vpack.c.b16 %v8957, %v8957
        %v9022 = vpack.c.b16 %v8958, %v8958
        %v9023 = vpack.c.b16 %v8959, %v8959
        %v9024 = vpack.c.b16 %v8960, %v8960
        %v9025 = vpack.c.b16 %v8961, %v8961
        %v9026 = vpack.c.b16 %v8962, %v8962
        %v9027 = vpack.c.b16 %v8963, %v8963
        %v9028 = vpack.c.b16 %v8964, %v8964
        %v9029 = vpack.c.b16 %v8965, %v8965
        %v9030 = vpack.c.b16 %v8966, %v8966
        %v9031 = vpack.c.b16 %v8967, %v8967
        %v9032 = vpack.c.b16 %v8968, %v8968
        %v9033 = vpack.c.b16 %v8969, %v8969
        %v9034 = vpack.c.b16 %v8970, %v8970
        %v9035 = vpack.c.b16 %v8971, %v8971
        %v9036 = vpack.c.b16 %v8972, %v8972
        %v9037 = vpack.c.b16 %v8973, %v8973
        %v9038 = vpack.c.b16 %v8974, %v8974
        %v9039 = vpack.c.b16 %v8975, %v8975
        %v9040 = vpack.c.b16 %v8976, %v8976
        %v9041 = vpack.c.b16 %v8977, %v8977
        %v9042 = vpack.c.b16 %v8978, %v8978
        %v9043 = vpack.c.b16 %v8979, %v8979
        %v9044 = vpack.c.b16 %v8980, %v8980
        %v9045 = vpack.c.b16 %v8981, %v8981
        %v9046 = vpack.c.b16 %v8982, %v8982
        %v9047 = vpack.c.b16 %v8983, %v8983
        %v9048 = vpack.c.b16 %v8984, %v8984
        %v9049 = vpack.c.b16 %v8985, %v8985
        %v9050 = vpack.c.b16 %v8986, %v8986
        %v9051 = vpack.c.b16 %v8987, %v8987
        %v9052 = vpack.c.b16 %v8988, %v8988
        %v9053 = vpack.c.b16 %v8989, %v8989
        %v9054 = vpack.c.b16 %v8990, %v8990
        %v9055 = vpack.c.b16 %v8991, %v8991
        %v9056 = vpack.c.b16 %v8992, %v8992
        %v9057 = vpack.c.b16 %v8993, %v8993
        %v9058 = vpack.c.b16 %v8994, %v8994
        %v9059 = vpack.c.b16 %v8995, %v8995
        %v9060 = vpack.c.b16 %v8996, %v8996
        %v9061 = vpack.c.b16 %v8997, %v8997
        %v9062 = vpack.c.b16 %v8998, %v8998
        %v9063 = vpack.c.b16 %v8999, %v8999
        %v9064 = vpack.c.b16 %v9000, %v9000
        %v9065 = vpack.c.b16 %v9001, %v9001
        %v9066 = vpack.c.b16 %v9002, %v9002
        %v9067 = vpack.c.b16 %v9003, %v9003
        %v9068 = vpack.c.b16 %v9004, %v9004
        %v9069 = vpack.c.b16 %v9005, %v9005
        %v9070 = vpack.c.b16 %v9006, %v9006
        %v9071 = vpack.c.b16 %v9007, %v9007
        %v9072 = vpack.c.b16 %v9008, %v9008
        %v9073 = vpack.c.b16 %v9009, %v9009
        %v9074 = vpack.c.b16 %v9010, %v9010
        %v9075 = vpack.c.b16 %v9011, %v9011
        %v9076 = vpack.c.b16 %v9012, %v9012
        %v9077 = vpack.c.b16 %v9013, %v9013
        %v9078 = vpack.c.b16 %v9014, %v9014
        %9143 = vst [vmem:[%s687] sm:$0xf] %v9015
        %9144 = vst [vmem:[%s687 + $0x4] sm:$0xf] %v9016
        %9145 = vst [vmem:[%s687 + $0x8] sm:$0xf] %v9017
        %9146 = vst [vmem:[%s687 + $0xc] sm:$0xf] %v9018
        %9147 = vst [vmem:[%s687 + $0x10] sm:$0xf] %v9019
        %9148 = vst [vmem:[%s687 + $0x14] sm:$0xf] %v9020
        %9149 = vst [vmem:[%s687 + $0x18] sm:$0xf] %v9021
        %9150 = vst [vmem:[%s687 + $0x1c] sm:$0xf] %v9022
        %9151 = vst [vmem:[%s687 + $0x20] sm:$0xf] %v9023
        %9152 = vst [vmem:[%s687 + $0x24] sm:$0xf] %v9024
        %9153 = vst [vmem:[%s687 + $0x28] sm:$0xf] %v9025
        %9154 = vst [vmem:[%s687 + $0x2c] sm:$0xf] %v9026
        %9155 = vst [vmem:[%s687 + $0x30] sm:$0xf] %v9027
        %9156 = vst [vmem:[%s687 + $0x34] sm:$0xf] %v9028
        %9157 = vst [vmem:[%s687 + $0x38] sm:$0xf] %v9029
        %9158 = vst [vmem:[%s687 + $0x3c] sm:$0xf] %v9030
        %9159 = vst [vmem:[%s687 + $0x40] sm:$0xf] %v9031
        %9160 = vst [vmem:[%s687 + $0x44] sm:$0xf] %v9032
        %9161 = vst [vmem:[%s687 + $0x48] sm:$0xf] %v9033
        %9162 = vst [vmem:[%s687 + $0x4c] sm:$0xf] %v9034
        %9163 = vst [vmem:[%s687 + $0x50] sm:$0xf] %v9035
        %9164 = vst [vmem:[%s687 + $0x54] sm:$0xf] %v9036
        %9165 = vst [vmem:[%s687 + $0x58] sm:$0xf] %v9037
        %9166 = vst [vmem:[%s687 + $0x5c] sm:$0xf] %v9038
        %9167 = vst [vmem:[%s687 + $0x60] sm:$0xf] %v9039
        %9168 = vst [vmem:[%s687 + $0x64] sm:$0xf] %v9040
        %9169 = vst [vmem:[%s687 + $0x68] sm:$0xf] %v9041
        %9170 = vst [vmem:[%s687 + $0x6c] sm:$0xf] %v9042
        %9171 = vst [vmem:[%s687 + $0x70] sm:$0xf] %v9043
        %9172 = vst [vmem:[%s687 + $0x74] sm:$0xf] %v9044
        %9173 = vst [vmem:[%s687 + $0x78] sm:$0xf] %v9045
        %9174 = vst [vmem:[%s687 + $0x7c] sm:$0xf] %v9046
        %9175 = vst [vmem:[%s687 + $0x80] sm:$0xf] %v9047
        %9176 = vst [vmem:[%s687 + $0x84] sm:$0xf] %v9048
        %9177 = vst [vmem:[%s687 + $0x88] sm:$0xf] %v9049
        %9178 = vst [vmem:[%s687 + $0x8c] sm:$0xf] %v9050
        %9179 = vst [vmem:[%s687 + $0x90] sm:$0xf] %v9051
        %9180 = vst [vmem:[%s687 + $0x94] sm:$0xf] %v9052
        %9181 = vst [vmem:[%s687 + $0x98] sm:$0xf] %v9053
        %9182 = vst [vmem:[%s687 + $0x9c] sm:$0xf] %v9054
        %9183 = vst [vmem:[%s687 + $0xa0] sm:$0xf] %v9055
        %9184 = vst [vmem:[%s687 + $0xa4] sm:$0xf] %v9056
        %9185 = vst [vmem:[%s687 + $0xa8] sm:$0xf] %v9057
        %9186 = vst [vmem:[%s687 + $0xac] sm:$0xf] %v9058
        %9187 = vst [vmem:[%s687 + $0xb0] sm:$0xf] %v9059
        %9188 = vst [vmem:[%s687 + $0xb4] sm:$0xf] %v9060
        %9189 = vst [vmem:[%s687 + $0xb8] sm:$0xf] %v9061
        %9190 = vst [vmem:[%s687 + $0xbc] sm:$0xf] %v9062
        %9191 = vst [vmem:[%s687 + $0xc0] sm:$0xf] %v9063
        %9192 = vst [vmem:[%s687 + $0xc4] sm:$0xf] %v9064
        %9193 = vst [vmem:[%s687 + $0xc8] sm:$0xf] %v9065
        %9194 = vst [vmem:[%s687 + $0xcc] sm:$0xf] %v9066
        %9195 = vst [vmem:[%s687 + $0xd0] sm:$0xf] %v9067
        %9196 = vst [vmem:[%s687 + $0xd4] sm:$0xf] %v9068
        %9197 = vst [vmem:[%s687 + $0xd8] sm:$0xf] %v9069
        %9198 = vst [vmem:[%s687 + $0xdc] sm:$0xf] %v9070
        %9199 = vst [vmem:[%s687 + $0xe0] sm:$0xf] %v9071
        %9200 = vst [vmem:[%s687 + $0xe4] sm:$0xf] %v9072
        %9201 = vst [vmem:[%s687 + $0xe8] sm:$0xf] %v9073
        %9202 = vst [vmem:[%s687 + $0xec] sm:$0xf] %v9074
        %9203 = vst [vmem:[%s687 + $0xf0] sm:$0xf] %v9075
        %9204 = vst [vmem:[%s687 + $0xf4] sm:$0xf] %v9076
        %9205 = vst [vmem:[%s687 + $0xf8] sm:$0xf] %v9077
        %9206 = vst [vmem:[%s687 + $0xfc] sm:$0xf] %v9078
        %v9207 = vadd.f32 %v8823, %v8824
        %v9208 = vadd.f32 %v9207, %v8825
        %v9209 = vadd.f32 %v9208, %v8826
        %v9210 = vadd.f32 %v9209, %v8827
        %v9211 = vadd.f32 %v9210, %v8828
        %v9212 = vadd.f32 %v9211, %v8829
        %v9213 = vadd.f32 %v9212, %v8830
        %v9214 = vadd.f32 %v9213, %v8831
        %v9215 = vadd.f32 %v9214, %v8832
        %v9216 = vadd.f32 %v9215, %v8833
        %v9217 = vadd.f32 %v9216, %v8834
        %v9218 = vadd.f32 %v9217, %v8835
        %v9219 = vadd.f32 %v9218, %v8836
        %v9220 = vadd.f32 %v9219, %v8837
        %v9221 = vadd.f32 %v9220, %v8838
        %v9222 = vadd.f32 %v9221, %v8839
        %v9223 = vadd.f32 %v9222, %v8840
        %v9224 = vadd.f32 %v9223, %v8841
        %v9225 = vadd.f32 %v9224, %v8842
        %v9226 = vadd.f32 %v9225, %v8843
        %v9227 = vadd.f32 %v9226, %v8844
        %v9228 = vadd.f32 %v9227, %v8845
        %v9229 = vadd.f32 %v9228, %v8846
        %v9230 = vadd.f32 %v9229, %v8847
        %v9231 = vadd.f32 %v9230, %v8848
        %v9232 = vadd.f32 %v9231, %v8849
        %v9233 = vadd.f32 %v9232, %v8850
        %v9234 = vadd.f32 %v9233, %v8851
        %v9235 = vadd.f32 %v9234, %v8852
        %v9236 = vadd.f32 %v9235, %v8853
        %v9237 = vadd.f32 %v9236, %v8854
        %v9238 = vadd.f32 %v9237, %v8855
        %v9239 = vadd.f32 %v9238, %v8856
        %v9240 = vadd.f32 %v9239, %v8857
        %v9241 = vadd.f32 %v9240, %v8858
        %v9242 = vadd.f32 %v9241, %v8859
        %v9243 = vadd.f32 %v9242, %v8860
        %v9244 = vadd.f32 %v9243, %v8861
        %v9245 = vadd.f32 %v9244, %v8862
        %v9246 = vadd.f32 %v9245, %v8863
        %v9247 = vadd.f32 %v9246, %v8864
        %v9248 = vadd.f32 %v9247, %v8865
        %v9249 = vadd.f32 %v9248, %v8866
        %v9250 = vadd.f32 %v9249, %v8867
        %v9251 = vadd.f32 %v9250, %v8868
        %v9252 = vadd.f32 %v9251, %v8869
        %v9253 = vadd.f32 %v9252, %v8870
        %v9254 = vadd.f32 %v9253, %v8871
        %v9255 = vadd.f32 %v9254, %v8872
        %v9256 = vadd.f32 %v9255, %v8873
        %v9257 = vadd.f32 %v9256, %v8874
        %v9258 = vadd.f32 %v9257, %v8875
        %v9259 = vadd.f32 %v9258, %v8876
        %v9260 = vadd.f32 %v9259, %v8877
        %v9261 = vadd.f32 %v9260, %v8878
        %v9262 = vadd.f32 %v9261, %v8879
        %v9263 = vadd.f32 %v9262, %v8880
        %v9264 = vadd.f32 %v9263, %v8881
        %v9265 = vadd.f32 %v9264, %v8882
        %v9266 = vadd.f32 %v9265, %v8883
        %v9267 = vadd.f32 %v9266, %v8884
        %v9268 = vadd.f32 %v9267, %v8885
        %v9269 = vadd.f32 %v9268, %v8886
        %v9270 = vrot.slane %v9269, 4
        %v9271 = vadd.f32 %v9269, %v9270
        %v9272 = vrot.slane %v9271, 2
        %v9273 = vadd.f32 %v9271, %v9272
        %v9274 = vrot.slane %v9273, 1
        %v9275 = vadd.f32 %v9273, %v9274
        %v9276 = vmul.f32 %v8823, %v8823
        %v9277 = vmul.f32 %v8824, %v8824
        %v9278 = vmul.f32 %v8825, %v8825
        %v9279 = vmul.f32 %v8826, %v8826
        %v9280 = vmul.f32 %v8827, %v8827
        %v9281 = vmul.f32 %v8828, %v8828
        %v9282 = vmul.f32 %v8829, %v8829
        %v9283 = vmul.f32 %v8830, %v8830
        %v9284 = vmul.f32 %v8831, %v8831
        %v9285 = vmul.f32 %v8832, %v8832
        %v9286 = vmul.f32 %v8833, %v8833
        %v9287 = vmul.f32 %v8834, %v8834
        %v9288 = vmul.f32 %v8835, %v8835
        %v9289 = vmul.f32 %v8836, %v8836
        %v9290 = vmul.f32 %v8837, %v8837
        %v9291 = vmul.f32 %v8838, %v8838
        %v9292 = vmul.f32 %v8839, %v8839
        %v9293 = vmul.f32 %v8840, %v8840
        %v9294 = vmul.f32 %v8841, %v8841
        %v9295 = vmul.f32 %v8842, %v8842
        %v9296 = vmul.f32 %v8843, %v8843
        %v9297 = vmul.f32 %v8844, %v8844
        %v9298 = vmul.f32 %v8845, %v8845
        %v9299 = vmul.f32 %v8846, %v8846
        %v9300 = vmul.f32 %v8847, %v8847
        %v9301 = vmul.f32 %v8848, %v8848
        %v9302 = vmul.f32 %v8849, %v8849
        %v9303 = vmul.f32 %v8850, %v8850
        %v9304 = vmul.f32 %v8851, %v8851
        %v9305 = vmul.f32 %v8852, %v8852
        %v9306 = vmul.f32 %v8853, %v8853
        %v9307 = vmul.f32 %v8854, %v8854
        %v9308 = vmul.f32 %v8855, %v8855
        %v9309 = vmul.f32 %v8856, %v8856
        %v9310 = vmul.f32 %v8857, %v8857
        %v9311 = vmul.f32 %v8858, %v8858
        %v9312 = vmul.f32 %v8859, %v8859
        %v9313 = vmul.f32 %v8860, %v8860
        %v9314 = vmul.f32 %v8861, %v8861
        %v9315 = vmul.f32 %v8862, %v8862
        %v9316 = vmul.f32 %v8863, %v8863
        %v9317 = vmul.f32 %v8864, %v8864
        %v9318 = vmul.f32 %v8865, %v8865
        %v9319 = vmul.f32 %v8866, %v8866
        %v9320 = vmul.f32 %v8867, %v8867
        %v9321 = vmul.f32 %v8868, %v8868
        %v9322 = vmul.f32 %v8869, %v8869
        %v9323 = vmul.f32 %v8870, %v8870
        %v9324 = vmul.f32 %v8871, %v8871
        %v9325 = vmul.f32 %v8872, %v8872
        %v9326 = vmul.f32 %v8873, %v8873
        %v9327 = vmul.f32 %v8874, %v8874
        %v9328 = vmul.f32 %v8875, %v8875
        %v9329 = vmul.f32 %v8876, %v8876
        %v9330 = vmul.f32 %v8877, %v8877
        %v9331 = vmul.f32 %v8878, %v8878
        %v9332 = vmul.f32 %v8879, %v8879
        %v9333 = vmul.f32 %v8880, %v8880
        %v9334 = vmul.f32 %v8881, %v8881
        %v9335 = vmul.f32 %v8882, %v8882
        %v9336 = vmul.f32 %v8883, %v8883
        %v9337 = vmul.f32 %v8884, %v8884
        %v9338 = vmul.f32 %v8885, %v8885
        %v9339 = vmul.f32 %v8886, %v8886
        %v9340 = vadd.f32 %v9276, %v9277
        %v9341 = vadd.f32 %v9340, %v9278
        %v9342 = vadd.f32 %v9341, %v9279
        %v9343 = vadd.f32 %v9342, %v9280
        %v9344 = vadd.f32 %v9343, %v9281
        %v9345 = vadd.f32 %v9344, %v9282
        %v9346 = vadd.f32 %v9345, %v9283
        %v9347 = vadd.f32 %v9346, %v9284
        %v9348 = vadd.f32 %v9347, %v9285
        %v9349 = vadd.f32 %v9348, %v9286
        %v9350 = vadd.f32 %v9349, %v9287
        %v9351 = vadd.f32 %v9350, %v9288
        %v9352 = vadd.f32 %v9351, %v9289
        %v9353 = vadd.f32 %v9352, %v9290
        %v9354 = vadd.f32 %v9353, %v9291
        %v9355 = vadd.f32 %v9354, %v9292
        %v9356 = vadd.f32 %v9355, %v9293
        %v9357 = vadd.f32 %v9356, %v9294
        %v9358 = vadd.f32 %v9357, %v9295
        %v9359 = vadd.f32 %v9358, %v9296
        %v9360 = vadd.f32 %v9359, %v9297
        %v9361 = vadd.f32 %v9360, %v9298
        %v9362 = vadd.f32 %v9361, %v9299
        %v9363 = vadd.f32 %v9362, %v9300
        %v9364 = vadd.f32 %v9363, %v9301
        %v9365 = vadd.f32 %v9364, %v9302
        %v9366 = vadd.f32 %v9365, %v9303
        %v9367 = vadd.f32 %v9366, %v9304
        %v9368 = vadd.f32 %v9367, %v9305
        %v9369 = vadd.f32 %v9368, %v9306
        %v9370 = vadd.f32 %v9369, %v9307
        %v9371 = vadd.f32 %v9370, %v9308
        %v9372 = vadd.f32 %v9371, %v9309
        %v9373 = vadd.f32 %v9372, %v9310
        %v9374 = vadd.f32 %v9373, %v9311
        %v9375 = vadd.f32 %v9374, %v9312
        %v9376 = vadd.f32 %v9375, %v9313
        %v9377 = vadd.f32 %v9376, %v9314
        %v9378 = vadd.f32 %v9377, %v9315
        %v9379 = vadd.f32 %v9378, %v9316
        %v9380 = vadd.f32 %v9379, %v9317
        %v9381 = vadd.f32 %v9380, %v9318
        %v9382 = vadd.f32 %v9381, %v9319
        %v9383 = vadd.f32 %v9382, %v9320
        %v9384 = vadd.f32 %v9383, %v9321
        %v9385 = vadd.f32 %v9384, %v9322
        %v9386 = vadd.f32 %v9385, %v9323
        %v9387 = vadd.f32 %v9386, %v9324
        %v9388 = vadd.f32 %v9387, %v9325
        %v9389 = vadd.f32 %v9388, %v9326
        %v9390 = vadd.f32 %v9389, %v9327
        %v9391 = vadd.f32 %v9390, %v9328
        %v9392 = vadd.f32 %v9391, %v9329
        %v9393 = vadd.f32 %v9392, %v9330
        %v9394 = vadd.f32 %v9393, %v9331
        %v9395 = vadd.f32 %v9394, %v9332
        %v9396 = vadd.f32 %v9395, %v9333
        %v9397 = vadd.f32 %v9396, %v9334
        %v9398 = vadd.f32 %v9397, %v9335
        %v9399 = vadd.f32 %v9398, %v9336
        %v9400 = vadd.f32 %v9399, %v9337
        %v9401 = vadd.f32 %v9400, %v9338
        %v9402 = vadd.f32 %v9401, %v9339
        %v9403 = vrot.slane %v9402, 4
        %v9404 = vadd.f32 %v9402, %v9403
        %v9405 = vrot.slane %v9404, 2
        %v9406 = vadd.f32 %v9404, %v9405
        %v9407 = vrot.slane %v9406, 1
        %v9408 = vadd.f32 %v9406, %v9407
        %9409 = vst [vmem:[%s694] sm:$0xff] %v9275
        %9410 = vst [vmem:[%s701] sm:$0xff] %v9408
        %s9411 = sand.u32 %s318, 1
        %s9412 = scalar_lea.sflag [#allocation6], %s9411
        %s9413 = sand.u32 %s318, 1
        %s9414 = smul.addr %s9413, 256
        %s9415 = scalar_lea.vmem [#allocation13], %s9414
        %s9416 = sand.u32 %s37, 1
        %s9417 = scalar_lea.sflag [#allocation15], %s9416
        %s9418 = sand.u32 %s344, 1
        %s9419 = smul.addr %s9418, 8
        %s9420 = scalar_lea.vmem [#allocation14], %s9419
        %s9421 = sand.u32 %s37, 1
        %s9422 = scalar_lea.sflag [#allocation15], %s9421
        %s9423 = sand.u32 %s370, 1
        %s9424 = smul.addr %s9423, 8
        %s9425 = scalar_lea.vmem [#allocation16], %s9424
        // Predicated region
        $region73: #{tpu_custom_call.1} parent=51 // pred_check
          %p9426 = pneg %p328
        $region74: #{tpu_custom_call.1} parent=51 // pred_check_branch
          %9428 = sbr.rel (%p9426) target = $region76
        $region75: #{tpu_custom_call.1} parent=51 // pred_region
          %s9429 = smul.u32 64, %s37
          %s9431 = ssub.s32 4096, 4096
          %9432 = vsyncadd %s9412, %s9431
          %s9433 = smul.addr %s9429, 64
          %s9434 = scalar_lea.hbm %s8, %s9433
          %s9435 = sshll.u32 %s9415, 4
          %s9436 = int_to_ptr.vmem [resolvable:$true] %s9435
          %9441 = dma.vmem_to_hbm [thread:$0]  %s9436, 4096, %s9434, %s9412, 64, 64, 4
        $region76: #{tpu_custom_call.1} parent=51 // pred_fallthru
          _
        // Predicated region
        $region77: #{tpu_custom_call.1} parent=51 // pred_check
          %p9442 = pneg %p354
        $region78: #{tpu_custom_call.1} parent=51 // pred_check_branch
          %9444 = sbr.rel (%p9442) target = $region80
        $region79: #{tpu_custom_call.1} parent=51 // pred_region
          %s9446 = ssub.s32 128, 128
          %9447 = vsyncadd %s9417, %s9446
          %s9448 = smul.addr %s37, 128
          %s9449 = scalar_lea.hbm %s9, %s9448
          %s9451 = sshll.u32 %s9420, 4
          %s9452 = int_to_ptr.vmem [resolvable:$true] %s9451
          %9454 = dma.vmem_to_hbm [thread:$0]  %s9452, 128, %s9449, %s9417
        $region80: #{tpu_custom_call.1} parent=51 // pred_fallthru
          _
        // Predicated region
        $region81: #{tpu_custom_call.1} parent=51 // pred_check
          %p9455 = pneg %p380
        $region82: #{tpu_custom_call.1} parent=51 // pred_check_branch
          %9457 = sbr.rel (%p9455) target = $region84
        $region83: #{tpu_custom_call.1} parent=51 // pred_region
          %s9459 = ssub.s32 128, 128
          %9460 = vsyncadd %s9422, %s9459
          %s9461 = smul.addr %s37, 128
          %s9462 = scalar_lea.hbm %s10, %s9461
          %s9464 = sshll.u32 %s9425, 4
          %s9465 = int_to_ptr.vmem [resolvable:$true] %s9464
          %9467 = dma.vmem_to_hbm [thread:$0]  %s9465, 128, %s9462, %s9422
        $region84: #{tpu_custom_call.1} parent=51 // pred_fallthru
          _
      $region52: #{tpu_custom_call.1} parent=5 // pred_fallthru
        _
      %p9468 = scmp.le.s32.totalorder 2, %s32
      // Predicated region
      $region85: #{tpu_custom_call.1} parent=5 // pred_check
        %p9469 = pneg %p9468
      $region86: #{tpu_custom_call.1} parent=5 // pred_check_branch
        %9471 = sbr.rel (%p9469) target = $region88
      $region87: #{tpu_custom_call.1} parent=5 // pred_region
        %s9472 = ssub.s32 %s32, 2
        // Predicated region
        $region89: #{tpu_custom_call.1} parent=87 // pred_check
          %p9473 = pneg %p334
        $region90: #{tpu_custom_call.1} parent=87 // pred_check_branch
          %9475 = sbr.rel (%p9473) target = $region92
        $region91: #{tpu_custom_call.1} parent=87 // pred_region
          %s9476 = sand.u32 %s319, 1
          %s9477 = scalar_lea.sflag [#allocation6], %s9476
          %s9478 = sand.u32 %s319, 1
          %s9479 = smul.addr %s9478, 256
          %s9480 = scalar_lea.vmem [#allocation13], %s9479
          %9481 = dma.done %s9477, 4096
        $region92: #{tpu_custom_call.1} parent=87 // pred_fallthru
          _
        // Predicated region
        $region93: #{tpu_custom_call.1} parent=87 // pred_check
          %p9482 = pneg %p360
        $region94: #{tpu_custom_call.1} parent=87 // pred_check_branch
          %9484 = sbr.rel (%p9482) target = $region96
        $region95: #{tpu_custom_call.1} parent=87 // pred_region
          %s9485 = sand.u32 %s38, 1
          %s9486 = scalar_lea.sflag [#allocation15], %s9485
          %s9487 = sand.u32 %s345, 1
          %s9488 = smul.addr %s9487, 8
          %s9489 = scalar_lea.vmem [#allocation14], %s9488
          %9490 = dma.done %s9486, 128
        $region96: #{tpu_custom_call.1} parent=87 // pred_fallthru
          _
        // Predicated region
        $region97: #{tpu_custom_call.1} parent=87 // pred_check
          %p9491 = pneg %p386
        $region98: #{tpu_custom_call.1} parent=87 // pred_check_branch
          %9493 = sbr.rel (%p9491) target = $region100
        $region99: #{tpu_custom_call.1} parent=87 // pred_region
          %s9494 = sand.u32 %s38, 1
          %s9495 = scalar_lea.sflag [#allocation15], %s9494
          %s9496 = sand.u32 %s371, 1
          %s9497 = smul.addr %s9496, 8
          %s9498 = scalar_lea.vmem [#allocation16], %s9497
          %9499 = dma.done %s9495, 128
        $region100: #{tpu_custom_call.1} parent=87 // pred_fallthru
          _
      $region88: #{tpu_custom_call.1} parent=5 // pred_fallthru
        _
    $region6: #{tpu_custom_call.1} parent=1 // loop_footer
      %s36 = sadd.s32 1, %s32
    $region7: #{tpu_custom_call.1} parent=1 // loop_footer_branch
      %31 = sbr.rel target = $region3
    $region8: #{tpu_custom_call.1} parent=1 // loop_exit
      _
    %9500 = vsyncpa [#allocation5], 1
    %s9501 = scalar_lea.sflag [#allocation5], 1
    %9502 = vsyncpa %s9501, 1
    %9503 = vsyncpa [#allocation8], 1
    %s9504 = scalar_lea.sflag [#allocation8], 1
    %9505 = vsyncpa %s9504, 1
    %9506 = vsyncpa [#allocation11], 1
    %s9507 = scalar_lea.sflag [#allocation11], 1
    %9508 = vsyncpa %s9507, 1
    %9509 = vsyncpa [#allocation6], 1
    %s9510 = scalar_lea.sflag [#allocation6], 1
    %9511 = vsyncpa %s9510, 1
    %9512 = vsyncpa [#allocation15], 1
    %s9513 = scalar_lea.sflag [#allocation15], 1
    %9514 = vsyncpa %s9513, 1

</llo_original>
